<compile_context>
chip_gen: v7x
topology: tpu7x:2x2x1
jax: 0.10.0
libtpu: 0.0.40
codegen_flags: <defaults>
</compile_context>

<pallas_src>
import functools

import jax
import jax.numpy as jnp
from jax import lax
from jax.experimental import pallas as pl
from jax.experimental.pallas import tpu as pltpu

BN_EPS = 1e-5

# (kernel_size, in_channels, out_channels, input_spatial) per conv block.
# Input spatial is 24x24 so conv3's pooled output flattens to 288 = 32*3*3,
# matching nn.Linear(288, 256).
_CONVS = ((2, 3, 64, 24), (2, 64, 128, 12), (4, 128, 32, 6))
_FC1, _FC2 = 256, 10


def _same_pad(k):
    # PyTorch padding='same' (stride 1): total = k-1, left = total//2, rest right.
    total = k - 1
    lo = total // 2
    return lo, total - lo


def _round8(x):
    return (x + 7) // 8 * 8


# ------------------------- fused Pallas forward ------------------------------

def make_cnn_call(n_pad, nb):
    """Builds the fused pallas_call: grid over the batch, `nb` samples/step."""
    (k1, c0, c1, h1), (k2, _, c2, h2), (k3, _, c3, h3) = _CONVS
    # conv1 reads a wrapper-built im2col on the *unpadded* 24x24 grid:
    # per-sample row stride 576 (a multiple of 8 already).
    st1 = h1 * h1
    # conv2 / conv3 read zero-padded pixel-row buffers ('same' pad baked in).
    wp2, wp3 = h2 + k2 - 1, h3 + k3 - 1               # 13, 9
    lo2, lo3 = _same_pad(k2)[0], _same_pad(k3)[0]     # 0, 1
    st2, st3 = _round8(wp2 * wp2), _round8(wp3 * wp3)  # 176, 88 (sublane aligned)
    hf = h3 // 2                                      # 3
    nfc = c3 * hf * hf                                # 288
    kk1, kk2, kk3 = k1 * k1 * c0, k2 * k2 * c1, k3 * k3 * c2   # 12, 256, 2048

    def conv_rows(stride, wp, h):
        # conv-output rows needed on a width-`wp` row grid (junk rows between
        # samples / at image-row wraps are computed but never read).
        return (nb - 1) * stride + (h - 1) * (wp + 1) + 1

    m1 = conv_rows(st1, h1, h1)
    m2 = conv_rows(st2, wp2, h2)
    m3 = conv_rows(st3, wp3, h3)

    def pool_compact(acc, ws_ref, wp, h, stride, shift_ref, emit):
        """2x2/2 max-pool of conv output `acc` (rows on a width-`wp` grid with
        per-sample stride `stride`), fully vectorized, parked in ws_ref; then
        per pool-row a stride-2 compaction read + folded-BN shift + ReLU,
        handed to `emit(sample, pool_row, (wo, C) f32 block)`."""
        ho = wo = h // 2
        L = (nb - 1) * stride + 2 * (ho - 1) * wp + 2 * (wo - 1) + 1
        pooled = jnp.maximum(
            jnp.maximum(acc[0:L], acc[1:L + 1]),                 # W neighbours
            jnp.maximum(acc[wp:L + wp], acc[wp + 1:L + wp + 1]))  # H neighbours
        ws_ref[pl.ds(0, L), :] = pooled
        shift = shift_ref[...]
        for s in range(nb):
            for a in range(ho):
                row = ws_ref[pl.ds(s * stride + 2 * a * wp, wo, stride=2), :]
                emit(s, a, jnp.maximum(row + shift, 0.0))

    def kernel(x_ref, w1_ref, s1_ref, w2_ref, s2_ref, w3_ref, s3_ref,
               fw1_ref, fs1_ref, fw2_ref, fb2_ref, o_ref,
               ws1, ws2, ws3, p2, p3, i2c2, i2c3, fcb):
        # Compaction only writes interior rows, so the 'same'-padding border of
        # the conv2/conv3 input buffers must be zero at every grid step.
        p2[...] = jnp.zeros_like(p2)
        p3[...] = jnp.zeros_like(p3)

        # ---------------- conv1: one wide-K bf16 dot (K = 12) ----------------
        acc1 = jnp.dot(x_ref[...], w1_ref[...],
                       preferred_element_type=jnp.float32)

        def emit_p2(s, a, blk):                       # blk: (12, 64) f32
            p2[pl.ds(s * st2 + (lo2 + a) * wp2 + lo2, h2), :] = blk
        pool_compact(acc1, ws1, h1, h1, st1, s1_ref, emit_p2)

        # -------- conv2: 4 taps fused along K (K = 256) via im2col ----------
        for t, (kh, kw) in enumerate((kh, kw) for kh in range(k2)
                                     for kw in range(k2)):
            i2c2[pl.ds(0, m2), pl.ds(t * c1, c1)] = (
                p2[pl.ds(kh * wp2 + kw, m2), :].astype(jnp.bfloat16))
        acc2 = jnp.dot(i2c2[pl.ds(0, m2), :], w2_ref[...],
                       preferred_element_type=jnp.float32)

        def emit_p3(s, a, blk):                       # blk: (6, 128) f32
            p3[pl.ds(s * st3 + (lo3 + a) * wp3 + lo3, h3), :] = blk
        pool_compact(acc2, ws2, wp2, h2, st2, s2_ref, emit_p3)

        # -------- conv3: 16 taps fused along K (K = 2048) via im2col --------
        for t, (kh, kw) in enumerate((kh, kw) for kh in range(k3)
                                     for kw in range(k3)):
            i2c3[pl.ds(0, m3), pl.ds(t * c2, c2)] = (
                p3[pl.ds(kh * wp3 + kw, m3), :].astype(jnp.bfloat16))
        acc3 = jnp.dot(i2c3[pl.ds(0, m3), :], w3_ref[...],
                       preferred_element_type=jnp.float32)

        def emit_fc(s, a, blk):                       # blk: (3, 32) f32
            # NHWC-flatten order (fc1 weight rows were permuted to match).
            for b in range(hf):
                fcb[pl.ds(s, 1), pl.ds((a * hf + b) * c3, c3)] = blk[b:b + 1, :]
        pool_compact(acc3, ws3, wp3, h3, st3, s3_ref, emit_fc)

        # ------ fc1 (+ BN1d shift + ReLU) and fc2: dense K=288/256 dots -----
        hid = jnp.dot(fcb[...].astype(jnp.bfloat16), fw1_ref[...],
                      preferred_element_type=jnp.float32)
        hid = jnp.maximum(hid + fs1_ref[...], 0.0)
        out = jnp.dot(hid.astype(jnp.bfloat16), fw2_ref[...],
                      preferred_element_type=jnp.float32) + fb2_ref[...]
        o_ref[...] = out                              # single (nb, 10) store

    def full(shape):
        return pl.BlockSpec(shape, lambda i: (0,) * len(shape))

    conv_flops = sum(2 * h * h * k * k * cin * cout
                     for (k, cin, cout, h) in _CONVS)
    fc_flops = 2 * (nfc * _FC1 + _FC1 * _FC2)
    bytes_acc = (n_pad * st1 * kk1 * 2                                 # input
                 + (kk1 * c1 + kk2 * c2 + kk3 * c3
                    + nfc * _FC1 + _FC1 * _FC2) * 2                    # weights
                 + n_pad * _FC2 * 4)                                   # logits
    cost = pl.CostEstimate(flops=(conv_flops + fc_flops) * n_pad,
                           transcendentals=0, bytes_accessed=bytes_acc)

    return pl.pallas_call(
        kernel,
        out_shape=jax.ShapeDtypeStruct((n_pad, _FC2), jnp.float32),
        grid_spec=pltpu.PrefetchScalarGridSpec(
            num_scalar_prefetch=0,
            grid=(n_pad // nb,),
            in_specs=[
                pl.BlockSpec((nb * st1, kk1), lambda i: (i, 0)),  # conv1 im2col
                full((kk1, c1)), full((1, c1)),                   # w1, shift1
                full((kk2, c2)), full((1, c2)),                   # w2, shift2
                full((kk3, c3)), full((1, c3)),                   # w3, shift3
                full((nfc, _FC1)), full((1, _FC1)),               # fc1 w, shift
                full((_FC1, _FC2)), full((1, _FC2)),              # fc2 w, bias
            ],
            out_specs=pl.BlockSpec((nb, _FC2), lambda i: (i, 0)),
            scratch_shapes=[
                pltpu.VMEM((nb * st1, c1), jnp.float32),          # ws1 pooled c1
                pltpu.VMEM((nb * st2, c2), jnp.float32),          # ws2 pooled c2
                pltpu.VMEM((nb * st3, c3), jnp.float32),          # ws3 pooled c3
                pltpu.VMEM((nb * st2, c1), jnp.float32),          # p2 padded in
                pltpu.VMEM((nb * st3, c2), jnp.float32),          # p3 padded in
                pltpu.VMEM((nb * st2, kk2), jnp.bfloat16),        # conv2 im2col
                pltpu.VMEM((nb * st3, kk3), jnp.bfloat16),        # conv3 im2col
                pltpu.VMEM((nb, nfc), jnp.float32),               # fc input rows
            ]),
        compiler_params=pltpu.CompilerParams(
            dimension_semantics=("parallel",),
            vmem_limit_bytes=32 * 1024 * 1024),
        cost_estimate=cost,
    )


# ---------------------------- parameters -------------------------------------

def init_params(key):
    def uniform(k, shape, fan_in):
        bound = 1.0 / float(fan_in) ** 0.5
        return jax.random.uniform(k, shape, jnp.float32, -bound, bound)

    keys = jax.random.split(key, 10)
    params = {}
    for i, (k, cin, cout, _) in enumerate(_CONVS):
        fan_in = cin * k * k
        w = uniform(keys[2 * i], (k, k, cin, cout), fan_in)       # HWIO
        b = uniform(keys[2 * i + 1], (cout,), fan_in)
        # BatchNorm2d eval defaults: gamma=1, beta=0, mean=0, var=1.
        bn_scale = jnp.ones((cout,), jnp.float32) / jnp.sqrt(1.0 + BN_EPS)
        params[f'conv{i + 1}_w'] = w
        params[f'conv{i + 1}_scale'] = bn_scale
        params[f'conv{i + 1}_shift'] = b * bn_scale
    # fc1: Linear(288, 256) stored transposed (288, 256), rows in CHW order.
    params['fc1_w'] = uniform(keys[6], (288, _FC1), 288)
    fc1_b = uniform(keys[7], (_FC1,), 288)
    bn_scale = jnp.ones((_FC1,), jnp.float32) / jnp.sqrt(1.0 + BN_EPS)
    params['fc1_scale'] = bn_scale
    params['fc1_shift'] = fc1_b * bn_scale
    # fc2: Linear(256, 10)
    params['fc2_w'] = uniform(keys[8], (_FC1, _FC2), _FC1)
    params['fc2_b'] = uniform(keys[9], (_FC2,), _FC1)
    return params


def prepare_kernel_params(params):
    """One-time prep (outside the hot path): fold BN scales into the weights,
    permute fc1 rows from NCHW-flatten to NHWC-flatten order, cast all matmul
    operands to bfloat16 (shifts/biases stay f32)."""
    (_, _, _, _), (_, _, _, _), (k3, _, c3, h3) = _CONVS
    hf = h3 // 2
    kp = {}
    for i, (k, cin, cout, _) in enumerate(_CONVS, start=1):
        w = params[f'conv{i}_w'] * params[f'conv{i}_scale']        # fold BN scale
        kp[f'w{i}'] = w.reshape(k * k * cin, cout).astype(jnp.bfloat16)
        kp[f's{i}'] = params[f'conv{i}_shift'].reshape(1, cout).astype(jnp.float32)
    # fc1 rows: PyTorch (C,H,W)-flatten -> kernel's (H,W,C) order; fold BN1d scale.
    fw1 = params['fc1_w'].reshape(c3, hf, hf, _FC1).transpose(1, 2, 0, 3)
    fw1 = fw1.reshape(c3 * hf * hf, _FC1) * params['fc1_scale'][None, :]
    kp['fw1'] = fw1.astype(jnp.bfloat16)
    kp['fs1'] = params['fc1_shift'].reshape(1, -1).astype(jnp.float32)
    kp['fw2'] = params['fc2_w'].astype(jnp.bfloat16)
    kp['fb2'] = params['fc2_b'].reshape(1, -1).astype(jnp.float32)
    return kp


# ------------------------------ forward ---------------------------------------

def _conv1_im2col(x_nchw):
    """NCHW -> per-pixel (kh, kw, c) patches for the k=2 'same' conv1."""
    k1, c0, _, h1 = _CONVS[0]
    lo, hi = _same_pad(k1)                                        # (0, 1)
    x = jnp.transpose(x_nchw, (0, 2, 3, 1)).astype(jnp.float32)   # NHWC
    xp = jnp.pad(x, ((0, 0), (lo, hi), (lo, hi), (0, 0)))
    taps = [xp[:, kh:kh + h1, kw:kw + h1, :]
            for kh in range(k1) for kw in range(k1)]
    patches = jnp.concatenate(taps, axis=-1)                      # (N, 24, 24, 12)
    return patches.reshape(x_nchw.shape[0], h1 * h1, k1 * k1 * c0)


@functools.partial(jax.jit, static_argnames=("block_n",))
def cnn_forward(kparams, x_nchw, block_n=8):
    n = x_nchw.shape[0]
    nb = n if n <= block_n else block_n          # block_n is a multiple of 8
    n_pad = ((n + nb - 1) // nb) * nb
    xi = _conv1_im2col(x_nchw).astype(jnp.bfloat16)
    if n_pad != n:
        xi = jnp.pad(xi, ((0, n_pad - n), (0, 0), (0, 0)))
    xi = xi.reshape(n_pad * xi.shape[1], xi.shape[2])
    out = make_cnn_call(n_pad, nb)(
        xi,
        kparams['w1'], kparams['s1'],
        kparams['w2'], kparams['s2'],
        kparams['w3'], kparams['s3'],
        kparams['fw1'], kparams['fs1'], kparams['fw2'], kparams['fb2'])
    return out[:n]


# --------------------------- pure-JAX reference --------------------------------

def reference_forward(params, x_nchw):
    x = jnp.transpose(x_nchw, (0, 2, 3, 1)).astype(jnp.float32)
    for i in (1, 2, 3):
        w = params[f'conv{i}_w']
        k = w.shape[0]
        lo, hi = _same_pad(k)
        z = lax.conv_general_dilated(
            x, w, window_strides=(1, 1), padding=((lo, hi), (lo, hi)),
            dimension_numbers=('NHWC', 'HWIO', 'NHWC'),
            precision=lax.Precision.HIGHEST)
        z = jnp.maximum(z * params[f'conv{i}_scale'] + params[f'conv{i}_shift'], 0.0)
        x = lax.reduce_window(z, -jnp.inf, lax.max,
                              (1, 2, 2, 1), (1, 2, 2, 1), 'VALID')
    n = x.shape[0]
    x = jnp.transpose(x, (0, 3, 1, 2)).reshape(n, -1)             # PyTorch flatten
    h = jnp.maximum((x @ params['fc1_w']) * params['fc1_scale']
                    + params['fc1_shift'], 0.0)
    return h @ params['fc2_w'] + params['fc2_b']


if __name__ == "__main__":
    key = jax.random.PRNGKey(0)
    pkey, xkey = jax.random.split(key)
    params = init_params(pkey)
    kparams = prepare_kernel_params(params)
    # fc1 expects 288 = 32*3*3 features -> input spatial 24x24 (3 pools of /2),
    # 3 channels, NCHW like PyTorch.
    x = jax.random.normal(xkey, (2, 3, 24, 24), jnp.float32)
    out = jax.block_until_ready(cnn_forward(kparams, x))
    assert out.shape == (2, 10), out.shape
    ref = reference_forward(params, x)
    if not jnp.allclose(out, ref, rtol=5e-2, atol=5e-2):
        raise AssertionError(
            f"kernel/reference mismatch, max abs err = {jnp.max(jnp.abs(out - ref))}")
    print("KERNEL_OK")
</pallas_src>

<mosaic_0001>
module attributes {stable_mosaic.version = 11 : i64} {
  func.func @kernel(%arg0: i32, %arg1: memref<1152x12xbf16, #tpu.memory_space<vmem>>, %arg2: memref<12x64xbf16, #tpu.memory_space<vmem>>, %arg3: memref<1x64xf32, #tpu.memory_space<vmem>>, %arg4: memref<256x128xbf16, #tpu.memory_space<vmem>>, %arg5: memref<1x128xf32, #tpu.memory_space<vmem>>, %arg6: memref<2048x32xbf16, #tpu.memory_space<vmem>>, %arg7: memref<1x32xf32, #tpu.memory_space<vmem>>, %arg8: memref<288x256xbf16, #tpu.memory_space<vmem>>, %arg9: memref<1x256xf32, #tpu.memory_space<vmem>>, %arg10: memref<256x10xbf16, #tpu.memory_space<vmem>>, %arg11: memref<1x10xf32, #tpu.memory_space<vmem>>, %arg12: memref<2x10xf32, #tpu.memory_space<vmem>>, %arg13: memref<1152x64xf32, #tpu.memory_space<vmem>>, %arg14: memref<352x128xf32, #tpu.memory_space<vmem>>, %arg15: memref<176x32xf32, #tpu.memory_space<vmem>>, %arg16: memref<352x64xf32, #tpu.memory_space<vmem>>, %arg17: memref<176x128xf32, #tpu.memory_space<vmem>>, %arg18: memref<352x256xbf16, #tpu.memory_space<vmem>>, %arg19: memref<176x2048xbf16, #tpu.memory_space<vmem>>, %arg20: memref<2x288xf32, #tpu.memory_space<vmem>>) attributes {dimension_semantics = [#tpu.dimension_semantics<parallel>], iteration_bounds = array<i64: 1>, scalar_prefetch = 0 : i64, scratch_operands = 8 : i64, tpu.core_type = #tpu.core_type<tc>, window_params = [{transform_indices = @transform_0, window_bounds = array<i64: 1152, 12>}, {pipeline_mode = #tpu.pipeline_mode<synchronous>, transform_indices = @transform_1, window_bounds = array<i64: 12, 64>}, {pipeline_mode = #tpu.pipeline_mode<synchronous>, transform_indices = @transform_2, window_bounds = array<i64: 1, 64>}, {pipeline_mode = #tpu.pipeline_mode<synchronous>, transform_indices = @transform_3, window_bounds = array<i64: 256, 128>}, {pipeline_mode = #tpu.pipeline_mode<synchronous>, transform_indices = @transform_4, window_bounds = array<i64: 1, 128>}, {pipeline_mode = #tpu.pipeline_mode<synchronous>, transform_indices = @transform_5, window_bounds = array<i64: 2048, 32>}, {pipeline_mode = #tpu.pipeline_mode<synchronous>, transform_indices = @transform_6, window_bounds = array<i64: 1, 32>}, {pipeline_mode = #tpu.pipeline_mode<synchronous>, transform_indices = @transform_7, window_bounds = array<i64: 288, 256>}, {pipeline_mode = #tpu.pipeline_mode<synchronous>, transform_indices = @transform_8, window_bounds = array<i64: 1, 256>}, {pipeline_mode = #tpu.pipeline_mode<synchronous>, transform_indices = @transform_9, window_bounds = array<i64: 256, 10>}, {pipeline_mode = #tpu.pipeline_mode<synchronous>, transform_indices = @transform_10, window_bounds = array<i64: 1, 10>}, {transform_indices = @transform_11, window_bounds = array<i64: 2, 10>}]} {
    %cst = arith.constant 0.000000e+00 : f32
    %0 = vector.broadcast %cst : f32 to vector<352x64xf32>
    %c0 = arith.constant 0 : index
    %c0_0 = arith.constant 0 : index
    %1 = vector.load %arg16[%c0, %c0_0] : memref<352x64xf32, #tpu.memory_space<vmem>>, vector<352x64xf32>
    tpu.vector_store %arg16[%c0, %c0_0], %0 {strides = array<i32>} : memref<352x64xf32, #tpu.memory_space<vmem>>, vector<352x64xf32>,
    %cst_1 = arith.constant 0.000000e+00 : f32
    %2 = vector.broadcast %cst_1 : f32 to vector<176x128xf32>
    %c0_2 = arith.constant 0 : index
    %c0_3 = arith.constant 0 : index
    %3 = vector.load %arg17[%c0_2, %c0_3] : memref<176x128xf32, #tpu.memory_space<vmem>>, vector<176x128xf32>
    tpu.vector_store %arg17[%c0_2, %c0_3], %2 {strides = array<i32>} : memref<176x128xf32, #tpu.memory_space<vmem>>, vector<176x128xf32>,
    %c0_4 = arith.constant 0 : index
    %c0_5 = arith.constant 0 : index
    %4 = vector.load %arg1[%c0_4, %c0_5] : memref<1152x12xbf16, #tpu.memory_space<vmem>>, vector<1152x12xbf16>
    %c0_6 = arith.constant 0 : index
    %c0_7 = arith.constant 0 : index
    %5 = vector.load %arg2[%c0_6, %c0_7] : memref<12x64xbf16, #tpu.memory_space<vmem>>, vector<12x64xbf16>
    %cst_8 = arith.constant dense<0.000000e+00> : vector<1152x64xf32>
    %6 = tpu.matmul %4, %5, %cst_8 {dimension_numbers = #tpu.dot_dimension_numbers<[1], [0], [0], [1], [0, 0, 1, 1], [], []>} : vector<1152x12xbf16>, vector<12x64xbf16>, vector<1152x64xf32> -> vector<1152x64xf32>
    %7 = vector.extract_strided_slice %6 {offsets = [0, 0], sizes = [1127, 64], strides = [1, 1]} : vector<1152x64xf32> to vector<1127x64xf32>
    %8 = vector.extract_strided_slice %6 {offsets = [1, 0], sizes = [1127, 64], strides = [1, 1]} : vector<1152x64xf32> to vector<1127x64xf32>
    %9 = arith.maximumf %7, %8 : vector<1127x64xf32>
    %10 = vector.extract_strided_slice %6 {offsets = [24, 0], sizes = [1127, 64], strides = [1, 1]} : vector<1152x64xf32> to vector<1127x64xf32>
    %11 = vector.extract_strided_slice %6 {offsets = [25, 0], sizes = [1127, 64], strides = [1, 1]} : vector<1152x64xf32> to vector<1127x64xf32>
    %12 = arith.maximumf %10, %11 : vector<1127x64xf32>
    %13 = arith.maximumf %9, %12 : vector<1127x64xf32>
    %c0_9 = arith.constant 0 : index
    %c0_10 = arith.constant 0 : index
    %14 = vector.load %arg13[%c0_9, %c0_10] : memref<1152x64xf32, #tpu.memory_space<vmem>>, vector<1127x64xf32>
    tpu.vector_store %arg13[%c0_9, %c0_10], %13 {strides = array<i32>} : memref<1152x64xf32, #tpu.memory_space<vmem>>, vector<1127x64xf32>,
    %c0_11 = arith.constant 0 : index
    %c0_12 = arith.constant 0 : index
    %15 = vector.load %arg3[%c0_11, %c0_12] : memref<1x64xf32, #tpu.memory_space<vmem>>, vector<1x64xf32>
    %c0_13 = arith.constant 0 : index
    %c0_14 = arith.constant 0 : index
    %16 = tpu.strided_load %arg13[%c0_13, %c0_14] {strides = array<i32: 2, 1>} : memref<1152x64xf32, #tpu.memory_space<vmem>>, vector<12x64xf32>
    %17 = vector.broadcast %15 : vector<1x64xf32> to vector<12x64xf32>
    %18 = arith.addf %16, %17 : vector<12x64xf32>
    %cst_15 = arith.constant 0.000000e+00 : f32
    %19 = vector.broadcast %cst_15 : f32 to vector<12x64xf32>
    %20 = arith.maximumf %18, %19 : vector<12x64xf32>
    %c0_16 = arith.constant 0 : index
    %c0_17 = arith.constant 0 : index
    %21 = vector.load %arg16[%c0_16, %c0_17] : memref<352x64xf32, #tpu.memory_space<vmem>>, vector<12x64xf32>
    tpu.vector_store %arg16[%c0_16, %c0_17], %20 {strides = array<i32>} : memref<352x64xf32, #tpu.memory_space<vmem>>, vector<12x64xf32>,
    %c48 = arith.constant 48 : index
    %c0_18 = arith.constant 0 : index
    %22 = tpu.strided_load %arg13[%c48, %c0_18] {strides = array<i32: 2, 1>} : memref<1152x64xf32, #tpu.memory_space<vmem>>, vector<12x64xf32>
    %23 = vector.broadcast %15 : vector<1x64xf32> to vector<12x64xf32>
    %24 = arith.addf %22, %23 : vector<12x64xf32>
    %cst_19 = arith.constant 0.000000e+00 : f32
    %25 = vector.broadcast %cst_19 : f32 to vector<12x64xf32>
    %26 = arith.maximumf %24, %25 : vector<12x64xf32>
    %c13 = arith.constant 13 : index
    %c0_20 = arith.constant 0 : index
    %27 = vector.load %arg16[%c13, %c0_20] : memref<352x64xf32, #tpu.memory_space<vmem>>, vector<12x64xf32>
    tpu.vector_store %arg16[%c13, %c0_20], %26 {strides = array<i32>} : memref<352x64xf32, #tpu.memory_space<vmem>>, vector<12x64xf32>,
    %c96 = arith.constant 96 : index
    %c0_21 = arith.constant 0 : index
    %28 = tpu.strided_load %arg13[%c96, %c0_21] {strides = array<i32: 2, 1>} : memref<1152x64xf32, #tpu.memory_space<vmem>>, vector<12x64xf32>
    %29 = vector.broadcast %15 : vector<1x64xf32> to vector<12x64xf32>
    %30 = arith.addf %28, %29 : vector<12x64xf32>
    %cst_22 = arith.constant 0.000000e+00 : f32
    %31 = vector.broadcast %cst_22 : f32 to vector<12x64xf32>
    %32 = arith.maximumf %30, %31 : vector<12x64xf32>
    %c26 = arith.constant 26 : index
    %c0_23 = arith.constant 0 : index
    %33 = vector.load %arg16[%c26, %c0_23] : memref<352x64xf32, #tpu.memory_space<vmem>>, vector<12x64xf32>
    tpu.vector_store %arg16[%c26, %c0_23], %32 {strides = array<i32>} : memref<352x64xf32, #tpu.memory_space<vmem>>, vector<12x64xf32>,
    %c144 = arith.constant 144 : index
    %c0_24 = arith.constant 0 : index
    %34 = tpu.strided_load %arg13[%c144, %c0_24] {strides = array<i32: 2, 1>} : memref<1152x64xf32, #tpu.memory_space<vmem>>, vector<12x64xf32>
    %35 = vector.broadcast %15 : vector<1x64xf32> to vector<12x64xf32>
    %36 = arith.addf %34, %35 : vector<12x64xf32>
    %cst_25 = arith.constant 0.000000e+00 : f32
    %37 = vector.broadcast %cst_25 : f32 to vector<12x64xf32>
    %38 = arith.maximumf %36, %37 : vector<12x64xf32>
    %c39 = arith.constant 39 : index
    %c0_26 = arith.constant 0 : index
    %39 = vector.load %arg16[%c39, %c0_26] : memref<352x64xf32, #tpu.memory_space<vmem>>, vector<12x64xf32>
    tpu.vector_store %arg16[%c39, %c0_26], %38 {strides = array<i32>} : memref<352x64xf32, #tpu.memory_space<vmem>>, vector<12x64xf32>,
    %c192 = arith.constant 192 : index
    %c0_27 = arith.constant 0 : index
    %40 = tpu.strided_load %arg13[%c192, %c0_27] {strides = array<i32: 2, 1>} : memref<1152x64xf32, #tpu.memory_space<vmem>>, vector<12x64xf32>
    %41 = vector.broadcast %15 : vector<1x64xf32> to vector<12x64xf32>
    %42 = arith.addf %40, %41 : vector<12x64xf32>
    %cst_28 = arith.constant 0.000000e+00 : f32
    %43 = vector.broadcast %cst_28 : f32 to vector<12x64xf32>
    %44 = arith.maximumf %42, %43 : vector<12x64xf32>
    %c52 = arith.constant 52 : index
    %c0_29 = arith.constant 0 : index
    %45 = vector.load %arg16[%c52, %c0_29] : memref<352x64xf32, #tpu.memory_space<vmem>>, vector<12x64xf32>
    tpu.vector_store %arg16[%c52, %c0_29], %44 {strides = array<i32>} : memref<352x64xf32, #tpu.memory_space<vmem>>, vector<12x64xf32>,
    %c240 = arith.constant 240 : index
    %c0_30 = arith.constant 0 : index
    %46 = tpu.strided_load %arg13[%c240, %c0_30] {strides = array<i32: 2, 1>} : memref<1152x64xf32, #tpu.memory_space<vmem>>, vector<12x64xf32>
    %47 = vector.broadcast %15 : vector<1x64xf32> to vector<12x64xf32>
    %48 = arith.addf %46, %47 : vector<12x64xf32>
    %cst_31 = arith.constant 0.000000e+00 : f32
    %49 = vector.broadcast %cst_31 : f32 to vector<12x64xf32>
    %50 = arith.maximumf %48, %49 : vector<12x64xf32>
    %c65 = arith.constant 65 : index
    %c0_32 = arith.constant 0 : index
    %51 = vector.load %arg16[%c65, %c0_32] : memref<352x64xf32, #tpu.memory_space<vmem>>, vector<12x64xf32>
    tpu.vector_store %arg16[%c65, %c0_32], %50 {strides = array<i32>} : memref<352x64xf32, #tpu.memory_space<vmem>>, vector<12x64xf32>,
    %c288 = arith.constant 288 : index
    %c0_33 = arith.constant 0 : index
    %52 = tpu.strided_load %arg13[%c288, %c0_33] {strides = array<i32: 2, 1>} : memref<1152x64xf32, #tpu.memory_space<vmem>>, vector<12x64xf32>
    %53 = vector.broadcast %15 : vector<1x64xf32> to vector<12x64xf32>
    %54 = arith.addf %52, %53 : vector<12x64xf32>
    %cst_34 = arith.constant 0.000000e+00 : f32
    %55 = vector.broadcast %cst_34 : f32 to vector<12x64xf32>
    %56 = arith.maximumf %54, %55 : vector<12x64xf32>
    %c78 = arith.constant 78 : index
    %c0_35 = arith.constant 0 : index
    %57 = vector.load %arg16[%c78, %c0_35] : memref<352x64xf32, #tpu.memory_space<vmem>>, vector<12x64xf32>
    tpu.vector_store %arg16[%c78, %c0_35], %56 {strides = array<i32>} : memref<352x64xf32, #tpu.memory_space<vmem>>, vector<12x64xf32>,
    %c336 = arith.constant 336 : index
    %c0_36 = arith.constant 0 : index
    %58 = tpu.strided_load %arg13[%c336, %c0_36] {strides = array<i32: 2, 1>} : memref<1152x64xf32, #tpu.memory_space<vmem>>, vector<12x64xf32>
    %59 = vector.broadcast %15 : vector<1x64xf32> to vector<12x64xf32>
    %60 = arith.addf %58, %59 : vector<12x64xf32>
    %cst_37 = arith.constant 0.000000e+00 : f32
    %61 = vector.broadcast %cst_37 : f32 to vector<12x64xf32>
    %62 = arith.maximumf %60, %61 : vector<12x64xf32>
    %c91 = arith.constant 91 : index
    %c0_38 = arith.constant 0 : index
    %63 = vector.load %arg16[%c91, %c0_38] : memref<352x64xf32, #tpu.memory_space<vmem>>, vector<12x64xf32>
    tpu.vector_store %arg16[%c91, %c0_38], %62 {strides = array<i32>} : memref<352x64xf32, #tpu.memory_space<vmem>>, vector<12x64xf32>,
    %c384 = arith.constant 384 : index
    %c0_39 = arith.constant 0 : index
    %64 = tpu.strided_load %arg13[%c384, %c0_39] {strides = array<i32: 2, 1>} : memref<1152x64xf32, #tpu.memory_space<vmem>>, vector<12x64xf32>
    %65 = vector.broadcast %15 : vector<1x64xf32> to vector<12x64xf32>
    %66 = arith.addf %64, %65 : vector<12x64xf32>
    %cst_40 = arith.constant 0.000000e+00 : f32
    %67 = vector.broadcast %cst_40 : f32 to vector<12x64xf32>
    %68 = arith.maximumf %66, %67 : vector<12x64xf32>
    %c104 = arith.constant 104 : index
    %c0_41 = arith.constant 0 : index
    %69 = vector.load %arg16[%c104, %c0_41] : memref<352x64xf32, #tpu.memory_space<vmem>>, vector<12x64xf32>
    tpu.vector_store %arg16[%c104, %c0_41], %68 {strides = array<i32>} : memref<352x64xf32, #tpu.memory_space<vmem>>, vector<12x64xf32>,
    %c432 = arith.constant 432 : index
    %c0_42 = arith.constant 0 : index
    %70 = tpu.strided_load %arg13[%c432, %c0_42] {strides = array<i32: 2, 1>} : memref<1152x64xf32, #tpu.memory_space<vmem>>, vector<12x64xf32>
    %71 = vector.broadcast %15 : vector<1x64xf32> to vector<12x64xf32>
    %72 = arith.addf %70, %71 : vector<12x64xf32>
    %cst_43 = arith.constant 0.000000e+00 : f32
    %73 = vector.broadcast %cst_43 : f32 to vector<12x64xf32>
    %74 = arith.maximumf %72, %73 : vector<12x64xf32>
    %c117 = arith.constant 117 : index
    %c0_44 = arith.constant 0 : index
    %75 = vector.load %arg16[%c117, %c0_44] : memref<352x64xf32, #tpu.memory_space<vmem>>, vector<12x64xf32>
    tpu.vector_store %arg16[%c117, %c0_44], %74 {strides = array<i32>} : memref<352x64xf32, #tpu.memory_space<vmem>>, vector<12x64xf32>,
    %c480 = arith.constant 480 : index
    %c0_45 = arith.constant 0 : index
    %76 = tpu.strided_load %arg13[%c480, %c0_45] {strides = array<i32: 2, 1>} : memref<1152x64xf32, #tpu.memory_space<vmem>>, vector<12x64xf32>
    %77 = vector.broadcast %15 : vector<1x64xf32> to vector<12x64xf32>
    %78 = arith.addf %76, %77 : vector<12x64xf32>
    %cst_46 = arith.constant 0.000000e+00 : f32
    %79 = vector.broadcast %cst_46 : f32 to vector<12x64xf32>
    %80 = arith.maximumf %78, %79 : vector<12x64xf32>
    %c130 = arith.constant 130 : index
    %c0_47 = arith.constant 0 : index
    %81 = vector.load %arg16[%c130, %c0_47] : memref<352x64xf32, #tpu.memory_space<vmem>>, vector<12x64xf32>
    tpu.vector_store %arg16[%c130, %c0_47], %80 {strides = array<i32>} : memref<352x64xf32, #tpu.memory_space<vmem>>, vector<12x64xf32>,
    %c528 = arith.constant 528 : index
    %c0_48 = arith.constant 0 : index
    %82 = tpu.strided_load %arg13[%c528, %c0_48] {strides = array<i32: 2, 1>} : memref<1152x64xf32, #tpu.memory_space<vmem>>, vector<12x64xf32>
    %83 = vector.broadcast %15 : vector<1x64xf32> to vector<12x64xf32>
    %84 = arith.addf %82, %83 : vector<12x64xf32>
    %cst_49 = arith.constant 0.000000e+00 : f32
    %85 = vector.broadcast %cst_49 : f32 to vector<12x64xf32>
    %86 = arith.maximumf %84, %85 : vector<12x64xf32>
    %c143 = arith.constant 143 : index
    %c0_50 = arith.constant 0 : index
    %87 = vector.load %arg16[%c143, %c0_50] : memref<352x64xf32, #tpu.memory_space<vmem>>, vector<12x64xf32>
    tpu.vector_store %arg16[%c143, %c0_50], %86 {strides = array<i32>} : memref<352x64xf32, #tpu.memory_space<vmem>>, vector<12x64xf32>,
    %c576 = arith.constant 576 : index
    %c0_51 = arith.constant 0 : index
    %88 = tpu.strided_load %arg13[%c576, %c0_51] {strides = array<i32: 2, 1>} : memref<1152x64xf32, #tpu.memory_space<vmem>>, vector<12x64xf32>
    %89 = vector.broadcast %15 : vector<1x64xf32> to vector<12x64xf32>
    %90 = arith.addf %88, %89 : vector<12x64xf32>
    %cst_52 = arith.constant 0.000000e+00 : f32
    %91 = vector.broadcast %cst_52 : f32 to vector<12x64xf32>
    %92 = arith.maximumf %90, %91 : vector<12x64xf32>
    %c176 = arith.constant 176 : index
    %c0_53 = arith.constant 0 : index
    %93 = vector.load %arg16[%c176, %c0_53] : memref<352x64xf32, #tpu.memory_space<vmem>>, vector<12x64xf32>
    tpu.vector_store %arg16[%c176, %c0_53], %92 {strides = array<i32>} : memref<352x64xf32, #tpu.memory_space<vmem>>, vector<12x64xf32>,
    %c624 = arith.constant 624 : index
    %c0_54 = arith.constant 0 : index
    %94 = tpu.strided_load %arg13[%c624, %c0_54] {strides = array<i32: 2, 1>} : memref<1152x64xf32, #tpu.memory_space<vmem>>, vector<12x64xf32>
    %95 = vector.broadcast %15 : vector<1x64xf32> to vector<12x64xf32>
    %96 = arith.addf %94, %95 : vector<12x64xf32>
    %cst_55 = arith.constant 0.000000e+00 : f32
    %97 = vector.broadcast %cst_55 : f32 to vector<12x64xf32>
    %98 = arith.maximumf %96, %97 : vector<12x64xf32>
    %c189 = arith.constant 189 : index
    %c0_56 = arith.constant 0 : index
    %99 = vector.load %arg16[%c189, %c0_56] : memref<352x64xf32, #tpu.memory_space<vmem>>, vector<12x64xf32>
    tpu.vector_store %arg16[%c189, %c0_56], %98 {strides = array<i32>} : memref<352x64xf32, #tpu.memory_space<vmem>>, vector<12x64xf32>,
    %c672 = arith.constant 672 : index
    %c0_57 = arith.constant 0 : index
    %100 = tpu.strided_load %arg13[%c672, %c0_57] {strides = array<i32: 2, 1>} : memref<1152x64xf32, #tpu.memory_space<vmem>>, vector<12x64xf32>
    %101 = vector.broadcast %15 : vector<1x64xf32> to vector<12x64xf32>
    %102 = arith.addf %100, %101 : vector<12x64xf32>
    %cst_58 = arith.constant 0.000000e+00 : f32
    %103 = vector.broadcast %cst_58 : f32 to vector<12x64xf32>
    %104 = arith.maximumf %102, %103 : vector<12x64xf32>
    %c202 = arith.constant 202 : index
    %c0_59 = arith.constant 0 : index
    %105 = vector.load %arg16[%c202, %c0_59] : memref<352x64xf32, #tpu.memory_space<vmem>>, vector<12x64xf32>
    tpu.vector_store %arg16[%c202, %c0_59], %104 {strides = array<i32>} : memref<352x64xf32, #tpu.memory_space<vmem>>, vector<12x64xf32>,
    %c720 = arith.constant 720 : index
    %c0_60 = arith.constant 0 : index
    %106 = tpu.strided_load %arg13[%c720, %c0_60] {strides = array<i32: 2, 1>} : memref<1152x64xf32, #tpu.memory_space<vmem>>, vector<12x64xf32>
    %107 = vector.broadcast %15 : vector<1x64xf32> to vector<12x64xf32>
    %108 = arith.addf %106, %107 : vector<12x64xf32>
    %cst_61 = arith.constant 0.000000e+00 : f32
    %109 = vector.broadcast %cst_61 : f32 to vector<12x64xf32>
    %110 = arith.maximumf %108, %109 : vector<12x64xf32>
    %c215 = arith.constant 215 : index
    %c0_62 = arith.constant 0 : index
    %111 = vector.load %arg16[%c215, %c0_62] : memref<352x64xf32, #tpu.memory_space<vmem>>, vector<12x64xf32>
    tpu.vector_store %arg16[%c215, %c0_62], %110 {strides = array<i32>} : memref<352x64xf32, #tpu.memory_space<vmem>>, vector<12x64xf32>,
    %c768 = arith.constant 768 : index
    %c0_63 = arith.constant 0 : index
    %112 = tpu.strided_load %arg13[%c768, %c0_63] {strides = array<i32: 2, 1>} : memref<1152x64xf32, #tpu.memory_space<vmem>>, vector<12x64xf32>
    %113 = vector.broadcast %15 : vector<1x64xf32> to vector<12x64xf32>
    %114 = arith.addf %112, %113 : vector<12x64xf32>
    %cst_64 = arith.constant 0.000000e+00 : f32
    %115 = vector.broadcast %cst_64 : f32 to vector<12x64xf32>
    %116 = arith.maximumf %114, %115 : vector<12x64xf32>
    %c228 = arith.constant 228 : index
    %c0_65 = arith.constant 0 : index
    %117 = vector.load %arg16[%c228, %c0_65] : memref<352x64xf32, #tpu.memory_space<vmem>>, vector<12x64xf32>
    tpu.vector_store %arg16[%c228, %c0_65], %116 {strides = array<i32>} : memref<352x64xf32, #tpu.memory_space<vmem>>, vector<12x64xf32>,
    %c816 = arith.constant 816 : index
    %c0_66 = arith.constant 0 : index
    %118 = tpu.strided_load %arg13[%c816, %c0_66] {strides = array<i32: 2, 1>} : memref<1152x64xf32, #tpu.memory_space<vmem>>, vector<12x64xf32>
    %119 = vector.broadcast %15 : vector<1x64xf32> to vector<12x64xf32>
    %120 = arith.addf %118, %119 : vector<12x64xf32>
    %cst_67 = arith.constant 0.000000e+00 : f32
    %121 = vector.broadcast %cst_67 : f32 to vector<12x64xf32>
    %122 = arith.maximumf %120, %121 : vector<12x64xf32>
    %c241 = arith.constant 241 : index
    %c0_68 = arith.constant 0 : index
    %123 = vector.load %arg16[%c241, %c0_68] : memref<352x64xf32, #tpu.memory_space<vmem>>, vector<12x64xf32>
    tpu.vector_store %arg16[%c241, %c0_68], %122 {strides = array<i32>} : memref<352x64xf32, #tpu.memory_space<vmem>>, vector<12x64xf32>,
    %c864 = arith.constant 864 : index
    %c0_69 = arith.constant 0 : index
    %124 = tpu.strided_load %arg13[%c864, %c0_69] {strides = array<i32: 2, 1>} : memref<1152x64xf32, #tpu.memory_space<vmem>>, vector<12x64xf32>
    %125 = vector.broadcast %15 : vector<1x64xf32> to vector<12x64xf32>
    %126 = arith.addf %124, %125 : vector<12x64xf32>
    %cst_70 = arith.constant 0.000000e+00 : f32
    %127 = vector.broadcast %cst_70 : f32 to vector<12x64xf32>
    %128 = arith.maximumf %126, %127 : vector<12x64xf32>
    %c254 = arith.constant 254 : index
    %c0_71 = arith.constant 0 : index
    %129 = vector.load %arg16[%c254, %c0_71] : memref<352x64xf32, #tpu.memory_space<vmem>>, vector<12x64xf32>
    tpu.vector_store %arg16[%c254, %c0_71], %128 {strides = array<i32>} : memref<352x64xf32, #tpu.memory_space<vmem>>, vector<12x64xf32>,
    %c912 = arith.constant 912 : index
    %c0_72 = arith.constant 0 : index
    %130 = tpu.strided_load %arg13[%c912, %c0_72] {strides = array<i32: 2, 1>} : memref<1152x64xf32, #tpu.memory_space<vmem>>, vector<12x64xf32>
    %131 = vector.broadcast %15 : vector<1x64xf32> to vector<12x64xf32>
    %132 = arith.addf %130, %131 : vector<12x64xf32>
    %cst_73 = arith.constant 0.000000e+00 : f32
    %133 = vector.broadcast %cst_73 : f32 to vector<12x64xf32>
    %134 = arith.maximumf %132, %133 : vector<12x64xf32>
    %c267 = arith.constant 267 : index
    %c0_74 = arith.constant 0 : index
    %135 = vector.load %arg16[%c267, %c0_74] : memref<352x64xf32, #tpu.memory_space<vmem>>, vector<12x64xf32>
    tpu.vector_store %arg16[%c267, %c0_74], %134 {strides = array<i32>} : memref<352x64xf32, #tpu.memory_space<vmem>>, vector<12x64xf32>,
    %c960 = arith.constant 960 : index
    %c0_75 = arith.constant 0 : index
    %136 = tpu.strided_load %arg13[%c960, %c0_75] {strides = array<i32: 2, 1>} : memref<1152x64xf32, #tpu.memory_space<vmem>>, vector<12x64xf32>
    %137 = vector.broadcast %15 : vector<1x64xf32> to vector<12x64xf32>
    %138 = arith.addf %136, %137 : vector<12x64xf32>
    %cst_76 = arith.constant 0.000000e+00 : f32
    %139 = vector.broadcast %cst_76 : f32 to vector<12x64xf32>
    %140 = arith.maximumf %138, %139 : vector<12x64xf32>
    %c280 = arith.constant 280 : index
    %c0_77 = arith.constant 0 : index
    %141 = vector.load %arg16[%c280, %c0_77] : memref<352x64xf32, #tpu.memory_space<vmem>>, vector<12x64xf32>
    tpu.vector_store %arg16[%c280, %c0_77], %140 {strides = array<i32>} : memref<352x64xf32, #tpu.memory_space<vmem>>, vector<12x64xf32>,
    %c1008 = arith.constant 1008 : index
    %c0_78 = arith.constant 0 : index
    %142 = tpu.strided_load %arg13[%c1008, %c0_78] {strides = array<i32: 2, 1>} : memref<1152x64xf32, #tpu.memory_space<vmem>>, vector<12x64xf32>
    %143 = vector.broadcast %15 : vector<1x64xf32> to vector<12x64xf32>
    %144 = arith.addf %142, %143 : vector<12x64xf32>
    %cst_79 = arith.constant 0.000000e+00 : f32
    %145 = vector.broadcast %cst_79 : f32 to vector<12x64xf32>
    %146 = arith.maximumf %144, %145 : vector<12x64xf32>
    %c293 = arith.constant 293 : index
    %c0_80 = arith.constant 0 : index
    %147 = vector.load %arg16[%c293, %c0_80] : memref<352x64xf32, #tpu.memory_space<vmem>>, vector<12x64xf32>
    tpu.vector_store %arg16[%c293, %c0_80], %146 {strides = array<i32>} : memref<352x64xf32, #tpu.memory_space<vmem>>, vector<12x64xf32>,
    %c1056 = arith.constant 1056 : index
    %c0_81 = arith.constant 0 : index
    %148 = tpu.strided_load %arg13[%c1056, %c0_81] {strides = array<i32: 2, 1>} : memref<1152x64xf32, #tpu.memory_space<vmem>>, vector<12x64xf32>
    %149 = vector.broadcast %15 : vector<1x64xf32> to vector<12x64xf32>
    %150 = arith.addf %148, %149 : vector<12x64xf32>
    %cst_82 = arith.constant 0.000000e+00 : f32
    %151 = vector.broadcast %cst_82 : f32 to vector<12x64xf32>
    %152 = arith.maximumf %150, %151 : vector<12x64xf32>
    %c306 = arith.constant 306 : index
    %c0_83 = arith.constant 0 : index
    %153 = vector.load %arg16[%c306, %c0_83] : memref<352x64xf32, #tpu.memory_space<vmem>>, vector<12x64xf32>
    tpu.vector_store %arg16[%c306, %c0_83], %152 {strides = array<i32>} : memref<352x64xf32, #tpu.memory_space<vmem>>, vector<12x64xf32>,
    %c1104 = arith.constant 1104 : index
    %c0_84 = arith.constant 0 : index
    %154 = tpu.strided_load %arg13[%c1104, %c0_84] {strides = array<i32: 2, 1>} : memref<1152x64xf32, #tpu.memory_space<vmem>>, vector<12x64xf32>
    %155 = vector.broadcast %15 : vector<1x64xf32> to vector<12x64xf32>
    %156 = arith.addf %154, %155 : vector<12x64xf32>
    %cst_85 = arith.constant 0.000000e+00 : f32
    %157 = vector.broadcast %cst_85 : f32 to vector<12x64xf32>
    %158 = arith.maximumf %156, %157 : vector<12x64xf32>
    %c319 = arith.constant 319 : index
    %c0_86 = arith.constant 0 : index
    %159 = vector.load %arg16[%c319, %c0_86] : memref<352x64xf32, #tpu.memory_space<vmem>>, vector<12x64xf32>
    tpu.vector_store %arg16[%c319, %c0_86], %158 {strides = array<i32>} : memref<352x64xf32, #tpu.memory_space<vmem>>, vector<12x64xf32>,
    %c0_87 = arith.constant 0 : index
    %c0_88 = arith.constant 0 : index
    %160 = vector.load %arg16[%c0_87, %c0_88] : memref<352x64xf32, #tpu.memory_space<vmem>>, vector<331x64xf32>
    %161 = arith.truncf %160 : vector<331x64xf32> to vector<331x64xbf16>
    %c0_89 = arith.constant 0 : index
    %c0_90 = arith.constant 0 : index
    %162 = vector.load %arg18[%c0_89, %c0_90] : memref<352x256xbf16, #tpu.memory_space<vmem>>, vector<331x64xbf16>
    tpu.vector_store %arg18[%c0_89, %c0_90], %161 {strides = array<i32>} : memref<352x256xbf16, #tpu.memory_space<vmem>>, vector<331x64xbf16>,
    %c1 = arith.constant 1 : index
    %c0_91 = arith.constant 0 : index
    %163 = vector.load %arg16[%c1, %c0_91] : memref<352x64xf32, #tpu.memory_space<vmem>>, vector<331x64xf32>
    %164 = arith.truncf %163 : vector<331x64xf32> to vector<331x64xbf16>
    %c0_92 = arith.constant 0 : index
    %c64 = arith.constant 64 : index
    %165 = vector.load %arg18[%c0_92, %c64] : memref<352x256xbf16, #tpu.memory_space<vmem>>, vector<331x64xbf16>
    tpu.vector_store %arg18[%c0_92, %c64], %164 {strides = array<i32>} : memref<352x256xbf16, #tpu.memory_space<vmem>>, vector<331x64xbf16>,
    %c13_93 = arith.constant 13 : index
    %c0_94 = arith.constant 0 : index
    %166 = vector.load %arg16[%c13_93, %c0_94] : memref<352x64xf32, #tpu.memory_space<vmem>>, vector<331x64xf32>
    %167 = arith.truncf %166 : vector<331x64xf32> to vector<331x64xbf16>
    %c0_95 = arith.constant 0 : index
    %c128 = arith.constant 128 : index
    %168 = vector.load %arg18[%c0_95, %c128] : memref<352x256xbf16, #tpu.memory_space<vmem>>, vector<331x64xbf16>
    tpu.vector_store %arg18[%c0_95, %c128], %167 {strides = array<i32>} : memref<352x256xbf16, #tpu.memory_space<vmem>>, vector<331x64xbf16>,
    %c14 = arith.constant 14 : index
    %c0_96 = arith.constant 0 : index
    %169 = vector.load %arg16[%c14, %c0_96] : memref<352x64xf32, #tpu.memory_space<vmem>>, vector<331x64xf32>
    %170 = arith.truncf %169 : vector<331x64xf32> to vector<331x64xbf16>
    %c0_97 = arith.constant 0 : index
    %c192_98 = arith.constant 192 : index
    %171 = vector.load %arg18[%c0_97, %c192_98] : memref<352x256xbf16, #tpu.memory_space<vmem>>, vector<331x64xbf16>
    tpu.vector_store %arg18[%c0_97, %c192_98], %170 {strides = array<i32>} : memref<352x256xbf16, #tpu.memory_space<vmem>>, vector<331x64xbf16>,
    %c0_99 = arith.constant 0 : index
    %c0_100 = arith.constant 0 : index
    %172 = vector.load %arg18[%c0_99, %c0_100] : memref<352x256xbf16, #tpu.memory_space<vmem>>, vector<331x256xbf16>
    %c0_101 = arith.constant 0 : index
    %c0_102 = arith.constant 0 : index
    %173 = vector.load %arg4[%c0_101, %c0_102] : memref<256x128xbf16, #tpu.memory_space<vmem>>, vector<256x128xbf16>
    %cst_103 = arith.constant dense<0.000000e+00> : vector<331x128xf32>
    %174 = tpu.matmul %172, %173, %cst_103 {dimension_numbers = #tpu.dot_dimension_numbers<[1], [0], [0], [1], [0, 0, 1, 1], [], []>} : vector<331x256xbf16>, vector<256x128xbf16>, vector<331x128xf32> -> vector<331x128xf32>
    %175 = vector.extract_strided_slice %174 {offsets = [0, 0], sizes = [317, 128], strides = [1, 1]} : vector<331x128xf32> to vector<317x128xf32>
    %176 = vector.extract_strided_slice %174 {offsets = [1, 0], sizes = [317, 128], strides = [1, 1]} : vector<331x128xf32> to vector<317x128xf32>
    %177 = arith.maximumf %175, %176 : vector<317x128xf32>
    %178 = vector.extract_strided_slice %174 {offsets = [13, 0], sizes = [317, 128], strides = [1, 1]} : vector<331x128xf32> to vector<317x128xf32>
    %179 = vector.extract_strided_slice %174 {offsets = [14, 0], sizes = [317, 128], strides = [1, 1]} : vector<331x128xf32> to vector<317x128xf32>
    %180 = arith.maximumf %178, %179 : vector<317x128xf32>
    %181 = arith.maximumf %177, %180 : vector<317x128xf32>
    %c0_104 = arith.constant 0 : index
    %c0_105 = arith.constant 0 : index
    %182 = vector.load %arg14[%c0_104, %c0_105] : memref<352x128xf32, #tpu.memory_space<vmem>>, vector<317x128xf32>
    tpu.vector_store %arg14[%c0_104, %c0_105], %181 {strides = array<i32>} : memref<352x128xf32, #tpu.memory_space<vmem>>, vector<317x128xf32>,
    %c0_106 = arith.constant 0 : index
    %c0_107 = arith.constant 0 : index
    %183 = vector.load %arg5[%c0_106, %c0_107] : memref<1x128xf32, #tpu.memory_space<vmem>>, vector<1x128xf32>
    %c0_108 = arith.constant 0 : index
    %c0_109 = arith.constant 0 : index
    %184 = tpu.strided_load %arg14[%c0_108, %c0_109] {strides = array<i32: 2, 1>} : memref<352x128xf32, #tpu.memory_space<vmem>>, vector<6x128xf32>
    %185 = vector.broadcast %183 : vector<1x128xf32> to vector<6x128xf32>
    %186 = arith.addf %184, %185 : vector<6x128xf32>
    %cst_110 = arith.constant 0.000000e+00 : f32
    %187 = vector.broadcast %cst_110 : f32 to vector<6x128xf32>
    %188 = arith.maximumf %186, %187 : vector<6x128xf32>
    %c10 = arith.constant 10 : index
    %c0_111 = arith.constant 0 : index
    %189 = vector.load %arg17[%c10, %c0_111] : memref<176x128xf32, #tpu.memory_space<vmem>>, vector<6x128xf32>
    tpu.vector_store %arg17[%c10, %c0_111], %188 {strides = array<i32>} : memref<176x128xf32, #tpu.memory_space<vmem>>, vector<6x128xf32>,
    %c26_112 = arith.constant 26 : index
    %c0_113 = arith.constant 0 : index
    %190 = tpu.strided_load %arg14[%c26_112, %c0_113] {strides = array<i32: 2, 1>} : memref<352x128xf32, #tpu.memory_space<vmem>>, vector<6x128xf32>
    %191 = vector.broadcast %183 : vector<1x128xf32> to vector<6x128xf32>
    %192 = arith.addf %190, %191 : vector<6x128xf32>
    %cst_114 = arith.constant 0.000000e+00 : f32
    %193 = vector.broadcast %cst_114 : f32 to vector<6x128xf32>
    %194 = arith.maximumf %192, %193 : vector<6x128xf32>
    %c19 = arith.constant 19 : index
    %c0_115 = arith.constant 0 : index
    %195 = vector.load %arg17[%c19, %c0_115] : memref<176x128xf32, #tpu.memory_space<vmem>>, vector<6x128xf32>
    tpu.vector_store %arg17[%c19, %c0_115], %194 {strides = array<i32>} : memref<176x128xf32, #tpu.memory_space<vmem>>, vector<6x128xf32>,
    %c52_116 = arith.constant 52 : index
    %c0_117 = arith.constant 0 : index
    %196 = tpu.strided_load %arg14[%c52_116, %c0_117] {strides = array<i32: 2, 1>} : memref<352x128xf32, #tpu.memory_space<vmem>>, vector<6x128xf32>
    %197 = vector.broadcast %183 : vector<1x128xf32> to vector<6x128xf32>
    %198 = arith.addf %196, %197 : vector<6x128xf32>
    %cst_118 = arith.constant 0.000000e+00 : f32
    %199 = vector.broadcast %cst_118 : f32 to vector<6x128xf32>
    %200 = arith.maximumf %198, %199 : vector<6x128xf32>
    %c28 = arith.constant 28 : index
    %c0_119 = arith.constant 0 : index
    %201 = vector.load %arg17[%c28, %c0_119] : memref<176x128xf32, #tpu.memory_space<vmem>>, vector<6x128xf32>
    tpu.vector_store %arg17[%c28, %c0_119], %200 {strides = array<i32>} : memref<176x128xf32, #tpu.memory_space<vmem>>, vector<6x128xf32>,
    %c78_120 = arith.constant 78 : index
    %c0_121 = arith.constant 0 : index
    %202 = tpu.strided_load %arg14[%c78_120, %c0_121] {strides = array<i32: 2, 1>} : memref<352x128xf32, #tpu.memory_space<vmem>>, vector<6x128xf32>
    %203 = vector.broadcast %183 : vector<1x128xf32> to vector<6x128xf32>
    %204 = arith.addf %202, %203 : vector<6x128xf32>
    %cst_122 = arith.constant 0.000000e+00 : f32
    %205 = vector.broadcast %cst_122 : f32 to vector<6x128xf32>
    %206 = arith.maximumf %204, %205 : vector<6x128xf32>
    %c37 = arith.constant 37 : index
    %c0_123 = arith.constant 0 : index
    %207 = vector.load %arg17[%c37, %c0_123] : memref<176x128xf32, #tpu.memory_space<vmem>>, vector<6x128xf32>
    tpu.vector_store %arg17[%c37, %c0_123], %206 {strides = array<i32>} : memref<176x128xf32, #tpu.memory_space<vmem>>, vector<6x128xf32>,
    %c104_124 = arith.constant 104 : index
    %c0_125 = arith.constant 0 : index
    %208 = tpu.strided_load %arg14[%c104_124, %c0_125] {strides = array<i32: 2, 1>} : memref<352x128xf32, #tpu.memory_space<vmem>>, vector<6x128xf32>
    %209 = vector.broadcast %183 : vector<1x128xf32> to vector<6x128xf32>
    %210 = arith.addf %208, %209 : vector<6x128xf32>
    %cst_126 = arith.constant 0.000000e+00 : f32
    %211 = vector.broadcast %cst_126 : f32 to vector<6x128xf32>
    %212 = arith.maximumf %210, %211 : vector<6x128xf32>
    %c46 = arith.constant 46 : index
    %c0_127 = arith.constant 0 : index
    %213 = vector.load %arg17[%c46, %c0_127] : memref<176x128xf32, #tpu.memory_space<vmem>>, vector<6x128xf32>
    tpu.vector_store %arg17[%c46, %c0_127], %212 {strides = array<i32>} : memref<176x128xf32, #tpu.memory_space<vmem>>, vector<6x128xf32>,
    %c130_128 = arith.constant 130 : index
    %c0_129 = arith.constant 0 : index
    %214 = tpu.strided_load %arg14[%c130_128, %c0_129] {strides = array<i32: 2, 1>} : memref<352x128xf32, #tpu.memory_space<vmem>>, vector<6x128xf32>
    %215 = vector.broadcast %183 : vector<1x128xf32> to vector<6x128xf32>
    %216 = arith.addf %214, %215 : vector<6x128xf32>
    %cst_130 = arith.constant 0.000000e+00 : f32
    %217 = vector.broadcast %cst_130 : f32 to vector<6x128xf32>
    %218 = arith.maximumf %216, %217 : vector<6x128xf32>
    %c55 = arith.constant 55 : index
    %c0_131 = arith.constant 0 : index
    %219 = vector.load %arg17[%c55, %c0_131] : memref<176x128xf32, #tpu.memory_space<vmem>>, vector<6x128xf32>
    tpu.vector_store %arg17[%c55, %c0_131], %218 {strides = array<i32>} : memref<176x128xf32, #tpu.memory_space<vmem>>, vector<6x128xf32>,
    %c176_132 = arith.constant 176 : index
    %c0_133 = arith.constant 0 : index
    %220 = tpu.strided_load %arg14[%c176_132, %c0_133] {strides = array<i32: 2, 1>} : memref<352x128xf32, #tpu.memory_space<vmem>>, vector<6x128xf32>
    %221 = vector.broadcast %183 : vector<1x128xf32> to vector<6x128xf32>
    %222 = arith.addf %220, %221 : vector<6x128xf32>
    %cst_134 = arith.constant 0.000000e+00 : f32
    %223 = vector.broadcast %cst_134 : f32 to vector<6x128xf32>
    %224 = arith.maximumf %222, %223 : vector<6x128xf32>
    %c98 = arith.constant 98 : index
    %c0_135 = arith.constant 0 : index
    %225 = vector.load %arg17[%c98, %c0_135] : memref<176x128xf32, #tpu.memory_space<vmem>>, vector<6x128xf32>
    tpu.vector_store %arg17[%c98, %c0_135], %224 {strides = array<i32>} : memref<176x128xf32, #tpu.memory_space<vmem>>, vector<6x128xf32>,
    %c202_136 = arith.constant 202 : index
    %c0_137 = arith.constant 0 : index
    %226 = tpu.strided_load %arg14[%c202_136, %c0_137] {strides = array<i32: 2, 1>} : memref<352x128xf32, #tpu.memory_space<vmem>>, vector<6x128xf32>
    %227 = vector.broadcast %183 : vector<1x128xf32> to vector<6x128xf32>
    %228 = arith.addf %226, %227 : vector<6x128xf32>
    %cst_138 = arith.constant 0.000000e+00 : f32
    %229 = vector.broadcast %cst_138 : f32 to vector<6x128xf32>
    %230 = arith.maximumf %228, %229 : vector<6x128xf32>
    %c107 = arith.constant 107 : index
    %c0_139 = arith.constant 0 : index
    %231 = vector.load %arg17[%c107, %c0_139] : memref<176x128xf32, #tpu.memory_space<vmem>>, vector<6x128xf32>
    tpu.vector_store %arg17[%c107, %c0_139], %230 {strides = array<i32>} : memref<176x128xf32, #tpu.memory_space<vmem>>, vector<6x128xf32>,
    %c228_140 = arith.constant 228 : index
    %c0_141 = arith.constant 0 : index
    %232 = tpu.strided_load %arg14[%c228_140, %c0_141] {strides = array<i32: 2, 1>} : memref<352x128xf32, #tpu.memory_space<vmem>>, vector<6x128xf32>
    %233 = vector.broadcast %183 : vector<1x128xf32> to vector<6x128xf32>
    %234 = arith.addf %232, %233 : vector<6x128xf32>
    %cst_142 = arith.constant 0.000000e+00 : f32
    %235 = vector.broadcast %cst_142 : f32 to vector<6x128xf32>
    %236 = arith.maximumf %234, %235 : vector<6x128xf32>
    %c116 = arith.constant 116 : index
    %c0_143 = arith.constant 0 : index
    %237 = vector.load %arg17[%c116, %c0_143] : memref<176x128xf32, #tpu.memory_space<vmem>>, vector<6x128xf32>
    tpu.vector_store %arg17[%c116, %c0_143], %236 {strides = array<i32>} : memref<176x128xf32, #tpu.memory_space<vmem>>, vector<6x128xf32>,
    %c254_144 = arith.constant 254 : index
    %c0_145 = arith.constant 0 : index
    %238 = tpu.strided_load %arg14[%c254_144, %c0_145] {strides = array<i32: 2, 1>} : memref<352x128xf32, #tpu.memory_space<vmem>>, vector<6x128xf32>
    %239 = vector.broadcast %183 : vector<1x128xf32> to vector<6x128xf32>
    %240 = arith.addf %238, %239 : vector<6x128xf32>
    %cst_146 = arith.constant 0.000000e+00 : f32
    %241 = vector.broadcast %cst_146 : f32 to vector<6x128xf32>
    %242 = arith.maximumf %240, %241 : vector<6x128xf32>
    %c125 = arith.constant 125 : index
    %c0_147 = arith.constant 0 : index
    %243 = vector.load %arg17[%c125, %c0_147] : memref<176x128xf32, #tpu.memory_space<vmem>>, vector<6x128xf32>
    tpu.vector_store %arg17[%c125, %c0_147], %242 {strides = array<i32>} : memref<176x128xf32, #tpu.memory_space<vmem>>, vector<6x128xf32>,
    %c280_148 = arith.constant 280 : index
    %c0_149 = arith.constant 0 : index
    %244 = tpu.strided_load %arg14[%c280_148, %c0_149] {strides = array<i32: 2, 1>} : memref<352x128xf32, #tpu.memory_space<vmem>>, vector<6x128xf32>
    %245 = vector.broadcast %183 : vector<1x128xf32> to vector<6x128xf32>
    %246 = arith.addf %244, %245 : vector<6x128xf32>
    %cst_150 = arith.constant 0.000000e+00 : f32
    %247 = vector.broadcast %cst_150 : f32 to vector<6x128xf32>
    %248 = arith.maximumf %246, %247 : vector<6x128xf32>
    %c134 = arith.constant 134 : index
    %c0_151 = arith.constant 0 : index
    %249 = vector.load %arg17[%c134, %c0_151] : memref<176x128xf32, #tpu.memory_space<vmem>>, vector<6x128xf32>
    tpu.vector_store %arg17[%c134, %c0_151], %248 {strides = array<i32>} : memref<176x128xf32, #tpu.memory_space<vmem>>, vector<6x128xf32>,
    %c306_152 = arith.constant 306 : index
    %c0_153 = arith.constant 0 : index
    %250 = tpu.strided_load %arg14[%c306_152, %c0_153] {strides = array<i32: 2, 1>} : memref<352x128xf32, #tpu.memory_space<vmem>>, vector<6x128xf32>
    %251 = vector.broadcast %183 : vector<1x128xf32> to vector<6x128xf32>
    %252 = arith.addf %250, %251 : vector<6x128xf32>
    %cst_154 = arith.constant 0.000000e+00 : f32
    %253 = vector.broadcast %cst_154 : f32 to vector<6x128xf32>
    %254 = arith.maximumf %252, %253 : vector<6x128xf32>
    %c143_155 = arith.constant 143 : index
    %c0_156 = arith.constant 0 : index
    %255 = vector.load %arg17[%c143_155, %c0_156] : memref<176x128xf32, #tpu.memory_space<vmem>>, vector<6x128xf32>
    tpu.vector_store %arg17[%c143_155, %c0_156], %254 {strides = array<i32>} : memref<176x128xf32, #tpu.memory_space<vmem>>, vector<6x128xf32>,
    %c0_157 = arith.constant 0 : index
    %c0_158 = arith.constant 0 : index
    %256 = vector.load %arg17[%c0_157, %c0_158] : memref<176x128xf32, #tpu.memory_space<vmem>>, vector<139x128xf32>
    %257 = arith.truncf %256 : vector<139x128xf32> to vector<139x128xbf16>
    %c0_159 = arith.constant 0 : index
    %c0_160 = arith.constant 0 : index
    %258 = vector.load %arg19[%c0_159, %c0_160] : memref<176x2048xbf16, #tpu.memory_space<vmem>>, vector<139x128xbf16>
    tpu.vector_store %arg19[%c0_159, %c0_160], %257 {strides = array<i32>} : memref<176x2048xbf16, #tpu.memory_space<vmem>>, vector<139x128xbf16>,
    %c1_161 = arith.constant 1 : index
    %c0_162 = arith.constant 0 : index
    %259 = vector.load %arg17[%c1_161, %c0_162] : memref<176x128xf32, #tpu.memory_space<vmem>>, vector<139x128xf32>
    %260 = arith.truncf %259 : vector<139x128xf32> to vector<139x128xbf16>
    %c0_163 = arith.constant 0 : index
    %c128_164 = arith.constant 128 : index
    %261 = vector.load %arg19[%c0_163, %c128_164] : memref<176x2048xbf16, #tpu.memory_space<vmem>>, vector<139x128xbf16>
    tpu.vector_store %arg19[%c0_163, %c128_164], %260 {strides = array<i32>} : memref<176x2048xbf16, #tpu.memory_space<vmem>>, vector<139x128xbf16>,
    %c2 = arith.constant 2 : index
    %c0_165 = arith.constant 0 : index
    %262 = vector.load %arg17[%c2, %c0_165] : memref<176x128xf32, #tpu.memory_space<vmem>>, vector<139x128xf32>
    %263 = arith.truncf %262 : vector<139x128xf32> to vector<139x128xbf16>
    %c0_166 = arith.constant 0 : index
    %c256 = arith.constant 256 : index
    %264 = vector.load %arg19[%c0_166, %c256] : memref<176x2048xbf16, #tpu.memory_space<vmem>>, vector<139x128xbf16>
    tpu.vector_store %arg19[%c0_166, %c256], %263 {strides = array<i32>} : memref<176x2048xbf16, #tpu.memory_space<vmem>>, vector<139x128xbf16>,
    %c3 = arith.constant 3 : index
    %c0_167 = arith.constant 0 : index
    %265 = vector.load %arg17[%c3, %c0_167] : memref<176x128xf32, #tpu.memory_space<vmem>>, vector<139x128xf32>
    %266 = arith.truncf %265 : vector<139x128xf32> to vector<139x128xbf16>
    %c0_168 = arith.constant 0 : index
    %c384_169 = arith.constant 384 : index
    %267 = vector.load %arg19[%c0_168, %c384_169] : memref<176x2048xbf16, #tpu.memory_space<vmem>>, vector<139x128xbf16>
    tpu.vector_store %arg19[%c0_168, %c384_169], %266 {strides = array<i32>} : memref<176x2048xbf16, #tpu.memory_space<vmem>>, vector<139x128xbf16>,
    %c9 = arith.constant 9 : index
    %c0_170 = arith.constant 0 : index
    %268 = vector.load %arg17[%c9, %c0_170] : memref<176x128xf32, #tpu.memory_space<vmem>>, vector<139x128xf32>
    %269 = arith.truncf %268 : vector<139x128xf32> to vector<139x128xbf16>
    %c0_171 = arith.constant 0 : index
    %c512 = arith.constant 512 : index
    %270 = vector.load %arg19[%c0_171, %c512] : memref<176x2048xbf16, #tpu.memory_space<vmem>>, vector<139x128xbf16>
    tpu.vector_store %arg19[%c0_171, %c512], %269 {strides = array<i32>} : memref<176x2048xbf16, #tpu.memory_space<vmem>>, vector<139x128xbf16>,
    %c10_172 = arith.constant 10 : index
    %c0_173 = arith.constant 0 : index
    %271 = vector.load %arg17[%c10_172, %c0_173] : memref<176x128xf32, #tpu.memory_space<vmem>>, vector<139x128xf32>
    %272 = arith.truncf %271 : vector<139x128xf32> to vector<139x128xbf16>
    %c0_174 = arith.constant 0 : index
    %c640 = arith.constant 640 : index
    %273 = vector.load %arg19[%c0_174, %c640] : memref<176x2048xbf16, #tpu.memory_space<vmem>>, vector<139x128xbf16>
    tpu.vector_store %arg19[%c0_174, %c640], %272 {strides = array<i32>} : memref<176x2048xbf16, #tpu.memory_space<vmem>>, vector<139x128xbf16>,
    %c11 = arith.constant 11 : index
    %c0_175 = arith.constant 0 : index
    %274 = vector.load %arg17[%c11, %c0_175] : memref<176x128xf32, #tpu.memory_space<vmem>>, vector<139x128xf32>
    %275 = arith.truncf %274 : vector<139x128xf32> to vector<139x128xbf16>
    %c0_176 = arith.constant 0 : index
    %c768_177 = arith.constant 768 : index
    %276 = vector.load %arg19[%c0_176, %c768_177] : memref<176x2048xbf16, #tpu.memory_space<vmem>>, vector<139x128xbf16>
    tpu.vector_store %arg19[%c0_176, %c768_177], %275 {strides = array<i32>} : memref<176x2048xbf16, #tpu.memory_space<vmem>>, vector<139x128xbf16>,
    %c12 = arith.constant 12 : index
    %c0_178 = arith.constant 0 : index
    %277 = vector.load %arg17[%c12, %c0_178] : memref<176x128xf32, #tpu.memory_space<vmem>>, vector<139x128xf32>
    %278 = arith.truncf %277 : vector<139x128xf32> to vector<139x128xbf16>
    %c0_179 = arith.constant 0 : index
    %c896 = arith.constant 896 : index
    %279 = vector.load %arg19[%c0_179, %c896] : memref<176x2048xbf16, #tpu.memory_space<vmem>>, vector<139x128xbf16>
    tpu.vector_store %arg19[%c0_179, %c896], %278 {strides = array<i32>} : memref<176x2048xbf16, #tpu.memory_space<vmem>>, vector<139x128xbf16>,
    %c18 = arith.constant 18 : index
    %c0_180 = arith.constant 0 : index
    %280 = vector.load %arg17[%c18, %c0_180] : memref<176x128xf32, #tpu.memory_space<vmem>>, vector<139x128xf32>
    %281 = arith.truncf %280 : vector<139x128xf32> to vector<139x128xbf16>
    %c0_181 = arith.constant 0 : index
    %c1024 = arith.constant 1024 : index
    %282 = vector.load %arg19[%c0_181, %c1024] : memref<176x2048xbf16, #tpu.memory_space<vmem>>, vector<139x128xbf16>
    tpu.vector_store %arg19[%c0_181, %c1024], %281 {strides = array<i32>} : memref<176x2048xbf16, #tpu.memory_space<vmem>>, vector<139x128xbf16>,
    %c19_182 = arith.constant 19 : index
    %c0_183 = arith.constant 0 : index
    %283 = vector.load %arg17[%c19_182, %c0_183] : memref<176x128xf32, #tpu.memory_space<vmem>>, vector<139x128xf32>
    %284 = arith.truncf %283 : vector<139x128xf32> to vector<139x128xbf16>
    %c0_184 = arith.constant 0 : index
    %c1152 = arith.constant 1152 : index
    %285 = vector.load %arg19[%c0_184, %c1152] : memref<176x2048xbf16, #tpu.memory_space<vmem>>, vector<139x128xbf16>
    tpu.vector_store %arg19[%c0_184, %c1152], %284 {strides = array<i32>} : memref<176x2048xbf16, #tpu.memory_space<vmem>>, vector<139x128xbf16>,
    %c20 = arith.constant 20 : index
    %c0_185 = arith.constant 0 : index
    %286 = vector.load %arg17[%c20, %c0_185] : memref<176x128xf32, #tpu.memory_space<vmem>>, vector<139x128xf32>
    %287 = arith.truncf %286 : vector<139x128xf32> to vector<139x128xbf16>
    %c0_186 = arith.constant 0 : index
    %c1280 = arith.constant 1280 : index
    %288 = vector.load %arg19[%c0_186, %c1280] : memref<176x2048xbf16, #tpu.memory_space<vmem>>, vector<139x128xbf16>
    tpu.vector_store %arg19[%c0_186, %c1280], %287 {strides = array<i32>} : memref<176x2048xbf16, #tpu.memory_space<vmem>>, vector<139x128xbf16>,
    %c21 = arith.constant 21 : index
    %c0_187 = arith.constant 0 : index
    %289 = vector.load %arg17[%c21, %c0_187] : memref<176x128xf32, #tpu.memory_space<vmem>>, vector<139x128xf32>
    %290 = arith.truncf %289 : vector<139x128xf32> to vector<139x128xbf16>
    %c0_188 = arith.constant 0 : index
    %c1408 = arith.constant 1408 : index
    %291 = vector.load %arg19[%c0_188, %c1408] : memref<176x2048xbf16, #tpu.memory_space<vmem>>, vector<139x128xbf16>
    tpu.vector_store %arg19[%c0_188, %c1408], %290 {strides = array<i32>} : memref<176x2048xbf16, #tpu.memory_space<vmem>>, vector<139x128xbf16>,
    %c27 = arith.constant 27 : index
    %c0_189 = arith.constant 0 : index
    %292 = vector.load %arg17[%c27, %c0_189] : memref<176x128xf32, #tpu.memory_space<vmem>>, vector<139x128xf32>
    %293 = arith.truncf %292 : vector<139x128xf32> to vector<139x128xbf16>
    %c0_190 = arith.constant 0 : index
    %c1536 = arith.constant 1536 : index
    %294 = vector.load %arg19[%c0_190, %c1536] : memref<176x2048xbf16, #tpu.memory_space<vmem>>, vector<139x128xbf16>
    tpu.vector_store %arg19[%c0_190, %c1536], %293 {strides = array<i32>} : memref<176x2048xbf16, #tpu.memory_space<vmem>>, vector<139x128xbf16>,
    %c28_191 = arith.constant 28 : index
    %c0_192 = arith.constant 0 : index
    %295 = vector.load %arg17[%c28_191, %c0_192] : memref<176x128xf32, #tpu.memory_space<vmem>>, vector<139x128xf32>
    %296 = arith.truncf %295 : vector<139x128xf32> to vector<139x128xbf16>
    %c0_193 = arith.constant 0 : index
    %c1664 = arith.constant 1664 : index
    %297 = vector.load %arg19[%c0_193, %c1664] : memref<176x2048xbf16, #tpu.memory_space<vmem>>, vector<139x128xbf16>
    tpu.vector_store %arg19[%c0_193, %c1664], %296 {strides = array<i32>} : memref<176x2048xbf16, #tpu.memory_space<vmem>>, vector<139x128xbf16>,
    %c29 = arith.constant 29 : index
    %c0_194 = arith.constant 0 : index
    %298 = vector.load %arg17[%c29, %c0_194] : memref<176x128xf32, #tpu.memory_space<vmem>>, vector<139x128xf32>
    %299 = arith.truncf %298 : vector<139x128xf32> to vector<139x128xbf16>
    %c0_195 = arith.constant 0 : index
    %c1792 = arith.constant 1792 : index
    %300 = vector.load %arg19[%c0_195, %c1792] : memref<176x2048xbf16, #tpu.memory_space<vmem>>, vector<139x128xbf16>
    tpu.vector_store %arg19[%c0_195, %c1792], %299 {strides = array<i32>} : memref<176x2048xbf16, #tpu.memory_space<vmem>>, vector<139x128xbf16>,
    %c30 = arith.constant 30 : index
    %c0_196 = arith.constant 0 : index
    %301 = vector.load %arg17[%c30, %c0_196] : memref<176x128xf32, #tpu.memory_space<vmem>>, vector<139x128xf32>
    %302 = arith.truncf %301 : vector<139x128xf32> to vector<139x128xbf16>
    %c0_197 = arith.constant 0 : index
    %c1920 = arith.constant 1920 : index
    %303 = vector.load %arg19[%c0_197, %c1920] : memref<176x2048xbf16, #tpu.memory_space<vmem>>, vector<139x128xbf16>
    tpu.vector_store %arg19[%c0_197, %c1920], %302 {strides = array<i32>} : memref<176x2048xbf16, #tpu.memory_space<vmem>>, vector<139x128xbf16>,
    %c0_198 = arith.constant 0 : index
    %c0_199 = arith.constant 0 : index
    %304 = vector.load %arg19[%c0_198, %c0_199] : memref<176x2048xbf16, #tpu.memory_space<vmem>>, vector<139x2048xbf16>
    %c0_200 = arith.constant 0 : index
    %c0_201 = arith.constant 0 : index
    %305 = vector.load %arg6[%c0_200, %c0_201] : memref<2048x32xbf16, #tpu.memory_space<vmem>>, vector<2048x32xbf16>
    %cst_202 = arith.constant dense<0.000000e+00> : vector<139x32xf32>
    %306 = tpu.matmul %304, %305, %cst_202 {dimension_numbers = #tpu.dot_dimension_numbers<[1], [0], [0], [1], [0, 0, 1, 1], [], []>} : vector<139x2048xbf16>, vector<2048x32xbf16>, vector<139x32xf32> -> vector<139x32xf32>
    %307 = vector.extract_strided_slice %306 {offsets = [0, 0], sizes = [129, 32], strides = [1, 1]} : vector<139x32xf32> to vector<129x32xf32>
    %308 = vector.extract_strided_slice %306 {offsets = [1, 0], sizes = [129, 32], strides = [1, 1]} : vector<139x32xf32> to vector<129x32xf32>
    %309 = arith.maximumf %307, %308 : vector<129x32xf32>
    %310 = vector.extract_strided_slice %306 {offsets = [9, 0], sizes = [129, 32], strides = [1, 1]} : vector<139x32xf32> to vector<129x32xf32>
    %311 = vector.extract_strided_slice %306 {offsets = [10, 0], sizes = [129, 32], strides = [1, 1]} : vector<139x32xf32> to vector<129x32xf32>
    %312 = arith.maximumf %310, %311 : vector<129x32xf32>
    %313 = arith.maximumf %309, %312 : vector<129x32xf32>
    %c0_203 = arith.constant 0 : index
    %c0_204 = arith.constant 0 : index
    %314 = vector.load %arg15[%c0_203, %c0_204] : memref<176x32xf32, #tpu.memory_space<vmem>>, vector<129x32xf32>
    tpu.vector_store %arg15[%c0_203, %c0_204], %313 {strides = array<i32>} : memref<176x32xf32, #tpu.memory_space<vmem>>, vector<129x32xf32>,
    %c0_205 = arith.constant 0 : index
    %c0_206 = arith.constant 0 : index
    %315 = vector.load %arg7[%c0_205, %c0_206] : memref<1x32xf32, #tpu.memory_space<vmem>>, vector<1x32xf32>
    %c0_207 = arith.constant 0 : index
    %c0_208 = arith.constant 0 : index
    %316 = tpu.strided_load %arg15[%c0_207, %c0_208] {strides = array<i32: 2, 1>} : memref<176x32xf32, #tpu.memory_space<vmem>>, vector<3x32xf32>
    %317 = vector.broadcast %315 : vector<1x32xf32> to vector<3x32xf32>
    %318 = arith.addf %316, %317 : vector<3x32xf32>
    %cst_209 = arith.constant 0.000000e+00 : f32
    %319 = vector.broadcast %cst_209 : f32 to vector<3x32xf32>
    %320 = arith.maximumf %318, %319 : vector<3x32xf32>
    %321 = vector.extract_strided_slice %320 {offsets = [0, 0], sizes = [1, 32], strides = [1, 1]} : vector<3x32xf32> to vector<1x32xf32>
    %c0_210 = arith.constant 0 : index
    %c0_211 = arith.constant 0 : index
    %322 = vector.load %arg20[%c0_210, %c0_211] : memref<2x288xf32, #tpu.memory_space<vmem>>, vector<1x32xf32>
    tpu.vector_store %arg20[%c0_210, %c0_211], %321 {strides = array<i32>} : memref<2x288xf32, #tpu.memory_space<vmem>>, vector<1x32xf32>,
    %323 = vector.extract_strided_slice %320 {offsets = [1, 0], sizes = [1, 32], strides = [1, 1]} : vector<3x32xf32> to vector<1x32xf32>
    %c0_212 = arith.constant 0 : index
    %c32 = arith.constant 32 : index
    %324 = vector.load %arg20[%c0_212, %c32] : memref<2x288xf32, #tpu.memory_space<vmem>>, vector<1x32xf32>
    tpu.vector_store %arg20[%c0_212, %c32], %323 {strides = array<i32>} : memref<2x288xf32, #tpu.memory_space<vmem>>, vector<1x32xf32>,
    %325 = vector.extract_strided_slice %320 {offsets = [2, 0], sizes = [1, 32], strides = [1, 1]} : vector<3x32xf32> to vector<1x32xf32>
    %c0_213 = arith.constant 0 : index
    %c64_214 = arith.constant 64 : index
    %326 = vector.load %arg20[%c0_213, %c64_214] : memref<2x288xf32, #tpu.memory_space<vmem>>, vector<1x32xf32>
    tpu.vector_store %arg20[%c0_213, %c64_214], %325 {strides = array<i32>} : memref<2x288xf32, #tpu.memory_space<vmem>>, vector<1x32xf32>,
    %c18_215 = arith.constant 18 : index
    %c0_216 = arith.constant 0 : index
    %327 = tpu.strided_load %arg15[%c18_215, %c0_216] {strides = array<i32: 2, 1>} : memref<176x32xf32, #tpu.memory_space<vmem>>, vector<3x32xf32>
    %328 = vector.broadcast %315 : vector<1x32xf32> to vector<3x32xf32>
    %329 = arith.addf %327, %328 : vector<3x32xf32>
    %cst_217 = arith.constant 0.000000e+00 : f32
    %330 = vector.broadcast %cst_217 : f32 to vector<3x32xf32>
    %331 = arith.maximumf %329, %330 : vector<3x32xf32>
    %332 = vector.extract_strided_slice %331 {offsets = [0, 0], sizes = [1, 32], strides = [1, 1]} : vector<3x32xf32> to vector<1x32xf32>
    %c0_218 = arith.constant 0 : index
    %c96_219 = arith.constant 96 : index
    %333 = vector.load %arg20[%c0_218, %c96_219] : memref<2x288xf32, #tpu.memory_space<vmem>>, vector<1x32xf32>
    tpu.vector_store %arg20[%c0_218, %c96_219], %332 {strides = array<i32>} : memref<2x288xf32, #tpu.memory_space<vmem>>, vector<1x32xf32>,
    %334 = vector.extract_strided_slice %331 {offsets = [1, 0], sizes = [1, 32], strides = [1, 1]} : vector<3x32xf32> to vector<1x32xf32>
    %c0_220 = arith.constant 0 : index
    %c128_221 = arith.constant 128 : index
    %335 = vector.load %arg20[%c0_220, %c128_221] : memref<2x288xf32, #tpu.memory_space<vmem>>, vector<1x32xf32>
    tpu.vector_store %arg20[%c0_220, %c128_221], %334 {strides = array<i32>} : memref<2x288xf32, #tpu.memory_space<vmem>>, vector<1x32xf32>,
    %336 = vector.extract_strided_slice %331 {offsets = [2, 0], sizes = [1, 32], strides = [1, 1]} : vector<3x32xf32> to vector<1x32xf32>
    %c0_222 = arith.constant 0 : index
    %c160 = arith.constant 160 : index
    %337 = vector.load %arg20[%c0_222, %c160] : memref<2x288xf32, #tpu.memory_space<vmem>>, vector<1x32xf32>
    tpu.vector_store %arg20[%c0_222, %c160], %336 {strides = array<i32>} : memref<2x288xf32, #tpu.memory_space<vmem>>, vector<1x32xf32>,
    %c36 = arith.constant 36 : index
    %c0_223 = arith.constant 0 : index
    %338 = tpu.strided_load %arg15[%c36, %c0_223] {strides = array<i32: 2, 1>} : memref<176x32xf32, #tpu.memory_space<vmem>>, vector<3x32xf32>
    %339 = vector.broadcast %315 : vector<1x32xf32> to vector<3x32xf32>
    %340 = arith.addf %338, %339 : vector<3x32xf32>
    %cst_224 = arith.constant 0.000000e+00 : f32
    %341 = vector.broadcast %cst_224 : f32 to vector<3x32xf32>
    %342 = arith.maximumf %340, %341 : vector<3x32xf32>
    %343 = vector.extract_strided_slice %342 {offsets = [0, 0], sizes = [1, 32], strides = [1, 1]} : vector<3x32xf32> to vector<1x32xf32>
    %c0_225 = arith.constant 0 : index
    %c192_226 = arith.constant 192 : index
    %344 = vector.load %arg20[%c0_225, %c192_226] : memref<2x288xf32, #tpu.memory_space<vmem>>, vector<1x32xf32>
    tpu.vector_store %arg20[%c0_225, %c192_226], %343 {strides = array<i32>} : memref<2x288xf32, #tpu.memory_space<vmem>>, vector<1x32xf32>,
    %345 = vector.extract_strided_slice %342 {offsets = [1, 0], sizes = [1, 32], strides = [1, 1]} : vector<3x32xf32> to vector<1x32xf32>
    %c0_227 = arith.constant 0 : index
    %c224 = arith.constant 224 : index
    %346 = vector.load %arg20[%c0_227, %c224] : memref<2x288xf32, #tpu.memory_space<vmem>>, vector<1x32xf32>
    tpu.vector_store %arg20[%c0_227, %c224], %345 {strides = array<i32>} : memref<2x288xf32, #tpu.memory_space<vmem>>, vector<1x32xf32>,
    %347 = vector.extract_strided_slice %342 {offsets = [2, 0], sizes = [1, 32], strides = [1, 1]} : vector<3x32xf32> to vector<1x32xf32>
    %c0_228 = arith.constant 0 : index
    %c256_229 = arith.constant 256 : index
    %348 = vector.load %arg20[%c0_228, %c256_229] : memref<2x288xf32, #tpu.memory_space<vmem>>, vector<1x32xf32>
    tpu.vector_store %arg20[%c0_228, %c256_229], %347 {strides = array<i32>} : memref<2x288xf32, #tpu.memory_space<vmem>>, vector<1x32xf32>,
    %c88 = arith.constant 88 : index
    %c0_230 = arith.constant 0 : index
    %349 = tpu.strided_load %arg15[%c88, %c0_230] {strides = array<i32: 2, 1>} : memref<176x32xf32, #tpu.memory_space<vmem>>, vector<3x32xf32>
    %350 = vector.broadcast %315 : vector<1x32xf32> to vector<3x32xf32>
    %351 = arith.addf %349, %350 : vector<3x32xf32>
    %cst_231 = arith.constant 0.000000e+00 : f32
    %352 = vector.broadcast %cst_231 : f32 to vector<3x32xf32>
    %353 = arith.maximumf %351, %352 : vector<3x32xf32>
    %354 = vector.extract_strided_slice %353 {offsets = [0, 0], sizes = [1, 32], strides = [1, 1]} : vector<3x32xf32> to vector<1x32xf32>
    %c1_232 = arith.constant 1 : index
    %c0_233 = arith.constant 0 : index
    %355 = vector.load %arg20[%c1_232, %c0_233] : memref<2x288xf32, #tpu.memory_space<vmem>>, vector<1x32xf32>
    tpu.vector_store %arg20[%c1_232, %c0_233], %354 {strides = array<i32>} : memref<2x288xf32, #tpu.memory_space<vmem>>, vector<1x32xf32>,
    %356 = vector.extract_strided_slice %353 {offsets = [1, 0], sizes = [1, 32], strides = [1, 1]} : vector<3x32xf32> to vector<1x32xf32>
    %c1_234 = arith.constant 1 : index
    %c32_235 = arith.constant 32 : index
    %357 = vector.load %arg20[%c1_234, %c32_235] : memref<2x288xf32, #tpu.memory_space<vmem>>, vector<1x32xf32>
    tpu.vector_store %arg20[%c1_234, %c32_235], %356 {strides = array<i32>} : memref<2x288xf32, #tpu.memory_space<vmem>>, vector<1x32xf32>,
    %358 = vector.extract_strided_slice %353 {offsets = [2, 0], sizes = [1, 32], strides = [1, 1]} : vector<3x32xf32> to vector<1x32xf32>
    %c1_236 = arith.constant 1 : index
    %c64_237 = arith.constant 64 : index
    %359 = vector.load %arg20[%c1_236, %c64_237] : memref<2x288xf32, #tpu.memory_space<vmem>>, vector<1x32xf32>
    tpu.vector_store %arg20[%c1_236, %c64_237], %358 {strides = array<i32>} : memref<2x288xf32, #tpu.memory_space<vmem>>, vector<1x32xf32>,
    %c106 = arith.constant 106 : index
    %c0_238 = arith.constant 0 : index
    %360 = tpu.strided_load %arg15[%c106, %c0_238] {strides = array<i32: 2, 1>} : memref<176x32xf32, #tpu.memory_space<vmem>>, vector<3x32xf32>
    %361 = vector.broadcast %315 : vector<1x32xf32> to vector<3x32xf32>
    %362 = arith.addf %360, %361 : vector<3x32xf32>
    %cst_239 = arith.constant 0.000000e+00 : f32
    %363 = vector.broadcast %cst_239 : f32 to vector<3x32xf32>
    %364 = arith.maximumf %362, %363 : vector<3x32xf32>
    %365 = vector.extract_strided_slice %364 {offsets = [0, 0], sizes = [1, 32], strides = [1, 1]} : vector<3x32xf32> to vector<1x32xf32>
    %c1_240 = arith.constant 1 : index
    %c96_241 = arith.constant 96 : index
    %366 = vector.load %arg20[%c1_240, %c96_241] : memref<2x288xf32, #tpu.memory_space<vmem>>, vector<1x32xf32>
    tpu.vector_store %arg20[%c1_240, %c96_241], %365 {strides = array<i32>} : memref<2x288xf32, #tpu.memory_space<vmem>>, vector<1x32xf32>,
    %367 = vector.extract_strided_slice %364 {offsets = [1, 0], sizes = [1, 32], strides = [1, 1]} : vector<3x32xf32> to vector<1x32xf32>
    %c1_242 = arith.constant 1 : index
    %c128_243 = arith.constant 128 : index
    %368 = vector.load %arg20[%c1_242, %c128_243] : memref<2x288xf32, #tpu.memory_space<vmem>>, vector<1x32xf32>
    tpu.vector_store %arg20[%c1_242, %c128_243], %367 {strides = array<i32>} : memref<2x288xf32, #tpu.memory_space<vmem>>, vector<1x32xf32>,
    %369 = vector.extract_strided_slice %364 {offsets = [2, 0], sizes = [1, 32], strides = [1, 1]} : vector<3x32xf32> to vector<1x32xf32>
    %c1_244 = arith.constant 1 : index
    %c160_245 = arith.constant 160 : index
    %370 = vector.load %arg20[%c1_244, %c160_245] : memref<2x288xf32, #tpu.memory_space<vmem>>, vector<1x32xf32>
    tpu.vector_store %arg20[%c1_244, %c160_245], %369 {strides = array<i32>} : memref<2x288xf32, #tpu.memory_space<vmem>>, vector<1x32xf32>,
    %c124 = arith.constant 124 : index
    %c0_246 = arith.constant 0 : index
    %371 = tpu.strided_load %arg15[%c124, %c0_246] {strides = array<i32: 2, 1>} : memref<176x32xf32, #tpu.memory_space<vmem>>, vector<3x32xf32>
    %372 = vector.broadcast %315 : vector<1x32xf32> to vector<3x32xf32>
    %373 = arith.addf %371, %372 : vector<3x32xf32>
    %cst_247 = arith.constant 0.000000e+00 : f32
    %374 = vector.broadcast %cst_247 : f32 to vector<3x32xf32>
    %375 = arith.maximumf %373, %374 : vector<3x32xf32>
    %376 = vector.extract_strided_slice %375 {offsets = [0, 0], sizes = [1, 32], strides = [1, 1]} : vector<3x32xf32> to vector<1x32xf32>
    %c1_248 = arith.constant 1 : index
    %c192_249 = arith.constant 192 : index
    %377 = vector.load %arg20[%c1_248, %c192_249] : memref<2x288xf32, #tpu.memory_space<vmem>>, vector<1x32xf32>
    tpu.vector_store %arg20[%c1_248, %c192_249], %376 {strides = array<i32>} : memref<2x288xf32, #tpu.memory_space<vmem>>, vector<1x32xf32>,
    %378 = vector.extract_strided_slice %375 {offsets = [1, 0], sizes = [1, 32], strides = [1, 1]} : vector<3x32xf32> to vector<1x32xf32>
    %c1_250 = arith.constant 1 : index
    %c224_251 = arith.constant 224 : index
    %379 = vector.load %arg20[%c1_250, %c224_251] : memref<2x288xf32, #tpu.memory_space<vmem>>, vector<1x32xf32>
    tpu.vector_store %arg20[%c1_250, %c224_251], %378 {strides = array<i32>} : memref<2x288xf32, #tpu.memory_space<vmem>>, vector<1x32xf32>,
    %380 = vector.extract_strided_slice %375 {offsets = [2, 0], sizes = [1, 32], strides = [1, 1]} : vector<3x32xf32> to vector<1x32xf32>
    %c1_252 = arith.constant 1 : index
    %c256_253 = arith.constant 256 : index
    %381 = vector.load %arg20[%c1_252, %c256_253] : memref<2x288xf32, #tpu.memory_space<vmem>>, vector<1x32xf32>
    tpu.vector_store %arg20[%c1_252, %c256_253], %380 {strides = array<i32>} : memref<2x288xf32, #tpu.memory_space<vmem>>, vector<1x32xf32>,
    %c0_254 = arith.constant 0 : index
    %c0_255 = arith.constant 0 : index
    %382 = vector.load %arg20[%c0_254, %c0_255] : memref<2x288xf32, #tpu.memory_space<vmem>>, vector<2x288xf32>
    %383 = arith.truncf %382 : vector<2x288xf32> to vector<2x288xbf16>
    %c0_256 = arith.constant 0 : index
    %c0_257 = arith.constant 0 : index
    %384 = vector.load %arg8[%c0_256, %c0_257] : memref<288x256xbf16, #tpu.memory_space<vmem>>, vector<288x256xbf16>
    %cst_258 = arith.constant dense<0.000000e+00> : vector<2x256xf32>
    %385 = tpu.matmul %383, %384, %cst_258 {dimension_numbers = #tpu.dot_dimension_numbers<[1], [0], [0], [1], [0, 0, 1, 1], [], []>} : vector<2x288xbf16>, vector<288x256xbf16>, vector<2x256xf32> -> vector<2x256xf32>
    %c0_259 = arith.constant 0 : index
    %c0_260 = arith.constant 0 : index
    %386 = vector.load %arg9[%c0_259, %c0_260] : memref<1x256xf32, #tpu.memory_space<vmem>>, vector<1x256xf32>
    %387 = vector.broadcast %386 : vector<1x256xf32> to vector<2x256xf32>
    %388 = arith.addf %385, %387 : vector<2x256xf32>
    %cst_261 = arith.constant 0.000000e+00 : f32
    %389 = vector.broadcast %cst_261 : f32 to vector<2x256xf32>
    %390 = arith.maximumf %388, %389 : vector<2x256xf32>
    %391 = arith.truncf %390 : vector<2x256xf32> to vector<2x256xbf16>
    %c0_262 = arith.constant 0 : index
    %c0_263 = arith.constant 0 : index
    %392 = vector.load %arg10[%c0_262, %c0_263] : memref<256x10xbf16, #tpu.memory_space<vmem>>, vector<256x10xbf16>
    %cst_264 = arith.constant dense<0.000000e+00> : vector<2x10xf32>
    %393 = tpu.matmul %391, %392, %cst_264 {dimension_numbers = #tpu.dot_dimension_numbers<[1], [0], [0], [1], [0, 0, 1, 1], [], []>} : vector<2x256xbf16>, vector<256x10xbf16>, vector<2x10xf32> -> vector<2x10xf32>
    %c0_265 = arith.constant 0 : index
    %c0_266 = arith.constant 0 : index
    %394 = vector.load %arg11[%c0_265, %c0_266] : memref<1x10xf32, #tpu.memory_space<vmem>>, vector<1x10xf32>
    %395 = vector.broadcast %394 : vector<1x10xf32> to vector<2x10xf32>
    %396 = arith.addf %393, %395 : vector<2x10xf32>
    %c0_267 = arith.constant 0 : index
    %c0_268 = arith.constant 0 : index
    %397 = vector.load %arg12[%c0_267, %c0_268] : memref<2x10xf32, #tpu.memory_space<vmem>>, vector<2x10xf32>
    tpu.vector_store %arg12[%c0_267, %c0_268], %396 {strides = array<i32>} : memref<2x10xf32, #tpu.memory_space<vmem>>, vector<2x10xf32>,
    return
  }
  func.func @transform_0(%arg0: i32) -> (i32, i32) {
    %c0_i32 = arith.constant 0 : i32
    %c0_i32_0 = arith.constant 0 : i32
    return %arg0, %c0_i32 : i32, i32
  }
  func.func @transform_1(%arg0: i32) -> (i32, i32) {
    %c0_i32 = arith.constant 0 : i32
    %c0_i32_0 = arith.constant 0 : i32
    %c0_i32_1 = arith.constant 0 : i32
    return %c0_i32, %c0_i32_0 : i32, i32
  }
  func.func @transform_2(%arg0: i32) -> (i32, i32) {
    %c0_i32 = arith.constant 0 : i32
    %c0_i32_0 = arith.constant 0 : i32
    %c0_i32_1 = arith.constant 0 : i32
    return %c0_i32, %c0_i32_0 : i32, i32
  }
  func.func @transform_3(%arg0: i32) -> (i32, i32) {
    %c0_i32 = arith.constant 0 : i32
    %c0_i32_0 = arith.constant 0 : i32
    %c0_i32_1 = arith.constant 0 : i32
    return %c0_i32, %c0_i32_0 : i32, i32
  }
  func.func @transform_4(%arg0: i32) -> (i32, i32) {
    %c0_i32 = arith.constant 0 : i32
    %c0_i32_0 = arith.constant 0 : i32
    %c0_i32_1 = arith.constant 0 : i32
    return %c0_i32, %c0_i32_0 : i32, i32
  }
  func.func @transform_5(%arg0: i32) -> (i32, i32) {
    %c0_i32 = arith.constant 0 : i32
    %c0_i32_0 = arith.constant 0 : i32
    %c0_i32_1 = arith.constant 0 : i32
    return %c0_i32, %c0_i32_0 : i32, i32
  }
  func.func @transform_6(%arg0: i32) -> (i32, i32) {
    %c0_i32 = arith.constant 0 : i32
    %c0_i32_0 = arith.constant 0 : i32
    %c0_i32_1 = arith.constant 0 : i32
    return %c0_i32, %c0_i32_0 : i32, i32
  }
  func.func @transform_7(%arg0: i32) -> (i32, i32) {
    %c0_i32 = arith.constant 0 : i32
    %c0_i32_0 = arith.constant 0 : i32
    %c0_i32_1 = arith.constant 0 : i32
    return %c0_i32, %c0_i32_0 : i32, i32
  }
  func.func @transform_8(%arg0: i32) -> (i32, i32) {
    %c0_i32 = arith.constant 0 : i32
    %c0_i32_0 = arith.constant 0 : i32
    %c0_i32_1 = arith.constant 0 : i32
    return %c0_i32, %c0_i32_0 : i32, i32
  }
  func.func @transform_9(%arg0: i32) -> (i32, i32) {
    %c0_i32 = arith.constant 0 : i32
    %c0_i32_0 = arith.constant 0 : i32
    %c0_i32_1 = arith.constant 0 : i32
    return %c0_i32, %c0_i32_0 : i32, i32
  }
  func.func @transform_10(%arg0: i32) -> (i32, i32) {
    %c0_i32 = arith.constant 0 : i32
    %c0_i32_0 = arith.constant 0 : i32
    %c0_i32_1 = arith.constant 0 : i32
    return %c0_i32, %c0_i32_0 : i32, i32
  }
  func.func @transform_11(%arg0: i32) -> (i32, i32) {
    %c0_i32 = arith.constant 0 : i32
    %c0_i32_0 = arith.constant 0 : i32
    return %arg0, %c0_i32 : i32, i32
  }
}

</mosaic_0001>

<llo_original>
// kernel: cnn_forward.1
$region0: #{cnn_forward.1}
  #allocation0 [shape = 'u32[]', space=smem, size = 0x4, offset = 0x4, fixed_abs, tag = 'smem constant byte address 0x4 - core index']
  #allocation1 [shape = 'u32[144,128]{1,0:T(1,128)}', space=vmem, size = 0x12000, scoped, tag = 'internal scratch']
  #allocation2 [shape = 'f32[1152,64]{1,0:T(8,128)}', space=vmem, size = 0x90000, scoped, tag = 'scratch operand']
  #allocation3 [shape = 'f32[352,128]{1,0:T(8,128)}', space=vmem, size = 0x2c000, scoped, tag = 'scratch operand']
  #allocation4 [shape = 'f32[176,32]{1,0:T(8,128)}', space=vmem, size = 0x16000, scoped, tag = 'scratch operand']
  #allocation5 [shape = 'f32[352,64]{1,0:T(8,128)}', space=vmem, size = 0x2c000, scoped, tag = 'scratch operand']
  #allocation6 [shape = 'f32[176,128]{1,0:T(8,128)}', space=vmem, size = 0x16000, scoped, tag = 'scratch operand']
  #allocation7 [shape = 'bf16[352,256]{1,0:T(16,128)(2,1)}', space=vmem, size = 0x2c000, scoped, tag = 'scratch operand']
  #allocation8 [shape = 'bf16[176,2048]{1,0:T(16,128)(2,1)}', space=vmem, size = 0xb0000, scoped, tag = 'scratch operand']
  #allocation9 [shape = 'f32[2,288]{1,0:T(2,128)}', space=vmem, size = 0xc00, scoped, tag = 'scratch operand']
  %s0 = inlined_call_operand.vmem [shape: bf16[1152,12], index: 0, kind: input, shape index: {}]
  %s1 = inlined_call_operand.vmem [shape: bf16[12,64], index: 1, kind: input, shape index: {}]
  %s2 = inlined_call_operand.vmem [shape: f32[1,64], index: 2, kind: input, shape index: {}]
  %s3 = inlined_call_operand.vmem [shape: bf16[256,128], index: 3, kind: input, shape index: {}]
  %s4 = inlined_call_operand.vmem [shape: f32[1,128], index: 4, kind: input, shape index: {}]
  %s5 = inlined_call_operand.vmem [shape: bf16[2048,32], index: 5, kind: input, shape index: {}]
  %s6 = inlined_call_operand.vmem [shape: f32[1,32], index: 6, kind: input, shape index: {}]
  %s7 = inlined_call_operand.vmem [shape: bf16[288,256], index: 7, kind: input, shape index: {}]
  %s8 = inlined_call_operand.vmem [shape: f32[1,256], index: 8, kind: input, shape index: {}]
  %s9 = inlined_call_operand.vmem [shape: bf16[256,10], index: 9, kind: input, shape index: {}]
  %s10 = inlined_call_operand.vmem [shape: f32[1,10], index: 10, kind: input, shape index: {}]
  %s11 = inlined_call_operand.hbm [shape: f32[2,10], index: 11, kind: output, shape index: {}]
  %s12 = sld [smem:[#allocation0]]
  $region54: #{cnn_forward.1} parent=0
    _
  %s14 = ssub.s32 1, %s12
  %s15 = scalar_select 0, %s14, %s12
  $region1: #{cnn_forward.1} parent=0
    #allocation10 [shape = 'u8[1024]{0}', space=vmem, size = 0x400, scoped, tag = 'output window, operand 0, single buffered']
    #allocation11 [shape = 's32[1]{0}', space=sflag, size = 0x4, scoped, tag = 'scoped memory for cnn_forward.1']
    %16 = vsyncpa [#allocation11], 0
    // Predicated region
    $region2: #{cnn_forward.1} parent=1 // pred_check
      _
    $region3: #{cnn_forward.1} parent=1 // pred_check_branch
      %18 = sbr.rel (0) target = $region5
    $region4: #{cnn_forward.1} parent=1 // pred_region
      _
    $region5: #{cnn_forward.1} parent=1 // pred_fallthru
      _
    // Predicated region
    $region6: #{cnn_forward.1} parent=1 // pred_check
      _
    $region7: #{cnn_forward.1} parent=1 // pred_check_branch
      %20 = sbr.rel (0) target = $region9
    $region8: #{cnn_forward.1} parent=1 // pred_region
      _
    $region9: #{cnn_forward.1} parent=1 // pred_fallthru
      _
    // Predicated region
    $region10: #{cnn_forward.1} parent=1 // pred_check
      _
    $region11: #{cnn_forward.1} parent=1 // pred_check_branch
      %22 = sbr.rel (0) target = $region13
    $region12: #{cnn_forward.1} parent=1 // pred_region
      _
    $region13: #{cnn_forward.1} parent=1 // pred_fallthru
      _
    // Predicated region
    $region14: #{cnn_forward.1} parent=1 // pred_check
      _
    $region15: #{cnn_forward.1} parent=1 // pred_check_branch
      %24 = sbr.rel (0) target = $region17
    $region16: #{cnn_forward.1} parent=1 // pred_region
      _
    $region17: #{cnn_forward.1} parent=1 // pred_fallthru
      _
    // Predicated region
    $region18: #{cnn_forward.1} parent=1 // pred_check
      _
    $region19: #{cnn_forward.1} parent=1 // pred_check_branch
      %26 = sbr.rel (0) target = $region21
    $region20: #{cnn_forward.1} parent=1 // pred_region
      _
    $region21: #{cnn_forward.1} parent=1 // pred_fallthru
      _
    // Predicated region
    $region22: #{cnn_forward.1} parent=1 // pred_check
      _
    $region23: #{cnn_forward.1} parent=1 // pred_check_branch
      %28 = sbr.rel (0) target = $region25
    $region24: #{cnn_forward.1} parent=1 // pred_region
      _
    $region25: #{cnn_forward.1} parent=1 // pred_fallthru
      _
    // Predicated region
    $region26: #{cnn_forward.1} parent=1 // pred_check
      _
    $region27: #{cnn_forward.1} parent=1 // pred_check_branch
      %30 = sbr.rel (0) target = $region29
    $region28: #{cnn_forward.1} parent=1 // pred_region
      _
    $region29: #{cnn_forward.1} parent=1 // pred_fallthru
      _
    // Predicated region
    $region30: #{cnn_forward.1} parent=1 // pred_check
      _
    $region31: #{cnn_forward.1} parent=1 // pred_check_branch
      %32 = sbr.rel (0) target = $region33
    $region32: #{cnn_forward.1} parent=1 // pred_region
      _
    $region33: #{cnn_forward.1} parent=1 // pred_fallthru
      _
    // Predicated region
    $region34: #{cnn_forward.1} parent=1 // pred_check
      _
    $region35: #{cnn_forward.1} parent=1 // pred_check_branch
      %34 = sbr.rel (0) target = $region37
    $region36: #{cnn_forward.1} parent=1 // pred_region
      _
    $region37: #{cnn_forward.1} parent=1 // pred_fallthru
      _
    // Predicated region
    $region38: #{cnn_forward.1} parent=1 // pred_check
      _
    $region39: #{cnn_forward.1} parent=1 // pred_check_branch
      %36 = sbr.rel (0) target = $region41
    $region40: #{cnn_forward.1} parent=1 // pred_region
      _
    $region41: #{cnn_forward.1} parent=1 // pred_fallthru
      _
    // Predicated region
    $region42: #{cnn_forward.1} parent=1 // pred_check
      _
    $region43: #{cnn_forward.1} parent=1 // pred_check_branch
      %38 = sbr.rel (0) target = $region45
    $region44: #{cnn_forward.1} parent=1 // pred_region
      _
    $region45: #{cnn_forward.1} parent=1 // pred_fallthru
      _
    %vm40 = vcmask 523264
    %41 = vst.msk [vmem:[#allocation5] sm:$0xff] %vm40, 0.0
    %42 = vst.msk [vmem:[#allocation5 + $0x8] sm:$0xff] %vm40, 0.0
    %43 = vst.msk [vmem:[#allocation5 + $0x10] sm:$0xff] %vm40, 0.0
    %44 = vst.msk [vmem:[#allocation5 + $0x18] sm:$0xff] %vm40, 0.0
    %45 = vst.msk [vmem:[#allocation5 + $0x20] sm:$0xff] %vm40, 0.0
    %46 = vst.msk [vmem:[#allocation5 + $0x28] sm:$0xff] %vm40, 0.0
    %47 = vst.msk [vmem:[#allocation5 + $0x30] sm:$0xff] %vm40, 0.0
    %48 = vst.msk [vmem:[#allocation5 + $0x38] sm:$0xff] %vm40, 0.0
    %49 = vst.msk [vmem:[#allocation5 + $0x40] sm:$0xff] %vm40, 0.0
    %50 = vst.msk [vmem:[#allocation5 + $0x48] sm:$0xff] %vm40, 0.0
    %51 = vst.msk [vmem:[#allocation5 + $0x50] sm:$0xff] %vm40, 0.0
    %52 = vst.msk [vmem:[#allocation5 + $0x58] sm:$0xff] %vm40, 0.0
    %53 = vst.msk [vmem:[#allocation5 + $0x60] sm:$0xff] %vm40, 0.0
    %54 = vst.msk [vmem:[#allocation5 + $0x68] sm:$0xff] %vm40, 0.0
    %55 = vst.msk [vmem:[#allocation5 + $0x70] sm:$0xff] %vm40, 0.0
    %56 = vst.msk [vmem:[#allocation5 + $0x78] sm:$0xff] %vm40, 0.0
    %57 = vst.msk [vmem:[#allocation5 + $0x80] sm:$0xff] %vm40, 0.0
    %58 = vst.msk [vmem:[#allocation5 + $0x88] sm:$0xff] %vm40, 0.0
    %59 = vst.msk [vmem:[#allocation5 + $0x90] sm:$0xff] %vm40, 0.0
    %60 = vst.msk [vmem:[#allocation5 + $0x98] sm:$0xff] %vm40, 0.0
    %61 = vst.msk [vmem:[#allocation5 + $0xa0] sm:$0xff] %vm40, 0.0
    %62 = vst.msk [vmem:[#allocation5 + $0xa8] sm:$0xff] %vm40, 0.0
    %63 = vst.msk [vmem:[#allocation5 + $0xb0] sm:$0xff] %vm40, 0.0
    %64 = vst.msk [vmem:[#allocation5 + $0xb8] sm:$0xff] %vm40, 0.0
    %65 = vst.msk [vmem:[#allocation5 + $0xc0] sm:$0xff] %vm40, 0.0
    %66 = vst.msk [vmem:[#allocation5 + $0xc8] sm:$0xff] %vm40, 0.0
    %67 = vst.msk [vmem:[#allocation5 + $0xd0] sm:$0xff] %vm40, 0.0
    %68 = vst.msk [vmem:[#allocation5 + $0xd8] sm:$0xff] %vm40, 0.0
    %69 = vst.msk [vmem:[#allocation5 + $0xe0] sm:$0xff] %vm40, 0.0
    %70 = vst.msk [vmem:[#allocation5 + $0xe8] sm:$0xff] %vm40, 0.0
    %71 = vst.msk [vmem:[#allocation5 + $0xf0] sm:$0xff] %vm40, 0.0
    %72 = vst.msk [vmem:[#allocation5 + $0xf8] sm:$0xff] %vm40, 0.0
    %73 = vst.msk [vmem:[#allocation5 + $0x100] sm:$0xff] %vm40, 0.0
    %74 = vst.msk [vmem:[#allocation5 + $0x108] sm:$0xff] %vm40, 0.0
    %75 = vst.msk [vmem:[#allocation5 + $0x110] sm:$0xff] %vm40, 0.0
    %76 = vst.msk [vmem:[#allocation5 + $0x118] sm:$0xff] %vm40, 0.0
    %77 = vst.msk [vmem:[#allocation5 + $0x120] sm:$0xff] %vm40, 0.0
    %78 = vst.msk [vmem:[#allocation5 + $0x128] sm:$0xff] %vm40, 0.0
    %79 = vst.msk [vmem:[#allocation5 + $0x130] sm:$0xff] %vm40, 0.0
    %80 = vst.msk [vmem:[#allocation5 + $0x138] sm:$0xff] %vm40, 0.0
    %81 = vst.msk [vmem:[#allocation5 + $0x140] sm:$0xff] %vm40, 0.0
    %82 = vst.msk [vmem:[#allocation5 + $0x148] sm:$0xff] %vm40, 0.0
    %83 = vst.msk [vmem:[#allocation5 + $0x150] sm:$0xff] %vm40, 0.0
    %84 = vst.msk [vmem:[#allocation5 + $0x158] sm:$0xff] %vm40, 0.0
    %85 = vst [vmem:[#allocation6] sm:$0xff] 0.0
    %86 = vst [vmem:[#allocation6 + $0x8] sm:$0xff] 0.0
    %87 = vst [vmem:[#allocation6 + $0x10] sm:$0xff] 0.0
    %88 = vst [vmem:[#allocation6 + $0x18] sm:$0xff] 0.0
    %89 = vst [vmem:[#allocation6 + $0x20] sm:$0xff] 0.0
    %90 = vst [vmem:[#allocation6 + $0x28] sm:$0xff] 0.0
    %91 = vst [vmem:[#allocation6 + $0x30] sm:$0xff] 0.0
    %92 = vst [vmem:[#allocation6 + $0x38] sm:$0xff] 0.0
    %93 = vst [vmem:[#allocation6 + $0x40] sm:$0xff] 0.0
    %94 = vst [vmem:[#allocation6 + $0x48] sm:$0xff] 0.0
    %95 = vst [vmem:[#allocation6 + $0x50] sm:$0xff] 0.0
    %96 = vst [vmem:[#allocation6 + $0x58] sm:$0xff] 0.0
    %97 = vst [vmem:[#allocation6 + $0x60] sm:$0xff] 0.0
    %98 = vst [vmem:[#allocation6 + $0x68] sm:$0xff] 0.0
    %99 = vst [vmem:[#allocation6 + $0x70] sm:$0xff] 0.0
    %100 = vst [vmem:[#allocation6 + $0x78] sm:$0xff] 0.0
    %101 = vst [vmem:[#allocation6 + $0x80] sm:$0xff] 0.0
    %102 = vst [vmem:[#allocation6 + $0x88] sm:$0xff] 0.0
    %103 = vst [vmem:[#allocation6 + $0x90] sm:$0xff] 0.0
    %104 = vst [vmem:[#allocation6 + $0x98] sm:$0xff] 0.0
    %105 = vst [vmem:[#allocation6 + $0xa0] sm:$0xff] 0.0
    %106 = vst [vmem:[#allocation6 + $0xa8] sm:$0xff] 0.0
    %v107 = vld [vmem:[%s0] sm:$0xf]
    %v108 = vld [vmem:[%s0 + $0x4] sm:$0xf]
    %v109 = vld [vmem:[%s0 + $0x8] sm:$0xf]
    %v110 = vld [vmem:[%s0 + $0xc] sm:$0xf]
    %v111 = vld [vmem:[%s0 + $0x10] sm:$0xf]
    %v112 = vld [vmem:[%s0 + $0x14] sm:$0xf]
    %v113 = vld [vmem:[%s0 + $0x18] sm:$0xf]
    %v114 = vld [vmem:[%s0 + $0x1c] sm:$0xf]
    %v115 = vld [vmem:[%s0 + $0x20] sm:$0xf]
    %v116 = vld [vmem:[%s0 + $0x24] sm:$0xf]
    %v117 = vld [vmem:[%s0 + $0x28] sm:$0xf]
    %v118 = vld [vmem:[%s0 + $0x2c] sm:$0xf]
    %v119 = vld [vmem:[%s0 + $0x30] sm:$0xf]
    %v120 = vld [vmem:[%s0 + $0x34] sm:$0xf]
    %v121 = vld [vmem:[%s0 + $0x38] sm:$0xf]
    %v122 = vld [vmem:[%s0 + $0x3c] sm:$0xf]
    %v123 = vld [vmem:[%s0 + $0x40] sm:$0xf]
    %v124 = vld [vmem:[%s0 + $0x44] sm:$0xf]
    %v125 = vld [vmem:[%s0 + $0x48] sm:$0xf]
    %v126 = vld [vmem:[%s0 + $0x4c] sm:$0xf]
    %v127 = vld [vmem:[%s0 + $0x50] sm:$0xf]
    %v128 = vld [vmem:[%s0 + $0x54] sm:$0xf]
    %v129 = vld [vmem:[%s0 + $0x58] sm:$0xf]
    %v130 = vld [vmem:[%s0 + $0x5c] sm:$0xf]
    %v131 = vld [vmem:[%s0 + $0x60] sm:$0xf]
    %v132 = vld [vmem:[%s0 + $0x64] sm:$0xf]
    %v133 = vld [vmem:[%s0 + $0x68] sm:$0xf]
    %v134 = vld [vmem:[%s0 + $0x6c] sm:$0xf]
    %v135 = vld [vmem:[%s0 + $0x70] sm:$0xf]
    %v136 = vld [vmem:[%s0 + $0x74] sm:$0xf]
    %v137 = vld [vmem:[%s0 + $0x78] sm:$0xf]
    %v138 = vld [vmem:[%s0 + $0x7c] sm:$0xf]
    %v139 = vld [vmem:[%s0 + $0x80] sm:$0xf]
    %v140 = vld [vmem:[%s0 + $0x84] sm:$0xf]
    %v141 = vld [vmem:[%s0 + $0x88] sm:$0xf]
    %v142 = vld [vmem:[%s0 + $0x8c] sm:$0xf]
    %v143 = vld [vmem:[%s0 + $0x90] sm:$0xf]
    %v144 = vld [vmem:[%s0 + $0x94] sm:$0xf]
    %v145 = vld [vmem:[%s0 + $0x98] sm:$0xf]
    %v146 = vld [vmem:[%s0 + $0x9c] sm:$0xf]
    %v147 = vld [vmem:[%s0 + $0xa0] sm:$0xf]
    %v148 = vld [vmem:[%s0 + $0xa4] sm:$0xf]
    %v149 = vld [vmem:[%s0 + $0xa8] sm:$0xf]
    %v150 = vld [vmem:[%s0 + $0xac] sm:$0xf]
    %v151 = vld [vmem:[%s0 + $0xb0] sm:$0xf]
    %v152 = vld [vmem:[%s0 + $0xb4] sm:$0xf]
    %v153 = vld [vmem:[%s0 + $0xb8] sm:$0xf]
    %v154 = vld [vmem:[%s0 + $0xbc] sm:$0xf]
    %v155 = vld [vmem:[%s0 + $0xc0] sm:$0xf]
    %v156 = vld [vmem:[%s0 + $0xc4] sm:$0xf]
    %v157 = vld [vmem:[%s0 + $0xc8] sm:$0xf]
    %v158 = vld [vmem:[%s0 + $0xcc] sm:$0xf]
    %v159 = vld [vmem:[%s0 + $0xd0] sm:$0xf]
    %v160 = vld [vmem:[%s0 + $0xd4] sm:$0xf]
    %v161 = vld [vmem:[%s0 + $0xd8] sm:$0xf]
    %v162 = vld [vmem:[%s0 + $0xdc] sm:$0xf]
    %v163 = vld [vmem:[%s0 + $0xe0] sm:$0xf]
    %v164 = vld [vmem:[%s0 + $0xe4] sm:$0xf]
    %v165 = vld [vmem:[%s0 + $0xe8] sm:$0xf]
    %v166 = vld [vmem:[%s0 + $0xec] sm:$0xf]
    %v167 = vld [vmem:[%s0 + $0xf0] sm:$0xf]
    %v168 = vld [vmem:[%s0 + $0xf4] sm:$0xf]
    %v169 = vld [vmem:[%s0 + $0xf8] sm:$0xf]
    %v170 = vld [vmem:[%s0 + $0xfc] sm:$0xf]
    %v171 = vld [vmem:[%s0 + $0x100] sm:$0xf]
    %v172 = vld [vmem:[%s0 + $0x104] sm:$0xf]
    %v173 = vld [vmem:[%s0 + $0x108] sm:$0xf]
    %v174 = vld [vmem:[%s0 + $0x10c] sm:$0xf]
    %v175 = vld [vmem:[%s0 + $0x110] sm:$0xf]
    %v176 = vld [vmem:[%s0 + $0x114] sm:$0xf]
    %v177 = vld [vmem:[%s0 + $0x118] sm:$0xf]
    %v178 = vld [vmem:[%s0 + $0x11c] sm:$0xf]
    %v179 = vld [vmem:[%s0 + $0x120] sm:$0xf]
    %v180 = vld [vmem:[%s0 + $0x124] sm:$0xf]
    %v181 = vld [vmem:[%s0 + $0x128] sm:$0xf]
    %v182 = vld [vmem:[%s0 + $0x12c] sm:$0xf]
    %v183 = vld [vmem:[%s0 + $0x130] sm:$0xf]
    %v184 = vld [vmem:[%s0 + $0x134] sm:$0xf]
    %v185 = vld [vmem:[%s0 + $0x138] sm:$0xf]
    %v186 = vld [vmem:[%s0 + $0x13c] sm:$0xf]
    %v187 = vld [vmem:[%s0 + $0x140] sm:$0xf]
    %v188 = vld [vmem:[%s0 + $0x144] sm:$0xf]
    %v189 = vld [vmem:[%s0 + $0x148] sm:$0xf]
    %v190 = vld [vmem:[%s0 + $0x14c] sm:$0xf]
    %v191 = vld [vmem:[%s0 + $0x150] sm:$0xf]
    %v192 = vld [vmem:[%s0 + $0x154] sm:$0xf]
    %v193 = vld [vmem:[%s0 + $0x158] sm:$0xf]
    %v194 = vld [vmem:[%s0 + $0x15c] sm:$0xf]
    %v195 = vld [vmem:[%s0 + $0x160] sm:$0xf]
    %v196 = vld [vmem:[%s0 + $0x164] sm:$0xf]
    %v197 = vld [vmem:[%s0 + $0x168] sm:$0xf]
    %v198 = vld [vmem:[%s0 + $0x16c] sm:$0xf]
    %v199 = vld [vmem:[%s0 + $0x170] sm:$0xf]
    %v200 = vld [vmem:[%s0 + $0x174] sm:$0xf]
    %v201 = vld [vmem:[%s0 + $0x178] sm:$0xf]
    %v202 = vld [vmem:[%s0 + $0x17c] sm:$0xf]
    %v203 = vld [vmem:[%s0 + $0x180] sm:$0xf]
    %v204 = vld [vmem:[%s0 + $0x184] sm:$0xf]
    %v205 = vld [vmem:[%s0 + $0x188] sm:$0xf]
    %v206 = vld [vmem:[%s0 + $0x18c] sm:$0xf]
    %v207 = vld [vmem:[%s0 + $0x190] sm:$0xf]
    %v208 = vld [vmem:[%s0 + $0x194] sm:$0xf]
    %v209 = vld [vmem:[%s0 + $0x198] sm:$0xf]
    %v210 = vld [vmem:[%s0 + $0x19c] sm:$0xf]
    %v211 = vld [vmem:[%s0 + $0x1a0] sm:$0xf]
    %v212 = vld [vmem:[%s0 + $0x1a4] sm:$0xf]
    %v213 = vld [vmem:[%s0 + $0x1a8] sm:$0xf]
    %v214 = vld [vmem:[%s0 + $0x1ac] sm:$0xf]
    %v215 = vld [vmem:[%s0 + $0x1b0] sm:$0xf]
    %v216 = vld [vmem:[%s0 + $0x1b4] sm:$0xf]
    %v217 = vld [vmem:[%s0 + $0x1b8] sm:$0xf]
    %v218 = vld [vmem:[%s0 + $0x1bc] sm:$0xf]
    %v219 = vld [vmem:[%s0 + $0x1c0] sm:$0xf]
    %v220 = vld [vmem:[%s0 + $0x1c4] sm:$0xf]
    %v221 = vld [vmem:[%s0 + $0x1c8] sm:$0xf]
    %v222 = vld [vmem:[%s0 + $0x1cc] sm:$0xf]
    %v223 = vld [vmem:[%s0 + $0x1d0] sm:$0xf]
    %v224 = vld [vmem:[%s0 + $0x1d4] sm:$0xf]
    %v225 = vld [vmem:[%s0 + $0x1d8] sm:$0xf]
    %v226 = vld [vmem:[%s0 + $0x1dc] sm:$0xf]
    %v227 = vld [vmem:[%s0 + $0x1e0] sm:$0xf]
    %v228 = vld [vmem:[%s0 + $0x1e4] sm:$0xf]
    %v229 = vld [vmem:[%s0 + $0x1e8] sm:$0xf]
    %v230 = vld [vmem:[%s0 + $0x1ec] sm:$0xf]
    %v231 = vld [vmem:[%s0 + $0x1f0] sm:$0xf]
    %v232 = vld [vmem:[%s0 + $0x1f4] sm:$0xf]
    %v233 = vld [vmem:[%s0 + $0x1f8] sm:$0xf]
    %v234 = vld [vmem:[%s0 + $0x1fc] sm:$0xf]
    %v235 = vld [vmem:[%s0 + $0x200] sm:$0xf]
    %v236 = vld [vmem:[%s0 + $0x204] sm:$0xf]
    %v237 = vld [vmem:[%s0 + $0x208] sm:$0xf]
    %v238 = vld [vmem:[%s0 + $0x20c] sm:$0xf]
    %v239 = vld [vmem:[%s0 + $0x210] sm:$0xf]
    %v240 = vld [vmem:[%s0 + $0x214] sm:$0xf]
    %v241 = vld [vmem:[%s0 + $0x218] sm:$0xf]
    %v242 = vld [vmem:[%s0 + $0x21c] sm:$0xf]
    %v243 = vld [vmem:[%s0 + $0x220] sm:$0xf]
    %v244 = vld [vmem:[%s0 + $0x224] sm:$0xf]
    %v245 = vld [vmem:[%s0 + $0x228] sm:$0xf]
    %v246 = vld [vmem:[%s0 + $0x22c] sm:$0xf]
    %v247 = vld [vmem:[%s0 + $0x230] sm:$0xf]
    %v248 = vld [vmem:[%s0 + $0x234] sm:$0xf]
    %v249 = vld [vmem:[%s0 + $0x238] sm:$0xf]
    %v250 = vld [vmem:[%s0 + $0x23c] sm:$0xf]
    %v251 = vld [vmem:[%s1] sm:$0xf]
    %v252 = vld [vmem:[%s1 + $0x4] sm:$0x3]
    %v397 = vunpack.c.l.b16 %v107
    %v398 = vunpack.c.l.b16 %v108
    %v399 = vunpack.c.l.b16 %v109
    %v400 = vunpack.c.l.b16 %v110
    %v401 = vunpack.c.l.b16 %v111
    %v402 = vunpack.c.l.b16 %v112
    %v403 = vunpack.c.l.b16 %v113
    %v404 = vunpack.c.l.b16 %v114
    %v405 = vunpack.c.l.b16 %v115
    %v406 = vunpack.c.l.b16 %v116
    %v407 = vunpack.c.l.b16 %v117
    %v408 = vunpack.c.l.b16 %v118
    %v409 = vunpack.c.l.b16 %v119
    %v410 = vunpack.c.l.b16 %v120
    %v411 = vunpack.c.l.b16 %v121
    %v412 = vunpack.c.l.b16 %v122
    %v413 = vunpack.c.l.b16 %v123
    %v414 = vunpack.c.l.b16 %v124
    %v415 = vunpack.c.l.b16 %v125
    %v416 = vunpack.c.l.b16 %v126
    %v417 = vunpack.c.l.b16 %v127
    %v418 = vunpack.c.l.b16 %v128
    %v419 = vunpack.c.l.b16 %v129
    %v420 = vunpack.c.l.b16 %v130
    %v421 = vunpack.c.l.b16 %v131
    %v422 = vunpack.c.l.b16 %v132
    %v423 = vunpack.c.l.b16 %v133
    %v424 = vunpack.c.l.b16 %v134
    %v425 = vunpack.c.l.b16 %v135
    %v426 = vunpack.c.l.b16 %v136
    %v427 = vunpack.c.l.b16 %v137
    %v428 = vunpack.c.l.b16 %v138
    %v429 = vunpack.c.l.b16 %v139
    %v430 = vunpack.c.l.b16 %v140
    %v431 = vunpack.c.l.b16 %v141
    %v432 = vunpack.c.l.b16 %v142
    %v433 = vunpack.c.l.b16 %v143
    %v434 = vunpack.c.l.b16 %v144
    %v435 = vunpack.c.l.b16 %v145
    %v436 = vunpack.c.l.b16 %v146
    %v437 = vunpack.c.l.b16 %v147
    %v438 = vunpack.c.l.b16 %v148
    %v439 = vunpack.c.l.b16 %v149
    %v440 = vunpack.c.l.b16 %v150
    %v441 = vunpack.c.l.b16 %v151
    %v442 = vunpack.c.l.b16 %v152
    %v443 = vunpack.c.l.b16 %v153
    %v444 = vunpack.c.l.b16 %v154
    %v445 = vunpack.c.l.b16 %v155
    %v446 = vunpack.c.l.b16 %v156
    %v447 = vunpack.c.l.b16 %v157
    %v448 = vunpack.c.l.b16 %v158
    %v449 = vunpack.c.l.b16 %v159
    %v450 = vunpack.c.l.b16 %v160
    %v451 = vunpack.c.l.b16 %v161
    %v452 = vunpack.c.l.b16 %v162
    %v453 = vunpack.c.l.b16 %v163
    %v454 = vunpack.c.l.b16 %v164
    %v455 = vunpack.c.l.b16 %v165
    %v456 = vunpack.c.l.b16 %v166
    %v457 = vunpack.c.l.b16 %v167
    %v458 = vunpack.c.l.b16 %v168
    %v459 = vunpack.c.l.b16 %v169
    %v460 = vunpack.c.l.b16 %v170
    %v461 = vunpack.c.l.b16 %v171
    %v462 = vunpack.c.l.b16 %v172
    %v463 = vunpack.c.l.b16 %v173
    %v464 = vunpack.c.l.b16 %v174
    %v465 = vunpack.c.l.b16 %v175
    %v466 = vunpack.c.l.b16 %v176
    %v467 = vunpack.c.l.b16 %v177
    %v468 = vunpack.c.l.b16 %v178
    %v469 = vunpack.c.l.b16 %v179
    %v470 = vunpack.c.l.b16 %v180
    %v471 = vunpack.c.l.b16 %v181
    %v472 = vunpack.c.l.b16 %v182
    %v473 = vunpack.c.l.b16 %v183
    %v474 = vunpack.c.l.b16 %v184
    %v475 = vunpack.c.l.b16 %v185
    %v476 = vunpack.c.l.b16 %v186
    %v477 = vunpack.c.l.b16 %v187
    %v478 = vunpack.c.l.b16 %v188
    %v479 = vunpack.c.l.b16 %v189
    %v480 = vunpack.c.l.b16 %v190
    %v481 = vunpack.c.l.b16 %v191
    %v482 = vunpack.c.l.b16 %v192
    %v483 = vunpack.c.l.b16 %v193
    %v484 = vunpack.c.l.b16 %v194
    %v485 = vunpack.c.l.b16 %v195
    %v486 = vunpack.c.l.b16 %v196
    %v487 = vunpack.c.l.b16 %v197
    %v488 = vunpack.c.l.b16 %v198
    %v489 = vunpack.c.l.b16 %v199
    %v490 = vunpack.c.l.b16 %v200
    %v491 = vunpack.c.l.b16 %v201
    %v492 = vunpack.c.l.b16 %v202
    %v493 = vunpack.c.l.b16 %v203
    %v494 = vunpack.c.l.b16 %v204
    %v495 = vunpack.c.l.b16 %v205
    %v496 = vunpack.c.l.b16 %v206
    %v497 = vunpack.c.l.b16 %v207
    %v498 = vunpack.c.l.b16 %v208
    %v499 = vunpack.c.l.b16 %v209
    %v500 = vunpack.c.l.b16 %v210
    %v501 = vunpack.c.l.b16 %v211
    %v502 = vunpack.c.l.b16 %v212
    %v503 = vunpack.c.l.b16 %v213
    %v504 = vunpack.c.l.b16 %v214
    %v505 = vunpack.c.l.b16 %v215
    %v506 = vunpack.c.l.b16 %v216
    %v507 = vunpack.c.l.b16 %v217
    %v508 = vunpack.c.l.b16 %v218
    %v509 = vunpack.c.l.b16 %v219
    %v510 = vunpack.c.l.b16 %v220
    %v511 = vunpack.c.l.b16 %v221
    %v512 = vunpack.c.l.b16 %v222
    %v513 = vunpack.c.l.b16 %v223
    %v514 = vunpack.c.l.b16 %v224
    %v515 = vunpack.c.l.b16 %v225
    %v516 = vunpack.c.l.b16 %v226
    %v517 = vunpack.c.l.b16 %v227
    %v518 = vunpack.c.l.b16 %v228
    %v519 = vunpack.c.l.b16 %v229
    %v520 = vunpack.c.l.b16 %v230
    %v521 = vunpack.c.l.b16 %v231
    %v522 = vunpack.c.l.b16 %v232
    %v523 = vunpack.c.l.b16 %v233
    %v524 = vunpack.c.l.b16 %v234
    %v525 = vunpack.c.l.b16 %v235
    %v526 = vunpack.c.l.b16 %v236
    %v527 = vunpack.c.l.b16 %v237
    %v528 = vunpack.c.l.b16 %v238
    %v529 = vunpack.c.l.b16 %v239
    %v530 = vunpack.c.l.b16 %v240
    %v531 = vunpack.c.l.b16 %v241
    %v532 = vunpack.c.l.b16 %v242
    %v533 = vunpack.c.l.b16 %v243
    %v534 = vunpack.c.l.b16 %v244
    %v535 = vunpack.c.l.b16 %v245
    %v536 = vunpack.c.l.b16 %v246
    %v537 = vunpack.c.l.b16 %v247
    %v538 = vunpack.c.l.b16 %v248
    %v539 = vunpack.c.l.b16 %v249
    %v540 = vunpack.c.l.b16 %v250
    %v541 = vpack.c.b16 %v398, %v397
    %v542 = vpack.c.b16 %v400, %v399
    %v543 = vpack.c.b16 %v402, %v401
    %v544 = vpack.c.b16 %v404, %v403
    %v545 = vpack.c.b16 %v406, %v405
    %v546 = vpack.c.b16 %v408, %v407
    %v547 = vpack.c.b16 %v410, %v409
    %v548 = vpack.c.b16 %v412, %v411
    %v549 = vpack.c.b16 %v414, %v413
    %v550 = vpack.c.b16 %v416, %v415
    %v551 = vpack.c.b16 %v418, %v417
    %v552 = vpack.c.b16 %v420, %v419
    %v553 = vpack.c.b16 %v422, %v421
    %v554 = vpack.c.b16 %v424, %v423
    %v555 = vpack.c.b16 %v426, %v425
    %v556 = vpack.c.b16 %v428, %v427
    %v557 = vpack.c.b16 %v430, %v429
    %v558 = vpack.c.b16 %v432, %v431
    %v559 = vpack.c.b16 %v434, %v433
    %v560 = vpack.c.b16 %v436, %v435
    %v561 = vpack.c.b16 %v438, %v437
    %v562 = vpack.c.b16 %v440, %v439
    %v563 = vpack.c.b16 %v442, %v441
    %v564 = vpack.c.b16 %v444, %v443
    %v565 = vpack.c.b16 %v446, %v445
    %v566 = vpack.c.b16 %v448, %v447
    %v567 = vpack.c.b16 %v450, %v449
    %v568 = vpack.c.b16 %v452, %v451
    %v569 = vpack.c.b16 %v454, %v453
    %v570 = vpack.c.b16 %v456, %v455
    %v571 = vpack.c.b16 %v458, %v457
    %v572 = vpack.c.b16 %v460, %v459
    %v573 = vpack.c.b16 %v462, %v461
    %v574 = vpack.c.b16 %v464, %v463
    %v575 = vpack.c.b16 %v466, %v465
    %v576 = vpack.c.b16 %v468, %v467
    %v577 = vpack.c.b16 %v470, %v469
    %v578 = vpack.c.b16 %v472, %v471
    %v579 = vpack.c.b16 %v474, %v473
    %v580 = vpack.c.b16 %v476, %v475
    %v581 = vpack.c.b16 %v478, %v477
    %v582 = vpack.c.b16 %v480, %v479
    %v583 = vpack.c.b16 %v482, %v481
    %v584 = vpack.c.b16 %v484, %v483
    %v585 = vpack.c.b16 %v486, %v485
    %v586 = vpack.c.b16 %v488, %v487
    %v587 = vpack.c.b16 %v490, %v489
    %v588 = vpack.c.b16 %v492, %v491
    %v589 = vpack.c.b16 %v494, %v493
    %v590 = vpack.c.b16 %v496, %v495
    %v591 = vpack.c.b16 %v498, %v497
    %v592 = vpack.c.b16 %v500, %v499
    %v593 = vpack.c.b16 %v502, %v501
    %v594 = vpack.c.b16 %v504, %v503
    %v595 = vpack.c.b16 %v506, %v505
    %v596 = vpack.c.b16 %v508, %v507
    %v597 = vpack.c.b16 %v510, %v509
    %v598 = vpack.c.b16 %v512, %v511
    %v599 = vpack.c.b16 %v514, %v513
    %v600 = vpack.c.b16 %v516, %v515
    %v601 = vpack.c.b16 %v518, %v517
    %v602 = vpack.c.b16 %v520, %v519
    %v603 = vpack.c.b16 %v522, %v521
    %v604 = vpack.c.b16 %v524, %v523
    %v605 = vpack.c.b16 %v526, %v525
    %v606 = vpack.c.b16 %v528, %v527
    %v607 = vpack.c.b16 %v530, %v529
    %v608 = vpack.c.b16 %v532, %v531
    %v609 = vpack.c.b16 %v534, %v533
    %v610 = vpack.c.b16 %v536, %v535
    %v611 = vpack.c.b16 %v538, %v537
    %v612 = vpack.c.b16 %v540, %v539
    %v615 = vunpack.c.l.b16 %v251
    %v616 = vunpack.c.l.b16 %v252
    %v617 = vpack.c.b16 %v616, %v615
    %vm618 = vcmask 97280
    %v620 = vsel %vm618, %v541, 0
    %v623 = vsel %vm618, %v542, 0
    %v626 = vsel %vm618, %v543, 0
    %v629 = vsel %vm618, %v544, 0
    %v632 = vsel %vm618, %v545, 0
    %v635 = vsel %vm618, %v546, 0
    %v638 = vsel %vm618, %v547, 0
    %v641 = vsel %vm618, %v548, 0
    %v644 = vsel %vm618, %v549, 0
    %v647 = vsel %vm618, %v550, 0
    %v650 = vsel %vm618, %v551, 0
    %v653 = vsel %vm618, %v552, 0
    %v656 = vsel %vm618, %v553, 0
    %v659 = vsel %vm618, %v554, 0
    %v662 = vsel %vm618, %v555, 0
    %v665 = vsel %vm618, %v556, 0
    %v668 = vsel %vm618, %v557, 0
    %v671 = vsel %vm618, %v558, 0
    %v674 = vsel %vm618, %v559, 0
    %v677 = vsel %vm618, %v560, 0
    %v680 = vsel %vm618, %v561, 0
    %v683 = vsel %vm618, %v562, 0
    %v686 = vsel %vm618, %v563, 0
    %v689 = vsel %vm618, %v564, 0
    %v692 = vsel %vm618, %v565, 0
    %v695 = vsel %vm618, %v566, 0
    %v698 = vsel %vm618, %v567, 0
    %v701 = vsel %vm618, %v568, 0
    %v704 = vsel %vm618, %v569, 0
    %v707 = vsel %vm618, %v570, 0
    %v710 = vsel %vm618, %v571, 0
    %v713 = vsel %vm618, %v572, 0
    %v716 = vsel %vm618, %v573, 0
    %v719 = vsel %vm618, %v574, 0
    %v722 = vsel %vm618, %v575, 0
    %v725 = vsel %vm618, %v576, 0
    %v728 = vsel %vm618, %v577, 0
    %v731 = vsel %vm618, %v578, 0
    %v734 = vsel %vm618, %v579, 0
    %v737 = vsel %vm618, %v580, 0
    %v740 = vsel %vm618, %v581, 0
    %v743 = vsel %vm618, %v582, 0
    %v746 = vsel %vm618, %v583, 0
    %v749 = vsel %vm618, %v584, 0
    %v752 = vsel %vm618, %v585, 0
    %v755 = vsel %vm618, %v586, 0
    %v758 = vsel %vm618, %v587, 0
    %v761 = vsel %vm618, %v588, 0
    %v764 = vsel %vm618, %v589, 0
    %v767 = vsel %vm618, %v590, 0
    %v770 = vsel %vm618, %v591, 0
    %v773 = vsel %vm618, %v592, 0
    %v776 = vsel %vm618, %v593, 0
    %v779 = vsel %vm618, %v594, 0
    %v782 = vsel %vm618, %v595, 0
    %v785 = vsel %vm618, %v596, 0
    %v788 = vsel %vm618, %v597, 0
    %v791 = vsel %vm618, %v598, 0
    %v794 = vsel %vm618, %v599, 0
    %v797 = vsel %vm618, %v600, 0
    %v800 = vsel %vm618, %v601, 0
    %v803 = vsel %vm618, %v602, 0
    %v806 = vsel %vm618, %v603, 0
    %v809 = vsel %vm618, %v604, 0
    %v812 = vsel %vm618, %v605, 0
    %v815 = vsel %vm618, %v606, 0
    %v818 = vsel %vm618, %v607, 0
    %v821 = vsel %vm618, %v608, 0
    %v824 = vsel %vm618, %v609, 0
    %v827 = vsel %vm618, %v610, 0
    %v830 = vsel %vm618, %v611, 0
    %v833 = vsel %vm618, %v612, 0
    %vm835 = vcmask 1045504
    %v837 = vsel %vm835, %v617, 0
    %839 = vmatprep.subr.bf16.mxu0 0
    %840 = vmatpush1.bf16.msra.mxu0 %v837
    %841 = vmatprep.subr.bf16.mxu0 0
    %842 = vmatpush1.bf16.msra.mxu0 0
    %843 = vmatprep.subr.bf16.mxu0 0
    %844 = vmatpush1.bf16.msra.mxu0 0
    %845 = vmatprep.subr.bf16.mxu0 0
    %846 = vmatpush1.bf16.msra.mxu0 0
    %847 = vmatprep.subr.bf16.mxu0 0
    %848 = vmatpush1.bf16.msra.mxu0 0
    %849 = vmatprep.subr.bf16.mxu0 0
    %850 = vmatpush1.bf16.msra.mxu0 0
    %851 = vmatprep.subr.bf16.mxu0 0
    %852 = vmatpush1.bf16.msra.mxu0 0
    %853 = vmatprep.subr.bf16.mxu0 0
    %854 = vmatpush1.bf16.msra.mxu0 0
    %855 = vmatprep.subr.bf16.mxu0 0
    %856 = vmatpush1.bf16.msra.mxu0 0
    %857 = vmatprep.subr.bf16.mxu0 0
    %858 = vmatpush1.bf16.msra.mxu0 0
    %859 = vmatprep.subr.bf16.mxu0 0
    %860 = vmatpush1.bf16.msra.mxu0 0
    %861 = vmatprep.subr.bf16.mxu0 0
    %862 = vmatpush1.bf16.msra.mxu0 0
    %863 = vmatprep.subr.bf16.mxu0 0
    %864 = vmatpush1.bf16.msra.mxu0 0
    %865 = vmatprep.subr.bf16.mxu0 0
    %866 = vmatpush1.bf16.msra.mxu0 0
    %867 = vmatprep.subr.bf16.mxu0 0
    %868 = vmatpush1.bf16.msra.mxu0 0
    %869 = vmatprep.subr.bf16.mxu0 0
    %870 = vmatpush1.bf16.msra.mxu0 0
    %871 = vmatprep.mubr.bf16.mxu0 0
    %872 = vmatmul.mubr.bf16.gmra.mrb[0].mxu0 %v620
    %v873 = vpop.f32.mrb[0].mxu0
    %v874 = vadd.f32 0.0, %v873
    %v875 = vpop.f32.mrb[0].mxu0
    %v876 = vpop.f32.mrb[0].mxu0
    %v877 = vadd.f32 0.0, %v876
    %v878 = vpop.f32.mrb[0].mxu0
    %879 = vmatprep.mubr.bf16.mxu0 0
    %880 = vmatmul.mubr.bf16.gmra.mrb[0].mxu0 %v623
    %v881 = vpop.f32.mrb[0].mxu0
    %v882 = vadd.f32 0.0, %v881
    %v883 = vpop.f32.mrb[0].mxu0
    %v884 = vpop.f32.mrb[0].mxu0
    %v885 = vadd.f32 0.0, %v884
    %v886 = vpop.f32.mrb[0].mxu0
    %887 = vmatprep.mubr.bf16.mxu0 0
    %888 = vmatmul.mubr.bf16.gmra.mrb[0].mxu0 %v626
    %v889 = vpop.f32.mrb[0].mxu0
    %v890 = vadd.f32 0.0, %v889
    %v891 = vpop.f32.mrb[0].mxu0
    %v892 = vpop.f32.mrb[0].mxu0
    %v893 = vadd.f32 0.0, %v892
    %v894 = vpop.f32.mrb[0].mxu0
    %895 = vmatprep.mubr.bf16.mxu0 0
    %896 = vmatmul.mubr.bf16.gmra.mrb[0].mxu0 %v629
    %v897 = vpop.f32.mrb[0].mxu0
    %v898 = vadd.f32 0.0, %v897
    %v899 = vpop.f32.mrb[0].mxu0
    %v900 = vpop.f32.mrb[0].mxu0
    %v901 = vadd.f32 0.0, %v900
    %v902 = vpop.f32.mrb[0].mxu0
    %903 = vmatprep.mubr.bf16.mxu0 0
    %904 = vmatmul.mubr.bf16.gmra.mrb[0].mxu0 %v632
    %v905 = vpop.f32.mrb[0].mxu0
    %v906 = vadd.f32 0.0, %v905
    %v907 = vpop.f32.mrb[0].mxu0
    %v908 = vpop.f32.mrb[0].mxu0
    %v909 = vadd.f32 0.0, %v908
    %v910 = vpop.f32.mrb[0].mxu0
    %911 = vmatprep.mubr.bf16.mxu0 0
    %912 = vmatmul.mubr.bf16.gmra.mrb[0].mxu0 %v635
    %v913 = vpop.f32.mrb[0].mxu0
    %v914 = vadd.f32 0.0, %v913
    %v915 = vpop.f32.mrb[0].mxu0
    %v916 = vpop.f32.mrb[0].mxu0
    %v917 = vadd.f32 0.0, %v916
    %v918 = vpop.f32.mrb[0].mxu0
    %919 = vmatprep.mubr.bf16.mxu0 0
    %920 = vmatmul.mubr.bf16.gmra.mrb[0].mxu0 %v638
    %v921 = vpop.f32.mrb[0].mxu0
    %v922 = vadd.f32 0.0, %v921
    %v923 = vpop.f32.mrb[0].mxu0
    %v924 = vpop.f32.mrb[0].mxu0
    %v925 = vadd.f32 0.0, %v924
    %v926 = vpop.f32.mrb[0].mxu0
    %927 = vmatprep.mubr.bf16.mxu0 0
    %928 = vmatmul.mubr.bf16.gmra.mrb[0].mxu0 %v641
    %v929 = vpop.f32.mrb[0].mxu0
    %v930 = vadd.f32 0.0, %v929
    %v931 = vpop.f32.mrb[0].mxu0
    %v932 = vpop.f32.mrb[0].mxu0
    %v933 = vadd.f32 0.0, %v932
    %v934 = vpop.f32.mrb[0].mxu0
    %935 = vmatprep.mubr.bf16.mxu0 0
    %936 = vmatmul.mubr.bf16.gmra.mrb[0].mxu0 %v644
    %v937 = vpop.f32.mrb[0].mxu0
    %v938 = vadd.f32 0.0, %v937
    %v939 = vpop.f32.mrb[0].mxu0
    %v940 = vpop.f32.mrb[0].mxu0
    %v941 = vadd.f32 0.0, %v940
    %v942 = vpop.f32.mrb[0].mxu0
    %943 = vmatprep.mubr.bf16.mxu0 0
    %944 = vmatmul.mubr.bf16.gmra.mrb[0].mxu0 %v647
    %v945 = vpop.f32.mrb[0].mxu0
    %v946 = vadd.f32 0.0, %v945
    %v947 = vpop.f32.mrb[0].mxu0
    %v948 = vpop.f32.mrb[0].mxu0
    %v949 = vadd.f32 0.0, %v948
    %v950 = vpop.f32.mrb[0].mxu0
    %951 = vmatprep.mubr.bf16.mxu0 0
    %952 = vmatmul.mubr.bf16.gmra.mrb[0].mxu0 %v650
    %v953 = vpop.f32.mrb[0].mxu0
    %v954 = vadd.f32 0.0, %v953
    %v955 = vpop.f32.mrb[0].mxu0
    %v956 = vpop.f32.mrb[0].mxu0
    %v957 = vadd.f32 0.0, %v956
    %v958 = vpop.f32.mrb[0].mxu0
    %959 = vmatprep.mubr.bf16.mxu0 0
    %960 = vmatmul.mubr.bf16.gmra.mrb[0].mxu0 %v653
    %v961 = vpop.f32.mrb[0].mxu0
    %v962 = vadd.f32 0.0, %v961
    %v963 = vpop.f32.mrb[0].mxu0
    %v964 = vpop.f32.mrb[0].mxu0
    %v965 = vadd.f32 0.0, %v964
    %v966 = vpop.f32.mrb[0].mxu0
    %967 = vmatprep.mubr.bf16.mxu0 0
    %968 = vmatmul.mubr.bf16.gmra.mrb[0].mxu0 %v656
    %v969 = vpop.f32.mrb[0].mxu0
    %v970 = vadd.f32 0.0, %v969
    %v971 = vpop.f32.mrb[0].mxu0
    %v972 = vpop.f32.mrb[0].mxu0
    %v973 = vadd.f32 0.0, %v972
    %v974 = vpop.f32.mrb[0].mxu0
    %975 = vmatprep.mubr.bf16.mxu0 0
    %976 = vmatmul.mubr.bf16.gmra.mrb[0].mxu0 %v659
    %v977 = vpop.f32.mrb[0].mxu0
    %v978 = vadd.f32 0.0, %v977
    %v979 = vpop.f32.mrb[0].mxu0
    %v980 = vpop.f32.mrb[0].mxu0
    %v981 = vadd.f32 0.0, %v980
    %v982 = vpop.f32.mrb[0].mxu0
    %983 = vmatprep.mubr.bf16.mxu0 0
    %984 = vmatmul.mubr.bf16.gmra.mrb[0].mxu0 %v662
    %v985 = vpop.f32.mrb[0].mxu0
    %v986 = vadd.f32 0.0, %v985
    %v987 = vpop.f32.mrb[0].mxu0
    %v988 = vpop.f32.mrb[0].mxu0
    %v989 = vadd.f32 0.0, %v988
    %v990 = vpop.f32.mrb[0].mxu0
    %991 = vmatprep.mubr.bf16.mxu0 0
    %992 = vmatmul.mubr.bf16.gmra.mrb[0].mxu0 %v665
    %v993 = vpop.f32.mrb[0].mxu0
    %v994 = vadd.f32 0.0, %v993
    %v995 = vpop.f32.mrb[0].mxu0
    %v996 = vpop.f32.mrb[0].mxu0
    %v997 = vadd.f32 0.0, %v996
    %v998 = vpop.f32.mrb[0].mxu0
    %999 = vmatprep.mubr.bf16.mxu0 0
    %1000 = vmatmul.mubr.bf16.gmra.mrb[0].mxu0 %v668
    %v1001 = vpop.f32.mrb[0].mxu0
    %v1002 = vadd.f32 0.0, %v1001
    %v1003 = vpop.f32.mrb[0].mxu0
    %v1004 = vpop.f32.mrb[0].mxu0
    %v1005 = vadd.f32 0.0, %v1004
    %v1006 = vpop.f32.mrb[0].mxu0
    %1007 = vmatprep.mubr.bf16.mxu0 0
    %1008 = vmatmul.mubr.bf16.gmra.mrb[0].mxu0 %v671
    %v1009 = vpop.f32.mrb[0].mxu0
    %v1010 = vadd.f32 0.0, %v1009
    %v1011 = vpop.f32.mrb[0].mxu0
    %v1012 = vpop.f32.mrb[0].mxu0
    %v1013 = vadd.f32 0.0, %v1012
    %v1014 = vpop.f32.mrb[0].mxu0
    %1015 = vmatprep.mubr.bf16.mxu0 0
    %1016 = vmatmul.mubr.bf16.gmra.mrb[0].mxu0 %v674
    %v1017 = vpop.f32.mrb[0].mxu0
    %v1018 = vadd.f32 0.0, %v1017
    %v1019 = vpop.f32.mrb[0].mxu0
    %v1020 = vpop.f32.mrb[0].mxu0
    %v1021 = vadd.f32 0.0, %v1020
    %v1022 = vpop.f32.mrb[0].mxu0
    %1023 = vmatprep.mubr.bf16.mxu0 0
    %1024 = vmatmul.mubr.bf16.gmra.mrb[0].mxu0 %v677
    %v1025 = vpop.f32.mrb[0].mxu0
    %v1026 = vadd.f32 0.0, %v1025
    %v1027 = vpop.f32.mrb[0].mxu0
    %v1028 = vpop.f32.mrb[0].mxu0
    %v1029 = vadd.f32 0.0, %v1028
    %v1030 = vpop.f32.mrb[0].mxu0
    %1031 = vmatprep.mubr.bf16.mxu0 0
    %1032 = vmatmul.mubr.bf16.gmra.mrb[0].mxu0 %v680
    %v1033 = vpop.f32.mrb[0].mxu0
    %v1034 = vadd.f32 0.0, %v1033
    %v1035 = vpop.f32.mrb[0].mxu0
    %v1036 = vpop.f32.mrb[0].mxu0
    %v1037 = vadd.f32 0.0, %v1036
    %v1038 = vpop.f32.mrb[0].mxu0
    %1039 = vmatprep.mubr.bf16.mxu0 0
    %1040 = vmatmul.mubr.bf16.gmra.mrb[0].mxu0 %v683
    %v1041 = vpop.f32.mrb[0].mxu0
    %v1042 = vadd.f32 0.0, %v1041
    %v1043 = vpop.f32.mrb[0].mxu0
    %v1044 = vpop.f32.mrb[0].mxu0
    %v1045 = vadd.f32 0.0, %v1044
    %v1046 = vpop.f32.mrb[0].mxu0
    %1047 = vmatprep.mubr.bf16.mxu0 0
    %1048 = vmatmul.mubr.bf16.gmra.mrb[0].mxu0 %v686
    %v1049 = vpop.f32.mrb[0].mxu0
    %v1050 = vadd.f32 0.0, %v1049
    %v1051 = vpop.f32.mrb[0].mxu0
    %v1052 = vpop.f32.mrb[0].mxu0
    %v1053 = vadd.f32 0.0, %v1052
    %v1054 = vpop.f32.mrb[0].mxu0
    %1055 = vmatprep.mubr.bf16.mxu0 0
    %1056 = vmatmul.mubr.bf16.gmra.mrb[0].mxu0 %v689
    %v1057 = vpop.f32.mrb[0].mxu0
    %v1058 = vadd.f32 0.0, %v1057
    %v1059 = vpop.f32.mrb[0].mxu0
    %v1060 = vpop.f32.mrb[0].mxu0
    %v1061 = vadd.f32 0.0, %v1060
    %v1062 = vpop.f32.mrb[0].mxu0
    %1063 = vmatprep.mubr.bf16.mxu0 0
    %1064 = vmatmul.mubr.bf16.gmra.mrb[0].mxu0 %v692
    %v1065 = vpop.f32.mrb[0].mxu0
    %v1066 = vadd.f32 0.0, %v1065
    %v1067 = vpop.f32.mrb[0].mxu0
    %v1068 = vpop.f32.mrb[0].mxu0
    %v1069 = vadd.f32 0.0, %v1068
    %v1070 = vpop.f32.mrb[0].mxu0
    %1071 = vmatprep.mubr.bf16.mxu0 0
    %1072 = vmatmul.mubr.bf16.gmra.mrb[0].mxu0 %v695
    %v1073 = vpop.f32.mrb[0].mxu0
    %v1074 = vadd.f32 0.0, %v1073
    %v1075 = vpop.f32.mrb[0].mxu0
    %v1076 = vpop.f32.mrb[0].mxu0
    %v1077 = vadd.f32 0.0, %v1076
    %v1078 = vpop.f32.mrb[0].mxu0
    %1079 = vmatprep.mubr.bf16.mxu0 0
    %1080 = vmatmul.mubr.bf16.gmra.mrb[0].mxu0 %v698
    %v1081 = vpop.f32.mrb[0].mxu0
    %v1082 = vadd.f32 0.0, %v1081
    %v1083 = vpop.f32.mrb[0].mxu0
    %v1084 = vpop.f32.mrb[0].mxu0
    %v1085 = vadd.f32 0.0, %v1084
    %v1086 = vpop.f32.mrb[0].mxu0
    %1087 = vmatprep.mubr.bf16.mxu0 0
    %1088 = vmatmul.mubr.bf16.gmra.mrb[0].mxu0 %v701
    %v1089 = vpop.f32.mrb[0].mxu0
    %v1090 = vadd.f32 0.0, %v1089
    %v1091 = vpop.f32.mrb[0].mxu0
    %v1092 = vpop.f32.mrb[0].mxu0
    %v1093 = vadd.f32 0.0, %v1092
    %v1094 = vpop.f32.mrb[0].mxu0
    %1095 = vmatprep.mubr.bf16.mxu0 0
    %1096 = vmatmul.mubr.bf16.gmra.mrb[0].mxu0 %v704
    %v1097 = vpop.f32.mrb[0].mxu0
    %v1098 = vadd.f32 0.0, %v1097
    %v1099 = vpop.f32.mrb[0].mxu0
    %v1100 = vpop.f32.mrb[0].mxu0
    %v1101 = vadd.f32 0.0, %v1100
    %v1102 = vpop.f32.mrb[0].mxu0
    %1103 = vmatprep.mubr.bf16.mxu0 0
    %1104 = vmatmul.mubr.bf16.gmra.mrb[0].mxu0 %v707
    %v1105 = vpop.f32.mrb[0].mxu0
    %v1106 = vadd.f32 0.0, %v1105
    %v1107 = vpop.f32.mrb[0].mxu0
    %v1108 = vpop.f32.mrb[0].mxu0
    %v1109 = vadd.f32 0.0, %v1108
    %v1110 = vpop.f32.mrb[0].mxu0
    %1111 = vmatprep.mubr.bf16.mxu0 0
    %1112 = vmatmul.mubr.bf16.gmra.mrb[0].mxu0 %v710
    %v1113 = vpop.f32.mrb[0].mxu0
    %v1114 = vadd.f32 0.0, %v1113
    %v1115 = vpop.f32.mrb[0].mxu0
    %v1116 = vpop.f32.mrb[0].mxu0
    %v1117 = vadd.f32 0.0, %v1116
    %v1118 = vpop.f32.mrb[0].mxu0
    %1119 = vmatprep.mubr.bf16.mxu0 0
    %1120 = vmatmul.mubr.bf16.gmra.mrb[0].mxu0 %v713
    %v1121 = vpop.f32.mrb[0].mxu0
    %v1122 = vadd.f32 0.0, %v1121
    %v1123 = vpop.f32.mrb[0].mxu0
    %v1124 = vpop.f32.mrb[0].mxu0
    %v1125 = vadd.f32 0.0, %v1124
    %v1126 = vpop.f32.mrb[0].mxu0
    %1127 = vmatprep.mubr.bf16.mxu0 0
    %1128 = vmatmul.mubr.bf16.gmra.mrb[0].mxu0 %v716
    %v1129 = vpop.f32.mrb[0].mxu0
    %v1130 = vadd.f32 0.0, %v1129
    %v1131 = vpop.f32.mrb[0].mxu0
    %v1132 = vpop.f32.mrb[0].mxu0
    %v1133 = vadd.f32 0.0, %v1132
    %v1134 = vpop.f32.mrb[0].mxu0
    %1135 = vmatprep.mubr.bf16.mxu0 0
    %1136 = vmatmul.mubr.bf16.gmra.mrb[0].mxu0 %v719
    %v1137 = vpop.f32.mrb[0].mxu0
    %v1138 = vadd.f32 0.0, %v1137
    %v1139 = vpop.f32.mrb[0].mxu0
    %v1140 = vpop.f32.mrb[0].mxu0
    %v1141 = vadd.f32 0.0, %v1140
    %v1142 = vpop.f32.mrb[0].mxu0
    %1143 = vmatprep.mubr.bf16.mxu0 0
    %1144 = vmatmul.mubr.bf16.gmra.mrb[0].mxu0 %v722
    %v1145 = vpop.f32.mrb[0].mxu0
    %v1146 = vadd.f32 0.0, %v1145
    %v1147 = vpop.f32.mrb[0].mxu0
    %v1148 = vpop.f32.mrb[0].mxu0
    %v1149 = vadd.f32 0.0, %v1148
    %v1150 = vpop.f32.mrb[0].mxu0
    %1151 = vmatprep.mubr.bf16.mxu0 0
    %1152 = vmatmul.mubr.bf16.gmra.mrb[0].mxu0 %v725
    %v1153 = vpop.f32.mrb[0].mxu0
    %v1154 = vadd.f32 0.0, %v1153
    %v1155 = vpop.f32.mrb[0].mxu0
    %v1156 = vpop.f32.mrb[0].mxu0
    %v1157 = vadd.f32 0.0, %v1156
    %v1158 = vpop.f32.mrb[0].mxu0
    %1159 = vmatprep.mubr.bf16.mxu0 0
    %1160 = vmatmul.mubr.bf16.gmra.mrb[0].mxu0 %v728
    %v1161 = vpop.f32.mrb[0].mxu0
    %v1162 = vadd.f32 0.0, %v1161
    %v1163 = vpop.f32.mrb[0].mxu0
    %v1164 = vpop.f32.mrb[0].mxu0
    %v1165 = vadd.f32 0.0, %v1164
    %v1166 = vpop.f32.mrb[0].mxu0
    %1167 = vmatprep.mubr.bf16.mxu0 0
    %1168 = vmatmul.mubr.bf16.gmra.mrb[0].mxu0 %v731
    %v1169 = vpop.f32.mrb[0].mxu0
    %v1170 = vadd.f32 0.0, %v1169
    %v1171 = vpop.f32.mrb[0].mxu0
    %v1172 = vpop.f32.mrb[0].mxu0
    %v1173 = vadd.f32 0.0, %v1172
    %v1174 = vpop.f32.mrb[0].mxu0
    %1175 = vmatprep.mubr.bf16.mxu0 0
    %1176 = vmatmul.mubr.bf16.gmra.mrb[0].mxu0 %v734
    %v1177 = vpop.f32.mrb[0].mxu0
    %v1178 = vadd.f32 0.0, %v1177
    %v1179 = vpop.f32.mrb[0].mxu0
    %v1180 = vpop.f32.mrb[0].mxu0
    %v1181 = vadd.f32 0.0, %v1180
    %v1182 = vpop.f32.mrb[0].mxu0
    %1183 = vmatprep.mubr.bf16.mxu0 0
    %1184 = vmatmul.mubr.bf16.gmra.mrb[0].mxu0 %v737
    %v1185 = vpop.f32.mrb[0].mxu0
    %v1186 = vadd.f32 0.0, %v1185
    %v1187 = vpop.f32.mrb[0].mxu0
    %v1188 = vpop.f32.mrb[0].mxu0
    %v1189 = vadd.f32 0.0, %v1188
    %v1190 = vpop.f32.mrb[0].mxu0
    %1191 = vmatprep.mubr.bf16.mxu0 0
    %1192 = vmatmul.mubr.bf16.gmra.mrb[0].mxu0 %v740
    %v1193 = vpop.f32.mrb[0].mxu0
    %v1194 = vadd.f32 0.0, %v1193
    %v1195 = vpop.f32.mrb[0].mxu0
    %v1196 = vpop.f32.mrb[0].mxu0
    %v1197 = vadd.f32 0.0, %v1196
    %v1198 = vpop.f32.mrb[0].mxu0
    %1199 = vmatprep.mubr.bf16.mxu0 0
    %1200 = vmatmul.mubr.bf16.gmra.mrb[0].mxu0 %v743
    %v1201 = vpop.f32.mrb[0].mxu0
    %v1202 = vadd.f32 0.0, %v1201
    %v1203 = vpop.f32.mrb[0].mxu0
    %v1204 = vpop.f32.mrb[0].mxu0
    %v1205 = vadd.f32 0.0, %v1204
    %v1206 = vpop.f32.mrb[0].mxu0
    %1207 = vmatprep.mubr.bf16.mxu0 0
    %1208 = vmatmul.mubr.bf16.gmra.mrb[0].mxu0 %v746
    %v1209 = vpop.f32.mrb[0].mxu0
    %v1210 = vadd.f32 0.0, %v1209
    %v1211 = vpop.f32.mrb[0].mxu0
    %v1212 = vpop.f32.mrb[0].mxu0
    %v1213 = vadd.f32 0.0, %v1212
    %v1214 = vpop.f32.mrb[0].mxu0
    %1215 = vmatprep.mubr.bf16.mxu0 0
    %1216 = vmatmul.mubr.bf16.gmra.mrb[0].mxu0 %v749
    %v1217 = vpop.f32.mrb[0].mxu0
    %v1218 = vadd.f32 0.0, %v1217
    %v1219 = vpop.f32.mrb[0].mxu0
    %v1220 = vpop.f32.mrb[0].mxu0
    %v1221 = vadd.f32 0.0, %v1220
    %v1222 = vpop.f32.mrb[0].mxu0
    %1223 = vmatprep.mubr.bf16.mxu0 0
    %1224 = vmatmul.mubr.bf16.gmra.mrb[0].mxu0 %v752
    %v1225 = vpop.f32.mrb[0].mxu0
    %v1226 = vadd.f32 0.0, %v1225
    %v1227 = vpop.f32.mrb[0].mxu0
    %v1228 = vpop.f32.mrb[0].mxu0
    %v1229 = vadd.f32 0.0, %v1228
    %v1230 = vpop.f32.mrb[0].mxu0
    %1231 = vmatprep.mubr.bf16.mxu0 0
    %1232 = vmatmul.mubr.bf16.gmra.mrb[0].mxu0 %v755
    %v1233 = vpop.f32.mrb[0].mxu0
    %v1234 = vadd.f32 0.0, %v1233
    %v1235 = vpop.f32.mrb[0].mxu0
    %v1236 = vpop.f32.mrb[0].mxu0
    %v1237 = vadd.f32 0.0, %v1236
    %v1238 = vpop.f32.mrb[0].mxu0
    %1239 = vmatprep.mubr.bf16.mxu0 0
    %1240 = vmatmul.mubr.bf16.gmra.mrb[0].mxu0 %v758
    %v1241 = vpop.f32.mrb[0].mxu0
    %v1242 = vadd.f32 0.0, %v1241
    %v1243 = vpop.f32.mrb[0].mxu0
    %v1244 = vpop.f32.mrb[0].mxu0
    %v1245 = vadd.f32 0.0, %v1244
    %v1246 = vpop.f32.mrb[0].mxu0
    %1247 = vmatprep.mubr.bf16.mxu0 0
    %1248 = vmatmul.mubr.bf16.gmra.mrb[0].mxu0 %v761
    %v1249 = vpop.f32.mrb[0].mxu0
    %v1250 = vadd.f32 0.0, %v1249
    %v1251 = vpop.f32.mrb[0].mxu0
    %v1252 = vpop.f32.mrb[0].mxu0
    %v1253 = vadd.f32 0.0, %v1252
    %v1254 = vpop.f32.mrb[0].mxu0
    %1255 = vmatprep.mubr.bf16.mxu0 0
    %1256 = vmatmul.mubr.bf16.gmra.mrb[0].mxu0 %v764
    %v1257 = vpop.f32.mrb[0].mxu0
    %v1258 = vadd.f32 0.0, %v1257
    %v1259 = vpop.f32.mrb[0].mxu0
    %v1260 = vpop.f32.mrb[0].mxu0
    %v1261 = vadd.f32 0.0, %v1260
    %v1262 = vpop.f32.mrb[0].mxu0
    %1263 = vmatprep.mubr.bf16.mxu0 0
    %1264 = vmatmul.mubr.bf16.gmra.mrb[0].mxu0 %v767
    %v1265 = vpop.f32.mrb[0].mxu0
    %v1266 = vadd.f32 0.0, %v1265
    %v1267 = vpop.f32.mrb[0].mxu0
    %v1268 = vpop.f32.mrb[0].mxu0
    %v1269 = vadd.f32 0.0, %v1268
    %v1270 = vpop.f32.mrb[0].mxu0
    %1271 = vmatprep.mubr.bf16.mxu0 0
    %1272 = vmatmul.mubr.bf16.gmra.mrb[0].mxu0 %v770
    %v1273 = vpop.f32.mrb[0].mxu0
    %v1274 = vadd.f32 0.0, %v1273
    %v1275 = vpop.f32.mrb[0].mxu0
    %v1276 = vpop.f32.mrb[0].mxu0
    %v1277 = vadd.f32 0.0, %v1276
    %v1278 = vpop.f32.mrb[0].mxu0
    %1279 = vmatprep.mubr.bf16.mxu0 0
    %1280 = vmatmul.mubr.bf16.gmra.mrb[0].mxu0 %v773
    %v1281 = vpop.f32.mrb[0].mxu0
    %v1282 = vadd.f32 0.0, %v1281
    %v1283 = vpop.f32.mrb[0].mxu0
    %v1284 = vpop.f32.mrb[0].mxu0
    %v1285 = vadd.f32 0.0, %v1284
    %v1286 = vpop.f32.mrb[0].mxu0
    %1287 = vmatprep.mubr.bf16.mxu0 0
    %1288 = vmatmul.mubr.bf16.gmra.mrb[0].mxu0 %v776
    %v1289 = vpop.f32.mrb[0].mxu0
    %v1290 = vadd.f32 0.0, %v1289
    %v1291 = vpop.f32.mrb[0].mxu0
    %v1292 = vpop.f32.mrb[0].mxu0
    %v1293 = vadd.f32 0.0, %v1292
    %v1294 = vpop.f32.mrb[0].mxu0
    %1295 = vmatprep.mubr.bf16.mxu0 0
    %1296 = vmatmul.mubr.bf16.gmra.mrb[0].mxu0 %v779
    %v1297 = vpop.f32.mrb[0].mxu0
    %v1298 = vadd.f32 0.0, %v1297
    %v1299 = vpop.f32.mrb[0].mxu0
    %v1300 = vpop.f32.mrb[0].mxu0
    %v1301 = vadd.f32 0.0, %v1300
    %v1302 = vpop.f32.mrb[0].mxu0
    %1303 = vmatprep.mubr.bf16.mxu0 0
    %1304 = vmatmul.mubr.bf16.gmra.mrb[0].mxu0 %v782
    %v1305 = vpop.f32.mrb[0].mxu0
    %v1306 = vadd.f32 0.0, %v1305
    %v1307 = vpop.f32.mrb[0].mxu0
    %v1308 = vpop.f32.mrb[0].mxu0
    %v1309 = vadd.f32 0.0, %v1308
    %v1310 = vpop.f32.mrb[0].mxu0
    %1311 = vmatprep.mubr.bf16.mxu0 0
    %1312 = vmatmul.mubr.bf16.gmra.mrb[0].mxu0 %v785
    %v1313 = vpop.f32.mrb[0].mxu0
    %v1314 = vadd.f32 0.0, %v1313
    %v1315 = vpop.f32.mrb[0].mxu0
    %v1316 = vpop.f32.mrb[0].mxu0
    %v1317 = vadd.f32 0.0, %v1316
    %v1318 = vpop.f32.mrb[0].mxu0
    %1319 = vmatprep.mubr.bf16.mxu0 0
    %1320 = vmatmul.mubr.bf16.gmra.mrb[0].mxu0 %v788
    %v1321 = vpop.f32.mrb[0].mxu0
    %v1322 = vadd.f32 0.0, %v1321
    %v1323 = vpop.f32.mrb[0].mxu0
    %v1324 = vpop.f32.mrb[0].mxu0
    %v1325 = vadd.f32 0.0, %v1324
    %v1326 = vpop.f32.mrb[0].mxu0
    %1327 = vmatprep.mubr.bf16.mxu0 0
    %1328 = vmatmul.mubr.bf16.gmra.mrb[0].mxu0 %v791
    %v1329 = vpop.f32.mrb[0].mxu0
    %v1330 = vadd.f32 0.0, %v1329
    %v1331 = vpop.f32.mrb[0].mxu0
    %v1332 = vpop.f32.mrb[0].mxu0
    %v1333 = vadd.f32 0.0, %v1332
    %v1334 = vpop.f32.mrb[0].mxu0
    %1335 = vmatprep.mubr.bf16.mxu0 0
    %1336 = vmatmul.mubr.bf16.gmra.mrb[0].mxu0 %v794
    %v1337 = vpop.f32.mrb[0].mxu0
    %v1338 = vadd.f32 0.0, %v1337
    %v1339 = vpop.f32.mrb[0].mxu0
    %v1340 = vpop.f32.mrb[0].mxu0
    %v1341 = vadd.f32 0.0, %v1340
    %v1342 = vpop.f32.mrb[0].mxu0
    %1343 = vmatprep.mubr.bf16.mxu0 0
    %1344 = vmatmul.mubr.bf16.gmra.mrb[0].mxu0 %v797
    %v1345 = vpop.f32.mrb[0].mxu0
    %v1346 = vadd.f32 0.0, %v1345
    %v1347 = vpop.f32.mrb[0].mxu0
    %v1348 = vpop.f32.mrb[0].mxu0
    %v1349 = vadd.f32 0.0, %v1348
    %v1350 = vpop.f32.mrb[0].mxu0
    %1351 = vmatprep.mubr.bf16.mxu0 0
    %1352 = vmatmul.mubr.bf16.gmra.mrb[0].mxu0 %v800
    %v1353 = vpop.f32.mrb[0].mxu0
    %v1354 = vadd.f32 0.0, %v1353
    %v1355 = vpop.f32.mrb[0].mxu0
    %v1356 = vpop.f32.mrb[0].mxu0
    %v1357 = vadd.f32 0.0, %v1356
    %v1358 = vpop.f32.mrb[0].mxu0
    %1359 = vmatprep.mubr.bf16.mxu0 0
    %1360 = vmatmul.mubr.bf16.gmra.mrb[0].mxu0 %v803
    %v1361 = vpop.f32.mrb[0].mxu0
    %v1362 = vadd.f32 0.0, %v1361
    %v1363 = vpop.f32.mrb[0].mxu0
    %v1364 = vpop.f32.mrb[0].mxu0
    %v1365 = vadd.f32 0.0, %v1364
    %v1366 = vpop.f32.mrb[0].mxu0
    %1367 = vmatprep.mubr.bf16.mxu0 0
    %1368 = vmatmul.mubr.bf16.gmra.mrb[0].mxu0 %v806
    %v1369 = vpop.f32.mrb[0].mxu0
    %v1370 = vadd.f32 0.0, %v1369
    %v1371 = vpop.f32.mrb[0].mxu0
    %v1372 = vpop.f32.mrb[0].mxu0
    %v1373 = vadd.f32 0.0, %v1372
    %v1374 = vpop.f32.mrb[0].mxu0
    %1375 = vmatprep.mubr.bf16.mxu0 0
    %1376 = vmatmul.mubr.bf16.gmra.mrb[0].mxu0 %v809
    %v1377 = vpop.f32.mrb[0].mxu0
    %v1378 = vadd.f32 0.0, %v1377
    %v1379 = vpop.f32.mrb[0].mxu0
    %v1380 = vpop.f32.mrb[0].mxu0
    %v1381 = vadd.f32 0.0, %v1380
    %v1382 = vpop.f32.mrb[0].mxu0
    %1383 = vmatprep.mubr.bf16.mxu0 0
    %1384 = vmatmul.mubr.bf16.gmra.mrb[0].mxu0 %v812
    %v1385 = vpop.f32.mrb[0].mxu0
    %v1386 = vadd.f32 0.0, %v1385
    %v1387 = vpop.f32.mrb[0].mxu0
    %v1388 = vpop.f32.mrb[0].mxu0
    %v1389 = vadd.f32 0.0, %v1388
    %v1390 = vpop.f32.mrb[0].mxu0
    %1391 = vmatprep.mubr.bf16.mxu0 0
    %1392 = vmatmul.mubr.bf16.gmra.mrb[0].mxu0 %v815
    %v1393 = vpop.f32.mrb[0].mxu0
    %v1394 = vadd.f32 0.0, %v1393
    %v1395 = vpop.f32.mrb[0].mxu0
    %v1396 = vpop.f32.mrb[0].mxu0
    %v1397 = vadd.f32 0.0, %v1396
    %v1398 = vpop.f32.mrb[0].mxu0
    %1399 = vmatprep.mubr.bf16.mxu0 0
    %1400 = vmatmul.mubr.bf16.gmra.mrb[0].mxu0 %v818
    %v1401 = vpop.f32.mrb[0].mxu0
    %v1402 = vadd.f32 0.0, %v1401
    %v1403 = vpop.f32.mrb[0].mxu0
    %v1404 = vpop.f32.mrb[0].mxu0
    %v1405 = vadd.f32 0.0, %v1404
    %v1406 = vpop.f32.mrb[0].mxu0
    %1407 = vmatprep.mubr.bf16.mxu0 0
    %1408 = vmatmul.mubr.bf16.gmra.mrb[0].mxu0 %v821
    %v1409 = vpop.f32.mrb[0].mxu0
    %v1410 = vadd.f32 0.0, %v1409
    %v1411 = vpop.f32.mrb[0].mxu0
    %v1412 = vpop.f32.mrb[0].mxu0
    %v1413 = vadd.f32 0.0, %v1412
    %v1414 = vpop.f32.mrb[0].mxu0
    %1415 = vmatprep.mubr.bf16.mxu0 0
    %1416 = vmatmul.mubr.bf16.gmra.mrb[0].mxu0 %v824
    %v1417 = vpop.f32.mrb[0].mxu0
    %v1418 = vadd.f32 0.0, %v1417
    %v1419 = vpop.f32.mrb[0].mxu0
    %v1420 = vpop.f32.mrb[0].mxu0
    %v1421 = vadd.f32 0.0, %v1420
    %v1422 = vpop.f32.mrb[0].mxu0
    %1423 = vmatprep.mubr.bf16.mxu0 0
    %1424 = vmatmul.mubr.bf16.gmra.mrb[0].mxu0 %v827
    %v1425 = vpop.f32.mrb[0].mxu0
    %v1426 = vadd.f32 0.0, %v1425
    %v1427 = vpop.f32.mrb[0].mxu0
    %v1428 = vpop.f32.mrb[0].mxu0
    %v1429 = vadd.f32 0.0, %v1428
    %v1430 = vpop.f32.mrb[0].mxu0
    %1431 = vmatprep.mubr.bf16.mxu0 0
    %1432 = vmatmul.mubr.bf16.gmra.mrb[0].mxu0 %v830
    %v1433 = vpop.f32.mrb[0].mxu0
    %v1434 = vadd.f32 0.0, %v1433
    %v1435 = vpop.f32.mrb[0].mxu0
    %v1436 = vpop.f32.mrb[0].mxu0
    %v1437 = vadd.f32 0.0, %v1436
    %v1438 = vpop.f32.mrb[0].mxu0
    %1439 = vmatprep.mubr.bf16.mxu0 0
    %1440 = vmatmul.mubr.bf16.gmra.mrb[0].mxu0 %v833
    %v1441 = vpop.f32.mrb[0].mxu0
    %v1442 = vadd.f32 0.0, %v1441
    %v1443 = vpop.f32.mrb[0].mxu0
    %v1444 = vpop.f32.mrb[0].mxu0
    %v1445 = vadd.f32 0.0, %v1444
    %v1446 = vpop.f32.mrb[0].mxu0
    %1447 = vdwg.mxu0
    %vm1589 = vcmask 1046528
    %v1590 = vrot.slane %v874, 1
    %v1591 = vrot.slane %v877, 1
    %v1592 = vsel %vm1589, %v1590, %v1591
    %v1593 = vrot.slane %v882, 1
    %v1594 = vsel %vm1589, %v1591, %v1593
    %v1595 = vrot.slane %v885, 1
    %v1596 = vsel %vm1589, %v1593, %v1595
    %v1597 = vrot.slane %v890, 1
    %v1598 = vsel %vm1589, %v1595, %v1597
    %v1599 = vrot.slane %v893, 1
    %v1600 = vsel %vm1589, %v1597, %v1599
    %v1601 = vrot.slane %v898, 1
    %v1602 = vsel %vm1589, %v1599, %v1601
    %v1603 = vrot.slane %v901, 1
    %v1604 = vsel %vm1589, %v1601, %v1603
    %v1605 = vrot.slane %v906, 1
    %v1606 = vsel %vm1589, %v1603, %v1605
    %v1607 = vrot.slane %v909, 1
    %v1608 = vsel %vm1589, %v1605, %v1607
    %v1609 = vrot.slane %v914, 1
    %v1610 = vsel %vm1589, %v1607, %v1609
    %v1611 = vrot.slane %v917, 1
    %v1612 = vsel %vm1589, %v1609, %v1611
    %v1613 = vrot.slane %v922, 1
    %v1614 = vsel %vm1589, %v1611, %v1613
    %v1615 = vrot.slane %v925, 1
    %v1616 = vsel %vm1589, %v1613, %v1615
    %v1617 = vrot.slane %v930, 1
    %v1618 = vsel %vm1589, %v1615, %v1617
    %v1619 = vrot.slane %v933, 1
    %v1620 = vsel %vm1589, %v1617, %v1619
    %v1621 = vrot.slane %v938, 1
    %v1622 = vsel %vm1589, %v1619, %v1621
    %v1623 = vrot.slane %v941, 1
    %v1624 = vsel %vm1589, %v1621, %v1623
    %v1625 = vrot.slane %v946, 1
    %v1626 = vsel %vm1589, %v1623, %v1625
    %v1627 = vrot.slane %v949, 1
    %v1628 = vsel %vm1589, %v1625, %v1627
    %v1629 = vrot.slane %v954, 1
    %v1630 = vsel %vm1589, %v1627, %v1629
    %v1631 = vrot.slane %v957, 1
    %v1632 = vsel %vm1589, %v1629, %v1631
    %v1633 = vrot.slane %v962, 1
    %v1634 = vsel %vm1589, %v1631, %v1633
    %v1635 = vrot.slane %v965, 1
    %v1636 = vsel %vm1589, %v1633, %v1635
    %v1637 = vrot.slane %v970, 1
    %v1638 = vsel %vm1589, %v1635, %v1637
    %v1639 = vrot.slane %v973, 1
    %v1640 = vsel %vm1589, %v1637, %v1639
    %v1641 = vrot.slane %v978, 1
    %v1642 = vsel %vm1589, %v1639, %v1641
    %v1643 = vrot.slane %v981, 1
    %v1644 = vsel %vm1589, %v1641, %v1643
    %v1645 = vrot.slane %v986, 1
    %v1646 = vsel %vm1589, %v1643, %v1645
    %v1647 = vrot.slane %v989, 1
    %v1648 = vsel %vm1589, %v1645, %v1647
    %v1649 = vrot.slane %v994, 1
    %v1650 = vsel %vm1589, %v1647, %v1649
    %v1651 = vrot.slane %v997, 1
    %v1652 = vsel %vm1589, %v1649, %v1651
    %v1653 = vrot.slane %v1002, 1
    %v1654 = vsel %vm1589, %v1651, %v1653
    %v1655 = vrot.slane %v1005, 1
    %v1656 = vsel %vm1589, %v1653, %v1655
    %v1657 = vrot.slane %v1010, 1
    %v1658 = vsel %vm1589, %v1655, %v1657
    %v1659 = vrot.slane %v1013, 1
    %v1660 = vsel %vm1589, %v1657, %v1659
    %v1661 = vrot.slane %v1018, 1
    %v1662 = vsel %vm1589, %v1659, %v1661
    %v1663 = vrot.slane %v1021, 1
    %v1664 = vsel %vm1589, %v1661, %v1663
    %v1665 = vrot.slane %v1026, 1
    %v1666 = vsel %vm1589, %v1663, %v1665
    %v1667 = vrot.slane %v1029, 1
    %v1668 = vsel %vm1589, %v1665, %v1667
    %v1669 = vrot.slane %v1034, 1
    %v1670 = vsel %vm1589, %v1667, %v1669
    %v1671 = vrot.slane %v1037, 1
    %v1672 = vsel %vm1589, %v1669, %v1671
    %v1673 = vrot.slane %v1042, 1
    %v1674 = vsel %vm1589, %v1671, %v1673
    %v1675 = vrot.slane %v1045, 1
    %v1676 = vsel %vm1589, %v1673, %v1675
    %v1677 = vrot.slane %v1050, 1
    %v1678 = vsel %vm1589, %v1675, %v1677
    %v1679 = vrot.slane %v1053, 1
    %v1680 = vsel %vm1589, %v1677, %v1679
    %v1681 = vrot.slane %v1058, 1
    %v1682 = vsel %vm1589, %v1679, %v1681
    %v1683 = vrot.slane %v1061, 1
    %v1684 = vsel %vm1589, %v1681, %v1683
    %v1685 = vrot.slane %v1066, 1
    %v1686 = vsel %vm1589, %v1683, %v1685
    %v1687 = vrot.slane %v1069, 1
    %v1688 = vsel %vm1589, %v1685, %v1687
    %v1689 = vrot.slane %v1074, 1
    %v1690 = vsel %vm1589, %v1687, %v1689
    %v1691 = vrot.slane %v1077, 1
    %v1692 = vsel %vm1589, %v1689, %v1691
    %v1693 = vrot.slane %v1082, 1
    %v1694 = vsel %vm1589, %v1691, %v1693
    %v1695 = vrot.slane %v1085, 1
    %v1696 = vsel %vm1589, %v1693, %v1695
    %v1697 = vrot.slane %v1090, 1
    %v1698 = vsel %vm1589, %v1695, %v1697
    %v1699 = vrot.slane %v1093, 1
    %v1700 = vsel %vm1589, %v1697, %v1699
    %v1701 = vrot.slane %v1098, 1
    %v1702 = vsel %vm1589, %v1699, %v1701
    %v1703 = vrot.slane %v1101, 1
    %v1704 = vsel %vm1589, %v1701, %v1703
    %v1705 = vrot.slane %v1106, 1
    %v1706 = vsel %vm1589, %v1703, %v1705
    %v1707 = vrot.slane %v1109, 1
    %v1708 = vsel %vm1589, %v1705, %v1707
    %v1709 = vrot.slane %v1114, 1
    %v1710 = vsel %vm1589, %v1707, %v1709
    %v1711 = vrot.slane %v1117, 1
    %v1712 = vsel %vm1589, %v1709, %v1711
    %v1713 = vrot.slane %v1122, 1
    %v1714 = vsel %vm1589, %v1711, %v1713
    %v1715 = vrot.slane %v1125, 1
    %v1716 = vsel %vm1589, %v1713, %v1715
    %v1717 = vrot.slane %v1130, 1
    %v1718 = vsel %vm1589, %v1715, %v1717
    %v1719 = vrot.slane %v1133, 1
    %v1720 = vsel %vm1589, %v1717, %v1719
    %v1721 = vrot.slane %v1138, 1
    %v1722 = vsel %vm1589, %v1719, %v1721
    %v1723 = vrot.slane %v1141, 1
    %v1724 = vsel %vm1589, %v1721, %v1723
    %v1725 = vrot.slane %v1146, 1
    %v1726 = vsel %vm1589, %v1723, %v1725
    %v1727 = vrot.slane %v1149, 1
    %v1728 = vsel %vm1589, %v1725, %v1727
    %v1729 = vrot.slane %v1154, 1
    %v1730 = vsel %vm1589, %v1727, %v1729
    %v1731 = vrot.slane %v1157, 1
    %v1732 = vsel %vm1589, %v1729, %v1731
    %v1733 = vrot.slane %v1162, 1
    %v1734 = vsel %vm1589, %v1731, %v1733
    %v1735 = vrot.slane %v1165, 1
    %v1736 = vsel %vm1589, %v1733, %v1735
    %v1737 = vrot.slane %v1170, 1
    %v1738 = vsel %vm1589, %v1735, %v1737
    %v1739 = vrot.slane %v1173, 1
    %v1740 = vsel %vm1589, %v1737, %v1739
    %v1741 = vrot.slane %v1178, 1
    %v1742 = vsel %vm1589, %v1739, %v1741
    %v1743 = vrot.slane %v1181, 1
    %v1744 = vsel %vm1589, %v1741, %v1743
    %v1745 = vrot.slane %v1186, 1
    %v1746 = vsel %vm1589, %v1743, %v1745
    %v1747 = vrot.slane %v1189, 1
    %v1748 = vsel %vm1589, %v1745, %v1747
    %v1749 = vrot.slane %v1194, 1
    %v1750 = vsel %vm1589, %v1747, %v1749
    %v1751 = vrot.slane %v1197, 1
    %v1752 = vsel %vm1589, %v1749, %v1751
    %v1753 = vrot.slane %v1202, 1
    %v1754 = vsel %vm1589, %v1751, %v1753
    %v1755 = vrot.slane %v1205, 1
    %v1756 = vsel %vm1589, %v1753, %v1755
    %v1757 = vrot.slane %v1210, 1
    %v1758 = vsel %vm1589, %v1755, %v1757
    %v1759 = vrot.slane %v1213, 1
    %v1760 = vsel %vm1589, %v1757, %v1759
    %v1761 = vrot.slane %v1218, 1
    %v1762 = vsel %vm1589, %v1759, %v1761
    %v1763 = vrot.slane %v1221, 1
    %v1764 = vsel %vm1589, %v1761, %v1763
    %v1765 = vrot.slane %v1226, 1
    %v1766 = vsel %vm1589, %v1763, %v1765
    %v1767 = vrot.slane %v1229, 1
    %v1768 = vsel %vm1589, %v1765, %v1767
    %v1769 = vrot.slane %v1234, 1
    %v1770 = vsel %vm1589, %v1767, %v1769
    %v1771 = vrot.slane %v1237, 1
    %v1772 = vsel %vm1589, %v1769, %v1771
    %v1773 = vrot.slane %v1242, 1
    %v1774 = vsel %vm1589, %v1771, %v1773
    %v1775 = vrot.slane %v1245, 1
    %v1776 = vsel %vm1589, %v1773, %v1775
    %v1777 = vrot.slane %v1250, 1
    %v1778 = vsel %vm1589, %v1775, %v1777
    %v1779 = vrot.slane %v1253, 1
    %v1780 = vsel %vm1589, %v1777, %v1779
    %v1781 = vrot.slane %v1258, 1
    %v1782 = vsel %vm1589, %v1779, %v1781
    %v1783 = vrot.slane %v1261, 1
    %v1784 = vsel %vm1589, %v1781, %v1783
    %v1785 = vrot.slane %v1266, 1
    %v1786 = vsel %vm1589, %v1783, %v1785
    %v1787 = vrot.slane %v1269, 1
    %v1788 = vsel %vm1589, %v1785, %v1787
    %v1789 = vrot.slane %v1274, 1
    %v1790 = vsel %vm1589, %v1787, %v1789
    %v1791 = vrot.slane %v1277, 1
    %v1792 = vsel %vm1589, %v1789, %v1791
    %v1793 = vrot.slane %v1282, 1
    %v1794 = vsel %vm1589, %v1791, %v1793
    %v1795 = vrot.slane %v1285, 1
    %v1796 = vsel %vm1589, %v1793, %v1795
    %v1797 = vrot.slane %v1290, 1
    %v1798 = vsel %vm1589, %v1795, %v1797
    %v1799 = vrot.slane %v1293, 1
    %v1800 = vsel %vm1589, %v1797, %v1799
    %v1801 = vrot.slane %v1298, 1
    %v1802 = vsel %vm1589, %v1799, %v1801
    %v1803 = vrot.slane %v1301, 1
    %v1804 = vsel %vm1589, %v1801, %v1803
    %v1805 = vrot.slane %v1306, 1
    %v1806 = vsel %vm1589, %v1803, %v1805
    %v1807 = vrot.slane %v1309, 1
    %v1808 = vsel %vm1589, %v1805, %v1807
    %v1809 = vrot.slane %v1314, 1
    %v1810 = vsel %vm1589, %v1807, %v1809
    %v1811 = vrot.slane %v1317, 1
    %v1812 = vsel %vm1589, %v1809, %v1811
    %v1813 = vrot.slane %v1322, 1
    %v1814 = vsel %vm1589, %v1811, %v1813
    %v1815 = vrot.slane %v1325, 1
    %v1816 = vsel %vm1589, %v1813, %v1815
    %v1817 = vrot.slane %v1330, 1
    %v1818 = vsel %vm1589, %v1815, %v1817
    %v1819 = vrot.slane %v1333, 1
    %v1820 = vsel %vm1589, %v1817, %v1819
    %v1821 = vrot.slane %v1338, 1
    %v1822 = vsel %vm1589, %v1819, %v1821
    %v1823 = vrot.slane %v1341, 1
    %v1824 = vsel %vm1589, %v1821, %v1823
    %v1825 = vrot.slane %v1346, 1
    %v1826 = vsel %vm1589, %v1823, %v1825
    %v1827 = vrot.slane %v1349, 1
    %v1828 = vsel %vm1589, %v1825, %v1827
    %v1829 = vrot.slane %v1354, 1
    %v1830 = vsel %vm1589, %v1827, %v1829
    %v1831 = vrot.slane %v1357, 1
    %v1832 = vsel %vm1589, %v1829, %v1831
    %v1833 = vrot.slane %v1362, 1
    %v1834 = vsel %vm1589, %v1831, %v1833
    %v1835 = vrot.slane %v1365, 1
    %v1836 = vsel %vm1589, %v1833, %v1835
    %v1837 = vrot.slane %v1370, 1
    %v1838 = vsel %vm1589, %v1835, %v1837
    %v1839 = vrot.slane %v1373, 1
    %v1840 = vsel %vm1589, %v1837, %v1839
    %v1841 = vrot.slane %v1378, 1
    %v1842 = vsel %vm1589, %v1839, %v1841
    %v1843 = vrot.slane %v1381, 1
    %v1844 = vsel %vm1589, %v1841, %v1843
    %v1845 = vrot.slane %v1386, 1
    %v1846 = vsel %vm1589, %v1843, %v1845
    %v1847 = vrot.slane %v1389, 1
    %v1848 = vsel %vm1589, %v1845, %v1847
    %v1849 = vrot.slane %v1394, 1
    %v1850 = vsel %vm1589, %v1847, %v1849
    %v1851 = vrot.slane %v1397, 1
    %v1852 = vsel %vm1589, %v1849, %v1851
    %v1853 = vrot.slane %v1402, 1
    %v1854 = vsel %vm1589, %v1851, %v1853
    %v1855 = vrot.slane %v1405, 1
    %v1856 = vsel %vm1589, %v1853, %v1855
    %v1857 = vrot.slane %v1410, 1
    %v1858 = vsel %vm1589, %v1855, %v1857
    %v1859 = vrot.slane %v1413, 1
    %v1860 = vsel %vm1589, %v1857, %v1859
    %v1861 = vrot.slane %v1418, 1
    %v1862 = vsel %vm1589, %v1859, %v1861
    %v1863 = vrot.slane %v1421, 1
    %v1864 = vsel %vm1589, %v1861, %v1863
    %v1865 = vrot.slane %v1426, 1
    %v1866 = vsel %vm1589, %v1863, %v1865
    %v1867 = vrot.slane %v1429, 1
    %v1868 = vsel %vm1589, %v1865, %v1867
    %v1869 = vrot.slane %v1434, 1
    %v1870 = vsel %vm1589, %v1867, %v1869
    %v2012 = vmax.f32 %v874, %v1592
    %v2013 = vmax.f32 %v877, %v1594
    %v2014 = vmax.f32 %v882, %v1596
    %v2015 = vmax.f32 %v885, %v1598
    %v2016 = vmax.f32 %v890, %v1600
    %v2017 = vmax.f32 %v893, %v1602
    %v2018 = vmax.f32 %v898, %v1604
    %v2019 = vmax.f32 %v901, %v1606
    %v2020 = vmax.f32 %v906, %v1608
    %v2021 = vmax.f32 %v909, %v1610
    %v2022 = vmax.f32 %v914, %v1612
    %v2023 = vmax.f32 %v917, %v1614
    %v2024 = vmax.f32 %v922, %v1616
    %v2025 = vmax.f32 %v925, %v1618
    %v2026 = vmax.f32 %v930, %v1620
    %v2027 = vmax.f32 %v933, %v1622
    %v2028 = vmax.f32 %v938, %v1624
    %v2029 = vmax.f32 %v941, %v1626
    %v2030 = vmax.f32 %v946, %v1628
    %v2031 = vmax.f32 %v949, %v1630
    %v2032 = vmax.f32 %v954, %v1632
    %v2033 = vmax.f32 %v957, %v1634
    %v2034 = vmax.f32 %v962, %v1636
    %v2035 = vmax.f32 %v965, %v1638
    %v2036 = vmax.f32 %v970, %v1640
    %v2037 = vmax.f32 %v973, %v1642
    %v2038 = vmax.f32 %v978, %v1644
    %v2039 = vmax.f32 %v981, %v1646
    %v2040 = vmax.f32 %v986, %v1648
    %v2041 = vmax.f32 %v989, %v1650
    %v2042 = vmax.f32 %v994, %v1652
    %v2043 = vmax.f32 %v997, %v1654
    %v2044 = vmax.f32 %v1002, %v1656
    %v2045 = vmax.f32 %v1005, %v1658
    %v2046 = vmax.f32 %v1010, %v1660
    %v2047 = vmax.f32 %v1013, %v1662
    %v2048 = vmax.f32 %v1018, %v1664
    %v2049 = vmax.f32 %v1021, %v1666
    %v2050 = vmax.f32 %v1026, %v1668
    %v2051 = vmax.f32 %v1029, %v1670
    %v2052 = vmax.f32 %v1034, %v1672
    %v2053 = vmax.f32 %v1037, %v1674
    %v2054 = vmax.f32 %v1042, %v1676
    %v2055 = vmax.f32 %v1045, %v1678
    %v2056 = vmax.f32 %v1050, %v1680
    %v2057 = vmax.f32 %v1053, %v1682
    %v2058 = vmax.f32 %v1058, %v1684
    %v2059 = vmax.f32 %v1061, %v1686
    %v2060 = vmax.f32 %v1066, %v1688
    %v2061 = vmax.f32 %v1069, %v1690
    %v2062 = vmax.f32 %v1074, %v1692
    %v2063 = vmax.f32 %v1077, %v1694
    %v2064 = vmax.f32 %v1082, %v1696
    %v2065 = vmax.f32 %v1085, %v1698
    %v2066 = vmax.f32 %v1090, %v1700
    %v2067 = vmax.f32 %v1093, %v1702
    %v2068 = vmax.f32 %v1098, %v1704
    %v2069 = vmax.f32 %v1101, %v1706
    %v2070 = vmax.f32 %v1106, %v1708
    %v2071 = vmax.f32 %v1109, %v1710
    %v2072 = vmax.f32 %v1114, %v1712
    %v2073 = vmax.f32 %v1117, %v1714
    %v2074 = vmax.f32 %v1122, %v1716
    %v2075 = vmax.f32 %v1125, %v1718
    %v2076 = vmax.f32 %v1130, %v1720
    %v2077 = vmax.f32 %v1133, %v1722
    %v2078 = vmax.f32 %v1138, %v1724
    %v2079 = vmax.f32 %v1141, %v1726
    %v2080 = vmax.f32 %v1146, %v1728
    %v2081 = vmax.f32 %v1149, %v1730
    %v2082 = vmax.f32 %v1154, %v1732
    %v2083 = vmax.f32 %v1157, %v1734
    %v2084 = vmax.f32 %v1162, %v1736
    %v2085 = vmax.f32 %v1165, %v1738
    %v2086 = vmax.f32 %v1170, %v1740
    %v2087 = vmax.f32 %v1173, %v1742
    %v2088 = vmax.f32 %v1178, %v1744
    %v2089 = vmax.f32 %v1181, %v1746
    %v2090 = vmax.f32 %v1186, %v1748
    %v2091 = vmax.f32 %v1189, %v1750
    %v2092 = vmax.f32 %v1194, %v1752
    %v2093 = vmax.f32 %v1197, %v1754
    %v2094 = vmax.f32 %v1202, %v1756
    %v2095 = vmax.f32 %v1205, %v1758
    %v2096 = vmax.f32 %v1210, %v1760
    %v2097 = vmax.f32 %v1213, %v1762
    %v2098 = vmax.f32 %v1218, %v1764
    %v2099 = vmax.f32 %v1221, %v1766
    %v2100 = vmax.f32 %v1226, %v1768
    %v2101 = vmax.f32 %v1229, %v1770
    %v2102 = vmax.f32 %v1234, %v1772
    %v2103 = vmax.f32 %v1237, %v1774
    %v2104 = vmax.f32 %v1242, %v1776
    %v2105 = vmax.f32 %v1245, %v1778
    %v2106 = vmax.f32 %v1250, %v1780
    %v2107 = vmax.f32 %v1253, %v1782
    %v2108 = vmax.f32 %v1258, %v1784
    %v2109 = vmax.f32 %v1261, %v1786
    %v2110 = vmax.f32 %v1266, %v1788
    %v2111 = vmax.f32 %v1269, %v1790
    %v2112 = vmax.f32 %v1274, %v1792
    %v2113 = vmax.f32 %v1277, %v1794
    %v2114 = vmax.f32 %v1282, %v1796
    %v2115 = vmax.f32 %v1285, %v1798
    %v2116 = vmax.f32 %v1290, %v1800
    %v2117 = vmax.f32 %v1293, %v1802
    %v2118 = vmax.f32 %v1298, %v1804
    %v2119 = vmax.f32 %v1301, %v1806
    %v2120 = vmax.f32 %v1306, %v1808
    %v2121 = vmax.f32 %v1309, %v1810
    %v2122 = vmax.f32 %v1314, %v1812
    %v2123 = vmax.f32 %v1317, %v1814
    %v2124 = vmax.f32 %v1322, %v1816
    %v2125 = vmax.f32 %v1325, %v1818
    %v2126 = vmax.f32 %v1330, %v1820
    %v2127 = vmax.f32 %v1333, %v1822
    %v2128 = vmax.f32 %v1338, %v1824
    %v2129 = vmax.f32 %v1341, %v1826
    %v2130 = vmax.f32 %v1346, %v1828
    %v2131 = vmax.f32 %v1349, %v1830
    %v2132 = vmax.f32 %v1354, %v1832
    %v2133 = vmax.f32 %v1357, %v1834
    %v2134 = vmax.f32 %v1362, %v1836
    %v2135 = vmax.f32 %v1365, %v1838
    %v2136 = vmax.f32 %v1370, %v1840
    %v2137 = vmax.f32 %v1373, %v1842
    %v2138 = vmax.f32 %v1378, %v1844
    %v2139 = vmax.f32 %v1381, %v1846
    %v2140 = vmax.f32 %v1386, %v1848
    %v2141 = vmax.f32 %v1389, %v1850
    %v2142 = vmax.f32 %v1394, %v1852
    %v2143 = vmax.f32 %v1397, %v1854
    %v2144 = vmax.f32 %v1402, %v1856
    %v2145 = vmax.f32 %v1405, %v1858
    %v2146 = vmax.f32 %v1410, %v1860
    %v2147 = vmax.f32 %v1413, %v1862
    %v2148 = vmax.f32 %v1418, %v1864
    %v2149 = vmax.f32 %v1421, %v1866
    %v2150 = vmax.f32 %v1426, %v1868
    %v2151 = vmax.f32 %v1429, %v1870
    %v2152 = vmax.f32 %v1434, %v1869
    %v2156 = vrot.slane %v1437, 1
    %v2157 = vsel %vm1589, %v1869, %v2156
    %v2158 = vrot.slane %v1442, 1
    %v2159 = vsel %vm1589, %v2156, %v2158
    %v2160 = vrot.slane %v1445, 1
    %v2161 = vsel %vm1589, %v2158, %v2160
    %v2166 = vmax.f32 %v1434, %v2157
    %v2167 = vmax.f32 %v1437, %v2159
    %v2168 = vmax.f32 %v1442, %v2161
    %v2169 = vmax.f32 %v1445, %v2160
    %v2170 = vmax.f32 %v2012, %v2015
    %v2171 = vmax.f32 %v2013, %v2016
    %v2172 = vmax.f32 %v2014, %v2017
    %v2173 = vmax.f32 %v2015, %v2018
    %v2174 = vmax.f32 %v2016, %v2019
    %v2175 = vmax.f32 %v2017, %v2020
    %v2176 = vmax.f32 %v2018, %v2021
    %v2177 = vmax.f32 %v2019, %v2022
    %v2178 = vmax.f32 %v2020, %v2023
    %v2179 = vmax.f32 %v2021, %v2024
    %v2180 = vmax.f32 %v2022, %v2025
    %v2181 = vmax.f32 %v2023, %v2026
    %v2182 = vmax.f32 %v2024, %v2027
    %v2183 = vmax.f32 %v2025, %v2028
    %v2184 = vmax.f32 %v2026, %v2029
    %v2185 = vmax.f32 %v2027, %v2030
    %v2186 = vmax.f32 %v2028, %v2031
    %v2187 = vmax.f32 %v2029, %v2032
    %v2188 = vmax.f32 %v2030, %v2033
    %v2189 = vmax.f32 %v2031, %v2034
    %v2190 = vmax.f32 %v2032, %v2035
    %v2191 = vmax.f32 %v2033, %v2036
    %v2192 = vmax.f32 %v2034, %v2037
    %v2193 = vmax.f32 %v2035, %v2038
    %v2194 = vmax.f32 %v2036, %v2039
    %v2195 = vmax.f32 %v2037, %v2040
    %v2196 = vmax.f32 %v2038, %v2041
    %v2197 = vmax.f32 %v2039, %v2042
    %v2198 = vmax.f32 %v2040, %v2043
    %v2199 = vmax.f32 %v2041, %v2044
    %v2200 = vmax.f32 %v2042, %v2045
    %v2201 = vmax.f32 %v2043, %v2046
    %v2202 = vmax.f32 %v2044, %v2047
    %v2203 = vmax.f32 %v2045, %v2048
    %v2204 = vmax.f32 %v2046, %v2049
    %v2205 = vmax.f32 %v2047, %v2050
    %v2206 = vmax.f32 %v2048, %v2051
    %v2207 = vmax.f32 %v2049, %v2052
    %v2208 = vmax.f32 %v2050, %v2053
    %v2209 = vmax.f32 %v2051, %v2054
    %v2210 = vmax.f32 %v2052, %v2055
    %v2211 = vmax.f32 %v2053, %v2056
    %v2212 = vmax.f32 %v2054, %v2057
    %v2213 = vmax.f32 %v2055, %v2058
    %v2214 = vmax.f32 %v2056, %v2059
    %v2215 = vmax.f32 %v2057, %v2060
    %v2216 = vmax.f32 %v2058, %v2061
    %v2217 = vmax.f32 %v2059, %v2062
    %v2218 = vmax.f32 %v2060, %v2063
    %v2219 = vmax.f32 %v2061, %v2064
    %v2220 = vmax.f32 %v2062, %v2065
    %v2221 = vmax.f32 %v2063, %v2066
    %v2222 = vmax.f32 %v2064, %v2067
    %v2223 = vmax.f32 %v2065, %v2068
    %v2224 = vmax.f32 %v2066, %v2069
    %v2225 = vmax.f32 %v2067, %v2070
    %v2226 = vmax.f32 %v2068, %v2071
    %v2227 = vmax.f32 %v2069, %v2072
    %v2228 = vmax.f32 %v2070, %v2073
    %v2229 = vmax.f32 %v2071, %v2074
    %v2230 = vmax.f32 %v2072, %v2075
    %v2231 = vmax.f32 %v2073, %v2076
    %v2232 = vmax.f32 %v2074, %v2077
    %v2233 = vmax.f32 %v2075, %v2078
    %v2234 = vmax.f32 %v2076, %v2079
    %v2235 = vmax.f32 %v2077, %v2080
    %v2236 = vmax.f32 %v2078, %v2081
    %v2237 = vmax.f32 %v2079, %v2082
    %v2238 = vmax.f32 %v2080, %v2083
    %v2239 = vmax.f32 %v2081, %v2084
    %v2240 = vmax.f32 %v2082, %v2085
    %v2241 = vmax.f32 %v2083, %v2086
    %v2242 = vmax.f32 %v2084, %v2087
    %v2243 = vmax.f32 %v2085, %v2088
    %v2244 = vmax.f32 %v2086, %v2089
    %v2245 = vmax.f32 %v2087, %v2090
    %v2246 = vmax.f32 %v2088, %v2091
    %v2247 = vmax.f32 %v2089, %v2092
    %v2248 = vmax.f32 %v2090, %v2093
    %v2249 = vmax.f32 %v2091, %v2094
    %v2250 = vmax.f32 %v2092, %v2095
    %v2251 = vmax.f32 %v2093, %v2096
    %v2252 = vmax.f32 %v2094, %v2097
    %v2253 = vmax.f32 %v2095, %v2098
    %v2254 = vmax.f32 %v2096, %v2099
    %v2255 = vmax.f32 %v2097, %v2100
    %v2256 = vmax.f32 %v2098, %v2101
    %v2257 = vmax.f32 %v2099, %v2102
    %v2258 = vmax.f32 %v2100, %v2103
    %v2259 = vmax.f32 %v2101, %v2104
    %v2260 = vmax.f32 %v2102, %v2105
    %v2261 = vmax.f32 %v2103, %v2106
    %v2262 = vmax.f32 %v2104, %v2107
    %v2263 = vmax.f32 %v2105, %v2108
    %v2264 = vmax.f32 %v2106, %v2109
    %v2265 = vmax.f32 %v2107, %v2110
    %v2266 = vmax.f32 %v2108, %v2111
    %v2267 = vmax.f32 %v2109, %v2112
    %v2268 = vmax.f32 %v2110, %v2113
    %v2269 = vmax.f32 %v2111, %v2114
    %v2270 = vmax.f32 %v2112, %v2115
    %v2271 = vmax.f32 %v2113, %v2116
    %v2272 = vmax.f32 %v2114, %v2117
    %v2273 = vmax.f32 %v2115, %v2118
    %v2274 = vmax.f32 %v2116, %v2119
    %v2275 = vmax.f32 %v2117, %v2120
    %v2276 = vmax.f32 %v2118, %v2121
    %v2277 = vmax.f32 %v2119, %v2122
    %v2278 = vmax.f32 %v2120, %v2123
    %v2279 = vmax.f32 %v2121, %v2124
    %v2280 = vmax.f32 %v2122, %v2125
    %v2281 = vmax.f32 %v2123, %v2126
    %v2282 = vmax.f32 %v2124, %v2127
    %v2283 = vmax.f32 %v2125, %v2128
    %v2284 = vmax.f32 %v2126, %v2129
    %v2285 = vmax.f32 %v2127, %v2130
    %v2286 = vmax.f32 %v2128, %v2131
    %v2287 = vmax.f32 %v2129, %v2132
    %v2288 = vmax.f32 %v2130, %v2133
    %v2289 = vmax.f32 %v2131, %v2134
    %v2290 = vmax.f32 %v2132, %v2135
    %v2291 = vmax.f32 %v2133, %v2136
    %v2292 = vmax.f32 %v2134, %v2137
    %v2293 = vmax.f32 %v2135, %v2138
    %v2294 = vmax.f32 %v2136, %v2139
    %v2295 = vmax.f32 %v2137, %v2140
    %v2296 = vmax.f32 %v2138, %v2141
    %v2297 = vmax.f32 %v2139, %v2142
    %v2298 = vmax.f32 %v2140, %v2143
    %v2299 = vmax.f32 %v2141, %v2144
    %v2300 = vmax.f32 %v2142, %v2145
    %v2301 = vmax.f32 %v2143, %v2146
    %v2302 = vmax.f32 %v2144, %v2147
    %v2303 = vmax.f32 %v2145, %v2148
    %v2304 = vmax.f32 %v2146, %v2149
    %v2305 = vmax.f32 %v2147, %v2150
    %v2306 = vmax.f32 %v2148, %v2151
    %v2307 = vmax.f32 %v2149, %v2166
    %v2308 = vmax.f32 %v2150, %v2167
    %v2309 = vmax.f32 %v2151, %v2168
    %v2310 = vmax.f32 %v2152, %v2169
    %2311 = vst.msk [vmem:[#allocation2] sm:$0xff] %vm40, %v2170
    %2312 = vst.msk [vmem:[#allocation2 + $0x8] sm:$0xff] %vm40, %v2171
    %2313 = vst.msk [vmem:[#allocation2 + $0x10] sm:$0xff] %vm40, %v2172
    %2314 = vst.msk [vmem:[#allocation2 + $0x18] sm:$0xff] %vm40, %v2173
    %2315 = vst.msk [vmem:[#allocation2 + $0x20] sm:$0xff] %vm40, %v2174
    %2316 = vst.msk [vmem:[#allocation2 + $0x28] sm:$0xff] %vm40, %v2175
    %2317 = vst.msk [vmem:[#allocation2 + $0x30] sm:$0xff] %vm40, %v2176
    %2318 = vst.msk [vmem:[#allocation2 + $0x38] sm:$0xff] %vm40, %v2177
    %2319 = vst.msk [vmem:[#allocation2 + $0x40] sm:$0xff] %vm40, %v2178
    %2320 = vst.msk [vmem:[#allocation2 + $0x48] sm:$0xff] %vm40, %v2179
    %2321 = vst.msk [vmem:[#allocation2 + $0x50] sm:$0xff] %vm40, %v2180
    %2322 = vst.msk [vmem:[#allocation2 + $0x58] sm:$0xff] %vm40, %v2181
    %2323 = vst.msk [vmem:[#allocation2 + $0x60] sm:$0xff] %vm40, %v2182
    %2324 = vst.msk [vmem:[#allocation2 + $0x68] sm:$0xff] %vm40, %v2183
    %2325 = vst.msk [vmem:[#allocation2 + $0x70] sm:$0xff] %vm40, %v2184
    %2326 = vst.msk [vmem:[#allocation2 + $0x78] sm:$0xff] %vm40, %v2185
    %2327 = vst.msk [vmem:[#allocation2 + $0x80] sm:$0xff] %vm40, %v2186
    %2328 = vst.msk [vmem:[#allocation2 + $0x88] sm:$0xff] %vm40, %v2187
    %2329 = vst.msk [vmem:[#allocation2 + $0x90] sm:$0xff] %vm40, %v2188
    %2330 = vst.msk [vmem:[#allocation2 + $0x98] sm:$0xff] %vm40, %v2189
    %2331 = vst.msk [vmem:[#allocation2 + $0xa0] sm:$0xff] %vm40, %v2190
    %2332 = vst.msk [vmem:[#allocation2 + $0xa8] sm:$0xff] %vm40, %v2191
    %2333 = vst.msk [vmem:[#allocation2 + $0xb0] sm:$0xff] %vm40, %v2192
    %2334 = vst.msk [vmem:[#allocation2 + $0xb8] sm:$0xff] %vm40, %v2193
    %2335 = vst.msk [vmem:[#allocation2 + $0xc0] sm:$0xff] %vm40, %v2194
    %2336 = vst.msk [vmem:[#allocation2 + $0xc8] sm:$0xff] %vm40, %v2195
    %2337 = vst.msk [vmem:[#allocation2 + $0xd0] sm:$0xff] %vm40, %v2196
    %2338 = vst.msk [vmem:[#allocation2 + $0xd8] sm:$0xff] %vm40, %v2197
    %2339 = vst.msk [vmem:[#allocation2 + $0xe0] sm:$0xff] %vm40, %v2198
    %2340 = vst.msk [vmem:[#allocation2 + $0xe8] sm:$0xff] %vm40, %v2199
    %2341 = vst.msk [vmem:[#allocation2 + $0xf0] sm:$0xff] %vm40, %v2200
    %2342 = vst.msk [vmem:[#allocation2 + $0xf8] sm:$0xff] %vm40, %v2201
    %2343 = vst.msk [vmem:[#allocation2 + $0x100] sm:$0xff] %vm40, %v2202
    %2344 = vst.msk [vmem:[#allocation2 + $0x108] sm:$0xff] %vm40, %v2203
    %2345 = vst.msk [vmem:[#allocation2 + $0x110] sm:$0xff] %vm40, %v2204
    %2346 = vst.msk [vmem:[#allocation2 + $0x118] sm:$0xff] %vm40, %v2205
    %2347 = vst.msk [vmem:[#allocation2 + $0x120] sm:$0xff] %vm40, %v2206
    %2348 = vst.msk [vmem:[#allocation2 + $0x128] sm:$0xff] %vm40, %v2207
    %2349 = vst.msk [vmem:[#allocation2 + $0x130] sm:$0xff] %vm40, %v2208
    %2350 = vst.msk [vmem:[#allocation2 + $0x138] sm:$0xff] %vm40, %v2209
    %2351 = vst.msk [vmem:[#allocation2 + $0x140] sm:$0xff] %vm40, %v2210
    %2352 = vst.msk [vmem:[#allocation2 + $0x148] sm:$0xff] %vm40, %v2211
    %2353 = vst.msk [vmem:[#allocation2 + $0x150] sm:$0xff] %vm40, %v2212
    %2354 = vst.msk [vmem:[#allocation2 + $0x158] sm:$0xff] %vm40, %v2213
    %2355 = vst.msk [vmem:[#allocation2 + $0x160] sm:$0xff] %vm40, %v2214
    %2356 = vst.msk [vmem:[#allocation2 + $0x168] sm:$0xff] %vm40, %v2215
    %2357 = vst.msk [vmem:[#allocation2 + $0x170] sm:$0xff] %vm40, %v2216
    %2358 = vst.msk [vmem:[#allocation2 + $0x178] sm:$0xff] %vm40, %v2217
    %2359 = vst.msk [vmem:[#allocation2 + $0x180] sm:$0xff] %vm40, %v2218
    %2360 = vst.msk [vmem:[#allocation2 + $0x188] sm:$0xff] %vm40, %v2219
    %2361 = vst.msk [vmem:[#allocation2 + $0x190] sm:$0xff] %vm40, %v2220
    %2362 = vst.msk [vmem:[#allocation2 + $0x198] sm:$0xff] %vm40, %v2221
    %2363 = vst.msk [vmem:[#allocation2 + $0x1a0] sm:$0xff] %vm40, %v2222
    %2364 = vst.msk [vmem:[#allocation2 + $0x1a8] sm:$0xff] %vm40, %v2223
    %2365 = vst.msk [vmem:[#allocation2 + $0x1b0] sm:$0xff] %vm40, %v2224
    %2366 = vst.msk [vmem:[#allocation2 + $0x1b8] sm:$0xff] %vm40, %v2225
    %2367 = vst.msk [vmem:[#allocation2 + $0x1c0] sm:$0xff] %vm40, %v2226
    %2368 = vst.msk [vmem:[#allocation2 + $0x1c8] sm:$0xff] %vm40, %v2227
    %2369 = vst.msk [vmem:[#allocation2 + $0x1d0] sm:$0xff] %vm40, %v2228
    %2370 = vst.msk [vmem:[#allocation2 + $0x1d8] sm:$0xff] %vm40, %v2229
    %2371 = vst.msk [vmem:[#allocation2 + $0x1e0] sm:$0xff] %vm40, %v2230
    %2372 = vst.msk [vmem:[#allocation2 + $0x1e8] sm:$0xff] %vm40, %v2231
    %2373 = vst.msk [vmem:[#allocation2 + $0x1f0] sm:$0xff] %vm40, %v2232
    %2374 = vst.msk [vmem:[#allocation2 + $0x1f8] sm:$0xff] %vm40, %v2233
    %2375 = vst.msk [vmem:[#allocation2 + $0x200] sm:$0xff] %vm40, %v2234
    %2376 = vst.msk [vmem:[#allocation2 + $0x208] sm:$0xff] %vm40, %v2235
    %2377 = vst.msk [vmem:[#allocation2 + $0x210] sm:$0xff] %vm40, %v2236
    %2378 = vst.msk [vmem:[#allocation2 + $0x218] sm:$0xff] %vm40, %v2237
    %2379 = vst.msk [vmem:[#allocation2 + $0x220] sm:$0xff] %vm40, %v2238
    %2380 = vst.msk [vmem:[#allocation2 + $0x228] sm:$0xff] %vm40, %v2239
    %2381 = vst.msk [vmem:[#allocation2 + $0x230] sm:$0xff] %vm40, %v2240
    %2382 = vst.msk [vmem:[#allocation2 + $0x238] sm:$0xff] %vm40, %v2241
    %2383 = vst.msk [vmem:[#allocation2 + $0x240] sm:$0xff] %vm40, %v2242
    %2384 = vst.msk [vmem:[#allocation2 + $0x248] sm:$0xff] %vm40, %v2243
    %2385 = vst.msk [vmem:[#allocation2 + $0x250] sm:$0xff] %vm40, %v2244
    %2386 = vst.msk [vmem:[#allocation2 + $0x258] sm:$0xff] %vm40, %v2245
    %2387 = vst.msk [vmem:[#allocation2 + $0x260] sm:$0xff] %vm40, %v2246
    %2388 = vst.msk [vmem:[#allocation2 + $0x268] sm:$0xff] %vm40, %v2247
    %2389 = vst.msk [vmem:[#allocation2 + $0x270] sm:$0xff] %vm40, %v2248
    %2390 = vst.msk [vmem:[#allocation2 + $0x278] sm:$0xff] %vm40, %v2249
    %2391 = vst.msk [vmem:[#allocation2 + $0x280] sm:$0xff] %vm40, %v2250
    %2392 = vst.msk [vmem:[#allocation2 + $0x288] sm:$0xff] %vm40, %v2251
    %2393 = vst.msk [vmem:[#allocation2 + $0x290] sm:$0xff] %vm40, %v2252
    %2394 = vst.msk [vmem:[#allocation2 + $0x298] sm:$0xff] %vm40, %v2253
    %2395 = vst.msk [vmem:[#allocation2 + $0x2a0] sm:$0xff] %vm40, %v2254
    %2396 = vst.msk [vmem:[#allocation2 + $0x2a8] sm:$0xff] %vm40, %v2255
    %2397 = vst.msk [vmem:[#allocation2 + $0x2b0] sm:$0xff] %vm40, %v2256
    %2398 = vst.msk [vmem:[#allocation2 + $0x2b8] sm:$0xff] %vm40, %v2257
    %2399 = vst.msk [vmem:[#allocation2 + $0x2c0] sm:$0xff] %vm40, %v2258
    %2400 = vst.msk [vmem:[#allocation2 + $0x2c8] sm:$0xff] %vm40, %v2259
    %2401 = vst.msk [vmem:[#allocation2 + $0x2d0] sm:$0xff] %vm40, %v2260
    %2402 = vst.msk [vmem:[#allocation2 + $0x2d8] sm:$0xff] %vm40, %v2261
    %2403 = vst.msk [vmem:[#allocation2 + $0x2e0] sm:$0xff] %vm40, %v2262
    %2404 = vst.msk [vmem:[#allocation2 + $0x2e8] sm:$0xff] %vm40, %v2263
    %2405 = vst.msk [vmem:[#allocation2 + $0x2f0] sm:$0xff] %vm40, %v2264
    %2406 = vst.msk [vmem:[#allocation2 + $0x2f8] sm:$0xff] %vm40, %v2265
    %2407 = vst.msk [vmem:[#allocation2 + $0x300] sm:$0xff] %vm40, %v2266
    %2408 = vst.msk [vmem:[#allocation2 + $0x308] sm:$0xff] %vm40, %v2267
    %2409 = vst.msk [vmem:[#allocation2 + $0x310] sm:$0xff] %vm40, %v2268
    %2410 = vst.msk [vmem:[#allocation2 + $0x318] sm:$0xff] %vm40, %v2269
    %2411 = vst.msk [vmem:[#allocation2 + $0x320] sm:$0xff] %vm40, %v2270
    %2412 = vst.msk [vmem:[#allocation2 + $0x328] sm:$0xff] %vm40, %v2271
    %2413 = vst.msk [vmem:[#allocation2 + $0x330] sm:$0xff] %vm40, %v2272
    %2414 = vst.msk [vmem:[#allocation2 + $0x338] sm:$0xff] %vm40, %v2273
    %2415 = vst.msk [vmem:[#allocation2 + $0x340] sm:$0xff] %vm40, %v2274
    %2416 = vst.msk [vmem:[#allocation2 + $0x348] sm:$0xff] %vm40, %v2275
    %2417 = vst.msk [vmem:[#allocation2 + $0x350] sm:$0xff] %vm40, %v2276
    %2418 = vst.msk [vmem:[#allocation2 + $0x358] sm:$0xff] %vm40, %v2277
    %2419 = vst.msk [vmem:[#allocation2 + $0x360] sm:$0xff] %vm40, %v2278
    %2420 = vst.msk [vmem:[#allocation2 + $0x368] sm:$0xff] %vm40, %v2279
    %2421 = vst.msk [vmem:[#allocation2 + $0x370] sm:$0xff] %vm40, %v2280
    %2422 = vst.msk [vmem:[#allocation2 + $0x378] sm:$0xff] %vm40, %v2281
    %2423 = vst.msk [vmem:[#allocation2 + $0x380] sm:$0xff] %vm40, %v2282
    %2424 = vst.msk [vmem:[#allocation2 + $0x388] sm:$0xff] %vm40, %v2283
    %2425 = vst.msk [vmem:[#allocation2 + $0x390] sm:$0xff] %vm40, %v2284
    %2426 = vst.msk [vmem:[#allocation2 + $0x398] sm:$0xff] %vm40, %v2285
    %2427 = vst.msk [vmem:[#allocation2 + $0x3a0] sm:$0xff] %vm40, %v2286
    %2428 = vst.msk [vmem:[#allocation2 + $0x3a8] sm:$0xff] %vm40, %v2287
    %2429 = vst.msk [vmem:[#allocation2 + $0x3b0] sm:$0xff] %vm40, %v2288
    %2430 = vst.msk [vmem:[#allocation2 + $0x3b8] sm:$0xff] %vm40, %v2289
    %2431 = vst.msk [vmem:[#allocation2 + $0x3c0] sm:$0xff] %vm40, %v2290
    %2432 = vst.msk [vmem:[#allocation2 + $0x3c8] sm:$0xff] %vm40, %v2291
    %2433 = vst.msk [vmem:[#allocation2 + $0x3d0] sm:$0xff] %vm40, %v2292
    %2434 = vst.msk [vmem:[#allocation2 + $0x3d8] sm:$0xff] %vm40, %v2293
    %2435 = vst.msk [vmem:[#allocation2 + $0x3e0] sm:$0xff] %vm40, %v2294
    %2436 = vst.msk [vmem:[#allocation2 + $0x3e8] sm:$0xff] %vm40, %v2295
    %2437 = vst.msk [vmem:[#allocation2 + $0x3f0] sm:$0xff] %vm40, %v2296
    %2438 = vst.msk [vmem:[#allocation2 + $0x3f8] sm:$0xff] %vm40, %v2297
    %2439 = vst.msk [vmem:[#allocation2 + $0x400] sm:$0xff] %vm40, %v2298
    %2440 = vst.msk [vmem:[#allocation2 + $0x408] sm:$0xff] %vm40, %v2299
    %2441 = vst.msk [vmem:[#allocation2 + $0x410] sm:$0xff] %vm40, %v2300
    %2442 = vst.msk [vmem:[#allocation2 + $0x418] sm:$0xff] %vm40, %v2301
    %2443 = vst.msk [vmem:[#allocation2 + $0x420] sm:$0xff] %vm40, %v2302
    %2444 = vst.msk [vmem:[#allocation2 + $0x428] sm:$0xff] %vm40, %v2303
    %2445 = vst.msk [vmem:[#allocation2 + $0x430] sm:$0xff] %vm40, %v2304
    %2446 = vst.msk [vmem:[#allocation2 + $0x438] sm:$0xff] %vm40, %v2305
    %2447 = vst.msk [vmem:[#allocation2 + $0x440] sm:$0xff] %vm40, %v2306
    %2448 = vst.msk [vmem:[#allocation2 + $0x448] sm:$0xff] %vm40, %v2307
    %2449 = vst.msk [vmem:[#allocation2 + $0x450] sm:$0xff] %vm40, %v2308
    %2450 = vst.msk [vmem:[#allocation2 + $0x458] sm:$0xff] %vm40, %v2309
    %vm2451 = vcmask 522240
    %2452 = vst.msk [vmem:[#allocation2 + $0x460] sm:$0x7f] %vm2451, %v2310
    %v2453 = vld [vmem:[%s2] sm:$0x1]
    %v2454 = vld [vmem:[#allocation2] ss:$2 sm:$0xff]
    %s2455 = scalar_lea.vmem [#allocation2], 16
    %v2456 = vld [vmem:[%s2455] ss:$2 sm:$0xf]
    %v2458 = vlaneseq
    %v2459 = vshrl.u32 %v2458, 7
    %v2460 = vsub.s32 0, %v2459
    %v2461 = vrot.slane %v2453, %v2460
    %v2463 = vadd.f32 %v2454, %v2461
    %v2464 = vadd.f32 %v2456, %v2461
    %v2465 = vmax.f32 %v2463, 0.0
    %v2466 = vmax.f32 %v2464, 0.0
    %2467 = vst.msk [vmem:[#allocation5] sm:$0xff] %vm40, %v2465
    %vm2468 = vcmask 519168
    %2469 = vst.msk [vmem:[#allocation5 + $0x8] sm:$0xf] %vm2468, %v2466
    %s2470 = scalar_lea.vmem [#allocation2], 48
    %v2471 = vld [vmem:[%s2470] ss:$2 sm:$0xff]
    %s2472 = scalar_lea.vmem [#allocation2], 64
    %v2473 = vld [vmem:[%s2472] ss:$2 sm:$0xf]
    %v2474 = vadd.f32 %v2471, %v2461
    %v2475 = vadd.f32 %v2473, %v2461
    %v2476 = vmax.f32 %v2474, 0.0
    %v2477 = vmax.f32 %v2475, 0.0
    %2478 = vst.msk [vmem:[#allocation5 + $0xd] sm:$0xff] %vm40, %v2476
    %2479 = vst.msk [vmem:[#allocation5 + $0x15] sm:$0xf] %vm2468, %v2477
    %s2480 = scalar_lea.vmem [#allocation2], 96
    %v2481 = vld [vmem:[%s2480] ss:$2 sm:$0xff]
    %s2482 = scalar_lea.vmem [#allocation2], 112
    %v2483 = vld [vmem:[%s2482] ss:$2 sm:$0xf]
    %v2484 = vadd.f32 %v2481, %v2461
    %v2485 = vadd.f32 %v2483, %v2461
    %v2486 = vmax.f32 %v2484, 0.0
    %v2487 = vmax.f32 %v2485, 0.0
    %2488 = vst.msk [vmem:[#allocation5 + $0x1a] sm:$0xff] %vm40, %v2486
    %2489 = vst.msk [vmem:[#allocation5 + $0x22] sm:$0xf] %vm2468, %v2487
    %s2490 = scalar_lea.vmem [#allocation2], 144
    %v2491 = vld [vmem:[%s2490] ss:$2 sm:$0xff]
    %s2492 = scalar_lea.vmem [#allocation2], 160
    %v2493 = vld [vmem:[%s2492] ss:$2 sm:$0xf]
    %v2494 = vadd.f32 %v2491, %v2461
    %v2495 = vadd.f32 %v2493, %v2461
    %v2496 = vmax.f32 %v2494, 0.0
    %v2497 = vmax.f32 %v2495, 0.0
    %2498 = vst.msk [vmem:[#allocation5 + $0x27] sm:$0xff] %vm40, %v2496
    %2499 = vst.msk [vmem:[#allocation5 + $0x2f] sm:$0xf] %vm2468, %v2497
    %s2500 = scalar_lea.vmem [#allocation2], 192
    %v2501 = vld [vmem:[%s2500] ss:$2 sm:$0xff]
    %s2502 = scalar_lea.vmem [#allocation2], 208
    %v2503 = vld [vmem:[%s2502] ss:$2 sm:$0xf]
    %v2504 = vadd.f32 %v2501, %v2461
    %v2505 = vadd.f32 %v2503, %v2461
    %v2506 = vmax.f32 %v2504, 0.0
    %v2507 = vmax.f32 %v2505, 0.0
    %2508 = vst.msk [vmem:[#allocation5 + $0x34] sm:$0xff] %vm40, %v2506
    %2509 = vst.msk [vmem:[#allocation5 + $0x3c] sm:$0xf] %vm2468, %v2507
    %s2510 = scalar_lea.vmem [#allocation2], 240
    %v2511 = vld [vmem:[%s2510] ss:$2 sm:$0xff]
    %s2512 = scalar_lea.vmem [#allocation2], 256
    %v2513 = vld [vmem:[%s2512] ss:$2 sm:$0xf]
    %v2514 = vadd.f32 %v2511, %v2461
    %v2515 = vadd.f32 %v2513, %v2461
    %v2516 = vmax.f32 %v2514, 0.0
    %v2517 = vmax.f32 %v2515, 0.0
    %2518 = vst.msk [vmem:[#allocation5 + $0x41] sm:$0xff] %vm40, %v2516
    %2519 = vst.msk [vmem:[#allocation5 + $0x49] sm:$0xf] %vm2468, %v2517
    %s2520 = scalar_lea.vmem [#allocation2], 288
    %v2521 = vld [vmem:[%s2520] ss:$2 sm:$0xff]
    %s2522 = scalar_lea.vmem [#allocation2], 304
    %v2523 = vld [vmem:[%s2522] ss:$2 sm:$0xf]
    %v2524 = vadd.f32 %v2521, %v2461
    %v2525 = vadd.f32 %v2523, %v2461
    %v2526 = vmax.f32 %v2524, 0.0
    %v2527 = vmax.f32 %v2525, 0.0
    %2528 = vst.msk [vmem:[#allocation5 + $0x4e] sm:$0xff] %vm40, %v2526
    %2529 = vst.msk [vmem:[#allocation5 + $0x56] sm:$0xf] %vm2468, %v2527
    %s2530 = scalar_lea.vmem [#allocation2], 336
    %v2531 = vld [vmem:[%s2530] ss:$2 sm:$0xff]
    %s2532 = scalar_lea.vmem [#allocation2], 352
    %v2533 = vld [vmem:[%s2532] ss:$2 sm:$0xf]
    %v2534 = vadd.f32 %v2531, %v2461
    %v2535 = vadd.f32 %v2533, %v2461
    %v2536 = vmax.f32 %v2534, 0.0
    %v2537 = vmax.f32 %v2535, 0.0
    %2538 = vst.msk [vmem:[#allocation5 + $0x5b] sm:$0xff] %vm40, %v2536
    %2539 = vst.msk [vmem:[#allocation5 + $0x63] sm:$0xf] %vm2468, %v2537
    %s2540 = scalar_lea.vmem [#allocation2], 384
    %v2541 = vld [vmem:[%s2540] ss:$2 sm:$0xff]
    %s2542 = scalar_lea.vmem [#allocation2], 400
    %v2543 = vld [vmem:[%s2542] ss:$2 sm:$0xf]
    %v2544 = vadd.f32 %v2541, %v2461
    %v2545 = vadd.f32 %v2543, %v2461
    %v2546 = vmax.f32 %v2544, 0.0
    %v2547 = vmax.f32 %v2545, 0.0
    %2548 = vst.msk [vmem:[#allocation5 + $0x68] sm:$0xff] %vm40, %v2546
    %2549 = vst.msk [vmem:[#allocation5 + $0x70] sm:$0xf] %vm2468, %v2547
    %s2550 = scalar_lea.vmem [#allocation2], 432
    %v2551 = vld [vmem:[%s2550] ss:$2 sm:$0xff]
    %s2552 = scalar_lea.vmem [#allocation2], 448
    %v2553 = vld [vmem:[%s2552] ss:$2 sm:$0xf]
    %v2554 = vadd.f32 %v2551, %v2461
    %v2555 = vadd.f32 %v2553, %v2461
    %v2556 = vmax.f32 %v2554, 0.0
    %v2557 = vmax.f32 %v2555, 0.0
    %2558 = vst.msk [vmem:[#allocation5 + $0x75] sm:$0xff] %vm40, %v2556
    %2559 = vst.msk [vmem:[#allocation5 + $0x7d] sm:$0xf] %vm2468, %v2557
    %s2560 = scalar_lea.vmem [#allocation2], 480
    %v2561 = vld [vmem:[%s2560] ss:$2 sm:$0xff]
    %s2562 = scalar_lea.vmem [#allocation2], 496
    %v2563 = vld [vmem:[%s2562] ss:$2 sm:$0xf]
    %v2564 = vadd.f32 %v2561, %v2461
    %v2565 = vadd.f32 %v2563, %v2461
    %v2566 = vmax.f32 %v2564, 0.0
    %v2567 = vmax.f32 %v2565, 0.0
    %2568 = vst.msk [vmem:[#allocation5 + $0x82] sm:$0xff] %vm40, %v2566
    %2569 = vst.msk [vmem:[#allocation5 + $0x8a] sm:$0xf] %vm2468, %v2567
    %s2570 = scalar_lea.vmem [#allocation2], 528
    %v2571 = vld [vmem:[%s2570] ss:$2 sm:$0xff]
    %s2572 = scalar_lea.vmem [#allocation2], 544
    %v2573 = vld [vmem:[%s2572] ss:$2 sm:$0xf]
    %v2574 = vadd.f32 %v2571, %v2461
    %v2575 = vadd.f32 %v2573, %v2461
    %v2576 = vmax.f32 %v2574, 0.0
    %v2577 = vmax.f32 %v2575, 0.0
    %2578 = vst.msk [vmem:[#allocation5 + $0x8f] sm:$0xff] %vm40, %v2576
    %2579 = vst.msk [vmem:[#allocation5 + $0x97] sm:$0xf] %vm2468, %v2577
    %s2580 = scalar_lea.vmem [#allocation2], 576
    %v2581 = vld [vmem:[%s2580] ss:$2 sm:$0xff]
    %s2582 = scalar_lea.vmem [#allocation2], 592
    %v2583 = vld [vmem:[%s2582] ss:$2 sm:$0xf]
    %v2584 = vadd.f32 %v2581, %v2461
    %v2585 = vadd.f32 %v2583, %v2461
    %v2586 = vmax.f32 %v2584, 0.0
    %v2587 = vmax.f32 %v2585, 0.0
    %2588 = vst.msk [vmem:[#allocation5 + $0xb0] sm:$0xff] %vm40, %v2586
    %2589 = vst.msk [vmem:[#allocation5 + $0xb8] sm:$0xf] %vm2468, %v2587
    %s2590 = scalar_lea.vmem [#allocation2], 624
    %v2591 = vld [vmem:[%s2590] ss:$2 sm:$0xff]
    %s2592 = scalar_lea.vmem [#allocation2], 640
    %v2593 = vld [vmem:[%s2592] ss:$2 sm:$0xf]
    %v2594 = vadd.f32 %v2591, %v2461
    %v2595 = vadd.f32 %v2593, %v2461
    %v2596 = vmax.f32 %v2594, 0.0
    %v2597 = vmax.f32 %v2595, 0.0
    %2598 = vst.msk [vmem:[#allocation5 + $0xbd] sm:$0xff] %vm40, %v2596
    %2599 = vst.msk [vmem:[#allocation5 + $0xc5] sm:$0xf] %vm2468, %v2597
    %s2600 = scalar_lea.vmem [#allocation2], 672
    %v2601 = vld [vmem:[%s2600] ss:$2 sm:$0xff]
    %s2602 = scalar_lea.vmem [#allocation2], 688
    %v2603 = vld [vmem:[%s2602] ss:$2 sm:$0xf]
    %v2604 = vadd.f32 %v2601, %v2461
    %v2605 = vadd.f32 %v2603, %v2461
    %v2606 = vmax.f32 %v2604, 0.0
    %v2607 = vmax.f32 %v2605, 0.0
    %2608 = vst.msk [vmem:[#allocation5 + $0xca] sm:$0xff] %vm40, %v2606
    %2609 = vst.msk [vmem:[#allocation5 + $0xd2] sm:$0xf] %vm2468, %v2607
    %s2610 = scalar_lea.vmem [#allocation2], 720
    %v2611 = vld [vmem:[%s2610] ss:$2 sm:$0xff]
    %s2612 = scalar_lea.vmem [#allocation2], 736
    %v2613 = vld [vmem:[%s2612] ss:$2 sm:$0xf]
    %v2614 = vadd.f32 %v2611, %v2461
    %v2615 = vadd.f32 %v2613, %v2461
    %v2616 = vmax.f32 %v2614, 0.0
    %v2617 = vmax.f32 %v2615, 0.0
    %2618 = vst.msk [vmem:[#allocation5 + $0xd7] sm:$0xff] %vm40, %v2616
    %2619 = vst.msk [vmem:[#allocation5 + $0xdf] sm:$0xf] %vm2468, %v2617
    %s2620 = scalar_lea.vmem [#allocation2], 768
    %v2621 = vld [vmem:[%s2620] ss:$2 sm:$0xff]
    %s2622 = scalar_lea.vmem [#allocation2], 784
    %v2623 = vld [vmem:[%s2622] ss:$2 sm:$0xf]
    %v2624 = vadd.f32 %v2621, %v2461
    %v2625 = vadd.f32 %v2623, %v2461
    %v2626 = vmax.f32 %v2624, 0.0
    %v2627 = vmax.f32 %v2625, 0.0
    %2628 = vst.msk [vmem:[#allocation5 + $0xe4] sm:$0xff] %vm40, %v2626
    %2629 = vst.msk [vmem:[#allocation5 + $0xec] sm:$0xf] %vm2468, %v2627
    %s2630 = scalar_lea.vmem [#allocation2], 816
    %v2631 = vld [vmem:[%s2630] ss:$2 sm:$0xff]
    %s2632 = scalar_lea.vmem [#allocation2], 832
    %v2633 = vld [vmem:[%s2632] ss:$2 sm:$0xf]
    %v2634 = vadd.f32 %v2631, %v2461
    %v2635 = vadd.f32 %v2633, %v2461
    %v2636 = vmax.f32 %v2634, 0.0
    %v2637 = vmax.f32 %v2635, 0.0
    %2638 = vst.msk [vmem:[#allocation5 + $0xf1] sm:$0xff] %vm40, %v2636
    %2639 = vst.msk [vmem:[#allocation5 + $0xf9] sm:$0xf] %vm2468, %v2637
    %s2640 = scalar_lea.vmem [#allocation2], 864
    %v2641 = vld [vmem:[%s2640] ss:$2 sm:$0xff]
    %s2642 = scalar_lea.vmem [#allocation2], 880
    %v2643 = vld [vmem:[%s2642] ss:$2 sm:$0xf]
    %v2644 = vadd.f32 %v2641, %v2461
    %v2645 = vadd.f32 %v2643, %v2461
    %v2646 = vmax.f32 %v2644, 0.0
    %v2647 = vmax.f32 %v2645, 0.0
    %2648 = vst.msk [vmem:[#allocation5 + $0xfe] sm:$0xff] %vm40, %v2646
    %2649 = vst.msk [vmem:[#allocation5 + $0x106] sm:$0xf] %vm2468, %v2647
    %s2650 = scalar_lea.vmem [#allocation2], 912
    %v2651 = vld [vmem:[%s2650] ss:$2 sm:$0xff]
    %s2652 = scalar_lea.vmem [#allocation2], 928
    %v2653 = vld [vmem:[%s2652] ss:$2 sm:$0xf]
    %v2654 = vadd.f32 %v2651, %v2461
    %v2655 = vadd.f32 %v2653, %v2461
    %v2656 = vmax.f32 %v2654, 0.0
    %v2657 = vmax.f32 %v2655, 0.0
    %2658 = vst.msk [vmem:[#allocation5 + $0x10b] sm:$0xff] %vm40, %v2656
    %2659 = vst.msk [vmem:[#allocation5 + $0x113] sm:$0xf] %vm2468, %v2657
    %s2660 = scalar_lea.vmem [#allocation2], 960
    %v2661 = vld [vmem:[%s2660] ss:$2 sm:$0xff]
    %s2662 = scalar_lea.vmem [#allocation2], 976
    %v2663 = vld [vmem:[%s2662] ss:$2 sm:$0xf]
    %v2664 = vadd.f32 %v2661, %v2461
    %v2665 = vadd.f32 %v2663, %v2461
    %v2666 = vmax.f32 %v2664, 0.0
    %v2667 = vmax.f32 %v2665, 0.0
    %2668 = vst.msk [vmem:[#allocation5 + $0x118] sm:$0xff] %vm40, %v2666
    %2669 = vst.msk [vmem:[#allocation5 + $0x120] sm:$0xf] %vm2468, %v2667
    %s2670 = scalar_lea.vmem [#allocation2], 1008
    %v2671 = vld [vmem:[%s2670] ss:$2 sm:$0xff]
    %s2672 = scalar_lea.vmem [#allocation2], 1024
    %v2673 = vld [vmem:[%s2672] ss:$2 sm:$0xf]
    %v2674 = vadd.f32 %v2671, %v2461
    %v2675 = vadd.f32 %v2673, %v2461
    %v2676 = vmax.f32 %v2674, 0.0
    %v2677 = vmax.f32 %v2675, 0.0
    %2678 = vst.msk [vmem:[#allocation5 + $0x125] sm:$0xff] %vm40, %v2676
    %2679 = vst.msk [vmem:[#allocation5 + $0x12d] sm:$0xf] %vm2468, %v2677
    %s2680 = scalar_lea.vmem [#allocation2], 1056
    %v2681 = vld [vmem:[%s2680] ss:$2 sm:$0xff]
    %s2682 = scalar_lea.vmem [#allocation2], 1072
    %v2683 = vld [vmem:[%s2682] ss:$2 sm:$0xf]
    %v2684 = vadd.f32 %v2681, %v2461
    %v2685 = vadd.f32 %v2683, %v2461
    %v2686 = vmax.f32 %v2684, 0.0
    %v2687 = vmax.f32 %v2685, 0.0
    %2688 = vst.msk [vmem:[#allocation5 + $0x132] sm:$0xff] %vm40, %v2686
    %2689 = vst.msk [vmem:[#allocation5 + $0x13a] sm:$0xf] %vm2468, %v2687
    %s2690 = scalar_lea.vmem [#allocation2], 1104
    %v2691 = vld [vmem:[%s2690] ss:$2 sm:$0xff]
    %s2692 = scalar_lea.vmem [#allocation2], 1120
    %v2693 = vld [vmem:[%s2692] ss:$2 sm:$0xf]
    %v2694 = vadd.f32 %v2691, %v2461
    %v2695 = vadd.f32 %v2693, %v2461
    %v2696 = vmax.f32 %v2694, 0.0
    %v2697 = vmax.f32 %v2695, 0.0
    %2698 = vst.msk [vmem:[#allocation5 + $0x13f] sm:$0xff] %vm40, %v2696
    %2699 = vst.msk [vmem:[#allocation5 + $0x147] sm:$0xf] %vm2468, %v2697
    %v2700 = vld [vmem:[#allocation5] sm:$0xff]
    %v2701 = vld [vmem:[#allocation5 + $0x8] sm:$0xff]
    %v2702 = vld [vmem:[#allocation5 + $0x10] sm:$0xff]
    %v2703 = vld [vmem:[#allocation5 + $0x18] sm:$0xff]
    %v2704 = vld [vmem:[#allocation5 + $0x20] sm:$0xff]
    %v2705 = vld [vmem:[#allocation5 + $0x28] sm:$0xff]
    %v2706 = vld [vmem:[#allocation5 + $0x30] sm:$0xff]
    %v2707 = vld [vmem:[#allocation5 + $0x38] sm:$0xff]
    %v2708 = vld [vmem:[#allocation5 + $0x40] sm:$0xff]
    %v2709 = vld [vmem:[#allocation5 + $0x48] sm:$0xff]
    %v2710 = vld [vmem:[#allocation5 + $0x50] sm:$0xff]
    %v2711 = vld [vmem:[#allocation5 + $0x58] sm:$0xff]
    %v2712 = vld [vmem:[#allocation5 + $0x60] sm:$0xff]
    %v2713 = vld [vmem:[#allocation5 + $0x68] sm:$0xff]
    %v2714 = vld [vmem:[#allocation5 + $0x70] sm:$0xff]
    %v2715 = vld [vmem:[#allocation5 + $0x78] sm:$0xff]
    %v2716 = vld [vmem:[#allocation5 + $0x80] sm:$0xff]
    %v2717 = vld [vmem:[#allocation5 + $0x88] sm:$0xff]
    %v2718 = vld [vmem:[#allocation5 + $0x90] sm:$0xff]
    %v2719 = vld [vmem:[#allocation5 + $0x98] sm:$0xff]
    %v2720 = vld [vmem:[#allocation5 + $0xa0] sm:$0xff]
    %v2721 = vld [vmem:[#allocation5 + $0xa8] sm:$0xff]
    %v2722 = vld [vmem:[#allocation5 + $0xb0] sm:$0xff]
    %v2723 = vld [vmem:[#allocation5 + $0xb8] sm:$0xff]
    %v2724 = vld [vmem:[#allocation5 + $0xc0] sm:$0xff]
    %v2725 = vld [vmem:[#allocation5 + $0xc8] sm:$0xff]
    %v2726 = vld [vmem:[#allocation5 + $0xd0] sm:$0xff]
    %v2727 = vld [vmem:[#allocation5 + $0xd8] sm:$0xff]
    %v2728 = vld [vmem:[#allocation5 + $0xe0] sm:$0xff]
    %v2729 = vld [vmem:[#allocation5 + $0xe8] sm:$0xff]
    %v2730 = vld [vmem:[#allocation5 + $0xf0] sm:$0xff]
    %v2731 = vld [vmem:[#allocation5 + $0xf8] sm:$0xff]
    %v2732 = vld [vmem:[#allocation5 + $0x100] sm:$0xff]
    %v2733 = vld [vmem:[#allocation5 + $0x108] sm:$0xff]
    %v2734 = vld [vmem:[#allocation5 + $0x110] sm:$0xff]
    %v2735 = vld [vmem:[#allocation5 + $0x118] sm:$0xff]
    %v2736 = vld [vmem:[#allocation5 + $0x120] sm:$0xff]
    %v2737 = vld [vmem:[#allocation5 + $0x128] sm:$0xff]
    %v2738 = vld [vmem:[#allocation5 + $0x130] sm:$0xff]
    %v2739 = vld [vmem:[#allocation5 + $0x138] sm:$0xff]
    %v2740 = vld [vmem:[#allocation5 + $0x140] sm:$0xff]
    %v2741 = vld [vmem:[#allocation5 + $0x148] sm:$0x7]
    %v2742 = vpack.c.bf16 %v2701, %v2700
    %v2743 = vpack.c.bf16 %v2703, %v2702
    %v2744 = vpack.c.bf16 %v2705, %v2704
    %v2745 = vpack.c.bf16 %v2707, %v2706
    %v2746 = vpack.c.bf16 %v2709, %v2708
    %v2747 = vpack.c.bf16 %v2711, %v2710
    %v2748 = vpack.c.bf16 %v2713, %v2712
    %v2749 = vpack.c.bf16 %v2715, %v2714
    %v2750 = vpack.c.bf16 %v2717, %v2716
    %v2751 = vpack.c.bf16 %v2719, %v2718
    %v2752 = vpack.c.bf16 %v2721, %v2720
    %v2753 = vpack.c.bf16 %v2723, %v2722
    %v2754 = vpack.c.bf16 %v2725, %v2724
    %v2755 = vpack.c.bf16 %v2727, %v2726
    %v2756 = vpack.c.bf16 %v2729, %v2728
    %v2757 = vpack.c.bf16 %v2731, %v2730
    %v2758 = vpack.c.bf16 %v2733, %v2732
    %v2759 = vpack.c.bf16 %v2735, %v2734
    %v2760 = vpack.c.bf16 %v2737, %v2736
    %v2761 = vpack.c.bf16 %v2739, %v2738
    %v2762 = vpack.c.bf16 %v2741, %v2740
    %2763 = vst.msk [vmem:[#allocation7] sm:$0xff] %vm40, %v2742
    %2764 = vst.msk [vmem:[#allocation7 + $0x10] sm:$0xff] %vm40, %v2743
    %2765 = vst.msk [vmem:[#allocation7 + $0x20] sm:$0xff] %vm40, %v2744
    %2766 = vst.msk [vmem:[#allocation7 + $0x30] sm:$0xff] %vm40, %v2745
    %2767 = vst.msk [vmem:[#allocation7 + $0x40] sm:$0xff] %vm40, %v2746
    %2768 = vst.msk [vmem:[#allocation7 + $0x50] sm:$0xff] %vm40, %v2747
    %2769 = vst.msk [vmem:[#allocation7 + $0x60] sm:$0xff] %vm40, %v2748
    %2770 = vst.msk [vmem:[#allocation7 + $0x70] sm:$0xff] %vm40, %v2749
    %2771 = vst.msk [vmem:[#allocation7 + $0x80] sm:$0xff] %vm40, %v2750
    %2772 = vst.msk [vmem:[#allocation7 + $0x90] sm:$0xff] %vm40, %v2751
    %2773 = vst.msk [vmem:[#allocation7 + $0xa0] sm:$0xff] %vm40, %v2752
    %2774 = vst.msk [vmem:[#allocation7 + $0xb0] sm:$0xff] %vm40, %v2753
    %2775 = vst.msk [vmem:[#allocation7 + $0xc0] sm:$0xff] %vm40, %v2754
    %2776 = vst.msk [vmem:[#allocation7 + $0xd0] sm:$0xff] %vm40, %v2755
    %2777 = vst.msk [vmem:[#allocation7 + $0xe0] sm:$0xff] %vm40, %v2756
    %2778 = vst.msk [vmem:[#allocation7 + $0xf0] sm:$0xff] %vm40, %v2757
    %2779 = vst.msk [vmem:[#allocation7 + $0x100] sm:$0xff] %vm40, %v2758
    %2780 = vst.msk [vmem:[#allocation7 + $0x110] sm:$0xff] %vm40, %v2759
    %2781 = vst.msk [vmem:[#allocation7 + $0x120] sm:$0xff] %vm40, %v2760
    %2782 = vst.msk [vmem:[#allocation7 + $0x130] sm:$0xff] %vm40, %v2761
    %vm2783 = vcmask 521216
    %vm2784 = vsmask.f32 5376
    %vm2785 = vmand %vm2783, %vm2784
    %v2786 = vld [vmem:[#allocation7 + $0x140] sm:$0x3f]
    %v2787 = vsel %vm2785, %v2762, %v2786
    %2788 = vst [vmem:[#allocation7 + $0x140] sm:$0x3f] %v2787
    %v2789 = vld [vmem:[#allocation5 + $0x1] sm:$0xff]
    %v2790 = vld [vmem:[#allocation5 + $0x9] sm:$0xff]
    %v2791 = vld [vmem:[#allocation5 + $0x11] sm:$0xff]
    %v2792 = vld [vmem:[#allocation5 + $0x19] sm:$0xff]
    %v2793 = vld [vmem:[#allocation5 + $0x21] sm:$0xff]
    %v2794 = vld [vmem:[#allocation5 + $0x29] sm:$0xff]
    %v2795 = vld [vmem:[#allocation5 + $0x31] sm:$0xff]
    %v2796 = vld [vmem:[#allocation5 + $0x39] sm:$0xff]
    %v2797 = vld [vmem:[#allocation5 + $0x41] sm:$0xff]
    %v2798 = vld [vmem:[#allocation5 + $0x49] sm:$0xff]
    %v2799 = vld [vmem:[#allocation5 + $0x51] sm:$0xff]
    %v2800 = vld [vmem:[#allocation5 + $0x59] sm:$0xff]
    %v2801 = vld [vmem:[#allocation5 + $0x61] sm:$0xff]
    %v2802 = vld [vmem:[#allocation5 + $0x69] sm:$0xff]
    %v2803 = vld [vmem:[#allocation5 + $0x71] sm:$0xff]
    %v2804 = vld [vmem:[#allocation5 + $0x79] sm:$0xff]
    %v2805 = vld [vmem:[#allocation5 + $0x81] sm:$0xff]
    %v2806 = vld [vmem:[#allocation5 + $0x89] sm:$0xff]
    %v2807 = vld [vmem:[#allocation5 + $0x91] sm:$0xff]
    %v2808 = vld [vmem:[#allocation5 + $0x99] sm:$0xff]
    %v2809 = vld [vmem:[#allocation5 + $0xa1] sm:$0xff]
    %v2810 = vld [vmem:[#allocation5 + $0xa9] sm:$0xff]
    %v2811 = vld [vmem:[#allocation5 + $0xb1] sm:$0xff]
    %v2812 = vld [vmem:[#allocation5 + $0xb9] sm:$0xff]
    %v2813 = vld [vmem:[#allocation5 + $0xc1] sm:$0xff]
    %v2814 = vld [vmem:[#allocation5 + $0xc9] sm:$0xff]
    %v2815 = vld [vmem:[#allocation5 + $0xd1] sm:$0xff]
    %v2816 = vld [vmem:[#allocation5 + $0xd9] sm:$0xff]
    %v2817 = vld [vmem:[#allocation5 + $0xe1] sm:$0xff]
    %v2818 = vld [vmem:[#allocation5 + $0xe9] sm:$0xff]
    %v2819 = vld [vmem:[#allocation5 + $0xf1] sm:$0xff]
    %v2820 = vld [vmem:[#allocation5 + $0xf9] sm:$0xff]
    %v2821 = vld [vmem:[#allocation5 + $0x101] sm:$0xff]
    %v2822 = vld [vmem:[#allocation5 + $0x109] sm:$0xff]
    %v2823 = vld [vmem:[#allocation5 + $0x111] sm:$0xff]
    %v2824 = vld [vmem:[#allocation5 + $0x119] sm:$0xff]
    %v2825 = vld [vmem:[#allocation5 + $0x121] sm:$0xff]
    %v2826 = vld [vmem:[#allocation5 + $0x129] sm:$0xff]
    %v2827 = vld [vmem:[#allocation5 + $0x131] sm:$0xff]
    %v2828 = vld [vmem:[#allocation5 + $0x139] sm:$0xff]
    %v2829 = vld [vmem:[#allocation5 + $0x141] sm:$0xff]
    %v2830 = vld [vmem:[#allocation5 + $0x149] sm:$0x7]
    %v2831 = vpack.c.bf16 %v2790, %v2789
    %v2832 = vpack.c.bf16 %v2792, %v2791
    %v2833 = vpack.c.bf16 %v2794, %v2793
    %v2834 = vpack.c.bf16 %v2796, %v2795
    %v2835 = vpack.c.bf16 %v2798, %v2797
    %v2836 = vpack.c.bf16 %v2800, %v2799
    %v2837 = vpack.c.bf16 %v2802, %v2801
    %v2838 = vpack.c.bf16 %v2804, %v2803
    %v2839 = vpack.c.bf16 %v2806, %v2805
    %v2840 = vpack.c.bf16 %v2808, %v2807
    %v2841 = vpack.c.bf16 %v2810, %v2809
    %v2842 = vpack.c.bf16 %v2812, %v2811
    %v2843 = vpack.c.bf16 %v2814, %v2813
    %v2844 = vpack.c.bf16 %v2816, %v2815
    %v2845 = vpack.c.bf16 %v2818, %v2817
    %v2846 = vpack.c.bf16 %v2820, %v2819
    %v2847 = vpack.c.bf16 %v2822, %v2821
    %v2848 = vpack.c.bf16 %v2824, %v2823
    %v2849 = vpack.c.bf16 %v2826, %v2825
    %v2850 = vpack.c.bf16 %v2828, %v2827
    %v2851 = vpack.c.bf16 %v2830, %v2829
    %2873 = vrot.lane.b32.xlu0 %v2831, 64
    %v2874 = vpop.permute.xlu0 %2873
    %2875 = vrot.lane.b32.xlu0 %v2832, 64
    %v2876 = vpop.permute.xlu0 %2875
    %2877 = vrot.lane.b32.xlu0 %v2833, 64
    %v2878 = vpop.permute.xlu0 %2877
    %2879 = vrot.lane.b32.xlu0 %v2834, 64
    %v2880 = vpop.permute.xlu0 %2879
    %2881 = vrot.lane.b32.xlu0 %v2835, 64
    %v2882 = vpop.permute.xlu0 %2881
    %2883 = vrot.lane.b32.xlu0 %v2836, 64
    %v2884 = vpop.permute.xlu0 %2883
    %2885 = vrot.lane.b32.xlu0 %v2837, 64
    %v2886 = vpop.permute.xlu0 %2885
    %2887 = vrot.lane.b32.xlu0 %v2838, 64
    %v2888 = vpop.permute.xlu0 %2887
    %2889 = vrot.lane.b32.xlu0 %v2839, 64
    %v2890 = vpop.permute.xlu0 %2889
    %2891 = vrot.lane.b32.xlu0 %v2840, 64
    %v2892 = vpop.permute.xlu0 %2891
    %2893 = vrot.lane.b32.xlu0 %v2841, 64
    %v2894 = vpop.permute.xlu0 %2893
    %2895 = vrot.lane.b32.xlu0 %v2842, 64
    %v2896 = vpop.permute.xlu0 %2895
    %2897 = vrot.lane.b32.xlu0 %v2843, 64
    %v2898 = vpop.permute.xlu0 %2897
    %2899 = vrot.lane.b32.xlu0 %v2844, 64
    %v2900 = vpop.permute.xlu0 %2899
    %2901 = vrot.lane.b32.xlu0 %v2845, 64
    %v2902 = vpop.permute.xlu0 %2901
    %2903 = vrot.lane.b32.xlu0 %v2846, 64
    %v2904 = vpop.permute.xlu0 %2903
    %2905 = vrot.lane.b32.xlu0 %v2847, 64
    %v2906 = vpop.permute.xlu0 %2905
    %2907 = vrot.lane.b32.xlu0 %v2848, 64
    %v2908 = vpop.permute.xlu0 %2907
    %2909 = vrot.lane.b32.xlu0 %v2849, 64
    %v2910 = vpop.permute.xlu0 %2909
    %2911 = vrot.lane.b32.xlu0 %v2850, 64
    %v2912 = vpop.permute.xlu0 %2911
    %2913 = vrot.lane.b32.xlu0 %v2851, 64
    %v2914 = vpop.permute.xlu0 %2913
    %vm2936 = vcmask 1048064
    %2937 = vst.msk [vmem:[#allocation7] sm:$0xff] %vm2936, %v2874
    %2938 = vst.msk [vmem:[#allocation7 + $0x10] sm:$0xff] %vm2936, %v2876
    %2939 = vst.msk [vmem:[#allocation7 + $0x20] sm:$0xff] %vm2936, %v2878
    %2940 = vst.msk [vmem:[#allocation7 + $0x30] sm:$0xff] %vm2936, %v2880
    %2941 = vst.msk [vmem:[#allocation7 + $0x40] sm:$0xff] %vm2936, %v2882
    %2942 = vst.msk [vmem:[#allocation7 + $0x50] sm:$0xff] %vm2936, %v2884
    %2943 = vst.msk [vmem:[#allocation7 + $0x60] sm:$0xff] %vm2936, %v2886
    %2944 = vst.msk [vmem:[#allocation7 + $0x70] sm:$0xff] %vm2936, %v2888
    %2945 = vst.msk [vmem:[#allocation7 + $0x80] sm:$0xff] %vm2936, %v2890
    %2946 = vst.msk [vmem:[#allocation7 + $0x90] sm:$0xff] %vm2936, %v2892
    %2947 = vst.msk [vmem:[#allocation7 + $0xa0] sm:$0xff] %vm2936, %v2894
    %2948 = vst.msk [vmem:[#allocation7 + $0xb0] sm:$0xff] %vm2936, %v2896
    %2949 = vst.msk [vmem:[#allocation7 + $0xc0] sm:$0xff] %vm2936, %v2898
    %2950 = vst.msk [vmem:[#allocation7 + $0xd0] sm:$0xff] %vm2936, %v2900
    %2951 = vst.msk [vmem:[#allocation7 + $0xe0] sm:$0xff] %vm2936, %v2902
    %2952 = vst.msk [vmem:[#allocation7 + $0xf0] sm:$0xff] %vm2936, %v2904
    %2953 = vst.msk [vmem:[#allocation7 + $0x100] sm:$0xff] %vm2936, %v2906
    %2954 = vst.msk [vmem:[#allocation7 + $0x110] sm:$0xff] %vm2936, %v2908
    %2955 = vst.msk [vmem:[#allocation7 + $0x120] sm:$0xff] %vm2936, %v2910
    %2956 = vst.msk [vmem:[#allocation7 + $0x130] sm:$0xff] %vm2936, %v2912
    %vm2957 = vcmask 1046016
    %vm2958 = vmand %vm2957, %vm2784
    %v2959 = vld [vmem:[#allocation7 + $0x140] sm:$0x3f]
    %v2960 = vsel %vm2958, %v2914, %v2959
    %2961 = vst [vmem:[#allocation7 + $0x140] sm:$0x3f] %v2960
    %v2962 = vld [vmem:[#allocation5 + $0xd] sm:$0xff]
    %v2963 = vld [vmem:[#allocation5 + $0x15] sm:$0xff]
    %v2964 = vld [vmem:[#allocation5 + $0x1d] sm:$0xff]
    %v2965 = vld [vmem:[#allocation5 + $0x25] sm:$0xff]
    %v2966 = vld [vmem:[#allocation5 + $0x2d] sm:$0xff]
    %v2967 = vld [vmem:[#allocation5 + $0x35] sm:$0xff]
    %v2968 = vld [vmem:[#allocation5 + $0x3d] sm:$0xff]
    %v2969 = vld [vmem:[#allocation5 + $0x45] sm:$0xff]
    %v2970 = vld [vmem:[#allocation5 + $0x4d] sm:$0xff]
    %v2971 = vld [vmem:[#allocation5 + $0x55] sm:$0xff]
    %v2972 = vld [vmem:[#allocation5 + $0x5d] sm:$0xff]
    %v2973 = vld [vmem:[#allocation5 + $0x65] sm:$0xff]
    %v2974 = vld [vmem:[#allocation5 + $0x6d] sm:$0xff]
    %v2975 = vld [vmem:[#allocation5 + $0x75] sm:$0xff]
    %v2976 = vld [vmem:[#allocation5 + $0x7d] sm:$0xff]
    %v2977 = vld [vmem:[#allocation5 + $0x85] sm:$0xff]
    %v2978 = vld [vmem:[#allocation5 + $0x8d] sm:$0xff]
    %v2979 = vld [vmem:[#allocation5 + $0x95] sm:$0xff]
    %v2980 = vld [vmem:[#allocation5 + $0x9d] sm:$0xff]
    %v2981 = vld [vmem:[#allocation5 + $0xa5] sm:$0xff]
    %v2982 = vld [vmem:[#allocation5 + $0xad] sm:$0xff]
    %v2983 = vld [vmem:[#allocation5 + $0xb5] sm:$0xff]
    %v2984 = vld [vmem:[#allocation5 + $0xbd] sm:$0xff]
    %v2985 = vld [vmem:[#allocation5 + $0xc5] sm:$0xff]
    %v2986 = vld [vmem:[#allocation5 + $0xcd] sm:$0xff]
    %v2987 = vld [vmem:[#allocation5 + $0xd5] sm:$0xff]
    %v2988 = vld [vmem:[#allocation5 + $0xdd] sm:$0xff]
    %v2989 = vld [vmem:[#allocation5 + $0xe5] sm:$0xff]
    %v2990 = vld [vmem:[#allocation5 + $0xed] sm:$0xff]
    %v2991 = vld [vmem:[#allocation5 + $0xf5] sm:$0xff]
    %v2992 = vld [vmem:[#allocation5 + $0xfd] sm:$0xff]
    %v2993 = vld [vmem:[#allocation5 + $0x105] sm:$0xff]
    %v2994 = vld [vmem:[#allocation5 + $0x10d] sm:$0xff]
    %v2995 = vld [vmem:[#allocation5 + $0x115] sm:$0xff]
    %v2996 = vld [vmem:[#allocation5 + $0x11d] sm:$0xff]
    %v2997 = vld [vmem:[#allocation5 + $0x125] sm:$0xff]
    %v2998 = vld [vmem:[#allocation5 + $0x12d] sm:$0xff]
    %v2999 = vld [vmem:[#allocation5 + $0x135] sm:$0xff]
    %v3000 = vld [vmem:[#allocation5 + $0x13d] sm:$0xff]
    %v3001 = vld [vmem:[#allocation5 + $0x145] sm:$0xff]
    %v3002 = vld [vmem:[#allocation5 + $0x14d] sm:$0xff]
    %v3003 = vld [vmem:[#allocation5 + $0x155] sm:$0x7]
    %v3004 = vpack.c.bf16 %v2963, %v2962
    %v3005 = vpack.c.bf16 %v2965, %v2964
    %v3006 = vpack.c.bf16 %v2967, %v2966
    %v3007 = vpack.c.bf16 %v2969, %v2968
    %v3008 = vpack.c.bf16 %v2971, %v2970
    %v3009 = vpack.c.bf16 %v2973, %v2972
    %v3010 = vpack.c.bf16 %v2975, %v2974
    %v3011 = vpack.c.bf16 %v2977, %v2976
    %v3012 = vpack.c.bf16 %v2979, %v2978
    %v3013 = vpack.c.bf16 %v2981, %v2980
    %v3014 = vpack.c.bf16 %v2983, %v2982
    %v3015 = vpack.c.bf16 %v2985, %v2984
    %v3016 = vpack.c.bf16 %v2987, %v2986
    %v3017 = vpack.c.bf16 %v2989, %v2988
    %v3018 = vpack.c.bf16 %v2991, %v2990
    %v3019 = vpack.c.bf16 %v2993, %v2992
    %v3020 = vpack.c.bf16 %v2995, %v2994
    %v3021 = vpack.c.bf16 %v2997, %v2996
    %v3022 = vpack.c.bf16 %v2999, %v2998
    %v3023 = vpack.c.bf16 %v3001, %v3000
    %v3024 = vpack.c.bf16 %v3003, %v3002
    %3025 = vst.msk [vmem:[#allocation7 + $0x8] sm:$0xff] %vm40, %v3004
    %3026 = vst.msk [vmem:[#allocation7 + $0x18] sm:$0xff] %vm40, %v3005
    %3027 = vst.msk [vmem:[#allocation7 + $0x28] sm:$0xff] %vm40, %v3006
    %3028 = vst.msk [vmem:[#allocation7 + $0x38] sm:$0xff] %vm40, %v3007
    %3029 = vst.msk [vmem:[#allocation7 + $0x48] sm:$0xff] %vm40, %v3008
    %3030 = vst.msk [vmem:[#allocation7 + $0x58] sm:$0xff] %vm40, %v3009
    %3031 = vst.msk [vmem:[#allocation7 + $0x68] sm:$0xff] %vm40, %v3010
    %3032 = vst.msk [vmem:[#allocation7 + $0x78] sm:$0xff] %vm40, %v3011
    %3033 = vst.msk [vmem:[#allocation7 + $0x88] sm:$0xff] %vm40, %v3012
    %3034 = vst.msk [vmem:[#allocation7 + $0x98] sm:$0xff] %vm40, %v3013
    %3035 = vst.msk [vmem:[#allocation7 + $0xa8] sm:$0xff] %vm40, %v3014
    %3036 = vst.msk [vmem:[#allocation7 + $0xb8] sm:$0xff] %vm40, %v3015
    %3037 = vst.msk [vmem:[#allocation7 + $0xc8] sm:$0xff] %vm40, %v3016
    %3038 = vst.msk [vmem:[#allocation7 + $0xd8] sm:$0xff] %vm40, %v3017
    %3039 = vst.msk [vmem:[#allocation7 + $0xe8] sm:$0xff] %vm40, %v3018
    %3040 = vst.msk [vmem:[#allocation7 + $0xf8] sm:$0xff] %vm40, %v3019
    %3041 = vst.msk [vmem:[#allocation7 + $0x108] sm:$0xff] %vm40, %v3020
    %3042 = vst.msk [vmem:[#allocation7 + $0x118] sm:$0xff] %vm40, %v3021
    %3043 = vst.msk [vmem:[#allocation7 + $0x128] sm:$0xff] %vm40, %v3022
    %3044 = vst.msk [vmem:[#allocation7 + $0x138] sm:$0xff] %vm40, %v3023
    %v3045 = vld [vmem:[#allocation7 + $0x148] sm:$0x3f]
    %v3046 = vsel %vm2785, %v3024, %v3045
    %3047 = vst [vmem:[#allocation7 + $0x148] sm:$0x3f] %v3046
    %v3048 = vld [vmem:[#allocation5 + $0xe] sm:$0xff]
    %v3049 = vld [vmem:[#allocation5 + $0x16] sm:$0xff]
    %v3050 = vld [vmem:[#allocation5 + $0x1e] sm:$0xff]
    %v3051 = vld [vmem:[#allocation5 + $0x26] sm:$0xff]
    %v3052 = vld [vmem:[#allocation5 + $0x2e] sm:$0xff]
    %v3053 = vld [vmem:[#allocation5 + $0x36] sm:$0xff]
    %v3054 = vld [vmem:[#allocation5 + $0x3e] sm:$0xff]
    %v3055 = vld [vmem:[#allocation5 + $0x46] sm:$0xff]
    %v3056 = vld [vmem:[#allocation5 + $0x4e] sm:$0xff]
    %v3057 = vld [vmem:[#allocation5 + $0x56] sm:$0xff]
    %v3058 = vld [vmem:[#allocation5 + $0x5e] sm:$0xff]
    %v3059 = vld [vmem:[#allocation5 + $0x66] sm:$0xff]
    %v3060 = vld [vmem:[#allocation5 + $0x6e] sm:$0xff]
    %v3061 = vld [vmem:[#allocation5 + $0x76] sm:$0xff]
    %v3062 = vld [vmem:[#allocation5 + $0x7e] sm:$0xff]
    %v3063 = vld [vmem:[#allocation5 + $0x86] sm:$0xff]
    %v3064 = vld [vmem:[#allocation5 + $0x8e] sm:$0xff]
    %v3065 = vld [vmem:[#allocation5 + $0x96] sm:$0xff]
    %v3066 = vld [vmem:[#allocation5 + $0x9e] sm:$0xff]
    %v3067 = vld [vmem:[#allocation5 + $0xa6] sm:$0xff]
    %v3068 = vld [vmem:[#allocation5 + $0xae] sm:$0xff]
    %v3069 = vld [vmem:[#allocation5 + $0xb6] sm:$0xff]
    %v3070 = vld [vmem:[#allocation5 + $0xbe] sm:$0xff]
    %v3071 = vld [vmem:[#allocation5 + $0xc6] sm:$0xff]
    %v3072 = vld [vmem:[#allocation5 + $0xce] sm:$0xff]
    %v3073 = vld [vmem:[#allocation5 + $0xd6] sm:$0xff]
    %v3074 = vld [vmem:[#allocation5 + $0xde] sm:$0xff]
    %v3075 = vld [vmem:[#allocation5 + $0xe6] sm:$0xff]
    %v3076 = vld [vmem:[#allocation5 + $0xee] sm:$0xff]
    %v3077 = vld [vmem:[#allocation5 + $0xf6] sm:$0xff]
    %v3078 = vld [vmem:[#allocation5 + $0xfe] sm:$0xff]
    %v3079 = vld [vmem:[#allocation5 + $0x106] sm:$0xff]
    %v3080 = vld [vmem:[#allocation5 + $0x10e] sm:$0xff]
    %v3081 = vld [vmem:[#allocation5 + $0x116] sm:$0xff]
    %v3082 = vld [vmem:[#allocation5 + $0x11e] sm:$0xff]
    %v3083 = vld [vmem:[#allocation5 + $0x126] sm:$0xff]
    %v3084 = vld [vmem:[#allocation5 + $0x12e] sm:$0xff]
    %v3085 = vld [vmem:[#allocation5 + $0x136] sm:$0xff]
    %v3086 = vld [vmem:[#allocation5 + $0x13e] sm:$0xff]
    %v3087 = vld [vmem:[#allocation5 + $0x146] sm:$0xff]
    %v3088 = vld [vmem:[#allocation5 + $0x14e] sm:$0xff]
    %v3089 = vld [vmem:[#allocation5 + $0x156] sm:$0x7]
    %v3090 = vpack.c.bf16 %v3049, %v3048
    %v3091 = vpack.c.bf16 %v3051, %v3050
    %v3092 = vpack.c.bf16 %v3053, %v3052
    %v3093 = vpack.c.bf16 %v3055, %v3054
    %v3094 = vpack.c.bf16 %v3057, %v3056
    %v3095 = vpack.c.bf16 %v3059, %v3058
    %v3096 = vpack.c.bf16 %v3061, %v3060
    %v3097 = vpack.c.bf16 %v3063, %v3062
    %v3098 = vpack.c.bf16 %v3065, %v3064
    %v3099 = vpack.c.bf16 %v3067, %v3066
    %v3100 = vpack.c.bf16 %v3069, %v3068
    %v3101 = vpack.c.bf16 %v3071, %v3070
    %v3102 = vpack.c.bf16 %v3073, %v3072
    %v3103 = vpack.c.bf16 %v3075, %v3074
    %v3104 = vpack.c.bf16 %v3077, %v3076
    %v3105 = vpack.c.bf16 %v3079, %v3078
    %v3106 = vpack.c.bf16 %v3081, %v3080
    %v3107 = vpack.c.bf16 %v3083, %v3082
    %v3108 = vpack.c.bf16 %v3085, %v3084
    %v3109 = vpack.c.bf16 %v3087, %v3086
    %v3110 = vpack.c.bf16 %v3089, %v3088
    %3132 = vrot.lane.b32.xlu0 %v3090, 64
    %v3133 = vpop.permute.xlu0 %3132
    %3134 = vrot.lane.b32.xlu0 %v3091, 64
    %v3135 = vpop.permute.xlu0 %3134
    %3136 = vrot.lane.b32.xlu0 %v3092, 64
    %v3137 = vpop.permute.xlu0 %3136
    %3138 = vrot.lane.b32.xlu0 %v3093, 64
    %v3139 = vpop.permute.xlu0 %3138
    %3140 = vrot.lane.b32.xlu0 %v3094, 64
    %v3141 = vpop.permute.xlu0 %3140
    %3142 = vrot.lane.b32.xlu0 %v3095, 64
    %v3143 = vpop.permute.xlu0 %3142
    %3144 = vrot.lane.b32.xlu0 %v3096, 64
    %v3145 = vpop.permute.xlu0 %3144
    %3146 = vrot.lane.b32.xlu0 %v3097, 64
    %v3147 = vpop.permute.xlu0 %3146
    %3148 = vrot.lane.b32.xlu0 %v3098, 64
    %v3149 = vpop.permute.xlu0 %3148
    %3150 = vrot.lane.b32.xlu0 %v3099, 64
    %v3151 = vpop.permute.xlu0 %3150
    %3152 = vrot.lane.b32.xlu0 %v3100, 64
    %v3153 = vpop.permute.xlu0 %3152
    %3154 = vrot.lane.b32.xlu0 %v3101, 64
    %v3155 = vpop.permute.xlu0 %3154
    %3156 = vrot.lane.b32.xlu0 %v3102, 64
    %v3157 = vpop.permute.xlu0 %3156
    %3158 = vrot.lane.b32.xlu0 %v3103, 64
    %v3159 = vpop.permute.xlu0 %3158
    %3160 = vrot.lane.b32.xlu0 %v3104, 64
    %v3161 = vpop.permute.xlu0 %3160
    %3162 = vrot.lane.b32.xlu0 %v3105, 64
    %v3163 = vpop.permute.xlu0 %3162
    %3164 = vrot.lane.b32.xlu0 %v3106, 64
    %v3165 = vpop.permute.xlu0 %3164
    %3166 = vrot.lane.b32.xlu0 %v3107, 64
    %v3167 = vpop.permute.xlu0 %3166
    %3168 = vrot.lane.b32.xlu0 %v3108, 64
    %v3169 = vpop.permute.xlu0 %3168
    %3170 = vrot.lane.b32.xlu0 %v3109, 64
    %v3171 = vpop.permute.xlu0 %3170
    %3172 = vrot.lane.b32.xlu0 %v3110, 64
    %v3173 = vpop.permute.xlu0 %3172
    %3195 = vst.msk [vmem:[#allocation7 + $0x8] sm:$0xff] %vm2936, %v3133
    %3196 = vst.msk [vmem:[#allocation7 + $0x18] sm:$0xff] %vm2936, %v3135
    %3197 = vst.msk [vmem:[#allocation7 + $0x28] sm:$0xff] %vm2936, %v3137
    %3198 = vst.msk [vmem:[#allocation7 + $0x38] sm:$0xff] %vm2936, %v3139
    %3199 = vst.msk [vmem:[#allocation7 + $0x48] sm:$0xff] %vm2936, %v3141
    %3200 = vst.msk [vmem:[#allocation7 + $0x58] sm:$0xff] %vm2936, %v3143
    %3201 = vst.msk [vmem:[#allocation7 + $0x68] sm:$0xff] %vm2936, %v3145
    %3202 = vst.msk [vmem:[#allocation7 + $0x78] sm:$0xff] %vm2936, %v3147
    %3203 = vst.msk [vmem:[#allocation7 + $0x88] sm:$0xff] %vm2936, %v3149
    %3204 = vst.msk [vmem:[#allocation7 + $0x98] sm:$0xff] %vm2936, %v3151
    %3205 = vst.msk [vmem:[#allocation7 + $0xa8] sm:$0xff] %vm2936, %v3153
    %3206 = vst.msk [vmem:[#allocation7 + $0xb8] sm:$0xff] %vm2936, %v3155
    %3207 = vst.msk [vmem:[#allocation7 + $0xc8] sm:$0xff] %vm2936, %v3157
    %3208 = vst.msk [vmem:[#allocation7 + $0xd8] sm:$0xff] %vm2936, %v3159
    %3209 = vst.msk [vmem:[#allocation7 + $0xe8] sm:$0xff] %vm2936, %v3161
    %3210 = vst.msk [vmem:[#allocation7 + $0xf8] sm:$0xff] %vm2936, %v3163
    %3211 = vst.msk [vmem:[#allocation7 + $0x108] sm:$0xff] %vm2936, %v3165
    %3212 = vst.msk [vmem:[#allocation7 + $0x118] sm:$0xff] %vm2936, %v3167
    %3213 = vst.msk [vmem:[#allocation7 + $0x128] sm:$0xff] %vm2936, %v3169
    %3214 = vst.msk [vmem:[#allocation7 + $0x138] sm:$0xff] %vm2936, %v3171
    %v3215 = vld [vmem:[#allocation7 + $0x148] sm:$0x3f]
    %v3216 = vsel %vm2958, %v3173, %v3215
    %3217 = vst [vmem:[#allocation7 + $0x148] sm:$0x3f] %v3216
    %v3218 = vld [vmem:[#allocation7] sm:$0xff]
    %v3219 = vld [vmem:[#allocation7 + $0x8] sm:$0xff]
    %v3220 = vld [vmem:[#allocation7 + $0x10] sm:$0xff]
    %v3221 = vld [vmem:[#allocation7 + $0x18] sm:$0xff]
    %v3222 = vld [vmem:[#allocation7 + $0x20] sm:$0xff]
    %v3223 = vld [vmem:[#allocation7 + $0x28] sm:$0xff]
    %v3224 = vld [vmem:[#allocation7 + $0x30] sm:$0xff]
    %v3225 = vld [vmem:[#allocation7 + $0x38] sm:$0xff]
    %v3226 = vld [vmem:[#allocation7 + $0x40] sm:$0xff]
    %v3227 = vld [vmem:[#allocation7 + $0x48] sm:$0xff]
    %v3228 = vld [vmem:[#allocation7 + $0x50] sm:$0xff]
    %v3229 = vld [vmem:[#allocation7 + $0x58] sm:$0xff]
    %v3230 = vld [vmem:[#allocation7 + $0x60] sm:$0xff]
    %v3231 = vld [vmem:[#allocation7 + $0x68] sm:$0xff]
    %v3232 = vld [vmem:[#allocation7 + $0x70] sm:$0xff]
    %v3233 = vld [vmem:[#allocation7 + $0x78] sm:$0xff]
    %v3234 = vld [vmem:[#allocation7 + $0x80] sm:$0xff]
    %v3235 = vld [vmem:[#allocation7 + $0x88] sm:$0xff]
    %v3236 = vld [vmem:[#allocation7 + $0x90] sm:$0xff]
    %v3237 = vld [vmem:[#allocation7 + $0x98] sm:$0xff]
    %v3238 = vld [vmem:[#allocation7 + $0xa0] sm:$0xff]
    %v3239 = vld [vmem:[#allocation7 + $0xa8] sm:$0xff]
    %v3240 = vld [vmem:[#allocation7 + $0xb0] sm:$0xff]
    %v3241 = vld [vmem:[#allocation7 + $0xb8] sm:$0xff]
    %v3242 = vld [vmem:[#allocation7 + $0xc0] sm:$0xff]
    %v3243 = vld [vmem:[#allocation7 + $0xc8] sm:$0xff]
    %v3244 = vld [vmem:[#allocation7 + $0xd0] sm:$0xff]
    %v3245 = vld [vmem:[#allocation7 + $0xd8] sm:$0xff]
    %v3246 = vld [vmem:[#allocation7 + $0xe0] sm:$0xff]
    %v3247 = vld [vmem:[#allocation7 + $0xe8] sm:$0xff]
    %v3248 = vld [vmem:[#allocation7 + $0xf0] sm:$0xff]
    %v3249 = vld [vmem:[#allocation7 + $0xf8] sm:$0xff]
    %v3250 = vld [vmem:[#allocation7 + $0x100] sm:$0xff]
    %v3251 = vld [vmem:[#allocation7 + $0x108] sm:$0xff]
    %v3252 = vld [vmem:[#allocation7 + $0x110] sm:$0xff]
    %v3253 = vld [vmem:[#allocation7 + $0x118] sm:$0xff]
    %v3254 = vld [vmem:[#allocation7 + $0x120] sm:$0xff]
    %v3255 = vld [vmem:[#allocation7 + $0x128] sm:$0xff]
    %v3256 = vld [vmem:[#allocation7 + $0x130] sm:$0xff]
    %v3257 = vld [vmem:[#allocation7 + $0x138] sm:$0xff]
    %v3258 = vld [vmem:[#allocation7 + $0x140] sm:$0x3f]
    %v3259 = vld [vmem:[#allocation7 + $0x148] sm:$0x3f]
    %v3260 = vld [vmem:[%s3] sm:$0xf]
    %v3261 = vld [vmem:[%s3 + $0x4] sm:$0xf]
    %v3262 = vld [vmem:[%s3 + $0x8] sm:$0xf]
    %v3263 = vld [vmem:[%s3 + $0xc] sm:$0xf]
    %v3264 = vld [vmem:[%s3 + $0x10] sm:$0xf]
    %v3265 = vld [vmem:[%s3 + $0x14] sm:$0xf]
    %v3266 = vld [vmem:[%s3 + $0x18] sm:$0xf]
    %v3267 = vld [vmem:[%s3 + $0x1c] sm:$0xf]
    %v3268 = vld [vmem:[%s3 + $0x20] sm:$0xf]
    %v3269 = vld [vmem:[%s3 + $0x24] sm:$0xf]
    %v3270 = vld [vmem:[%s3 + $0x28] sm:$0xf]
    %v3271 = vld [vmem:[%s3 + $0x2c] sm:$0xf]
    %v3272 = vld [vmem:[%s3 + $0x30] sm:$0xf]
    %v3273 = vld [vmem:[%s3 + $0x34] sm:$0xf]
    %v3274 = vld [vmem:[%s3 + $0x38] sm:$0xf]
    %v3275 = vld [vmem:[%s3 + $0x3c] sm:$0xf]
    %v3276 = vld [vmem:[%s3 + $0x40] sm:$0xf]
    %v3277 = vld [vmem:[%s3 + $0x44] sm:$0xf]
    %v3278 = vld [vmem:[%s3 + $0x48] sm:$0xf]
    %v3279 = vld [vmem:[%s3 + $0x4c] sm:$0xf]
    %v3280 = vld [vmem:[%s3 + $0x50] sm:$0xf]
    %v3281 = vld [vmem:[%s3 + $0x54] sm:$0xf]
    %v3282 = vld [vmem:[%s3 + $0x58] sm:$0xf]
    %v3283 = vld [vmem:[%s3 + $0x5c] sm:$0xf]
    %v3284 = vld [vmem:[%s3 + $0x60] sm:$0xf]
    %v3285 = vld [vmem:[%s3 + $0x64] sm:$0xf]
    %v3286 = vld [vmem:[%s3 + $0x68] sm:$0xf]
    %v3287 = vld [vmem:[%s3 + $0x6c] sm:$0xf]
    %v3288 = vld [vmem:[%s3 + $0x70] sm:$0xf]
    %v3289 = vld [vmem:[%s3 + $0x74] sm:$0xf]
    %v3290 = vld [vmem:[%s3 + $0x78] sm:$0xf]
    %v3291 = vld [vmem:[%s3 + $0x7c] sm:$0xf]
    %v3324 = vunpack.c.l.b16 %v3260
    %v3325 = vunpack.c.l.b16 %v3261
    %v3326 = vunpack.c.l.b16 %v3262
    %v3327 = vunpack.c.l.b16 %v3263
    %v3328 = vunpack.c.l.b16 %v3264
    %v3329 = vunpack.c.l.b16 %v3265
    %v3330 = vunpack.c.l.b16 %v3266
    %v3331 = vunpack.c.l.b16 %v3267
    %v3332 = vunpack.c.l.b16 %v3268
    %v3333 = vunpack.c.l.b16 %v3269
    %v3334 = vunpack.c.l.b16 %v3270
    %v3335 = vunpack.c.l.b16 %v3271
    %v3336 = vunpack.c.l.b16 %v3272
    %v3337 = vunpack.c.l.b16 %v3273
    %v3338 = vunpack.c.l.b16 %v3274
    %v3339 = vunpack.c.l.b16 %v3275
    %v3340 = vunpack.c.l.b16 %v3276
    %v3341 = vunpack.c.l.b16 %v3277
    %v3342 = vunpack.c.l.b16 %v3278
    %v3343 = vunpack.c.l.b16 %v3279
    %v3344 = vunpack.c.l.b16 %v3280
    %v3345 = vunpack.c.l.b16 %v3281
    %v3346 = vunpack.c.l.b16 %v3282
    %v3347 = vunpack.c.l.b16 %v3283
    %v3348 = vunpack.c.l.b16 %v3284
    %v3349 = vunpack.c.l.b16 %v3285
    %v3350 = vunpack.c.l.b16 %v3286
    %v3351 = vunpack.c.l.b16 %v3287
    %v3352 = vunpack.c.l.b16 %v3288
    %v3353 = vunpack.c.l.b16 %v3289
    %v3354 = vunpack.c.l.b16 %v3290
    %v3355 = vunpack.c.l.b16 %v3291
    %v3356 = vpack.c.b16 %v3325, %v3324
    %v3357 = vpack.c.b16 %v3327, %v3326
    %v3358 = vpack.c.b16 %v3329, %v3328
    %v3359 = vpack.c.b16 %v3331, %v3330
    %v3360 = vpack.c.b16 %v3333, %v3332
    %v3361 = vpack.c.b16 %v3335, %v3334
    %v3362 = vpack.c.b16 %v3337, %v3336
    %v3363 = vpack.c.b16 %v3339, %v3338
    %v3364 = vpack.c.b16 %v3341, %v3340
    %v3365 = vpack.c.b16 %v3343, %v3342
    %v3366 = vpack.c.b16 %v3345, %v3344
    %v3367 = vpack.c.b16 %v3347, %v3346
    %v3368 = vpack.c.b16 %v3349, %v3348
    %v3369 = vpack.c.b16 %v3351, %v3350
    %v3370 = vpack.c.b16 %v3353, %v3352
    %v3371 = vpack.c.b16 %v3355, %v3354
    %3388 = vmatprep.subr.bf16.mxu0 0
    %3389 = vmatpush1.bf16.msra.mxu0 %v3356
    %3390 = vmatprep.subr.bf16.mxu0 0
    %3391 = vmatpush1.bf16.msra.mxu0 %v3357
    %3392 = vmatprep.subr.bf16.mxu0 0
    %3393 = vmatpush1.bf16.msra.mxu0 %v3358
    %3394 = vmatprep.subr.bf16.mxu0 0
    %3395 = vmatpush1.bf16.msra.mxu0 %v3359
    %3396 = vmatprep.subr.bf16.mxu0 0
    %3397 = vmatpush1.bf16.msra.mxu0 %v3360
    %3398 = vmatprep.subr.bf16.mxu0 0
    %3399 = vmatpush1.bf16.msra.mxu0 %v3361
    %3400 = vmatprep.subr.bf16.mxu0 0
    %3401 = vmatpush1.bf16.msra.mxu0 %v3362
    %3402 = vmatprep.subr.bf16.mxu0 0
    %3403 = vmatpush1.bf16.msra.mxu0 %v3363
    %3404 = vmatprep.subr.bf16.mxu0 0
    %3405 = vmatpush1.bf16.msra.mxu0 %v3364
    %3406 = vmatprep.subr.bf16.mxu0 0
    %3407 = vmatpush1.bf16.msra.mxu0 %v3365
    %3408 = vmatprep.subr.bf16.mxu0 0
    %3409 = vmatpush1.bf16.msra.mxu0 %v3366
    %3410 = vmatprep.subr.bf16.mxu0 0
    %3411 = vmatpush1.bf16.msra.mxu0 %v3367
    %3412 = vmatprep.subr.bf16.mxu0 0
    %3413 = vmatpush1.bf16.msra.mxu0 %v3368
    %3414 = vmatprep.subr.bf16.mxu0 0
    %3415 = vmatpush1.bf16.msra.mxu0 %v3369
    %3416 = vmatprep.subr.bf16.mxu0 0
    %3417 = vmatpush1.bf16.msra.mxu0 %v3370
    %3418 = vmatprep.subr.bf16.mxu0 0
    %3419 = vmatpush1.bf16.msra.mxu0 %v3371
    %3420 = vmatprep.mubr.bf16.mxu0 %v3219
    %3421 = vmatmul.mubr.bf16.gmra.mrb[0].mxu0 %v3218
    %v3422 = vpop.f32.mrb[0].mxu0
    %v3423 = vadd.f32 0.0, %v3422
    %v3424 = vpop.f32.mrb[0].mxu0
    %v3425 = vpop.f32.mrb[0].mxu0
    %v3426 = vadd.f32 0.0, %v3425
    %v3427 = vpop.f32.mrb[0].mxu0
    %3428 = vmatprep.mubr.bf16.mxu0 %v3221
    %3429 = vmatmul.mubr.bf16.gmra.mrb[0].mxu0 %v3220
    %v3430 = vpop.f32.mrb[0].mxu0
    %v3431 = vadd.f32 0.0, %v3430
    %v3432 = vpop.f32.mrb[0].mxu0
    %v3433 = vpop.f32.mrb[0].mxu0
    %v3434 = vadd.f32 0.0, %v3433
    %v3435 = vpop.f32.mrb[0].mxu0
    %3436 = vmatprep.mubr.bf16.mxu0 %v3223
    %3437 = vmatmul.mubr.bf16.gmra.mrb[0].mxu0 %v3222
    %v3438 = vpop.f32.mrb[0].mxu0
    %v3439 = vadd.f32 0.0, %v3438
    %v3440 = vpop.f32.mrb[0].mxu0
    %v3441 = vpop.f32.mrb[0].mxu0
    %v3442 = vadd.f32 0.0, %v3441
    %v3443 = vpop.f32.mrb[0].mxu0
    %3444 = vmatprep.mubr.bf16.mxu0 %v3225
    %3445 = vmatmul.mubr.bf16.gmra.mrb[0].mxu0 %v3224
    %v3446 = vpop.f32.mrb[0].mxu0
    %v3447 = vadd.f32 0.0, %v3446
    %v3448 = vpop.f32.mrb[0].mxu0
    %v3449 = vpop.f32.mrb[0].mxu0
    %v3450 = vadd.f32 0.0, %v3449
    %v3451 = vpop.f32.mrb[0].mxu0
    %3452 = vmatprep.mubr.bf16.mxu0 %v3227
    %3453 = vmatmul.mubr.bf16.gmra.mrb[0].mxu0 %v3226
    %v3454 = vpop.f32.mrb[0].mxu0
    %v3455 = vadd.f32 0.0, %v3454
    %v3456 = vpop.f32.mrb[0].mxu0
    %v3457 = vpop.f32.mrb[0].mxu0
    %v3458 = vadd.f32 0.0, %v3457
    %v3459 = vpop.f32.mrb[0].mxu0
    %3460 = vmatprep.mubr.bf16.mxu0 %v3229
    %3461 = vmatmul.mubr.bf16.gmra.mrb[0].mxu0 %v3228
    %v3462 = vpop.f32.mrb[0].mxu0
    %v3463 = vadd.f32 0.0, %v3462
    %v3464 = vpop.f32.mrb[0].mxu0
    %v3465 = vpop.f32.mrb[0].mxu0
    %v3466 = vadd.f32 0.0, %v3465
    %v3467 = vpop.f32.mrb[0].mxu0
    %3468 = vmatprep.mubr.bf16.mxu0 %v3231
    %3469 = vmatmul.mubr.bf16.gmra.mrb[0].mxu0 %v3230
    %v3470 = vpop.f32.mrb[0].mxu0
    %v3471 = vadd.f32 0.0, %v3470
    %v3472 = vpop.f32.mrb[0].mxu0
    %v3473 = vpop.f32.mrb[0].mxu0
    %v3474 = vadd.f32 0.0, %v3473
    %v3475 = vpop.f32.mrb[0].mxu0
    %3476 = vmatprep.mubr.bf16.mxu0 %v3233
    %3477 = vmatmul.mubr.bf16.gmra.mrb[0].mxu0 %v3232
    %v3478 = vpop.f32.mrb[0].mxu0
    %v3479 = vadd.f32 0.0, %v3478
    %v3480 = vpop.f32.mrb[0].mxu0
    %v3481 = vpop.f32.mrb[0].mxu0
    %v3482 = vadd.f32 0.0, %v3481
    %v3483 = vpop.f32.mrb[0].mxu0
    %3484 = vmatprep.mubr.bf16.mxu0 %v3235
    %3485 = vmatmul.mubr.bf16.gmra.mrb[0].mxu0 %v3234
    %v3486 = vpop.f32.mrb[0].mxu0
    %v3487 = vadd.f32 0.0, %v3486
    %v3488 = vpop.f32.mrb[0].mxu0
    %v3489 = vpop.f32.mrb[0].mxu0
    %v3490 = vadd.f32 0.0, %v3489
    %v3491 = vpop.f32.mrb[0].mxu0
    %3492 = vmatprep.mubr.bf16.mxu0 %v3237
    %3493 = vmatmul.mubr.bf16.gmra.mrb[0].mxu0 %v3236
    %v3494 = vpop.f32.mrb[0].mxu0
    %v3495 = vadd.f32 0.0, %v3494
    %v3496 = vpop.f32.mrb[0].mxu0
    %v3497 = vpop.f32.mrb[0].mxu0
    %v3498 = vadd.f32 0.0, %v3497
    %v3499 = vpop.f32.mrb[0].mxu0
    %3500 = vmatprep.mubr.bf16.mxu0 %v3239
    %3501 = vmatmul.mubr.bf16.gmra.mrb[0].mxu0 %v3238
    %v3502 = vpop.f32.mrb[0].mxu0
    %v3503 = vadd.f32 0.0, %v3502
    %v3504 = vpop.f32.mrb[0].mxu0
    %v3505 = vpop.f32.mrb[0].mxu0
    %v3506 = vadd.f32 0.0, %v3505
    %v3507 = vpop.f32.mrb[0].mxu0
    %3508 = vmatprep.mubr.bf16.mxu0 %v3241
    %3509 = vmatmul.mubr.bf16.gmra.mrb[0].mxu0 %v3240
    %v3510 = vpop.f32.mrb[0].mxu0
    %v3511 = vadd.f32 0.0, %v3510
    %v3512 = vpop.f32.mrb[0].mxu0
    %v3513 = vpop.f32.mrb[0].mxu0
    %v3514 = vadd.f32 0.0, %v3513
    %v3515 = vpop.f32.mrb[0].mxu0
    %3516 = vmatprep.mubr.bf16.mxu0 %v3243
    %3517 = vmatmul.mubr.bf16.gmra.mrb[0].mxu0 %v3242
    %v3518 = vpop.f32.mrb[0].mxu0
    %v3519 = vadd.f32 0.0, %v3518
    %v3520 = vpop.f32.mrb[0].mxu0
    %v3521 = vpop.f32.mrb[0].mxu0
    %v3522 = vadd.f32 0.0, %v3521
    %v3523 = vpop.f32.mrb[0].mxu0
    %3524 = vmatprep.mubr.bf16.mxu0 %v3245
    %3525 = vmatmul.mubr.bf16.gmra.mrb[0].mxu0 %v3244
    %v3526 = vpop.f32.mrb[0].mxu0
    %v3527 = vadd.f32 0.0, %v3526
    %v3528 = vpop.f32.mrb[0].mxu0
    %v3529 = vpop.f32.mrb[0].mxu0
    %v3530 = vadd.f32 0.0, %v3529
    %v3531 = vpop.f32.mrb[0].mxu0
    %3532 = vmatprep.mubr.bf16.mxu0 %v3247
    %3533 = vmatmul.mubr.bf16.gmra.mrb[0].mxu0 %v3246
    %v3534 = vpop.f32.mrb[0].mxu0
    %v3535 = vadd.f32 0.0, %v3534
    %v3536 = vpop.f32.mrb[0].mxu0
    %v3537 = vpop.f32.mrb[0].mxu0
    %v3538 = vadd.f32 0.0, %v3537
    %v3539 = vpop.f32.mrb[0].mxu0
    %3540 = vmatprep.mubr.bf16.mxu0 %v3249
    %3541 = vmatmul.mubr.bf16.gmra.mrb[0].mxu0 %v3248
    %v3542 = vpop.f32.mrb[0].mxu0
    %v3543 = vadd.f32 0.0, %v3542
    %v3544 = vpop.f32.mrb[0].mxu0
    %v3545 = vpop.f32.mrb[0].mxu0
    %v3546 = vadd.f32 0.0, %v3545
    %v3547 = vpop.f32.mrb[0].mxu0
    %3548 = vmatprep.mubr.bf16.mxu0 %v3251
    %3549 = vmatmul.mubr.bf16.gmra.mrb[0].mxu0 %v3250
    %v3550 = vpop.f32.mrb[0].mxu0
    %v3551 = vadd.f32 0.0, %v3550
    %v3552 = vpop.f32.mrb[0].mxu0
    %v3553 = vpop.f32.mrb[0].mxu0
    %v3554 = vadd.f32 0.0, %v3553
    %v3555 = vpop.f32.mrb[0].mxu0
    %3556 = vmatprep.mubr.bf16.mxu0 %v3253
    %3557 = vmatmul.mubr.bf16.gmra.mrb[0].mxu0 %v3252
    %v3558 = vpop.f32.mrb[0].mxu0
    %v3559 = vadd.f32 0.0, %v3558
    %v3560 = vpop.f32.mrb[0].mxu0
    %v3561 = vpop.f32.mrb[0].mxu0
    %v3562 = vadd.f32 0.0, %v3561
    %v3563 = vpop.f32.mrb[0].mxu0
    %3564 = vmatprep.mubr.bf16.mxu0 %v3255
    %3565 = vmatmul.mubr.bf16.gmra.mrb[0].mxu0 %v3254
    %v3566 = vpop.f32.mrb[0].mxu0
    %v3567 = vadd.f32 0.0, %v3566
    %v3568 = vpop.f32.mrb[0].mxu0
    %v3569 = vpop.f32.mrb[0].mxu0
    %v3570 = vadd.f32 0.0, %v3569
    %v3571 = vpop.f32.mrb[0].mxu0
    %3572 = vmatprep.mubr.bf16.mxu0 %v3257
    %3573 = vmatmul.mubr.bf16.gmra.mrb[0].mxu0 %v3256
    %v3574 = vpop.f32.mrb[0].mxu0
    %v3575 = vadd.f32 0.0, %v3574
    %v3576 = vpop.f32.mrb[0].mxu0
    %v3577 = vpop.f32.mrb[0].mxu0
    %v3578 = vadd.f32 0.0, %v3577
    %v3579 = vpop.f32.mrb[0].mxu0
    %3580 = vmatprep.mubr.bf16.mxu0 %v3259
    %3581 = vmatmul.mubr.bf16.gmra.mrb[0].mxu0 %v3258
    %v3582 = vpop.f32.mrb[0].mxu0
    %v3583 = vadd.f32 0.0, %v3582
    %v3584 = vpop.f32.mrb[0].mxu0
    %v3585 = vpop.f32.mrb[0].mxu0
    %v3586 = vadd.f32 0.0, %v3585
    %v3587 = vpop.f32.mrb[0].mxu0
    %3588 = vdwg.mxu0
    %v3629 = vrot.slane %v3423, 1
    %v3630 = vrot.slane %v3426, 1
    %v3631 = vsel %vm1589, %v3629, %v3630
    %v3632 = vrot.slane %v3431, 1
    %v3633 = vsel %vm1589, %v3630, %v3632
    %v3634 = vrot.slane %v3434, 1
    %v3635 = vsel %vm1589, %v3632, %v3634
    %v3636 = vrot.slane %v3439, 1
    %v3637 = vsel %vm1589, %v3634, %v3636
    %v3638 = vrot.slane %v3442, 1
    %v3639 = vsel %vm1589, %v3636, %v3638
    %v3640 = vrot.slane %v3447, 1
    %v3641 = vsel %vm1589, %v3638, %v3640
    %v3642 = vrot.slane %v3450, 1
    %v3643 = vsel %vm1589, %v3640, %v3642
    %v3644 = vrot.slane %v3455, 1
    %v3645 = vsel %vm1589, %v3642, %v3644
    %v3646 = vrot.slane %v3458, 1
    %v3647 = vsel %vm1589, %v3644, %v3646
    %v3648 = vrot.slane %v3463, 1
    %v3649 = vsel %vm1589, %v3646, %v3648
    %v3650 = vrot.slane %v3466, 1
    %v3651 = vsel %vm1589, %v3648, %v3650
    %v3652 = vrot.slane %v3471, 1
    %v3653 = vsel %vm1589, %v3650, %v3652
    %v3654 = vrot.slane %v3474, 1
    %v3655 = vsel %vm1589, %v3652, %v3654
    %v3656 = vrot.slane %v3479, 1
    %v3657 = vsel %vm1589, %v3654, %v3656
    %v3658 = vrot.slane %v3482, 1
    %v3659 = vsel %vm1589, %v3656, %v3658
    %v3660 = vrot.slane %v3487, 1
    %v3661 = vsel %vm1589, %v3658, %v3660
    %v3662 = vrot.slane %v3490, 1
    %v3663 = vsel %vm1589, %v3660, %v3662
    %v3664 = vrot.slane %v3495, 1
    %v3665 = vsel %vm1589, %v3662, %v3664
    %v3666 = vrot.slane %v3498, 1
    %v3667 = vsel %vm1589, %v3664, %v3666
    %v3668 = vrot.slane %v3503, 1
    %v3669 = vsel %vm1589, %v3666, %v3668
    %v3670 = vrot.slane %v3506, 1
    %v3671 = vsel %vm1589, %v3668, %v3670
    %v3672 = vrot.slane %v3511, 1
    %v3673 = vsel %vm1589, %v3670, %v3672
    %v3674 = vrot.slane %v3514, 1
    %v3675 = vsel %vm1589, %v3672, %v3674
    %v3676 = vrot.slane %v3519, 1
    %v3677 = vsel %vm1589, %v3674, %v3676
    %v3678 = vrot.slane %v3522, 1
    %v3679 = vsel %vm1589, %v3676, %v3678
    %v3680 = vrot.slane %v3527, 1
    %v3681 = vsel %vm1589, %v3678, %v3680
    %v3682 = vrot.slane %v3530, 1
    %v3683 = vsel %vm1589, %v3680, %v3682
    %v3684 = vrot.slane %v3535, 1
    %v3685 = vsel %vm1589, %v3682, %v3684
    %v3686 = vrot.slane %v3538, 1
    %v3687 = vsel %vm1589, %v3684, %v3686
    %v3688 = vrot.slane %v3543, 1
    %v3689 = vsel %vm1589, %v3686, %v3688
    %v3690 = vrot.slane %v3546, 1
    %v3691 = vsel %vm1589, %v3688, %v3690
    %v3692 = vrot.slane %v3551, 1
    %v3693 = vsel %vm1589, %v3690, %v3692
    %v3694 = vrot.slane %v3554, 1
    %v3695 = vsel %vm1589, %v3692, %v3694
    %v3696 = vrot.slane %v3559, 1
    %v3697 = vsel %vm1589, %v3694, %v3696
    %v3698 = vrot.slane %v3562, 1
    %v3699 = vsel %vm1589, %v3696, %v3698
    %v3700 = vrot.slane %v3567, 1
    %v3701 = vsel %vm1589, %v3698, %v3700
    %v3702 = vrot.slane %v3570, 1
    %v3703 = vsel %vm1589, %v3700, %v3702
    %v3704 = vrot.slane %v3575, 1
    %v3705 = vsel %vm1589, %v3702, %v3704
    %v3706 = vrot.slane %v3578, 1
    %v3707 = vsel %vm1589, %v3704, %v3706
    %v3748 = vmax.f32 %v3423, %v3631
    %v3749 = vmax.f32 %v3426, %v3633
    %v3750 = vmax.f32 %v3431, %v3635
    %v3751 = vmax.f32 %v3434, %v3637
    %v3752 = vmax.f32 %v3439, %v3639
    %v3753 = vmax.f32 %v3442, %v3641
    %v3754 = vmax.f32 %v3447, %v3643
    %v3755 = vmax.f32 %v3450, %v3645
    %v3756 = vmax.f32 %v3455, %v3647
    %v3757 = vmax.f32 %v3458, %v3649
    %v3758 = vmax.f32 %v3463, %v3651
    %v3759 = vmax.f32 %v3466, %v3653
    %v3760 = vmax.f32 %v3471, %v3655
    %v3761 = vmax.f32 %v3474, %v3657
    %v3762 = vmax.f32 %v3479, %v3659
    %v3763 = vmax.f32 %v3482, %v3661
    %v3764 = vmax.f32 %v3487, %v3663
    %v3765 = vmax.f32 %v3490, %v3665
    %v3766 = vmax.f32 %v3495, %v3667
    %v3767 = vmax.f32 %v3498, %v3669
    %v3768 = vmax.f32 %v3503, %v3671
    %v3769 = vmax.f32 %v3506, %v3673
    %v3770 = vmax.f32 %v3511, %v3675
    %v3771 = vmax.f32 %v3514, %v3677
    %v3772 = vmax.f32 %v3519, %v3679
    %v3773 = vmax.f32 %v3522, %v3681
    %v3774 = vmax.f32 %v3527, %v3683
    %v3775 = vmax.f32 %v3530, %v3685
    %v3776 = vmax.f32 %v3535, %v3687
    %v3777 = vmax.f32 %v3538, %v3689
    %v3778 = vmax.f32 %v3543, %v3691
    %v3779 = vmax.f32 %v3546, %v3693
    %v3780 = vmax.f32 %v3551, %v3695
    %v3781 = vmax.f32 %v3554, %v3697
    %v3782 = vmax.f32 %v3559, %v3699
    %v3783 = vmax.f32 %v3562, %v3701
    %v3784 = vmax.f32 %v3567, %v3703
    %v3785 = vmax.f32 %v3570, %v3705
    %v3786 = vmax.f32 %v3575, %v3707
    %v3787 = vmax.f32 %v3578, %v3706
    %v3790 = vrot.slane %v3583, 1
    %v3791 = vsel %vm1589, %v3706, %v3790
    %v3792 = vrot.slane %v3586, 1
    %v3793 = vsel %vm1589, %v3790, %v3792
    %v3797 = vmax.f32 %v3578, %v3791
    %v3798 = vmax.f32 %v3583, %v3793
    %v3799 = vmax.f32 %v3586, %v3792
    %vm3841 = vcmask 1042432
    %v3842 = vrot.slane %v3749, 5
    %v3843 = vrot.slane %v3750, 5
    %v3844 = vsel %vm3841, %v3842, %v3843
    %v3845 = vrot.slane %v3751, 5
    %v3846 = vsel %vm3841, %v3843, %v3845
    %v3847 = vrot.slane %v3752, 5
    %v3848 = vsel %vm3841, %v3845, %v3847
    %v3849 = vrot.slane %v3753, 5
    %v3850 = vsel %vm3841, %v3847, %v3849
    %v3851 = vrot.slane %v3754, 5
    %v3852 = vsel %vm3841, %v3849, %v3851
    %v3853 = vrot.slane %v3755, 5
    %v3854 = vsel %vm3841, %v3851, %v3853
    %v3855 = vrot.slane %v3756, 5
    %v3856 = vsel %vm3841, %v3853, %v3855
    %v3857 = vrot.slane %v3757, 5
    %v3858 = vsel %vm3841, %v3855, %v3857
    %v3859 = vrot.slane %v3758, 5
    %v3860 = vsel %vm3841, %v3857, %v3859
    %v3861 = vrot.slane %v3759, 5
    %v3862 = vsel %vm3841, %v3859, %v3861
    %v3863 = vrot.slane %v3760, 5
    %v3864 = vsel %vm3841, %v3861, %v3863
    %v3865 = vrot.slane %v3761, 5
    %v3866 = vsel %vm3841, %v3863, %v3865
    %v3867 = vrot.slane %v3762, 5
    %v3868 = vsel %vm3841, %v3865, %v3867
    %v3869 = vrot.slane %v3763, 5
    %v3870 = vsel %vm3841, %v3867, %v3869
    %v3871 = vrot.slane %v3764, 5
    %v3872 = vsel %vm3841, %v3869, %v3871
    %v3873 = vrot.slane %v3765, 5
    %v3874 = vsel %vm3841, %v3871, %v3873
    %v3875 = vrot.slane %v3766, 5
    %v3876 = vsel %vm3841, %v3873, %v3875
    %v3877 = vrot.slane %v3767, 5
    %v3878 = vsel %vm3841, %v3875, %v3877
    %v3879 = vrot.slane %v3768, 5
    %v3880 = vsel %vm3841, %v3877, %v3879
    %v3881 = vrot.slane %v3769, 5
    %v3882 = vsel %vm3841, %v3879, %v3881
    %v3883 = vrot.slane %v3770, 5
    %v3884 = vsel %vm3841, %v3881, %v3883
    %v3885 = vrot.slane %v3771, 5
    %v3886 = vsel %vm3841, %v3883, %v3885
    %v3887 = vrot.slane %v3772, 5
    %v3888 = vsel %vm3841, %v3885, %v3887
    %v3889 = vrot.slane %v3773, 5
    %v3890 = vsel %vm3841, %v3887, %v3889
    %v3891 = vrot.slane %v3774, 5
    %v3892 = vsel %vm3841, %v3889, %v3891
    %v3893 = vrot.slane %v3775, 5
    %v3894 = vsel %vm3841, %v3891, %v3893
    %v3895 = vrot.slane %v3776, 5
    %v3896 = vsel %vm3841, %v3893, %v3895
    %v3897 = vrot.slane %v3777, 5
    %v3898 = vsel %vm3841, %v3895, %v3897
    %v3899 = vrot.slane %v3778, 5
    %v3900 = vsel %vm3841, %v3897, %v3899
    %v3901 = vrot.slane %v3779, 5
    %v3902 = vsel %vm3841, %v3899, %v3901
    %v3903 = vrot.slane %v3780, 5
    %v3904 = vsel %vm3841, %v3901, %v3903
    %v3905 = vrot.slane %v3781, 5
    %v3906 = vsel %vm3841, %v3903, %v3905
    %v3907 = vrot.slane %v3782, 5
    %v3908 = vsel %vm3841, %v3905, %v3907
    %v3909 = vrot.slane %v3783, 5
    %v3910 = vsel %vm3841, %v3907, %v3909
    %v3911 = vrot.slane %v3784, 5
    %v3912 = vsel %vm3841, %v3909, %v3911
    %v3913 = vrot.slane %v3785, 5
    %v3914 = vsel %vm3841, %v3911, %v3913
    %v3915 = vrot.slane %v3786, 5
    %v3916 = vsel %vm3841, %v3913, %v3915
    %v3917 = vrot.slane %v3797, 5
    %v3918 = vsel %vm3841, %v3915, %v3917
    %v3919 = vrot.slane %v3798, 5
    %v3920 = vsel %vm3841, %v3917, %v3919
    %v3921 = vrot.slane %v3799, 5
    %v3922 = vsel %vm3841, %v3919, %v3921
    %v3963 = vmax.f32 %v3748, %v3844
    %v3964 = vmax.f32 %v3749, %v3846
    %v3965 = vmax.f32 %v3750, %v3848
    %v3966 = vmax.f32 %v3751, %v3850
    %v3967 = vmax.f32 %v3752, %v3852
    %v3968 = vmax.f32 %v3753, %v3854
    %v3969 = vmax.f32 %v3754, %v3856
    %v3970 = vmax.f32 %v3755, %v3858
    %v3971 = vmax.f32 %v3756, %v3860
    %v3972 = vmax.f32 %v3757, %v3862
    %v3973 = vmax.f32 %v3758, %v3864
    %v3974 = vmax.f32 %v3759, %v3866
    %v3975 = vmax.f32 %v3760, %v3868
    %v3976 = vmax.f32 %v3761, %v3870
    %v3977 = vmax.f32 %v3762, %v3872
    %v3978 = vmax.f32 %v3763, %v3874
    %v3979 = vmax.f32 %v3764, %v3876
    %v3980 = vmax.f32 %v3765, %v3878
    %v3981 = vmax.f32 %v3766, %v3880
    %v3982 = vmax.f32 %v3767, %v3882
    %v3983 = vmax.f32 %v3768, %v3884
    %v3984 = vmax.f32 %v3769, %v3886
    %v3985 = vmax.f32 %v3770, %v3888
    %v3986 = vmax.f32 %v3771, %v3890
    %v3987 = vmax.f32 %v3772, %v3892
    %v3988 = vmax.f32 %v3773, %v3894
    %v3989 = vmax.f32 %v3774, %v3896
    %v3990 = vmax.f32 %v3775, %v3898
    %v3991 = vmax.f32 %v3776, %v3900
    %v3992 = vmax.f32 %v3777, %v3902
    %v3993 = vmax.f32 %v3778, %v3904
    %v3994 = vmax.f32 %v3779, %v3906
    %v3995 = vmax.f32 %v3780, %v3908
    %v3996 = vmax.f32 %v3781, %v3910
    %v3997 = vmax.f32 %v3782, %v3912
    %v3998 = vmax.f32 %v3783, %v3914
    %v3999 = vmax.f32 %v3784, %v3916
    %v4000 = vmax.f32 %v3785, %v3918
    %v4001 = vmax.f32 %v3786, %v3920
    %v4002 = vmax.f32 %v3787, %v3922
    %4003 = vst [vmem:[#allocation3] sm:$0xff] %v3963
    %4004 = vst [vmem:[#allocation3 + $0x8] sm:$0xff] %v3964
    %4005 = vst [vmem:[#allocation3 + $0x10] sm:$0xff] %v3965
    %4006 = vst [vmem:[#allocation3 + $0x18] sm:$0xff] %v3966
    %4007 = vst [vmem:[#allocation3 + $0x20] sm:$0xff] %v3967
    %4008 = vst [vmem:[#allocation3 + $0x28] sm:$0xff] %v3968
    %4009 = vst [vmem:[#allocation3 + $0x30] sm:$0xff] %v3969
    %4010 = vst [vmem:[#allocation3 + $0x38] sm:$0xff] %v3970
    %4011 = vst [vmem:[#allocation3 + $0x40] sm:$0xff] %v3971
    %4012 = vst [vmem:[#allocation3 + $0x48] sm:$0xff] %v3972
    %4013 = vst [vmem:[#allocation3 + $0x50] sm:$0xff] %v3973
    %4014 = vst [vmem:[#allocation3 + $0x58] sm:$0xff] %v3974
    %4015 = vst [vmem:[#allocation3 + $0x60] sm:$0xff] %v3975
    %4016 = vst [vmem:[#allocation3 + $0x68] sm:$0xff] %v3976
    %4017 = vst [vmem:[#allocation3 + $0x70] sm:$0xff] %v3977
    %4018 = vst [vmem:[#allocation3 + $0x78] sm:$0xff] %v3978
    %4019 = vst [vmem:[#allocation3 + $0x80] sm:$0xff] %v3979
    %4020 = vst [vmem:[#allocation3 + $0x88] sm:$0xff] %v3980
    %4021 = vst [vmem:[#allocation3 + $0x90] sm:$0xff] %v3981
    %4022 = vst [vmem:[#allocation3 + $0x98] sm:$0xff] %v3982
    %4023 = vst [vmem:[#allocation3 + $0xa0] sm:$0xff] %v3983
    %4024 = vst [vmem:[#allocation3 + $0xa8] sm:$0xff] %v3984
    %4025 = vst [vmem:[#allocation3 + $0xb0] sm:$0xff] %v3985
    %4026 = vst [vmem:[#allocation3 + $0xb8] sm:$0xff] %v3986
    %4027 = vst [vmem:[#allocation3 + $0xc0] sm:$0xff] %v3987
    %4028 = vst [vmem:[#allocation3 + $0xc8] sm:$0xff] %v3988
    %4029 = vst [vmem:[#allocation3 + $0xd0] sm:$0xff] %v3989
    %4030 = vst [vmem:[#allocation3 + $0xd8] sm:$0xff] %v3990
    %4031 = vst [vmem:[#allocation3 + $0xe0] sm:$0xff] %v3991
    %4032 = vst [vmem:[#allocation3 + $0xe8] sm:$0xff] %v3992
    %4033 = vst [vmem:[#allocation3 + $0xf0] sm:$0xff] %v3993
    %4034 = vst [vmem:[#allocation3 + $0xf8] sm:$0xff] %v3994
    %4035 = vst [vmem:[#allocation3 + $0x100] sm:$0xff] %v3995
    %4036 = vst [vmem:[#allocation3 + $0x108] sm:$0xff] %v3996
    %4037 = vst [vmem:[#allocation3 + $0x110] sm:$0xff] %v3997
    %4038 = vst [vmem:[#allocation3 + $0x118] sm:$0xff] %v3998
    %4039 = vst [vmem:[#allocation3 + $0x120] sm:$0xff] %v3999
    %4040 = vst [vmem:[#allocation3 + $0x128] sm:$0xff] %v4000
    %4041 = vst [vmem:[#allocation3 + $0x130] sm:$0xff] %v4001
    %4042 = vst [vmem:[#allocation3 + $0x138] sm:$0x1f] %v4002
    %v4043 = vld [vmem:[%s4] sm:$0x1]
    %v4044 = vld [vmem:[#allocation3] ss:$2 sm:$0x3f]
    %v4046 = vlaneseq
    %v4047 = vshrl.u32 %v4046, 7
    %v4048 = vsub.s32 0, %v4047
    %v4049 = vrot.slane %v4043, %v4048
    %v4051 = vadd.f32 %v4044, %v4049
    %v4052 = vmax.f32 %v4051, 0.0
    %4053 = vst [vmem:[#allocation6 + $0xa] sm:$0x3f] %v4052
    %s4054 = scalar_lea.vmem [#allocation3], 26
    %v4055 = vld [vmem:[%s4054] ss:$2 sm:$0x3f]
    %v4056 = vadd.f32 %v4055, %v4049
    %v4057 = vmax.f32 %v4056, 0.0
    %4058 = vst [vmem:[#allocation6 + $0x13] sm:$0x3f] %v4057
    %s4059 = scalar_lea.vmem [#allocation3], 52
    %v4060 = vld [vmem:[%s4059] ss:$2 sm:$0x3f]
    %v4061 = vadd.f32 %v4060, %v4049
    %v4062 = vmax.f32 %v4061, 0.0
    %4063 = vst [vmem:[#allocation6 + $0x1c] sm:$0x3f] %v4062
    %s4064 = scalar_lea.vmem [#allocation3], 78
    %v4065 = vld [vmem:[%s4064] ss:$2 sm:$0x3f]
    %v4066 = vadd.f32 %v4065, %v4049
    %v4067 = vmax.f32 %v4066, 0.0
    %4068 = vst [vmem:[#allocation6 + $0x25] sm:$0x3f] %v4067
    %s4069 = scalar_lea.vmem [#allocation3], 104
    %v4070 = vld [vmem:[%s4069] ss:$2 sm:$0x3f]
    %v4071 = vadd.f32 %v4070, %v4049
    %v4072 = vmax.f32 %v4071, 0.0
    %4073 = vst [vmem:[#allocation6 + $0x2e] sm:$0x3f] %v4072
    %s4074 = scalar_lea.vmem [#allocation3], 130
    %v4075 = vld [vmem:[%s4074] ss:$2 sm:$0x3f]
    %v4076 = vadd.f32 %v4075, %v4049
    %v4077 = vmax.f32 %v4076, 0.0
    %4078 = vst [vmem:[#allocation6 + $0x37] sm:$0x3f] %v4077
    %s4079 = scalar_lea.vmem [#allocation3], 176
    %v4080 = vld [vmem:[%s4079] ss:$2 sm:$0x3f]
    %v4081 = vadd.f32 %v4080, %v4049
    %v4082 = vmax.f32 %v4081, 0.0
    %4083 = vst [vmem:[#allocation6 + $0x62] sm:$0x3f] %v4082
    %s4084 = scalar_lea.vmem [#allocation3], 202
    %v4085 = vld [vmem:[%s4084] ss:$2 sm:$0x3f]
    %v4086 = vadd.f32 %v4085, %v4049
    %v4087 = vmax.f32 %v4086, 0.0
    %4088 = vst [vmem:[#allocation6 + $0x6b] sm:$0x3f] %v4087
    %s4089 = scalar_lea.vmem [#allocation3], 228
    %v4090 = vld [vmem:[%s4089] ss:$2 sm:$0x3f]
    %v4091 = vadd.f32 %v4090, %v4049
    %v4092 = vmax.f32 %v4091, 0.0
    %4093 = vst [vmem:[#allocation6 + $0x74] sm:$0x3f] %v4092
    %s4094 = scalar_lea.vmem [#allocation3], 254
    %v4095 = vld [vmem:[%s4094] ss:$2 sm:$0x3f]
    %v4096 = vadd.f32 %v4095, %v4049
    %v4097 = vmax.f32 %v4096, 0.0
    %4098 = vst [vmem:[#allocation6 + $0x7d] sm:$0x3f] %v4097
    %s4099 = scalar_lea.vmem [#allocation3], 280
    %v4100 = vld [vmem:[%s4099] ss:$2 sm:$0x3f]
    %v4101 = vadd.f32 %v4100, %v4049
    %v4102 = vmax.f32 %v4101, 0.0
    %4103 = vst [vmem:[#allocation6 + $0x86] sm:$0x3f] %v4102
    %s4104 = scalar_lea.vmem [#allocation3], 306
    %v4105 = vld [vmem:[%s4104] ss:$2 sm:$0x3f]
    %v4106 = vadd.f32 %v4105, %v4049
    %v4107 = vmax.f32 %v4106, 0.0
    %4108 = vst [vmem:[#allocation6 + $0x8f] sm:$0x3f] %v4107
    %v4109 = vld [vmem:[#allocation6] sm:$0xff]
    %v4110 = vld [vmem:[#allocation6 + $0x8] sm:$0xff]
    %v4111 = vld [vmem:[#allocation6 + $0x10] sm:$0xff]
    %v4112 = vld [vmem:[#allocation6 + $0x18] sm:$0xff]
    %v4113 = vld [vmem:[#allocation6 + $0x20] sm:$0xff]
    %v4114 = vld [vmem:[#allocation6 + $0x28] sm:$0xff]
    %v4115 = vld [vmem:[#allocation6 + $0x30] sm:$0xff]
    %v4116 = vld [vmem:[#allocation6 + $0x38] sm:$0xff]
    %v4117 = vld [vmem:[#allocation6 + $0x40] sm:$0xff]
    %v4118 = vld [vmem:[#allocation6 + $0x48] sm:$0xff]
    %v4119 = vld [vmem:[#allocation6 + $0x50] sm:$0xff]
    %v4120 = vld [vmem:[#allocation6 + $0x58] sm:$0xff]
    %v4121 = vld [vmem:[#allocation6 + $0x60] sm:$0xff]
    %v4122 = vld [vmem:[#allocation6 + $0x68] sm:$0xff]
    %v4123 = vld [vmem:[#allocation6 + $0x70] sm:$0xff]
    %v4124 = vld [vmem:[#allocation6 + $0x78] sm:$0xff]
    %v4125 = vld [vmem:[#allocation6 + $0x80] sm:$0xff]
    %v4126 = vld [vmem:[#allocation6 + $0x88] sm:$0x7]
    %v4127 = vpack.c.bf16 %v4110, %v4109
    %v4128 = vpack.c.bf16 %v4112, %v4111
    %v4129 = vpack.c.bf16 %v4114, %v4113
    %v4130 = vpack.c.bf16 %v4116, %v4115
    %v4131 = vpack.c.bf16 %v4118, %v4117
    %v4132 = vpack.c.bf16 %v4120, %v4119
    %v4133 = vpack.c.bf16 %v4122, %v4121
    %v4134 = vpack.c.bf16 %v4124, %v4123
    %v4135 = vpack.c.bf16 %v4126, %v4125
    %4136 = vst [vmem:[#allocation8] sm:$0xff] %v4127
    %4137 = vst [vmem:[#allocation8 + $0x80] sm:$0xff] %v4128
    %4138 = vst [vmem:[#allocation8 + $0x100] sm:$0xff] %v4129
    %4139 = vst [vmem:[#allocation8 + $0x180] sm:$0xff] %v4130
    %4140 = vst [vmem:[#allocation8 + $0x200] sm:$0xff] %v4131
    %4141 = vst [vmem:[#allocation8 + $0x280] sm:$0xff] %v4132
    %4142 = vst [vmem:[#allocation8 + $0x300] sm:$0xff] %v4133
    %4143 = vst [vmem:[#allocation8 + $0x380] sm:$0xff] %v4134
    %vm4144 = vcmask 1045504
    %vm4145 = vmand %vm4144, %vm2784
    %v4146 = vld [vmem:[#allocation8 + $0x400] sm:$0x3f]
    %v4147 = vsel %vm4145, %v4135, %v4146
    %4148 = vst [vmem:[#allocation8 + $0x400] sm:$0x3f] %v4147
    %v4149 = vld [vmem:[#allocation6 + $0x1] sm:$0xff]
    %v4150 = vld [vmem:[#allocation6 + $0x9] sm:$0xff]
    %v4151 = vld [vmem:[#allocation6 + $0x11] sm:$0xff]
    %v4152 = vld [vmem:[#allocation6 + $0x19] sm:$0xff]
    %v4153 = vld [vmem:[#allocation6 + $0x21] sm:$0xff]
    %v4154 = vld [vmem:[#allocation6 + $0x29] sm:$0xff]
    %v4155 = vld [vmem:[#allocation6 + $0x31] sm:$0xff]
    %v4156 = vld [vmem:[#allocation6 + $0x39] sm:$0xff]
    %v4157 = vld [vmem:[#allocation6 + $0x41] sm:$0xff]
    %v4158 = vld [vmem:[#allocation6 + $0x49] sm:$0xff]
    %v4159 = vld [vmem:[#allocation6 + $0x51] sm:$0xff]
    %v4160 = vld [vmem:[#allocation6 + $0x59] sm:$0xff]
    %v4161 = vld [vmem:[#allocation6 + $0x61] sm:$0xff]
    %v4162 = vld [vmem:[#allocation6 + $0x69] sm:$0xff]
    %v4163 = vld [vmem:[#allocation6 + $0x71] sm:$0xff]
    %v4164 = vld [vmem:[#allocation6 + $0x79] sm:$0xff]
    %v4165 = vld [vmem:[#allocation6 + $0x81] sm:$0xff]
    %v4166 = vld [vmem:[#allocation6 + $0x89] sm:$0x7]
    %v4167 = vpack.c.bf16 %v4150, %v4149
    %v4168 = vpack.c.bf16 %v4152, %v4151
    %v4169 = vpack.c.bf16 %v4154, %v4153
    %v4170 = vpack.c.bf16 %v4156, %v4155
    %v4171 = vpack.c.bf16 %v4158, %v4157
    %v4172 = vpack.c.bf16 %v4160, %v4159
    %v4173 = vpack.c.bf16 %v4162, %v4161
    %v4174 = vpack.c.bf16 %v4164, %v4163
    %v4175 = vpack.c.bf16 %v4166, %v4165
    %4176 = vst [vmem:[#allocation8 + $0x8] sm:$0xff] %v4167
    %4177 = vst [vmem:[#allocation8 + $0x88] sm:$0xff] %v4168
    %4178 = vst [vmem:[#allocation8 + $0x108] sm:$0xff] %v4169
    %4179 = vst [vmem:[#allocation8 + $0x188] sm:$0xff] %v4170
    %4180 = vst [vmem:[#allocation8 + $0x208] sm:$0xff] %v4171
    %4181 = vst [vmem:[#allocation8 + $0x288] sm:$0xff] %v4172
    %4182 = vst [vmem:[#allocation8 + $0x308] sm:$0xff] %v4173
    %4183 = vst [vmem:[#allocation8 + $0x388] sm:$0xff] %v4174
    %v4184 = vld [vmem:[#allocation8 + $0x408] sm:$0x3f]
    %v4185 = vsel %vm4145, %v4175, %v4184
    %4186 = vst [vmem:[#allocation8 + $0x408] sm:$0x3f] %v4185
    %v4187 = vld [vmem:[#allocation6 + $0x2] sm:$0xff]
    %v4188 = vld [vmem:[#allocation6 + $0xa] sm:$0xff]
    %v4189 = vld [vmem:[#allocation6 + $0x12] sm:$0xff]
    %v4190 = vld [vmem:[#allocation6 + $0x1a] sm:$0xff]
    %v4191 = vld [vmem:[#allocation6 + $0x22] sm:$0xff]
    %v4192 = vld [vmem:[#allocation6 + $0x2a] sm:$0xff]
    %v4193 = vld [vmem:[#allocation6 + $0x32] sm:$0xff]
    %v4194 = vld [vmem:[#allocation6 + $0x3a] sm:$0xff]
    %v4195 = vld [vmem:[#allocation6 + $0x42] sm:$0xff]
    %v4196 = vld [vmem:[#allocation6 + $0x4a] sm:$0xff]
    %v4197 = vld [vmem:[#allocation6 + $0x52] sm:$0xff]
    %v4198 = vld [vmem:[#allocation6 + $0x5a] sm:$0xff]
    %v4199 = vld [vmem:[#allocation6 + $0x62] sm:$0xff]
    %v4200 = vld [vmem:[#allocation6 + $0x6a] sm:$0xff]
    %v4201 = vld [vmem:[#allocation6 + $0x72] sm:$0xff]
    %v4202 = vld [vmem:[#allocation6 + $0x7a] sm:$0xff]
    %v4203 = vld [vmem:[#allocation6 + $0x82] sm:$0xff]
    %v4204 = vld [vmem:[#allocation6 + $0x8a] sm:$0x7]
    %v4205 = vpack.c.bf16 %v4188, %v4187
    %v4206 = vpack.c.bf16 %v4190, %v4189
    %v4207 = vpack.c.bf16 %v4192, %v4191
    %v4208 = vpack.c.bf16 %v4194, %v4193
    %v4209 = vpack.c.bf16 %v4196, %v4195
    %v4210 = vpack.c.bf16 %v4198, %v4197
    %v4211 = vpack.c.bf16 %v4200, %v4199
    %v4212 = vpack.c.bf16 %v4202, %v4201
    %v4213 = vpack.c.bf16 %v4204, %v4203
    %4214 = vst [vmem:[#allocation8 + $0x10] sm:$0xff] %v4205
    %4215 = vst [vmem:[#allocation8 + $0x90] sm:$0xff] %v4206
    %4216 = vst [vmem:[#allocation8 + $0x110] sm:$0xff] %v4207
    %4217 = vst [vmem:[#allocation8 + $0x190] sm:$0xff] %v4208
    %4218 = vst [vmem:[#allocation8 + $0x210] sm:$0xff] %v4209
    %4219 = vst [vmem:[#allocation8 + $0x290] sm:$0xff] %v4210
    %4220 = vst [vmem:[#allocation8 + $0x310] sm:$0xff] %v4211
    %4221 = vst [vmem:[#allocation8 + $0x390] sm:$0xff] %v4212
    %v4222 = vld [vmem:[#allocation8 + $0x410] sm:$0x3f]
    %v4223 = vsel %vm4145, %v4213, %v4222
    %4224 = vst [vmem:[#allocation8 + $0x410] sm:$0x3f] %v4223
    %v4225 = vld [vmem:[#allocation6 + $0x3] sm:$0xff]
    %v4226 = vld [vmem:[#allocation6 + $0xb] sm:$0xff]
    %v4227 = vld [vmem:[#allocation6 + $0x13] sm:$0xff]
    %v4228 = vld [vmem:[#allocation6 + $0x1b] sm:$0xff]
    %v4229 = vld [vmem:[#allocation6 + $0x23] sm:$0xff]
    %v4230 = vld [vmem:[#allocation6 + $0x2b] sm:$0xff]
    %v4231 = vld [vmem:[#allocation6 + $0x33] sm:$0xff]
    %v4232 = vld [vmem:[#allocation6 + $0x3b] sm:$0xff]
    %v4233 = vld [vmem:[#allocation6 + $0x43] sm:$0xff]
    %v4234 = vld [vmem:[#allocation6 + $0x4b] sm:$0xff]
    %v4235 = vld [vmem:[#allocation6 + $0x53] sm:$0xff]
    %v4236 = vld [vmem:[#allocation6 + $0x5b] sm:$0xff]
    %v4237 = vld [vmem:[#allocation6 + $0x63] sm:$0xff]
    %v4238 = vld [vmem:[#allocation6 + $0x6b] sm:$0xff]
    %v4239 = vld [vmem:[#allocation6 + $0x73] sm:$0xff]
    %v4240 = vld [vmem:[#allocation6 + $0x7b] sm:$0xff]
    %v4241 = vld [vmem:[#allocation6 + $0x83] sm:$0xff]
    %v4242 = vld [vmem:[#allocation6 + $0x8b] sm:$0x7]
    %v4243 = vpack.c.bf16 %v4226, %v4225
    %v4244 = vpack.c.bf16 %v4228, %v4227
    %v4245 = vpack.c.bf16 %v4230, %v4229
    %v4246 = vpack.c.bf16 %v4232, %v4231
    %v4247 = vpack.c.bf16 %v4234, %v4233
    %v4248 = vpack.c.bf16 %v4236, %v4235
    %v4249 = vpack.c.bf16 %v4238, %v4237
    %v4250 = vpack.c.bf16 %v4240, %v4239
    %v4251 = vpack.c.bf16 %v4242, %v4241
    %4252 = vst [vmem:[#allocation8 + $0x18] sm:$0xff] %v4243
    %4253 = vst [vmem:[#allocation8 + $0x98] sm:$0xff] %v4244
    %4254 = vst [vmem:[#allocation8 + $0x118] sm:$0xff] %v4245
    %4255 = vst [vmem:[#allocation8 + $0x198] sm:$0xff] %v4246
    %4256 = vst [vmem:[#allocation8 + $0x218] sm:$0xff] %v4247
    %4257 = vst [vmem:[#allocation8 + $0x298] sm:$0xff] %v4248
    %4258 = vst [vmem:[#allocation8 + $0x318] sm:$0xff] %v4249
    %4259 = vst [vmem:[#allocation8 + $0x398] sm:$0xff] %v4250
    %v4260 = vld [vmem:[#allocation8 + $0x418] sm:$0x3f]
    %v4261 = vsel %vm4145, %v4251, %v4260
    %4262 = vst [vmem:[#allocation8 + $0x418] sm:$0x3f] %v4261
    %v4263 = vld [vmem:[#allocation6 + $0x9] sm:$0xff]
    %v4264 = vld [vmem:[#allocation6 + $0x11] sm:$0xff]
    %v4265 = vld [vmem:[#allocation6 + $0x19] sm:$0xff]
    %v4266 = vld [vmem:[#allocation6 + $0x21] sm:$0xff]
    %v4267 = vld [vmem:[#allocation6 + $0x29] sm:$0xff]
    %v4268 = vld [vmem:[#allocation6 + $0x31] sm:$0xff]
    %v4269 = vld [vmem:[#allocation6 + $0x39] sm:$0xff]
    %v4270 = vld [vmem:[#allocation6 + $0x41] sm:$0xff]
    %v4271 = vld [vmem:[#allocation6 + $0x49] sm:$0xff]
    %v4272 = vld [vmem:[#allocation6 + $0x51] sm:$0xff]
    %v4273 = vld [vmem:[#allocation6 + $0x59] sm:$0xff]
    %v4274 = vld [vmem:[#allocation6 + $0x61] sm:$0xff]
    %v4275 = vld [vmem:[#allocation6 + $0x69] sm:$0xff]
    %v4276 = vld [vmem:[#allocation6 + $0x71] sm:$0xff]
    %v4277 = vld [vmem:[#allocation6 + $0x79] sm:$0xff]
    %v4278 = vld [vmem:[#allocation6 + $0x81] sm:$0xff]
    %v4279 = vld [vmem:[#allocation6 + $0x89] sm:$0xff]
    %v4280 = vld [vmem:[#allocation6 + $0x91] sm:$0x7]
    %v4281 = vpack.c.bf16 %v4264, %v4263
    %v4282 = vpack.c.bf16 %v4266, %v4265
    %v4283 = vpack.c.bf16 %v4268, %v4267
    %v4284 = vpack.c.bf16 %v4270, %v4269
    %v4285 = vpack.c.bf16 %v4272, %v4271
    %v4286 = vpack.c.bf16 %v4274, %v4273
    %v4287 = vpack.c.bf16 %v4276, %v4275
    %v4288 = vpack.c.bf16 %v4278, %v4277
    %v4289 = vpack.c.bf16 %v4280, %v4279
    %4290 = vst [vmem:[#allocation8 + $0x20] sm:$0xff] %v4281
    %4291 = vst [vmem:[#allocation8 + $0xa0] sm:$0xff] %v4282
    %4292 = vst [vmem:[#allocation8 + $0x120] sm:$0xff] %v4283
    %4293 = vst [vmem:[#allocation8 + $0x1a0] sm:$0xff] %v4284
    %4294 = vst [vmem:[#allocation8 + $0x220] sm:$0xff] %v4285
    %4295 = vst [vmem:[#allocation8 + $0x2a0] sm:$0xff] %v4286
    %4296 = vst [vmem:[#allocation8 + $0x320] sm:$0xff] %v4287
    %4297 = vst [vmem:[#allocation8 + $0x3a0] sm:$0xff] %v4288
    %v4298 = vld [vmem:[#allocation8 + $0x420] sm:$0x3f]
    %v4299 = vsel %vm4145, %v4289, %v4298
    %4300 = vst [vmem:[#allocation8 + $0x420] sm:$0x3f] %v4299
    %v4301 = vld [vmem:[#allocation6 + $0xa] sm:$0xff]
    %v4302 = vld [vmem:[#allocation6 + $0x12] sm:$0xff]
    %v4303 = vld [vmem:[#allocation6 + $0x1a] sm:$0xff]
    %v4304 = vld [vmem:[#allocation6 + $0x22] sm:$0xff]
    %v4305 = vld [vmem:[#allocation6 + $0x2a] sm:$0xff]
    %v4306 = vld [vmem:[#allocation6 + $0x32] sm:$0xff]
    %v4307 = vld [vmem:[#allocation6 + $0x3a] sm:$0xff]
    %v4308 = vld [vmem:[#allocation6 + $0x42] sm:$0xff]
    %v4309 = vld [vmem:[#allocation6 + $0x4a] sm:$0xff]
    %v4310 = vld [vmem:[#allocation6 + $0x52] sm:$0xff]
    %v4311 = vld [vmem:[#allocation6 + $0x5a] sm:$0xff]
    %v4312 = vld [vmem:[#allocation6 + $0x62] sm:$0xff]
    %v4313 = vld [vmem:[#allocation6 + $0x6a] sm:$0xff]
    %v4314 = vld [vmem:[#allocation6 + $0x72] sm:$0xff]
    %v4315 = vld [vmem:[#allocation6 + $0x7a] sm:$0xff]
    %v4316 = vld [vmem:[#allocation6 + $0x82] sm:$0xff]
    %v4317 = vld [vmem:[#allocation6 + $0x8a] sm:$0xff]
    %v4318 = vld [vmem:[#allocation6 + $0x92] sm:$0x7]
    %v4319 = vpack.c.bf16 %v4302, %v4301
    %v4320 = vpack.c.bf16 %v4304, %v4303
    %v4321 = vpack.c.bf16 %v4306, %v4305
    %v4322 = vpack.c.bf16 %v4308, %v4307
    %v4323 = vpack.c.bf16 %v4310, %v4309
    %v4324 = vpack.c.bf16 %v4312, %v4311
    %v4325 = vpack.c.bf16 %v4314, %v4313
    %v4326 = vpack.c.bf16 %v4316, %v4315
    %v4327 = vpack.c.bf16 %v4318, %v4317
    %4328 = vst [vmem:[#allocation8 + $0x28] sm:$0xff] %v4319
    %4329 = vst [vmem:[#allocation8 + $0xa8] sm:$0xff] %v4320
    %4330 = vst [vmem:[#allocation8 + $0x128] sm:$0xff] %v4321
    %4331 = vst [vmem:[#allocation8 + $0x1a8] sm:$0xff] %v4322
    %4332 = vst [vmem:[#allocation8 + $0x228] sm:$0xff] %v4323
    %4333 = vst [vmem:[#allocation8 + $0x2a8] sm:$0xff] %v4324
    %4334 = vst [vmem:[#allocation8 + $0x328] sm:$0xff] %v4325
    %4335 = vst [vmem:[#allocation8 + $0x3a8] sm:$0xff] %v4326
    %v4336 = vld [vmem:[#allocation8 + $0x428] sm:$0x3f]
    %v4337 = vsel %vm4145, %v4327, %v4336
    %4338 = vst [vmem:[#allocation8 + $0x428] sm:$0x3f] %v4337
    %v4339 = vld [vmem:[#allocation6 + $0xb] sm:$0xff]
    %v4340 = vld [vmem:[#allocation6 + $0x13] sm:$0xff]
    %v4341 = vld [vmem:[#allocation6 + $0x1b] sm:$0xff]
    %v4342 = vld [vmem:[#allocation6 + $0x23] sm:$0xff]
    %v4343 = vld [vmem:[#allocation6 + $0x2b] sm:$0xff]
    %v4344 = vld [vmem:[#allocation6 + $0x33] sm:$0xff]
    %v4345 = vld [vmem:[#allocation6 + $0x3b] sm:$0xff]
    %v4346 = vld [vmem:[#allocation6 + $0x43] sm:$0xff]
    %v4347 = vld [vmem:[#allocation6 + $0x4b] sm:$0xff]
    %v4348 = vld [vmem:[#allocation6 + $0x53] sm:$0xff]
    %v4349 = vld [vmem:[#allocation6 + $0x5b] sm:$0xff]
    %v4350 = vld [vmem:[#allocation6 + $0x63] sm:$0xff]
    %v4351 = vld [vmem:[#allocation6 + $0x6b] sm:$0xff]
    %v4352 = vld [vmem:[#allocation6 + $0x73] sm:$0xff]
    %v4353 = vld [vmem:[#allocation6 + $0x7b] sm:$0xff]
    %v4354 = vld [vmem:[#allocation6 + $0x83] sm:$0xff]
    %v4355 = vld [vmem:[#allocation6 + $0x8b] sm:$0xff]
    %v4356 = vld [vmem:[#allocation6 + $0x93] sm:$0x7]
    %v4357 = vpack.c.bf16 %v4340, %v4339
    %v4358 = vpack.c.bf16 %v4342, %v4341
    %v4359 = vpack.c.bf16 %v4344, %v4343
    %v4360 = vpack.c.bf16 %v4346, %v4345
    %v4361 = vpack.c.bf16 %v4348, %v4347
    %v4362 = vpack.c.bf16 %v4350, %v4349
    %v4363 = vpack.c.bf16 %v4352, %v4351
    %v4364 = vpack.c.bf16 %v4354, %v4353
    %v4365 = vpack.c.bf16 %v4356, %v4355
    %4366 = vst [vmem:[#allocation8 + $0x30] sm:$0xff] %v4357
    %4367 = vst [vmem:[#allocation8 + $0xb0] sm:$0xff] %v4358
    %4368 = vst [vmem:[#allocation8 + $0x130] sm:$0xff] %v4359
    %4369 = vst [vmem:[#allocation8 + $0x1b0] sm:$0xff] %v4360
    %4370 = vst [vmem:[#allocation8 + $0x230] sm:$0xff] %v4361
    %4371 = vst [vmem:[#allocation8 + $0x2b0] sm:$0xff] %v4362
    %4372 = vst [vmem:[#allocation8 + $0x330] sm:$0xff] %v4363
    %4373 = vst [vmem:[#allocation8 + $0x3b0] sm:$0xff] %v4364
    %v4374 = vld [vmem:[#allocation8 + $0x430] sm:$0x3f]
    %v4375 = vsel %vm4145, %v4365, %v4374
    %4376 = vst [vmem:[#allocation8 + $0x430] sm:$0x3f] %v4375
    %v4377 = vld [vmem:[#allocation6 + $0xc] sm:$0xff]
    %v4378 = vld [vmem:[#allocation6 + $0x14] sm:$0xff]
    %v4379 = vld [vmem:[#allocation6 + $0x1c] sm:$0xff]
    %v4380 = vld [vmem:[#allocation6 + $0x24] sm:$0xff]
    %v4381 = vld [vmem:[#allocation6 + $0x2c] sm:$0xff]
    %v4382 = vld [vmem:[#allocation6 + $0x34] sm:$0xff]
    %v4383 = vld [vmem:[#allocation6 + $0x3c] sm:$0xff]
    %v4384 = vld [vmem:[#allocation6 + $0x44] sm:$0xff]
    %v4385 = vld [vmem:[#allocation6 + $0x4c] sm:$0xff]
    %v4386 = vld [vmem:[#allocation6 + $0x54] sm:$0xff]
    %v4387 = vld [vmem:[#allocation6 + $0x5c] sm:$0xff]
    %v4388 = vld [vmem:[#allocation6 + $0x64] sm:$0xff]
    %v4389 = vld [vmem:[#allocation6 + $0x6c] sm:$0xff]
    %v4390 = vld [vmem:[#allocation6 + $0x74] sm:$0xff]
    %v4391 = vld [vmem:[#allocation6 + $0x7c] sm:$0xff]
    %v4392 = vld [vmem:[#allocation6 + $0x84] sm:$0xff]
    %v4393 = vld [vmem:[#allocation6 + $0x8c] sm:$0xff]
    %v4394 = vld [vmem:[#allocation6 + $0x94] sm:$0x7]
    %v4395 = vpack.c.bf16 %v4378, %v4377
    %v4396 = vpack.c.bf16 %v4380, %v4379
    %v4397 = vpack.c.bf16 %v4382, %v4381
    %v4398 = vpack.c.bf16 %v4384, %v4383
    %v4399 = vpack.c.bf16 %v4386, %v4385
    %v4400 = vpack.c.bf16 %v4388, %v4387
    %v4401 = vpack.c.bf16 %v4390, %v4389
    %v4402 = vpack.c.bf16 %v4392, %v4391
    %v4403 = vpack.c.bf16 %v4394, %v4393
    %4404 = vst [vmem:[#allocation8 + $0x38] sm:$0xff] %v4395
    %4405 = vst [vmem:[#allocation8 + $0xb8] sm:$0xff] %v4396
    %4406 = vst [vmem:[#allocation8 + $0x138] sm:$0xff] %v4397
    %4407 = vst [vmem:[#allocation8 + $0x1b8] sm:$0xff] %v4398
    %4408 = vst [vmem:[#allocation8 + $0x238] sm:$0xff] %v4399
    %4409 = vst [vmem:[#allocation8 + $0x2b8] sm:$0xff] %v4400
    %4410 = vst [vmem:[#allocation8 + $0x338] sm:$0xff] %v4401
    %4411 = vst [vmem:[#allocation8 + $0x3b8] sm:$0xff] %v4402
    %v4412 = vld [vmem:[#allocation8 + $0x438] sm:$0x3f]
    %v4413 = vsel %vm4145, %v4403, %v4412
    %4414 = vst [vmem:[#allocation8 + $0x438] sm:$0x3f] %v4413
    %v4415 = vld [vmem:[#allocation6 + $0x12] sm:$0xff]
    %v4416 = vld [vmem:[#allocation6 + $0x1a] sm:$0xff]
    %v4417 = vld [vmem:[#allocation6 + $0x22] sm:$0xff]
    %v4418 = vld [vmem:[#allocation6 + $0x2a] sm:$0xff]
    %v4419 = vld [vmem:[#allocation6 + $0x32] sm:$0xff]
    %v4420 = vld [vmem:[#allocation6 + $0x3a] sm:$0xff]
    %v4421 = vld [vmem:[#allocation6 + $0x42] sm:$0xff]
    %v4422 = vld [vmem:[#allocation6 + $0x4a] sm:$0xff]
    %v4423 = vld [vmem:[#allocation6 + $0x52] sm:$0xff]
    %v4424 = vld [vmem:[#allocation6 + $0x5a] sm:$0xff]
    %v4425 = vld [vmem:[#allocation6 + $0x62] sm:$0xff]
    %v4426 = vld [vmem:[#allocation6 + $0x6a] sm:$0xff]
    %v4427 = vld [vmem:[#allocation6 + $0x72] sm:$0xff]
    %v4428 = vld [vmem:[#allocation6 + $0x7a] sm:$0xff]
    %v4429 = vld [vmem:[#allocation6 + $0x82] sm:$0xff]
    %v4430 = vld [vmem:[#allocation6 + $0x8a] sm:$0xff]
    %v4431 = vld [vmem:[#allocation6 + $0x92] sm:$0xff]
    %v4432 = vld [vmem:[#allocation6 + $0x9a] sm:$0x7]
    %v4433 = vpack.c.bf16 %v4416, %v4415
    %v4434 = vpack.c.bf16 %v4418, %v4417
    %v4435 = vpack.c.bf16 %v4420, %v4419
    %v4436 = vpack.c.bf16 %v4422, %v4421
    %v4437 = vpack.c.bf16 %v4424, %v4423
    %v4438 = vpack.c.bf16 %v4426, %v4425
    %v4439 = vpack.c.bf16 %v4428, %v4427
    %v4440 = vpack.c.bf16 %v4430, %v4429
    %v4441 = vpack.c.bf16 %v4432, %v4431
    %4442 = vst [vmem:[#allocation8 + $0x40] sm:$0xff] %v4433
    %4443 = vst [vmem:[#allocation8 + $0xc0] sm:$0xff] %v4434
    %4444 = vst [vmem:[#allocation8 + $0x140] sm:$0xff] %v4435
    %4445 = vst [vmem:[#allocation8 + $0x1c0] sm:$0xff] %v4436
    %4446 = vst [vmem:[#allocation8 + $0x240] sm:$0xff] %v4437
    %4447 = vst [vmem:[#allocation8 + $0x2c0] sm:$0xff] %v4438
    %4448 = vst [vmem:[#allocation8 + $0x340] sm:$0xff] %v4439
    %4449 = vst [vmem:[#allocation8 + $0x3c0] sm:$0xff] %v4440
    %v4450 = vld [vmem:[#allocation8 + $0x440] sm:$0x3f]
    %v4451 = vsel %vm4145, %v4441, %v4450
    %4452 = vst [vmem:[#allocation8 + $0x440] sm:$0x3f] %v4451
    %v4453 = vld [vmem:[#allocation6 + $0x13] sm:$0xff]
    %v4454 = vld [vmem:[#allocation6 + $0x1b] sm:$0xff]
    %v4455 = vld [vmem:[#allocation6 + $0x23] sm:$0xff]
    %v4456 = vld [vmem:[#allocation6 + $0x2b] sm:$0xff]
    %v4457 = vld [vmem:[#allocation6 + $0x33] sm:$0xff]
    %v4458 = vld [vmem:[#allocation6 + $0x3b] sm:$0xff]
    %v4459 = vld [vmem:[#allocation6 + $0x43] sm:$0xff]
    %v4460 = vld [vmem:[#allocation6 + $0x4b] sm:$0xff]
    %v4461 = vld [vmem:[#allocation6 + $0x53] sm:$0xff]
    %v4462 = vld [vmem:[#allocation6 + $0x5b] sm:$0xff]
    %v4463 = vld [vmem:[#allocation6 + $0x63] sm:$0xff]
    %v4464 = vld [vmem:[#allocation6 + $0x6b] sm:$0xff]
    %v4465 = vld [vmem:[#allocation6 + $0x73] sm:$0xff]
    %v4466 = vld [vmem:[#allocation6 + $0x7b] sm:$0xff]
    %v4467 = vld [vmem:[#allocation6 + $0x83] sm:$0xff]
    %v4468 = vld [vmem:[#allocation6 + $0x8b] sm:$0xff]
    %v4469 = vld [vmem:[#allocation6 + $0x93] sm:$0xff]
    %v4470 = vld [vmem:[#allocation6 + $0x9b] sm:$0x7]
    %v4471 = vpack.c.bf16 %v4454, %v4453
    %v4472 = vpack.c.bf16 %v4456, %v4455
    %v4473 = vpack.c.bf16 %v4458, %v4457
    %v4474 = vpack.c.bf16 %v4460, %v4459
    %v4475 = vpack.c.bf16 %v4462, %v4461
    %v4476 = vpack.c.bf16 %v4464, %v4463
    %v4477 = vpack.c.bf16 %v4466, %v4465
    %v4478 = vpack.c.bf16 %v4468, %v4467
    %v4479 = vpack.c.bf16 %v4470, %v4469
    %4480 = vst [vmem:[#allocation8 + $0x48] sm:$0xff] %v4471
    %4481 = vst [vmem:[#allocation8 + $0xc8] sm:$0xff] %v4472
    %4482 = vst [vmem:[#allocation8 + $0x148] sm:$0xff] %v4473
    %4483 = vst [vmem:[#allocation8 + $0x1c8] sm:$0xff] %v4474
    %4484 = vst [vmem:[#allocation8 + $0x248] sm:$0xff] %v4475
    %4485 = vst [vmem:[#allocation8 + $0x2c8] sm:$0xff] %v4476
    %4486 = vst [vmem:[#allocation8 + $0x348] sm:$0xff] %v4477
    %4487 = vst [vmem:[#allocation8 + $0x3c8] sm:$0xff] %v4478
    %v4488 = vld [vmem:[#allocation8 + $0x448] sm:$0x3f]
    %v4489 = vsel %vm4145, %v4479, %v4488
    %4490 = vst [vmem:[#allocation8 + $0x448] sm:$0x3f] %v4489
    %v4491 = vld [vmem:[#allocation6 + $0x14] sm:$0xff]
    %v4492 = vld [vmem:[#allocation6 + $0x1c] sm:$0xff]
    %v4493 = vld [vmem:[#allocation6 + $0x24] sm:$0xff]
    %v4494 = vld [vmem:[#allocation6 + $0x2c] sm:$0xff]
    %v4495 = vld [vmem:[#allocation6 + $0x34] sm:$0xff]
    %v4496 = vld [vmem:[#allocation6 + $0x3c] sm:$0xff]
    %v4497 = vld [vmem:[#allocation6 + $0x44] sm:$0xff]
    %v4498 = vld [vmem:[#allocation6 + $0x4c] sm:$0xff]
    %v4499 = vld [vmem:[#allocation6 + $0x54] sm:$0xff]
    %v4500 = vld [vmem:[#allocation6 + $0x5c] sm:$0xff]
    %v4501 = vld [vmem:[#allocation6 + $0x64] sm:$0xff]
    %v4502 = vld [vmem:[#allocation6 + $0x6c] sm:$0xff]
    %v4503 = vld [vmem:[#allocation6 + $0x74] sm:$0xff]
    %v4504 = vld [vmem:[#allocation6 + $0x7c] sm:$0xff]
    %v4505 = vld [vmem:[#allocation6 + $0x84] sm:$0xff]
    %v4506 = vld [vmem:[#allocation6 + $0x8c] sm:$0xff]
    %v4507 = vld [vmem:[#allocation6 + $0x94] sm:$0xff]
    %v4508 = vld [vmem:[#allocation6 + $0x9c] sm:$0x7]
    %v4509 = vpack.c.bf16 %v4492, %v4491
    %v4510 = vpack.c.bf16 %v4494, %v4493
    %v4511 = vpack.c.bf16 %v4496, %v4495
    %v4512 = vpack.c.bf16 %v4498, %v4497
    %v4513 = vpack.c.bf16 %v4500, %v4499
    %v4514 = vpack.c.bf16 %v4502, %v4501
    %v4515 = vpack.c.bf16 %v4504, %v4503
    %v4516 = vpack.c.bf16 %v4506, %v4505
    %v4517 = vpack.c.bf16 %v4508, %v4507
    %4518 = vst [vmem:[#allocation8 + $0x50] sm:$0xff] %v4509
    %4519 = vst [vmem:[#allocation8 + $0xd0] sm:$0xff] %v4510
    %4520 = vst [vmem:[#allocation8 + $0x150] sm:$0xff] %v4511
    %4521 = vst [vmem:[#allocation8 + $0x1d0] sm:$0xff] %v4512
    %4522 = vst [vmem:[#allocation8 + $0x250] sm:$0xff] %v4513
    %4523 = vst [vmem:[#allocation8 + $0x2d0] sm:$0xff] %v4514
    %4524 = vst [vmem:[#allocation8 + $0x350] sm:$0xff] %v4515
    %4525 = vst [vmem:[#allocation8 + $0x3d0] sm:$0xff] %v4516
    %v4526 = vld [vmem:[#allocation8 + $0x450] sm:$0x3f]
    %v4527 = vsel %vm4145, %v4517, %v4526
    %4528 = vst [vmem:[#allocation8 + $0x450] sm:$0x3f] %v4527
    %v4529 = vld [vmem:[#allocation6 + $0x15] sm:$0xff]
    %v4530 = vld [vmem:[#allocation6 + $0x1d] sm:$0xff]
    %v4531 = vld [vmem:[#allocation6 + $0x25] sm:$0xff]
    %v4532 = vld [vmem:[#allocation6 + $0x2d] sm:$0xff]
    %v4533 = vld [vmem:[#allocation6 + $0x35] sm:$0xff]
    %v4534 = vld [vmem:[#allocation6 + $0x3d] sm:$0xff]
    %v4535 = vld [vmem:[#allocation6 + $0x45] sm:$0xff]
    %v4536 = vld [vmem:[#allocation6 + $0x4d] sm:$0xff]
    %v4537 = vld [vmem:[#allocation6 + $0x55] sm:$0xff]
    %v4538 = vld [vmem:[#allocation6 + $0x5d] sm:$0xff]
    %v4539 = vld [vmem:[#allocation6 + $0x65] sm:$0xff]
    %v4540 = vld [vmem:[#allocation6 + $0x6d] sm:$0xff]
    %v4541 = vld [vmem:[#allocation6 + $0x75] sm:$0xff]
    %v4542 = vld [vmem:[#allocation6 + $0x7d] sm:$0xff]
    %v4543 = vld [vmem:[#allocation6 + $0x85] sm:$0xff]
    %v4544 = vld [vmem:[#allocation6 + $0x8d] sm:$0xff]
    %v4545 = vld [vmem:[#allocation6 + $0x95] sm:$0xff]
    %v4546 = vld [vmem:[#allocation6 + $0x9d] sm:$0x7]
    %v4547 = vpack.c.bf16 %v4530, %v4529
    %v4548 = vpack.c.bf16 %v4532, %v4531
    %v4549 = vpack.c.bf16 %v4534, %v4533
    %v4550 = vpack.c.bf16 %v4536, %v4535
    %v4551 = vpack.c.bf16 %v4538, %v4537
    %v4552 = vpack.c.bf16 %v4540, %v4539
    %v4553 = vpack.c.bf16 %v4542, %v4541
    %v4554 = vpack.c.bf16 %v4544, %v4543
    %v4555 = vpack.c.bf16 %v4546, %v4545
    %4556 = vst [vmem:[#allocation8 + $0x58] sm:$0xff] %v4547
    %4557 = vst [vmem:[#allocation8 + $0xd8] sm:$0xff] %v4548
    %4558 = vst [vmem:[#allocation8 + $0x158] sm:$0xff] %v4549
    %4559 = vst [vmem:[#allocation8 + $0x1d8] sm:$0xff] %v4550
    %4560 = vst [vmem:[#allocation8 + $0x258] sm:$0xff] %v4551
    %4561 = vst [vmem:[#allocation8 + $0x2d8] sm:$0xff] %v4552
    %4562 = vst [vmem:[#allocation8 + $0x358] sm:$0xff] %v4553
    %4563 = vst [vmem:[#allocation8 + $0x3d8] sm:$0xff] %v4554
    %v4564 = vld [vmem:[#allocation8 + $0x458] sm:$0x3f]
    %v4565 = vsel %vm4145, %v4555, %v4564
    %4566 = vst [vmem:[#allocation8 + $0x458] sm:$0x3f] %v4565
    %v4567 = vld [vmem:[#allocation6 + $0x1b] sm:$0xff]
    %v4568 = vld [vmem:[#allocation6 + $0x23] sm:$0xff]
    %v4569 = vld [vmem:[#allocation6 + $0x2b] sm:$0xff]
    %v4570 = vld [vmem:[#allocation6 + $0x33] sm:$0xff]
    %v4571 = vld [vmem:[#allocation6 + $0x3b] sm:$0xff]
    %v4572 = vld [vmem:[#allocation6 + $0x43] sm:$0xff]
    %v4573 = vld [vmem:[#allocation6 + $0x4b] sm:$0xff]
    %v4574 = vld [vmem:[#allocation6 + $0x53] sm:$0xff]
    %v4575 = vld [vmem:[#allocation6 + $0x5b] sm:$0xff]
    %v4576 = vld [vmem:[#allocation6 + $0x63] sm:$0xff]
    %v4577 = vld [vmem:[#allocation6 + $0x6b] sm:$0xff]
    %v4578 = vld [vmem:[#allocation6 + $0x73] sm:$0xff]
    %v4579 = vld [vmem:[#allocation6 + $0x7b] sm:$0xff]
    %v4580 = vld [vmem:[#allocation6 + $0x83] sm:$0xff]
    %v4581 = vld [vmem:[#allocation6 + $0x8b] sm:$0xff]
    %v4582 = vld [vmem:[#allocation6 + $0x93] sm:$0xff]
    %v4583 = vld [vmem:[#allocation6 + $0x9b] sm:$0xff]
    %v4584 = vld [vmem:[#allocation6 + $0xa3] sm:$0x7]
    %v4585 = vpack.c.bf16 %v4568, %v4567
    %v4586 = vpack.c.bf16 %v4570, %v4569
    %v4587 = vpack.c.bf16 %v4572, %v4571
    %v4588 = vpack.c.bf16 %v4574, %v4573
    %v4589 = vpack.c.bf16 %v4576, %v4575
    %v4590 = vpack.c.bf16 %v4578, %v4577
    %v4591 = vpack.c.bf16 %v4580, %v4579
    %v4592 = vpack.c.bf16 %v4582, %v4581
    %v4593 = vpack.c.bf16 %v4584, %v4583
    %4594 = vst [vmem:[#allocation8 + $0x60] sm:$0xff] %v4585
    %4595 = vst [vmem:[#allocation8 + $0xe0] sm:$0xff] %v4586
    %4596 = vst [vmem:[#allocation8 + $0x160] sm:$0xff] %v4587
    %4597 = vst [vmem:[#allocation8 + $0x1e0] sm:$0xff] %v4588
    %4598 = vst [vmem:[#allocation8 + $0x260] sm:$0xff] %v4589
    %4599 = vst [vmem:[#allocation8 + $0x2e0] sm:$0xff] %v4590
    %4600 = vst [vmem:[#allocation8 + $0x360] sm:$0xff] %v4591
    %4601 = vst [vmem:[#allocation8 + $0x3e0] sm:$0xff] %v4592
    %v4602 = vld [vmem:[#allocation8 + $0x460] sm:$0x3f]
    %v4603 = vsel %vm4145, %v4593, %v4602
    %4604 = vst [vmem:[#allocation8 + $0x460] sm:$0x3f] %v4603
    %v4605 = vld [vmem:[#allocation6 + $0x1c] sm:$0xff]
    %v4606 = vld [vmem:[#allocation6 + $0x24] sm:$0xff]
    %v4607 = vld [vmem:[#allocation6 + $0x2c] sm:$0xff]
    %v4608 = vld [vmem:[#allocation6 + $0x34] sm:$0xff]
    %v4609 = vld [vmem:[#allocation6 + $0x3c] sm:$0xff]
    %v4610 = vld [vmem:[#allocation6 + $0x44] sm:$0xff]
    %v4611 = vld [vmem:[#allocation6 + $0x4c] sm:$0xff]
    %v4612 = vld [vmem:[#allocation6 + $0x54] sm:$0xff]
    %v4613 = vld [vmem:[#allocation6 + $0x5c] sm:$0xff]
    %v4614 = vld [vmem:[#allocation6 + $0x64] sm:$0xff]
    %v4615 = vld [vmem:[#allocation6 + $0x6c] sm:$0xff]
    %v4616 = vld [vmem:[#allocation6 + $0x74] sm:$0xff]
    %v4617 = vld [vmem:[#allocation6 + $0x7c] sm:$0xff]
    %v4618 = vld [vmem:[#allocation6 + $0x84] sm:$0xff]
    %v4619 = vld [vmem:[#allocation6 + $0x8c] sm:$0xff]
    %v4620 = vld [vmem:[#allocation6 + $0x94] sm:$0xff]
    %v4621 = vld [vmem:[#allocation6 + $0x9c] sm:$0xff]
    %v4622 = vld [vmem:[#allocation6 + $0xa4] sm:$0x7]
    %v4623 = vpack.c.bf16 %v4606, %v4605
    %v4624 = vpack.c.bf16 %v4608, %v4607
    %v4625 = vpack.c.bf16 %v4610, %v4609
    %v4626 = vpack.c.bf16 %v4612, %v4611
    %v4627 = vpack.c.bf16 %v4614, %v4613
    %v4628 = vpack.c.bf16 %v4616, %v4615
    %v4629 = vpack.c.bf16 %v4618, %v4617
    %v4630 = vpack.c.bf16 %v4620, %v4619
    %v4631 = vpack.c.bf16 %v4622, %v4621
    %4632 = vst [vmem:[#allocation8 + $0x68] sm:$0xff] %v4623
    %4633 = vst [vmem:[#allocation8 + $0xe8] sm:$0xff] %v4624
    %4634 = vst [vmem:[#allocation8 + $0x168] sm:$0xff] %v4625
    %4635 = vst [vmem:[#allocation8 + $0x1e8] sm:$0xff] %v4626
    %4636 = vst [vmem:[#allocation8 + $0x268] sm:$0xff] %v4627
    %4637 = vst [vmem:[#allocation8 + $0x2e8] sm:$0xff] %v4628
    %4638 = vst [vmem:[#allocation8 + $0x368] sm:$0xff] %v4629
    %4639 = vst [vmem:[#allocation8 + $0x3e8] sm:$0xff] %v4630
    %v4640 = vld [vmem:[#allocation8 + $0x468] sm:$0x3f]
    %v4641 = vsel %vm4145, %v4631, %v4640
    %4642 = vst [vmem:[#allocation8 + $0x468] sm:$0x3f] %v4641
    %v4643 = vld [vmem:[#allocation6 + $0x1d] sm:$0xff]
    %v4644 = vld [vmem:[#allocation6 + $0x25] sm:$0xff]
    %v4645 = vld [vmem:[#allocation6 + $0x2d] sm:$0xff]
    %v4646 = vld [vmem:[#allocation6 + $0x35] sm:$0xff]
    %v4647 = vld [vmem:[#allocation6 + $0x3d] sm:$0xff]
    %v4648 = vld [vmem:[#allocation6 + $0x45] sm:$0xff]
    %v4649 = vld [vmem:[#allocation6 + $0x4d] sm:$0xff]
    %v4650 = vld [vmem:[#allocation6 + $0x55] sm:$0xff]
    %v4651 = vld [vmem:[#allocation6 + $0x5d] sm:$0xff]
    %v4652 = vld [vmem:[#allocation6 + $0x65] sm:$0xff]
    %v4653 = vld [vmem:[#allocation6 + $0x6d] sm:$0xff]
    %v4654 = vld [vmem:[#allocation6 + $0x75] sm:$0xff]
    %v4655 = vld [vmem:[#allocation6 + $0x7d] sm:$0xff]
    %v4656 = vld [vmem:[#allocation6 + $0x85] sm:$0xff]
    %v4657 = vld [vmem:[#allocation6 + $0x8d] sm:$0xff]
    %v4658 = vld [vmem:[#allocation6 + $0x95] sm:$0xff]
    %v4659 = vld [vmem:[#allocation6 + $0x9d] sm:$0xff]
    %v4660 = vld [vmem:[#allocation6 + $0xa5] sm:$0x7]
    %v4661 = vpack.c.bf16 %v4644, %v4643
    %v4662 = vpack.c.bf16 %v4646, %v4645
    %v4663 = vpack.c.bf16 %v4648, %v4647
    %v4664 = vpack.c.bf16 %v4650, %v4649
    %v4665 = vpack.c.bf16 %v4652, %v4651
    %v4666 = vpack.c.bf16 %v4654, %v4653
    %v4667 = vpack.c.bf16 %v4656, %v4655
    %v4668 = vpack.c.bf16 %v4658, %v4657
    %v4669 = vpack.c.bf16 %v4660, %v4659
    %4670 = vst [vmem:[#allocation8 + $0x70] sm:$0xff] %v4661
    %4671 = vst [vmem:[#allocation8 + $0xf0] sm:$0xff] %v4662
    %4672 = vst [vmem:[#allocation8 + $0x170] sm:$0xff] %v4663
    %4673 = vst [vmem:[#allocation8 + $0x1f0] sm:$0xff] %v4664
    %4674 = vst [vmem:[#allocation8 + $0x270] sm:$0xff] %v4665
    %4675 = vst [vmem:[#allocation8 + $0x2f0] sm:$0xff] %v4666
    %4676 = vst [vmem:[#allocation8 + $0x370] sm:$0xff] %v4667
    %4677 = vst [vmem:[#allocation8 + $0x3f0] sm:$0xff] %v4668
    %v4678 = vld [vmem:[#allocation8 + $0x470] sm:$0x3f]
    %v4679 = vsel %vm4145, %v4669, %v4678
    %4680 = vst [vmem:[#allocation8 + $0x470] sm:$0x3f] %v4679
    %v4681 = vld [vmem:[#allocation6 + $0x1e] sm:$0xff]
    %v4682 = vld [vmem:[#allocation6 + $0x26] sm:$0xff]
    %v4683 = vld [vmem:[#allocation6 + $0x2e] sm:$0xff]
    %v4684 = vld [vmem:[#allocation6 + $0x36] sm:$0xff]
    %v4685 = vld [vmem:[#allocation6 + $0x3e] sm:$0xff]
    %v4686 = vld [vmem:[#allocation6 + $0x46] sm:$0xff]
    %v4687 = vld [vmem:[#allocation6 + $0x4e] sm:$0xff]
    %v4688 = vld [vmem:[#allocation6 + $0x56] sm:$0xff]
    %v4689 = vld [vmem:[#allocation6 + $0x5e] sm:$0xff]
    %v4690 = vld [vmem:[#allocation6 + $0x66] sm:$0xff]
    %v4691 = vld [vmem:[#allocation6 + $0x6e] sm:$0xff]
    %v4692 = vld [vmem:[#allocation6 + $0x76] sm:$0xff]
    %v4693 = vld [vmem:[#allocation6 + $0x7e] sm:$0xff]
    %v4694 = vld [vmem:[#allocation6 + $0x86] sm:$0xff]
    %v4695 = vld [vmem:[#allocation6 + $0x8e] sm:$0xff]
    %v4696 = vld [vmem:[#allocation6 + $0x96] sm:$0xff]
    %v4697 = vld [vmem:[#allocation6 + $0x9e] sm:$0xff]
    %v4698 = vld [vmem:[#allocation6 + $0xa6] sm:$0x7]
    %v4699 = vpack.c.bf16 %v4682, %v4681
    %v4700 = vpack.c.bf16 %v4684, %v4683
    %v4701 = vpack.c.bf16 %v4686, %v4685
    %v4702 = vpack.c.bf16 %v4688, %v4687
    %v4703 = vpack.c.bf16 %v4690, %v4689
    %v4704 = vpack.c.bf16 %v4692, %v4691
    %v4705 = vpack.c.bf16 %v4694, %v4693
    %v4706 = vpack.c.bf16 %v4696, %v4695
    %v4707 = vpack.c.bf16 %v4698, %v4697
    %4708 = vst [vmem:[#allocation8 + $0x78] sm:$0xff] %v4699
    %4709 = vst [vmem:[#allocation8 + $0xf8] sm:$0xff] %v4700
    %4710 = vst [vmem:[#allocation8 + $0x178] sm:$0xff] %v4701
    %4711 = vst [vmem:[#allocation8 + $0x1f8] sm:$0xff] %v4702
    %4712 = vst [vmem:[#allocation8 + $0x278] sm:$0xff] %v4703
    %4713 = vst [vmem:[#allocation8 + $0x2f8] sm:$0xff] %v4704
    %4714 = vst [vmem:[#allocation8 + $0x378] sm:$0xff] %v4705
    %4715 = vst [vmem:[#allocation8 + $0x3f8] sm:$0xff] %v4706
    %v4716 = vld [vmem:[#allocation8 + $0x478] sm:$0x3f]
    %v4717 = vsel %vm4145, %v4707, %v4716
    %4718 = vst [vmem:[#allocation8 + $0x478] sm:$0x3f] %v4717
    %v4719 = vld [vmem:[#allocation8] sm:$0xff]
    %v4720 = vld [vmem:[#allocation8 + $0x8] sm:$0xff]
    %v4721 = vld [vmem:[#allocation8 + $0x10] sm:$0xff]
    %v4722 = vld [vmem:[#allocation8 + $0x18] sm:$0xff]
    %v4723 = vld [vmem:[#allocation8 + $0x20] sm:$0xff]
    %v4724 = vld [vmem:[#allocation8 + $0x28] sm:$0xff]
    %v4725 = vld [vmem:[#allocation8 + $0x30] sm:$0xff]
    %v4726 = vld [vmem:[#allocation8 + $0x38] sm:$0xff]
    %v4727 = vld [vmem:[#allocation8 + $0x40] sm:$0xff]
    %v4728 = vld [vmem:[#allocation8 + $0x48] sm:$0xff]
    %v4729 = vld [vmem:[#allocation8 + $0x50] sm:$0xff]
    %v4730 = vld [vmem:[#allocation8 + $0x58] sm:$0xff]
    %v4731 = vld [vmem:[#allocation8 + $0x60] sm:$0xff]
    %v4732 = vld [vmem:[#allocation8 + $0x68] sm:$0xff]
    %v4733 = vld [vmem:[#allocation8 + $0x70] sm:$0xff]
    %v4734 = vld [vmem:[#allocation8 + $0x78] sm:$0xff]
    %v4735 = vld [vmem:[#allocation8 + $0x80] sm:$0xff]
    %v4736 = vld [vmem:[#allocation8 + $0x88] sm:$0xff]
    %v4737 = vld [vmem:[#allocation8 + $0x90] sm:$0xff]
    %v4738 = vld [vmem:[#allocation8 + $0x98] sm:$0xff]
    %v4739 = vld [vmem:[#allocation8 + $0xa0] sm:$0xff]
    %v4740 = vld [vmem:[#allocation8 + $0xa8] sm:$0xff]
    %v4741 = vld [vmem:[#allocation8 + $0xb0] sm:$0xff]
    %v4742 = vld [vmem:[#allocation8 + $0xb8] sm:$0xff]
    %v4743 = vld [vmem:[#allocation8 + $0xc0] sm:$0xff]
    %v4744 = vld [vmem:[#allocation8 + $0xc8] sm:$0xff]
    %v4745 = vld [vmem:[#allocation8 + $0xd0] sm:$0xff]
    %v4746 = vld [vmem:[#allocation8 + $0xd8] sm:$0xff]
    %v4747 = vld [vmem:[#allocation8 + $0xe0] sm:$0xff]
    %v4748 = vld [vmem:[#allocation8 + $0xe8] sm:$0xff]
    %v4749 = vld [vmem:[#allocation8 + $0xf0] sm:$0xff]
    %v4750 = vld [vmem:[#allocation8 + $0xf8] sm:$0xff]
    %v4751 = vld [vmem:[#allocation8 + $0x100] sm:$0xff]
    %v4752 = vld [vmem:[#allocation8 + $0x108] sm:$0xff]
    %v4753 = vld [vmem:[#allocation8 + $0x110] sm:$0xff]
    %v4754 = vld [vmem:[#allocation8 + $0x118] sm:$0xff]
    %v4755 = vld [vmem:[#allocation8 + $0x120] sm:$0xff]
    %v4756 = vld [vmem:[#allocation8 + $0x128] sm:$0xff]
    %v4757 = vld [vmem:[#allocation8 + $0x130] sm:$0xff]
    %v4758 = vld [vmem:[#allocation8 + $0x138] sm:$0xff]
    %v4759 = vld [vmem:[#allocation8 + $0x140] sm:$0xff]
    %v4760 = vld [vmem:[#allocation8 + $0x148] sm:$0xff]
    %v4761 = vld [vmem:[#allocation8 + $0x150] sm:$0xff]
    %v4762 = vld [vmem:[#allocation8 + $0x158] sm:$0xff]
    %v4763 = vld [vmem:[#allocation8 + $0x160] sm:$0xff]
    %v4764 = vld [vmem:[#allocation8 + $0x168] sm:$0xff]
    %v4765 = vld [vmem:[#allocation8 + $0x170] sm:$0xff]
    %v4766 = vld [vmem:[#allocation8 + $0x178] sm:$0xff]
    %v4767 = vld [vmem:[#allocation8 + $0x180] sm:$0xff]
    %v4768 = vld [vmem:[#allocation8 + $0x188] sm:$0xff]
    %v4769 = vld [vmem:[#allocation8 + $0x190] sm:$0xff]
    %v4770 = vld [vmem:[#allocation8 + $0x198] sm:$0xff]
    %v4771 = vld [vmem:[#allocation8 + $0x1a0] sm:$0xff]
    %v4772 = vld [vmem:[#allocation8 + $0x1a8] sm:$0xff]
    %v4773 = vld [vmem:[#allocation8 + $0x1b0] sm:$0xff]
    %v4774 = vld [vmem:[#allocation8 + $0x1b8] sm:$0xff]
    %v4775 = vld [vmem:[#allocation8 + $0x1c0] sm:$0xff]
    %v4776 = vld [vmem:[#allocation8 + $0x1c8] sm:$0xff]
    %v4777 = vld [vmem:[#allocation8 + $0x1d0] sm:$0xff]
    %v4778 = vld [vmem:[#allocation8 + $0x1d8] sm:$0xff]
    %v4779 = vld [vmem:[#allocation8 + $0x1e0] sm:$0xff]
    %v4780 = vld [vmem:[#allocation8 + $0x1e8] sm:$0xff]
    %v4781 = vld [vmem:[#allocation8 + $0x1f0] sm:$0xff]
    %v4782 = vld [vmem:[#allocation8 + $0x1f8] sm:$0xff]
    %v4783 = vld [vmem:[#allocation8 + $0x200] sm:$0xff]
    %v4784 = vld [vmem:[#allocation8 + $0x208] sm:$0xff]
    %v4785 = vld [vmem:[#allocation8 + $0x210] sm:$0xff]
    %v4786 = vld [vmem:[#allocation8 + $0x218] sm:$0xff]
    %v4787 = vld [vmem:[#allocation8 + $0x220] sm:$0xff]
    %v4788 = vld [vmem:[#allocation8 + $0x228] sm:$0xff]
    %v4789 = vld [vmem:[#allocation8 + $0x230] sm:$0xff]
    %v4790 = vld [vmem:[#allocation8 + $0x238] sm:$0xff]
    %v4791 = vld [vmem:[#allocation8 + $0x240] sm:$0xff]
    %v4792 = vld [vmem:[#allocation8 + $0x248] sm:$0xff]
    %v4793 = vld [vmem:[#allocation8 + $0x250] sm:$0xff]
    %v4794 = vld [vmem:[#allocation8 + $0x258] sm:$0xff]
    %v4795 = vld [vmem:[#allocation8 + $0x260] sm:$0xff]
    %v4796 = vld [vmem:[#allocation8 + $0x268] sm:$0xff]
    %v4797 = vld [vmem:[#allocation8 + $0x270] sm:$0xff]
    %v4798 = vld [vmem:[#allocation8 + $0x278] sm:$0xff]
    %v4799 = vld [vmem:[#allocation8 + $0x280] sm:$0xff]
    %v4800 = vld [vmem:[#allocation8 + $0x288] sm:$0xff]
    %v4801 = vld [vmem:[#allocation8 + $0x290] sm:$0xff]
    %v4802 = vld [vmem:[#allocation8 + $0x298] sm:$0xff]
    %v4803 = vld [vmem:[#allocation8 + $0x2a0] sm:$0xff]
    %v4804 = vld [vmem:[#allocation8 + $0x2a8] sm:$0xff]
    %v4805 = vld [vmem:[#allocation8 + $0x2b0] sm:$0xff]
    %v4806 = vld [vmem:[#allocation8 + $0x2b8] sm:$0xff]
    %v4807 = vld [vmem:[#allocation8 + $0x2c0] sm:$0xff]
    %v4808 = vld [vmem:[#allocation8 + $0x2c8] sm:$0xff]
    %v4809 = vld [vmem:[#allocation8 + $0x2d0] sm:$0xff]
    %v4810 = vld [vmem:[#allocation8 + $0x2d8] sm:$0xff]
    %v4811 = vld [vmem:[#allocation8 + $0x2e0] sm:$0xff]
    %v4812 = vld [vmem:[#allocation8 + $0x2e8] sm:$0xff]
    %v4813 = vld [vmem:[#allocation8 + $0x2f0] sm:$0xff]
    %v4814 = vld [vmem:[#allocation8 + $0x2f8] sm:$0xff]
    %v4815 = vld [vmem:[#allocation8 + $0x300] sm:$0xff]
    %v4816 = vld [vmem:[#allocation8 + $0x308] sm:$0xff]
    %v4817 = vld [vmem:[#allocation8 + $0x310] sm:$0xff]
    %v4818 = vld [vmem:[#allocation8 + $0x318] sm:$0xff]
    %v4819 = vld [vmem:[#allocation8 + $0x320] sm:$0xff]
    %v4820 = vld [vmem:[#allocation8 + $0x328] sm:$0xff]
    %v4821 = vld [vmem:[#allocation8 + $0x330] sm:$0xff]
    %v4822 = vld [vmem:[#allocation8 + $0x338] sm:$0xff]
    %v4823 = vld [vmem:[#allocation8 + $0x340] sm:$0xff]
    %v4824 = vld [vmem:[#allocation8 + $0x348] sm:$0xff]
    %v4825 = vld [vmem:[#allocation8 + $0x350] sm:$0xff]
    %v4826 = vld [vmem:[#allocation8 + $0x358] sm:$0xff]
    %v4827 = vld [vmem:[#allocation8 + $0x360] sm:$0xff]
    %v4828 = vld [vmem:[#allocation8 + $0x368] sm:$0xff]
    %v4829 = vld [vmem:[#allocation8 + $0x370] sm:$0xff]
    %v4830 = vld [vmem:[#allocation8 + $0x378] sm:$0xff]
    %v4831 = vld [vmem:[#allocation8 + $0x380] sm:$0xff]
    %v4832 = vld [vmem:[#allocation8 + $0x388] sm:$0xff]
    %v4833 = vld [vmem:[#allocation8 + $0x390] sm:$0xff]
    %v4834 = vld [vmem:[#allocation8 + $0x398] sm:$0xff]
    %v4835 = vld [vmem:[#allocation8 + $0x3a0] sm:$0xff]
    %v4836 = vld [vmem:[#allocation8 + $0x3a8] sm:$0xff]
    %v4837 = vld [vmem:[#allocation8 + $0x3b0] sm:$0xff]
    %v4838 = vld [vmem:[#allocation8 + $0x3b8] sm:$0xff]
    %v4839 = vld [vmem:[#allocation8 + $0x3c0] sm:$0xff]
    %v4840 = vld [vmem:[#allocation8 + $0x3c8] sm:$0xff]
    %v4841 = vld [vmem:[#allocation8 + $0x3d0] sm:$0xff]
    %v4842 = vld [vmem:[#allocation8 + $0x3d8] sm:$0xff]
    %v4843 = vld [vmem:[#allocation8 + $0x3e0] sm:$0xff]
    %v4844 = vld [vmem:[#allocation8 + $0x3e8] sm:$0xff]
    %v4845 = vld [vmem:[#allocation8 + $0x3f0] sm:$0xff]
    %v4846 = vld [vmem:[#allocation8 + $0x3f8] sm:$0xff]
    %v4847 = vld [vmem:[#allocation8 + $0x400] sm:$0x3f]
    %v4848 = vld [vmem:[#allocation8 + $0x408] sm:$0x3f]
    %v4849 = vld [vmem:[#allocation8 + $0x410] sm:$0x3f]
    %v4850 = vld [vmem:[#allocation8 + $0x418] sm:$0x3f]
    %v4851 = vld [vmem:[#allocation8 + $0x420] sm:$0x3f]
    %v4852 = vld [vmem:[#allocation8 + $0x428] sm:$0x3f]
    %v4853 = vld [vmem:[#allocation8 + $0x430] sm:$0x3f]
    %v4854 = vld [vmem:[#allocation8 + $0x438] sm:$0x3f]
    %v4855 = vld [vmem:[#allocation8 + $0x440] sm:$0x3f]
    %v4856 = vld [vmem:[#allocation8 + $0x448] sm:$0x3f]
    %v4857 = vld [vmem:[#allocation8 + $0x450] sm:$0x3f]
    %v4858 = vld [vmem:[#allocation8 + $0x458] sm:$0x3f]
    %v4859 = vld [vmem:[#allocation8 + $0x460] sm:$0x3f]
    %v4860 = vld [vmem:[#allocation8 + $0x468] sm:$0x3f]
    %v4861 = vld [vmem:[#allocation8 + $0x470] sm:$0x3f]
    %v4862 = vld [vmem:[#allocation8 + $0x478] sm:$0x3f]
    %v4863 = vld [vmem:[%s5] sm:$0xf]
    %v4864 = vld [vmem:[%s5 + $0x4] sm:$0xf]
    %v4865 = vld [vmem:[%s5 + $0x8] sm:$0xf]
    %v4866 = vld [vmem:[%s5 + $0xc] sm:$0xf]
    %v4867 = vld [vmem:[%s5 + $0x10] sm:$0xf]
    %v4868 = vld [vmem:[%s5 + $0x14] sm:$0xf]
    %v4869 = vld [vmem:[%s5 + $0x18] sm:$0xf]
    %v4870 = vld [vmem:[%s5 + $0x1c] sm:$0xf]
    %v4871 = vld [vmem:[%s5 + $0x20] sm:$0xf]
    %v4872 = vld [vmem:[%s5 + $0x24] sm:$0xf]
    %v4873 = vld [vmem:[%s5 + $0x28] sm:$0xf]
    %v4874 = vld [vmem:[%s5 + $0x2c] sm:$0xf]
    %v4875 = vld [vmem:[%s5 + $0x30] sm:$0xf]
    %v4876 = vld [vmem:[%s5 + $0x34] sm:$0xf]
    %v4877 = vld [vmem:[%s5 + $0x38] sm:$0xf]
    %v4878 = vld [vmem:[%s5 + $0x3c] sm:$0xf]
    %v4879 = vld [vmem:[%s5 + $0x40] sm:$0xf]
    %v4880 = vld [vmem:[%s5 + $0x44] sm:$0xf]
    %v4881 = vld [vmem:[%s5 + $0x48] sm:$0xf]
    %v4882 = vld [vmem:[%s5 + $0x4c] sm:$0xf]
    %v4883 = vld [vmem:[%s5 + $0x50] sm:$0xf]
    %v4884 = vld [vmem:[%s5 + $0x54] sm:$0xf]
    %v4885 = vld [vmem:[%s5 + $0x58] sm:$0xf]
    %v4886 = vld [vmem:[%s5 + $0x5c] sm:$0xf]
    %v4887 = vld [vmem:[%s5 + $0x60] sm:$0xf]
    %v4888 = vld [vmem:[%s5 + $0x64] sm:$0xf]
    %v4889 = vld [vmem:[%s5 + $0x68] sm:$0xf]
    %v4890 = vld [vmem:[%s5 + $0x6c] sm:$0xf]
    %v4891 = vld [vmem:[%s5 + $0x70] sm:$0xf]
    %v4892 = vld [vmem:[%s5 + $0x74] sm:$0xf]
    %v4893 = vld [vmem:[%s5 + $0x78] sm:$0xf]
    %v4894 = vld [vmem:[%s5 + $0x7c] sm:$0xf]
    %v4895 = vld [vmem:[%s5 + $0x80] sm:$0xf]
    %v4896 = vld [vmem:[%s5 + $0x84] sm:$0xf]
    %v4897 = vld [vmem:[%s5 + $0x88] sm:$0xf]
    %v4898 = vld [vmem:[%s5 + $0x8c] sm:$0xf]
    %v4899 = vld [vmem:[%s5 + $0x90] sm:$0xf]
    %v4900 = vld [vmem:[%s5 + $0x94] sm:$0xf]
    %v4901 = vld [vmem:[%s5 + $0x98] sm:$0xf]
    %v4902 = vld [vmem:[%s5 + $0x9c] sm:$0xf]
    %v4903 = vld [vmem:[%s5 + $0xa0] sm:$0xf]
    %v4904 = vld [vmem:[%s5 + $0xa4] sm:$0xf]
    %v4905 = vld [vmem:[%s5 + $0xa8] sm:$0xf]
    %v4906 = vld [vmem:[%s5 + $0xac] sm:$0xf]
    %v4907 = vld [vmem:[%s5 + $0xb0] sm:$0xf]
    %v4908 = vld [vmem:[%s5 + $0xb4] sm:$0xf]
    %v4909 = vld [vmem:[%s5 + $0xb8] sm:$0xf]
    %v4910 = vld [vmem:[%s5 + $0xbc] sm:$0xf]
    %v4911 = vld [vmem:[%s5 + $0xc0] sm:$0xf]
    %v4912 = vld [vmem:[%s5 + $0xc4] sm:$0xf]
    %v4913 = vld [vmem:[%s5 + $0xc8] sm:$0xf]
    %v4914 = vld [vmem:[%s5 + $0xcc] sm:$0xf]
    %v4915 = vld [vmem:[%s5 + $0xd0] sm:$0xf]
    %v4916 = vld [vmem:[%s5 + $0xd4] sm:$0xf]
    %v4917 = vld [vmem:[%s5 + $0xd8] sm:$0xf]
    %v4918 = vld [vmem:[%s5 + $0xdc] sm:$0xf]
    %v4919 = vld [vmem:[%s5 + $0xe0] sm:$0xf]
    %v4920 = vld [vmem:[%s5 + $0xe4] sm:$0xf]
    %v4921 = vld [vmem:[%s5 + $0xe8] sm:$0xf]
    %v4922 = vld [vmem:[%s5 + $0xec] sm:$0xf]
    %v4923 = vld [vmem:[%s5 + $0xf0] sm:$0xf]
    %v4924 = vld [vmem:[%s5 + $0xf4] sm:$0xf]
    %v4925 = vld [vmem:[%s5 + $0xf8] sm:$0xf]
    %v4926 = vld [vmem:[%s5 + $0xfc] sm:$0xf]
    %v4927 = vld [vmem:[%s5 + $0x100] sm:$0xf]
    %v4928 = vld [vmem:[%s5 + $0x104] sm:$0xf]
    %v4929 = vld [vmem:[%s5 + $0x108] sm:$0xf]
    %v4930 = vld [vmem:[%s5 + $0x10c] sm:$0xf]
    %v4931 = vld [vmem:[%s5 + $0x110] sm:$0xf]
    %v4932 = vld [vmem:[%s5 + $0x114] sm:$0xf]
    %v4933 = vld [vmem:[%s5 + $0x118] sm:$0xf]
    %v4934 = vld [vmem:[%s5 + $0x11c] sm:$0xf]
    %v4935 = vld [vmem:[%s5 + $0x120] sm:$0xf]
    %v4936 = vld [vmem:[%s5 + $0x124] sm:$0xf]
    %v4937 = vld [vmem:[%s5 + $0x128] sm:$0xf]
    %v4938 = vld [vmem:[%s5 + $0x12c] sm:$0xf]
    %v4939 = vld [vmem:[%s5 + $0x130] sm:$0xf]
    %v4940 = vld [vmem:[%s5 + $0x134] sm:$0xf]
    %v4941 = vld [vmem:[%s5 + $0x138] sm:$0xf]
    %v4942 = vld [vmem:[%s5 + $0x13c] sm:$0xf]
    %v4943 = vld [vmem:[%s5 + $0x140] sm:$0xf]
    %v4944 = vld [vmem:[%s5 + $0x144] sm:$0xf]
    %v4945 = vld [vmem:[%s5 + $0x148] sm:$0xf]
    %v4946 = vld [vmem:[%s5 + $0x14c] sm:$0xf]
    %v4947 = vld [vmem:[%s5 + $0x150] sm:$0xf]
    %v4948 = vld [vmem:[%s5 + $0x154] sm:$0xf]
    %v4949 = vld [vmem:[%s5 + $0x158] sm:$0xf]
    %v4950 = vld [vmem:[%s5 + $0x15c] sm:$0xf]
    %v4951 = vld [vmem:[%s5 + $0x160] sm:$0xf]
    %v4952 = vld [vmem:[%s5 + $0x164] sm:$0xf]
    %v4953 = vld [vmem:[%s5 + $0x168] sm:$0xf]
    %v4954 = vld [vmem:[%s5 + $0x16c] sm:$0xf]
    %v4955 = vld [vmem:[%s5 + $0x170] sm:$0xf]
    %v4956 = vld [vmem:[%s5 + $0x174] sm:$0xf]
    %v4957 = vld [vmem:[%s5 + $0x178] sm:$0xf]
    %v4958 = vld [vmem:[%s5 + $0x17c] sm:$0xf]
    %v4959 = vld [vmem:[%s5 + $0x180] sm:$0xf]
    %v4960 = vld [vmem:[%s5 + $0x184] sm:$0xf]
    %v4961 = vld [vmem:[%s5 + $0x188] sm:$0xf]
    %v4962 = vld [vmem:[%s5 + $0x18c] sm:$0xf]
    %v4963 = vld [vmem:[%s5 + $0x190] sm:$0xf]
    %v4964 = vld [vmem:[%s5 + $0x194] sm:$0xf]
    %v4965 = vld [vmem:[%s5 + $0x198] sm:$0xf]
    %v4966 = vld [vmem:[%s5 + $0x19c] sm:$0xf]
    %v4967 = vld [vmem:[%s5 + $0x1a0] sm:$0xf]
    %v4968 = vld [vmem:[%s5 + $0x1a4] sm:$0xf]
    %v4969 = vld [vmem:[%s5 + $0x1a8] sm:$0xf]
    %v4970 = vld [vmem:[%s5 + $0x1ac] sm:$0xf]
    %v4971 = vld [vmem:[%s5 + $0x1b0] sm:$0xf]
    %v4972 = vld [vmem:[%s5 + $0x1b4] sm:$0xf]
    %v4973 = vld [vmem:[%s5 + $0x1b8] sm:$0xf]
    %v4974 = vld [vmem:[%s5 + $0x1bc] sm:$0xf]
    %v4975 = vld [vmem:[%s5 + $0x1c0] sm:$0xf]
    %v4976 = vld [vmem:[%s5 + $0x1c4] sm:$0xf]
    %v4977 = vld [vmem:[%s5 + $0x1c8] sm:$0xf]
    %v4978 = vld [vmem:[%s5 + $0x1cc] sm:$0xf]
    %v4979 = vld [vmem:[%s5 + $0x1d0] sm:$0xf]
    %v4980 = vld [vmem:[%s5 + $0x1d4] sm:$0xf]
    %v4981 = vld [vmem:[%s5 + $0x1d8] sm:$0xf]
    %v4982 = vld [vmem:[%s5 + $0x1dc] sm:$0xf]
    %v4983 = vld [vmem:[%s5 + $0x1e0] sm:$0xf]
    %v4984 = vld [vmem:[%s5 + $0x1e4] sm:$0xf]
    %v4985 = vld [vmem:[%s5 + $0x1e8] sm:$0xf]
    %v4986 = vld [vmem:[%s5 + $0x1ec] sm:$0xf]
    %v4987 = vld [vmem:[%s5 + $0x1f0] sm:$0xf]
    %v4988 = vld [vmem:[%s5 + $0x1f4] sm:$0xf]
    %v4989 = vld [vmem:[%s5 + $0x1f8] sm:$0xf]
    %v4990 = vld [vmem:[%s5 + $0x1fc] sm:$0xf]
    %v4991 = vld [vmem:[%s5 + $0x200] sm:$0xf]
    %v4992 = vld [vmem:[%s5 + $0x204] sm:$0xf]
    %v4993 = vld [vmem:[%s5 + $0x208] sm:$0xf]
    %v4994 = vld [vmem:[%s5 + $0x20c] sm:$0xf]
    %v4995 = vld [vmem:[%s5 + $0x210] sm:$0xf]
    %v4996 = vld [vmem:[%s5 + $0x214] sm:$0xf]
    %v4997 = vld [vmem:[%s5 + $0x218] sm:$0xf]
    %v4998 = vld [vmem:[%s5 + $0x21c] sm:$0xf]
    %v4999 = vld [vmem:[%s5 + $0x220] sm:$0xf]
    %v5000 = vld [vmem:[%s5 + $0x224] sm:$0xf]
    %v5001 = vld [vmem:[%s5 + $0x228] sm:$0xf]
    %v5002 = vld [vmem:[%s5 + $0x22c] sm:$0xf]
    %v5003 = vld [vmem:[%s5 + $0x230] sm:$0xf]
    %v5004 = vld [vmem:[%s5 + $0x234] sm:$0xf]
    %v5005 = vld [vmem:[%s5 + $0x238] sm:$0xf]
    %v5006 = vld [vmem:[%s5 + $0x23c] sm:$0xf]
    %v5007 = vld [vmem:[%s5 + $0x240] sm:$0xf]
    %v5008 = vld [vmem:[%s5 + $0x244] sm:$0xf]
    %v5009 = vld [vmem:[%s5 + $0x248] sm:$0xf]
    %v5010 = vld [vmem:[%s5 + $0x24c] sm:$0xf]
    %v5011 = vld [vmem:[%s5 + $0x250] sm:$0xf]
    %v5012 = vld [vmem:[%s5 + $0x254] sm:$0xf]
    %v5013 = vld [vmem:[%s5 + $0x258] sm:$0xf]
    %v5014 = vld [vmem:[%s5 + $0x25c] sm:$0xf]
    %v5015 = vld [vmem:[%s5 + $0x260] sm:$0xf]
    %v5016 = vld [vmem:[%s5 + $0x264] sm:$0xf]
    %v5017 = vld [vmem:[%s5 + $0x268] sm:$0xf]
    %v5018 = vld [vmem:[%s5 + $0x26c] sm:$0xf]
    %v5019 = vld [vmem:[%s5 + $0x270] sm:$0xf]
    %v5020 = vld [vmem:[%s5 + $0x274] sm:$0xf]
    %v5021 = vld [vmem:[%s5 + $0x278] sm:$0xf]
    %v5022 = vld [vmem:[%s5 + $0x27c] sm:$0xf]
    %v5023 = vld [vmem:[%s5 + $0x280] sm:$0xf]
    %v5024 = vld [vmem:[%s5 + $0x284] sm:$0xf]
    %v5025 = vld [vmem:[%s5 + $0x288] sm:$0xf]
    %v5026 = vld [vmem:[%s5 + $0x28c] sm:$0xf]
    %v5027 = vld [vmem:[%s5 + $0x290] sm:$0xf]
    %v5028 = vld [vmem:[%s5 + $0x294] sm:$0xf]
    %v5029 = vld [vmem:[%s5 + $0x298] sm:$0xf]
    %v5030 = vld [vmem:[%s5 + $0x29c] sm:$0xf]
    %v5031 = vld [vmem:[%s5 + $0x2a0] sm:$0xf]
    %v5032 = vld [vmem:[%s5 + $0x2a4] sm:$0xf]
    %v5033 = vld [vmem:[%s5 + $0x2a8] sm:$0xf]
    %v5034 = vld [vmem:[%s5 + $0x2ac] sm:$0xf]
    %v5035 = vld [vmem:[%s5 + $0x2b0] sm:$0xf]
    %v5036 = vld [vmem:[%s5 + $0x2b4] sm:$0xf]
    %v5037 = vld [vmem:[%s5 + $0x2b8] sm:$0xf]
    %v5038 = vld [vmem:[%s5 + $0x2bc] sm:$0xf]
    %v5039 = vld [vmem:[%s5 + $0x2c0] sm:$0xf]
    %v5040 = vld [vmem:[%s5 + $0x2c4] sm:$0xf]
    %v5041 = vld [vmem:[%s5 + $0x2c8] sm:$0xf]
    %v5042 = vld [vmem:[%s5 + $0x2cc] sm:$0xf]
    %v5043 = vld [vmem:[%s5 + $0x2d0] sm:$0xf]
    %v5044 = vld [vmem:[%s5 + $0x2d4] sm:$0xf]
    %v5045 = vld [vmem:[%s5 + $0x2d8] sm:$0xf]
    %v5046 = vld [vmem:[%s5 + $0x2dc] sm:$0xf]
    %v5047 = vld [vmem:[%s5 + $0x2e0] sm:$0xf]
    %v5048 = vld [vmem:[%s5 + $0x2e4] sm:$0xf]
    %v5049 = vld [vmem:[%s5 + $0x2e8] sm:$0xf]
    %v5050 = vld [vmem:[%s5 + $0x2ec] sm:$0xf]
    %v5051 = vld [vmem:[%s5 + $0x2f0] sm:$0xf]
    %v5052 = vld [vmem:[%s5 + $0x2f4] sm:$0xf]
    %v5053 = vld [vmem:[%s5 + $0x2f8] sm:$0xf]
    %v5054 = vld [vmem:[%s5 + $0x2fc] sm:$0xf]
    %v5055 = vld [vmem:[%s5 + $0x300] sm:$0xf]
    %v5056 = vld [vmem:[%s5 + $0x304] sm:$0xf]
    %v5057 = vld [vmem:[%s5 + $0x308] sm:$0xf]
    %v5058 = vld [vmem:[%s5 + $0x30c] sm:$0xf]
    %v5059 = vld [vmem:[%s5 + $0x310] sm:$0xf]
    %v5060 = vld [vmem:[%s5 + $0x314] sm:$0xf]
    %v5061 = vld [vmem:[%s5 + $0x318] sm:$0xf]
    %v5062 = vld [vmem:[%s5 + $0x31c] sm:$0xf]
    %v5063 = vld [vmem:[%s5 + $0x320] sm:$0xf]
    %v5064 = vld [vmem:[%s5 + $0x324] sm:$0xf]
    %v5065 = vld [vmem:[%s5 + $0x328] sm:$0xf]
    %v5066 = vld [vmem:[%s5 + $0x32c] sm:$0xf]
    %v5067 = vld [vmem:[%s5 + $0x330] sm:$0xf]
    %v5068 = vld [vmem:[%s5 + $0x334] sm:$0xf]
    %v5069 = vld [vmem:[%s5 + $0x338] sm:$0xf]
    %v5070 = vld [vmem:[%s5 + $0x33c] sm:$0xf]
    %v5071 = vld [vmem:[%s5 + $0x340] sm:$0xf]
    %v5072 = vld [vmem:[%s5 + $0x344] sm:$0xf]
    %v5073 = vld [vmem:[%s5 + $0x348] sm:$0xf]
    %v5074 = vld [vmem:[%s5 + $0x34c] sm:$0xf]
    %v5075 = vld [vmem:[%s5 + $0x350] sm:$0xf]
    %v5076 = vld [vmem:[%s5 + $0x354] sm:$0xf]
    %v5077 = vld [vmem:[%s5 + $0x358] sm:$0xf]
    %v5078 = vld [vmem:[%s5 + $0x35c] sm:$0xf]
    %v5079 = vld [vmem:[%s5 + $0x360] sm:$0xf]
    %v5080 = vld [vmem:[%s5 + $0x364] sm:$0xf]
    %v5081 = vld [vmem:[%s5 + $0x368] sm:$0xf]
    %v5082 = vld [vmem:[%s5 + $0x36c] sm:$0xf]
    %v5083 = vld [vmem:[%s5 + $0x370] sm:$0xf]
    %v5084 = vld [vmem:[%s5 + $0x374] sm:$0xf]
    %v5085 = vld [vmem:[%s5 + $0x378] sm:$0xf]
    %v5086 = vld [vmem:[%s5 + $0x37c] sm:$0xf]
    %v5087 = vld [vmem:[%s5 + $0x380] sm:$0xf]
    %v5088 = vld [vmem:[%s5 + $0x384] sm:$0xf]
    %v5089 = vld [vmem:[%s5 + $0x388] sm:$0xf]
    %v5090 = vld [vmem:[%s5 + $0x38c] sm:$0xf]
    %v5091 = vld [vmem:[%s5 + $0x390] sm:$0xf]
    %v5092 = vld [vmem:[%s5 + $0x394] sm:$0xf]
    %v5093 = vld [vmem:[%s5 + $0x398] sm:$0xf]
    %v5094 = vld [vmem:[%s5 + $0x39c] sm:$0xf]
    %v5095 = vld [vmem:[%s5 + $0x3a0] sm:$0xf]
    %v5096 = vld [vmem:[%s5 + $0x3a4] sm:$0xf]
    %v5097 = vld [vmem:[%s5 + $0x3a8] sm:$0xf]
    %v5098 = vld [vmem:[%s5 + $0x3ac] sm:$0xf]
    %v5099 = vld [vmem:[%s5 + $0x3b0] sm:$0xf]
    %v5100 = vld [vmem:[%s5 + $0x3b4] sm:$0xf]
    %v5101 = vld [vmem:[%s5 + $0x3b8] sm:$0xf]
    %v5102 = vld [vmem:[%s5 + $0x3bc] sm:$0xf]
    %v5103 = vld [vmem:[%s5 + $0x3c0] sm:$0xf]
    %v5104 = vld [vmem:[%s5 + $0x3c4] sm:$0xf]
    %v5105 = vld [vmem:[%s5 + $0x3c8] sm:$0xf]
    %v5106 = vld [vmem:[%s5 + $0x3cc] sm:$0xf]
    %v5107 = vld [vmem:[%s5 + $0x3d0] sm:$0xf]
    %v5108 = vld [vmem:[%s5 + $0x3d4] sm:$0xf]
    %v5109 = vld [vmem:[%s5 + $0x3d8] sm:$0xf]
    %v5110 = vld [vmem:[%s5 + $0x3dc] sm:$0xf]
    %v5111 = vld [vmem:[%s5 + $0x3e0] sm:$0xf]
    %v5112 = vld [vmem:[%s5 + $0x3e4] sm:$0xf]
    %v5113 = vld [vmem:[%s5 + $0x3e8] sm:$0xf]
    %v5114 = vld [vmem:[%s5 + $0x3ec] sm:$0xf]
    %v5115 = vld [vmem:[%s5 + $0x3f0] sm:$0xf]
    %v5116 = vld [vmem:[%s5 + $0x3f4] sm:$0xf]
    %v5117 = vld [vmem:[%s5 + $0x3f8] sm:$0xf]
    %v5118 = vld [vmem:[%s5 + $0x3fc] sm:$0xf]
    %v5375 = vunpack.c.l.b16 %v4863
    %v5376 = vunpack.c.l.b16 %v4864
    %v5377 = vunpack.c.l.b16 %v4865
    %v5378 = vunpack.c.l.b16 %v4866
    %v5379 = vunpack.c.l.b16 %v4867
    %v5380 = vunpack.c.l.b16 %v4868
    %v5381 = vunpack.c.l.b16 %v4869
    %v5382 = vunpack.c.l.b16 %v4870
    %v5383 = vunpack.c.l.b16 %v4871
    %v5384 = vunpack.c.l.b16 %v4872
    %v5385 = vunpack.c.l.b16 %v4873
    %v5386 = vunpack.c.l.b16 %v4874
    %v5387 = vunpack.c.l.b16 %v4875
    %v5388 = vunpack.c.l.b16 %v4876
    %v5389 = vunpack.c.l.b16 %v4877
    %v5390 = vunpack.c.l.b16 %v4878
    %v5391 = vunpack.c.l.b16 %v4879
    %v5392 = vunpack.c.l.b16 %v4880
    %v5393 = vunpack.c.l.b16 %v4881
    %v5394 = vunpack.c.l.b16 %v4882
    %v5395 = vunpack.c.l.b16 %v4883
    %v5396 = vunpack.c.l.b16 %v4884
    %v5397 = vunpack.c.l.b16 %v4885
    %v5398 = vunpack.c.l.b16 %v4886
    %v5399 = vunpack.c.l.b16 %v4887
    %v5400 = vunpack.c.l.b16 %v4888
    %v5401 = vunpack.c.l.b16 %v4889
    %v5402 = vunpack.c.l.b16 %v4890
    %v5403 = vunpack.c.l.b16 %v4891
    %v5404 = vunpack.c.l.b16 %v4892
    %v5405 = vunpack.c.l.b16 %v4893
    %v5406 = vunpack.c.l.b16 %v4894
    %v5407 = vunpack.c.l.b16 %v4895
    %v5408 = vunpack.c.l.b16 %v4896
    %v5409 = vunpack.c.l.b16 %v4897
    %v5410 = vunpack.c.l.b16 %v4898
    %v5411 = vunpack.c.l.b16 %v4899
    %v5412 = vunpack.c.l.b16 %v4900
    %v5413 = vunpack.c.l.b16 %v4901
    %v5414 = vunpack.c.l.b16 %v4902
    %v5415 = vunpack.c.l.b16 %v4903
    %v5416 = vunpack.c.l.b16 %v4904
    %v5417 = vunpack.c.l.b16 %v4905
    %v5418 = vunpack.c.l.b16 %v4906
    %v5419 = vunpack.c.l.b16 %v4907
    %v5420 = vunpack.c.l.b16 %v4908
    %v5421 = vunpack.c.l.b16 %v4909
    %v5422 = vunpack.c.l.b16 %v4910
    %v5423 = vunpack.c.l.b16 %v4911
    %v5424 = vunpack.c.l.b16 %v4912
    %v5425 = vunpack.c.l.b16 %v4913
    %v5426 = vunpack.c.l.b16 %v4914
    %v5427 = vunpack.c.l.b16 %v4915
    %v5428 = vunpack.c.l.b16 %v4916
    %v5429 = vunpack.c.l.b16 %v4917
    %v5430 = vunpack.c.l.b16 %v4918
    %v5431 = vunpack.c.l.b16 %v4919
    %v5432 = vunpack.c.l.b16 %v4920
    %v5433 = vunpack.c.l.b16 %v4921
    %v5434 = vunpack.c.l.b16 %v4922
    %v5435 = vunpack.c.l.b16 %v4923
    %v5436 = vunpack.c.l.b16 %v4924
    %v5437 = vunpack.c.l.b16 %v4925
    %v5438 = vunpack.c.l.b16 %v4926
    %v5439 = vunpack.c.l.b16 %v4927
    %v5440 = vunpack.c.l.b16 %v4928
    %v5441 = vunpack.c.l.b16 %v4929
    %v5442 = vunpack.c.l.b16 %v4930
    %v5443 = vunpack.c.l.b16 %v4931
    %v5444 = vunpack.c.l.b16 %v4932
    %v5445 = vunpack.c.l.b16 %v4933
    %v5446 = vunpack.c.l.b16 %v4934
    %v5447 = vunpack.c.l.b16 %v4935
    %v5448 = vunpack.c.l.b16 %v4936
    %v5449 = vunpack.c.l.b16 %v4937
    %v5450 = vunpack.c.l.b16 %v4938
    %v5451 = vunpack.c.l.b16 %v4939
    %v5452 = vunpack.c.l.b16 %v4940
    %v5453 = vunpack.c.l.b16 %v4941
    %v5454 = vunpack.c.l.b16 %v4942
    %v5455 = vunpack.c.l.b16 %v4943
    %v5456 = vunpack.c.l.b16 %v4944
    %v5457 = vunpack.c.l.b16 %v4945
    %v5458 = vunpack.c.l.b16 %v4946
    %v5459 = vunpack.c.l.b16 %v4947
    %v5460 = vunpack.c.l.b16 %v4948
    %v5461 = vunpack.c.l.b16 %v4949
    %v5462 = vunpack.c.l.b16 %v4950
    %v5463 = vunpack.c.l.b16 %v4951
    %v5464 = vunpack.c.l.b16 %v4952
    %v5465 = vunpack.c.l.b16 %v4953
    %v5466 = vunpack.c.l.b16 %v4954
    %v5467 = vunpack.c.l.b16 %v4955
    %v5468 = vunpack.c.l.b16 %v4956
    %v5469 = vunpack.c.l.b16 %v4957
    %v5470 = vunpack.c.l.b16 %v4958
    %v5471 = vunpack.c.l.b16 %v4959
    %v5472 = vunpack.c.l.b16 %v4960
    %v5473 = vunpack.c.l.b16 %v4961
    %v5474 = vunpack.c.l.b16 %v4962
    %v5475 = vunpack.c.l.b16 %v4963
    %v5476 = vunpack.c.l.b16 %v4964
    %v5477 = vunpack.c.l.b16 %v4965
    %v5478 = vunpack.c.l.b16 %v4966
    %v5479 = vunpack.c.l.b16 %v4967
    %v5480 = vunpack.c.l.b16 %v4968
    %v5481 = vunpack.c.l.b16 %v4969
    %v5482 = vunpack.c.l.b16 %v4970
    %v5483 = vunpack.c.l.b16 %v4971
    %v5484 = vunpack.c.l.b16 %v4972
    %v5485 = vunpack.c.l.b16 %v4973
    %v5486 = vunpack.c.l.b16 %v4974
    %v5487 = vunpack.c.l.b16 %v4975
    %v5488 = vunpack.c.l.b16 %v4976
    %v5489 = vunpack.c.l.b16 %v4977
    %v5490 = vunpack.c.l.b16 %v4978
    %v5491 = vunpack.c.l.b16 %v4979
    %v5492 = vunpack.c.l.b16 %v4980
    %v5493 = vunpack.c.l.b16 %v4981
    %v5494 = vunpack.c.l.b16 %v4982
    %v5495 = vunpack.c.l.b16 %v4983
    %v5496 = vunpack.c.l.b16 %v4984
    %v5497 = vunpack.c.l.b16 %v4985
    %v5498 = vunpack.c.l.b16 %v4986
    %v5499 = vunpack.c.l.b16 %v4987
    %v5500 = vunpack.c.l.b16 %v4988
    %v5501 = vunpack.c.l.b16 %v4989
    %v5502 = vunpack.c.l.b16 %v4990
    %v5503 = vunpack.c.l.b16 %v4991
    %v5504 = vunpack.c.l.b16 %v4992
    %v5505 = vunpack.c.l.b16 %v4993
    %v5506 = vunpack.c.l.b16 %v4994
    %v5507 = vunpack.c.l.b16 %v4995
    %v5508 = vunpack.c.l.b16 %v4996
    %v5509 = vunpack.c.l.b16 %v4997
    %v5510 = vunpack.c.l.b16 %v4998
    %v5511 = vunpack.c.l.b16 %v4999
    %v5512 = vunpack.c.l.b16 %v5000
    %v5513 = vunpack.c.l.b16 %v5001
    %v5514 = vunpack.c.l.b16 %v5002
    %v5515 = vunpack.c.l.b16 %v5003
    %v5516 = vunpack.c.l.b16 %v5004
    %v5517 = vunpack.c.l.b16 %v5005
    %v5518 = vunpack.c.l.b16 %v5006
    %v5519 = vunpack.c.l.b16 %v5007
    %v5520 = vunpack.c.l.b16 %v5008
    %v5521 = vunpack.c.l.b16 %v5009
    %v5522 = vunpack.c.l.b16 %v5010
    %v5523 = vunpack.c.l.b16 %v5011
    %v5524 = vunpack.c.l.b16 %v5012
    %v5525 = vunpack.c.l.b16 %v5013
    %v5526 = vunpack.c.l.b16 %v5014
    %v5527 = vunpack.c.l.b16 %v5015
    %v5528 = vunpack.c.l.b16 %v5016
    %v5529 = vunpack.c.l.b16 %v5017
    %v5530 = vunpack.c.l.b16 %v5018
    %v5531 = vunpack.c.l.b16 %v5019
    %v5532 = vunpack.c.l.b16 %v5020
    %v5533 = vunpack.c.l.b16 %v5021
    %v5534 = vunpack.c.l.b16 %v5022
    %v5535 = vunpack.c.l.b16 %v5023
    %v5536 = vunpack.c.l.b16 %v5024
    %v5537 = vunpack.c.l.b16 %v5025
    %v5538 = vunpack.c.l.b16 %v5026
    %v5539 = vunpack.c.l.b16 %v5027
    %v5540 = vunpack.c.l.b16 %v5028
    %v5541 = vunpack.c.l.b16 %v5029
    %v5542 = vunpack.c.l.b16 %v5030
    %v5543 = vunpack.c.l.b16 %v5031
    %v5544 = vunpack.c.l.b16 %v5032
    %v5545 = vunpack.c.l.b16 %v5033
    %v5546 = vunpack.c.l.b16 %v5034
    %v5547 = vunpack.c.l.b16 %v5035
    %v5548 = vunpack.c.l.b16 %v5036
    %v5549 = vunpack.c.l.b16 %v5037
    %v5550 = vunpack.c.l.b16 %v5038
    %v5551 = vunpack.c.l.b16 %v5039
    %v5552 = vunpack.c.l.b16 %v5040
    %v5553 = vunpack.c.l.b16 %v5041
    %v5554 = vunpack.c.l.b16 %v5042
    %v5555 = vunpack.c.l.b16 %v5043
    %v5556 = vunpack.c.l.b16 %v5044
    %v5557 = vunpack.c.l.b16 %v5045
    %v5558 = vunpack.c.l.b16 %v5046
    %v5559 = vunpack.c.l.b16 %v5047
    %v5560 = vunpack.c.l.b16 %v5048
    %v5561 = vunpack.c.l.b16 %v5049
    %v5562 = vunpack.c.l.b16 %v5050
    %v5563 = vunpack.c.l.b16 %v5051
    %v5564 = vunpack.c.l.b16 %v5052
    %v5565 = vunpack.c.l.b16 %v5053
    %v5566 = vunpack.c.l.b16 %v5054
    %v5567 = vunpack.c.l.b16 %v5055
    %v5568 = vunpack.c.l.b16 %v5056
    %v5569 = vunpack.c.l.b16 %v5057
    %v5570 = vunpack.c.l.b16 %v5058
    %v5571 = vunpack.c.l.b16 %v5059
    %v5572 = vunpack.c.l.b16 %v5060
    %v5573 = vunpack.c.l.b16 %v5061
    %v5574 = vunpack.c.l.b16 %v5062
    %v5575 = vunpack.c.l.b16 %v5063
    %v5576 = vunpack.c.l.b16 %v5064
    %v5577 = vunpack.c.l.b16 %v5065
    %v5578 = vunpack.c.l.b16 %v5066
    %v5579 = vunpack.c.l.b16 %v5067
    %v5580 = vunpack.c.l.b16 %v5068
    %v5581 = vunpack.c.l.b16 %v5069
    %v5582 = vunpack.c.l.b16 %v5070
    %v5583 = vunpack.c.l.b16 %v5071
    %v5584 = vunpack.c.l.b16 %v5072
    %v5585 = vunpack.c.l.b16 %v5073
    %v5586 = vunpack.c.l.b16 %v5074
    %v5587 = vunpack.c.l.b16 %v5075
    %v5588 = vunpack.c.l.b16 %v5076
    %v5589 = vunpack.c.l.b16 %v5077
    %v5590 = vunpack.c.l.b16 %v5078
    %v5591 = vunpack.c.l.b16 %v5079
    %v5592 = vunpack.c.l.b16 %v5080
    %v5593 = vunpack.c.l.b16 %v5081
    %v5594 = vunpack.c.l.b16 %v5082
    %v5595 = vunpack.c.l.b16 %v5083
    %v5596 = vunpack.c.l.b16 %v5084
    %v5597 = vunpack.c.l.b16 %v5085
    %v5598 = vunpack.c.l.b16 %v5086
    %v5599 = vunpack.c.l.b16 %v5087
    %v5600 = vunpack.c.l.b16 %v5088
    %v5601 = vunpack.c.l.b16 %v5089
    %v5602 = vunpack.c.l.b16 %v5090
    %v5603 = vunpack.c.l.b16 %v5091
    %v5604 = vunpack.c.l.b16 %v5092
    %v5605 = vunpack.c.l.b16 %v5093
    %v5606 = vunpack.c.l.b16 %v5094
    %v5607 = vunpack.c.l.b16 %v5095
    %v5608 = vunpack.c.l.b16 %v5096
    %v5609 = vunpack.c.l.b16 %v5097
    %v5610 = vunpack.c.l.b16 %v5098
    %v5611 = vunpack.c.l.b16 %v5099
    %v5612 = vunpack.c.l.b16 %v5100
    %v5613 = vunpack.c.l.b16 %v5101
    %v5614 = vunpack.c.l.b16 %v5102
    %v5615 = vunpack.c.l.b16 %v5103
    %v5616 = vunpack.c.l.b16 %v5104
    %v5617 = vunpack.c.l.b16 %v5105
    %v5618 = vunpack.c.l.b16 %v5106
    %v5619 = vunpack.c.l.b16 %v5107
    %v5620 = vunpack.c.l.b16 %v5108
    %v5621 = vunpack.c.l.b16 %v5109
    %v5622 = vunpack.c.l.b16 %v5110
    %v5623 = vunpack.c.l.b16 %v5111
    %v5624 = vunpack.c.l.b16 %v5112
    %v5625 = vunpack.c.l.b16 %v5113
    %v5626 = vunpack.c.l.b16 %v5114
    %v5627 = vunpack.c.l.b16 %v5115
    %v5628 = vunpack.c.l.b16 %v5116
    %v5629 = vunpack.c.l.b16 %v5117
    %v5630 = vunpack.c.l.b16 %v5118
    %v5631 = vpack.c.b16 %v5376, %v5375
    %v5632 = vpack.c.b16 %v5378, %v5377
    %v5633 = vpack.c.b16 %v5380, %v5379
    %v5634 = vpack.c.b16 %v5382, %v5381
    %v5635 = vpack.c.b16 %v5384, %v5383
    %v5636 = vpack.c.b16 %v5386, %v5385
    %v5637 = vpack.c.b16 %v5388, %v5387
    %v5638 = vpack.c.b16 %v5390, %v5389
    %v5639 = vpack.c.b16 %v5392, %v5391
    %v5640 = vpack.c.b16 %v5394, %v5393
    %v5641 = vpack.c.b16 %v5396, %v5395
    %v5642 = vpack.c.b16 %v5398, %v5397
    %v5643 = vpack.c.b16 %v5400, %v5399
    %v5644 = vpack.c.b16 %v5402, %v5401
    %v5645 = vpack.c.b16 %v5404, %v5403
    %v5646 = vpack.c.b16 %v5406, %v5405
    %v5647 = vpack.c.b16 %v5408, %v5407
    %v5648 = vpack.c.b16 %v5410, %v5409
    %v5649 = vpack.c.b16 %v5412, %v5411
    %v5650 = vpack.c.b16 %v5414, %v5413
    %v5651 = vpack.c.b16 %v5416, %v5415
    %v5652 = vpack.c.b16 %v5418, %v5417
    %v5653 = vpack.c.b16 %v5420, %v5419
    %v5654 = vpack.c.b16 %v5422, %v5421
    %v5655 = vpack.c.b16 %v5424, %v5423
    %v5656 = vpack.c.b16 %v5426, %v5425
    %v5657 = vpack.c.b16 %v5428, %v5427
    %v5658 = vpack.c.b16 %v5430, %v5429
    %v5659 = vpack.c.b16 %v5432, %v5431
    %v5660 = vpack.c.b16 %v5434, %v5433
    %v5661 = vpack.c.b16 %v5436, %v5435
    %v5662 = vpack.c.b16 %v5438, %v5437
    %v5663 = vpack.c.b16 %v5440, %v5439
    %v5664 = vpack.c.b16 %v5442, %v5441
    %v5665 = vpack.c.b16 %v5444, %v5443
    %v5666 = vpack.c.b16 %v5446, %v5445
    %v5667 = vpack.c.b16 %v5448, %v5447
    %v5668 = vpack.c.b16 %v5450, %v5449
    %v5669 = vpack.c.b16 %v5452, %v5451
    %v5670 = vpack.c.b16 %v5454, %v5453
    %v5671 = vpack.c.b16 %v5456, %v5455
    %v5672 = vpack.c.b16 %v5458, %v5457
    %v5673 = vpack.c.b16 %v5460, %v5459
    %v5674 = vpack.c.b16 %v5462, %v5461
    %v5675 = vpack.c.b16 %v5464, %v5463
    %v5676 = vpack.c.b16 %v5466, %v5465
    %v5677 = vpack.c.b16 %v5468, %v5467
    %v5678 = vpack.c.b16 %v5470, %v5469
    %v5679 = vpack.c.b16 %v5472, %v5471
    %v5680 = vpack.c.b16 %v5474, %v5473
    %v5681 = vpack.c.b16 %v5476, %v5475
    %v5682 = vpack.c.b16 %v5478, %v5477
    %v5683 = vpack.c.b16 %v5480, %v5479
    %v5684 = vpack.c.b16 %v5482, %v5481
    %v5685 = vpack.c.b16 %v5484, %v5483
    %v5686 = vpack.c.b16 %v5486, %v5485
    %v5687 = vpack.c.b16 %v5488, %v5487
    %v5688 = vpack.c.b16 %v5490, %v5489
    %v5689 = vpack.c.b16 %v5492, %v5491
    %v5690 = vpack.c.b16 %v5494, %v5493
    %v5691 = vpack.c.b16 %v5496, %v5495
    %v5692 = vpack.c.b16 %v5498, %v5497
    %v5693 = vpack.c.b16 %v5500, %v5499
    %v5694 = vpack.c.b16 %v5502, %v5501
    %v5695 = vpack.c.b16 %v5504, %v5503
    %v5696 = vpack.c.b16 %v5506, %v5505
    %v5697 = vpack.c.b16 %v5508, %v5507
    %v5698 = vpack.c.b16 %v5510, %v5509
    %v5699 = vpack.c.b16 %v5512, %v5511
    %v5700 = vpack.c.b16 %v5514, %v5513
    %v5701 = vpack.c.b16 %v5516, %v5515
    %v5702 = vpack.c.b16 %v5518, %v5517
    %v5703 = vpack.c.b16 %v5520, %v5519
    %v5704 = vpack.c.b16 %v5522, %v5521
    %v5705 = vpack.c.b16 %v5524, %v5523
    %v5706 = vpack.c.b16 %v5526, %v5525
    %v5707 = vpack.c.b16 %v5528, %v5527
    %v5708 = vpack.c.b16 %v5530, %v5529
    %v5709 = vpack.c.b16 %v5532, %v5531
    %v5710 = vpack.c.b16 %v5534, %v5533
    %v5711 = vpack.c.b16 %v5536, %v5535
    %v5712 = vpack.c.b16 %v5538, %v5537
    %v5713 = vpack.c.b16 %v5540, %v5539
    %v5714 = vpack.c.b16 %v5542, %v5541
    %v5715 = vpack.c.b16 %v5544, %v5543
    %v5716 = vpack.c.b16 %v5546, %v5545
    %v5717 = vpack.c.b16 %v5548, %v5547
    %v5718 = vpack.c.b16 %v5550, %v5549
    %v5719 = vpack.c.b16 %v5552, %v5551
    %v5720 = vpack.c.b16 %v5554, %v5553
    %v5721 = vpack.c.b16 %v5556, %v5555
    %v5722 = vpack.c.b16 %v5558, %v5557
    %v5723 = vpack.c.b16 %v5560, %v5559
    %v5724 = vpack.c.b16 %v5562, %v5561
    %v5725 = vpack.c.b16 %v5564, %v5563
    %v5726 = vpack.c.b16 %v5566, %v5565
    %v5727 = vpack.c.b16 %v5568, %v5567
    %v5728 = vpack.c.b16 %v5570, %v5569
    %v5729 = vpack.c.b16 %v5572, %v5571
    %v5730 = vpack.c.b16 %v5574, %v5573
    %v5731 = vpack.c.b16 %v5576, %v5575
    %v5732 = vpack.c.b16 %v5578, %v5577
    %v5733 = vpack.c.b16 %v5580, %v5579
    %v5734 = vpack.c.b16 %v5582, %v5581
    %v5735 = vpack.c.b16 %v5584, %v5583
    %v5736 = vpack.c.b16 %v5586, %v5585
    %v5737 = vpack.c.b16 %v5588, %v5587
    %v5738 = vpack.c.b16 %v5590, %v5589
    %v5739 = vpack.c.b16 %v5592, %v5591
    %v5740 = vpack.c.b16 %v5594, %v5593
    %v5741 = vpack.c.b16 %v5596, %v5595
    %v5742 = vpack.c.b16 %v5598, %v5597
    %v5743 = vpack.c.b16 %v5600, %v5599
    %v5744 = vpack.c.b16 %v5602, %v5601
    %v5745 = vpack.c.b16 %v5604, %v5603
    %v5746 = vpack.c.b16 %v5606, %v5605
    %v5747 = vpack.c.b16 %v5608, %v5607
    %v5748 = vpack.c.b16 %v5610, %v5609
    %v5749 = vpack.c.b16 %v5612, %v5611
    %v5750 = vpack.c.b16 %v5614, %v5613
    %v5751 = vpack.c.b16 %v5616, %v5615
    %v5752 = vpack.c.b16 %v5618, %v5617
    %v5753 = vpack.c.b16 %v5620, %v5619
    %v5754 = vpack.c.b16 %v5622, %v5621
    %v5755 = vpack.c.b16 %v5624, %v5623
    %v5756 = vpack.c.b16 %v5626, %v5625
    %v5757 = vpack.c.b16 %v5628, %v5627
    %v5758 = vpack.c.b16 %v5630, %v5629
    %5887 = vmatprep.subr.bf16.mxu0 0
    %5888 = vmatpush1.bf16.msra.mxu0 %v5631
    %5889 = vmatprep.subr.bf16.mxu0 0
    %5890 = vmatpush1.bf16.msra.mxu0 %v5632
    %5891 = vmatprep.subr.bf16.mxu0 0
    %5892 = vmatpush1.bf16.msra.mxu0 %v5633
    %5893 = vmatprep.subr.bf16.mxu0 0
    %5894 = vmatpush1.bf16.msra.mxu0 %v5634
    %5895 = vmatprep.subr.bf16.mxu0 0
    %5896 = vmatpush1.bf16.msra.mxu0 %v5635
    %5897 = vmatprep.subr.bf16.mxu0 0
    %5898 = vmatpush1.bf16.msra.mxu0 %v5636
    %5899 = vmatprep.subr.bf16.mxu0 0
    %5900 = vmatpush1.bf16.msra.mxu0 %v5637
    %5901 = vmatprep.subr.bf16.mxu0 0
    %5902 = vmatpush1.bf16.msra.mxu0 %v5638
    %5903 = vmatprep.subr.bf16.mxu0 0
    %5904 = vmatpush1.bf16.msra.mxu0 %v5639
    %5905 = vmatprep.subr.bf16.mxu0 0
    %5906 = vmatpush1.bf16.msra.mxu0 %v5640
    %5907 = vmatprep.subr.bf16.mxu0 0
    %5908 = vmatpush1.bf16.msra.mxu0 %v5641
    %5909 = vmatprep.subr.bf16.mxu0 0
    %5910 = vmatpush1.bf16.msra.mxu0 %v5642
    %5911 = vmatprep.subr.bf16.mxu0 0
    %5912 = vmatpush1.bf16.msra.mxu0 %v5643
    %5913 = vmatprep.subr.bf16.mxu0 0
    %5914 = vmatpush1.bf16.msra.mxu0 %v5644
    %5915 = vmatprep.subr.bf16.mxu0 0
    %5916 = vmatpush1.bf16.msra.mxu0 %v5645
    %5917 = vmatprep.subr.bf16.mxu0 0
    %5918 = vmatpush1.bf16.msra.mxu0 %v5646
    %5919 = vmatprep.mubr.bf16.mxu0 %v4720
    %5920 = vmatmul.mubr.bf16.gmra.mrb[0].mxu0 %v4719
    %v5921 = vpop.f32.mrb[0].mxu0
    %v5922 = vadd.f32 0.0, %v5921
    %v5923 = vpop.f32.mrb[0].mxu0
    %v5924 = vpop.f32.mrb[0].mxu0
    %v5925 = vadd.f32 0.0, %v5924
    %v5926 = vpop.f32.mrb[0].mxu0
    %5927 = vmatprep.mubr.bf16.mxu0 %v4736
    %5928 = vmatmul.mubr.bf16.gmra.mrb[0].mxu0 %v4735
    %v5929 = vpop.f32.mrb[0].mxu0
    %v5930 = vadd.f32 0.0, %v5929
    %v5931 = vpop.f32.mrb[0].mxu0
    %v5932 = vpop.f32.mrb[0].mxu0
    %v5933 = vadd.f32 0.0, %v5932
    %v5934 = vpop.f32.mrb[0].mxu0
    %5935 = vmatprep.mubr.bf16.mxu0 %v4752
    %5936 = vmatmul.mubr.bf16.gmra.mrb[0].mxu0 %v4751
    %v5937 = vpop.f32.mrb[0].mxu0
    %v5938 = vadd.f32 0.0, %v5937
    %v5939 = vpop.f32.mrb[0].mxu0
    %v5940 = vpop.f32.mrb[0].mxu0
    %v5941 = vadd.f32 0.0, %v5940
    %v5942 = vpop.f32.mrb[0].mxu0
    %5943 = vmatprep.mubr.bf16.mxu0 %v4768
    %5944 = vmatmul.mubr.bf16.gmra.mrb[0].mxu0 %v4767
    %v5945 = vpop.f32.mrb[0].mxu0
    %v5946 = vadd.f32 0.0, %v5945
    %v5947 = vpop.f32.mrb[0].mxu0
    %v5948 = vpop.f32.mrb[0].mxu0
    %v5949 = vadd.f32 0.0, %v5948
    %v5950 = vpop.f32.mrb[0].mxu0
    %5951 = vmatprep.mubr.bf16.mxu0 %v4784
    %5952 = vmatmul.mubr.bf16.gmra.mrb[0].mxu0 %v4783
    %v5953 = vpop.f32.mrb[0].mxu0
    %v5954 = vadd.f32 0.0, %v5953
    %v5955 = vpop.f32.mrb[0].mxu0
    %v5956 = vpop.f32.mrb[0].mxu0
    %v5957 = vadd.f32 0.0, %v5956
    %v5958 = vpop.f32.mrb[0].mxu0
    %5959 = vmatprep.mubr.bf16.mxu0 %v4800
    %5960 = vmatmul.mubr.bf16.gmra.mrb[0].mxu0 %v4799
    %v5961 = vpop.f32.mrb[0].mxu0
    %v5962 = vadd.f32 0.0, %v5961
    %v5963 = vpop.f32.mrb[0].mxu0
    %v5964 = vpop.f32.mrb[0].mxu0
    %v5965 = vadd.f32 0.0, %v5964
    %v5966 = vpop.f32.mrb[0].mxu0
    %5967 = vmatprep.mubr.bf16.mxu0 %v4816
    %5968 = vmatmul.mubr.bf16.gmra.mrb[0].mxu0 %v4815
    %v5969 = vpop.f32.mrb[0].mxu0
    %v5970 = vadd.f32 0.0, %v5969
    %v5971 = vpop.f32.mrb[0].mxu0
    %v5972 = vpop.f32.mrb[0].mxu0
    %v5973 = vadd.f32 0.0, %v5972
    %v5974 = vpop.f32.mrb[0].mxu0
    %5975 = vmatprep.mubr.bf16.mxu0 %v4832
    %5976 = vmatmul.mubr.bf16.gmra.mrb[0].mxu0 %v4831
    %v5977 = vpop.f32.mrb[0].mxu0
    %v5978 = vadd.f32 0.0, %v5977
    %v5979 = vpop.f32.mrb[0].mxu0
    %v5980 = vpop.f32.mrb[0].mxu0
    %v5981 = vadd.f32 0.0, %v5980
    %v5982 = vpop.f32.mrb[0].mxu0
    %5983 = vmatprep.mubr.bf16.mxu0 %v4848
    %5984 = vmatmul.mubr.bf16.gmra.mrb[0].mxu0 %v4847
    %v5985 = vpop.f32.mrb[0].mxu0
    %v5986 = vadd.f32 0.0, %v5985
    %v5987 = vpop.f32.mrb[0].mxu0
    %v5988 = vpop.f32.mrb[0].mxu0
    %v5989 = vadd.f32 0.0, %v5988
    %v5990 = vpop.f32.mrb[0].mxu0
    %5991 = vdwg.mxu0
    %5992 = vmatprep.subr.bf16.mxu0 0
    %5993 = vmatpush1.bf16.msra.mxu0 %v5647
    %5994 = vmatprep.subr.bf16.mxu0 0
    %5995 = vmatpush1.bf16.msra.mxu0 %v5648
    %5996 = vmatprep.subr.bf16.mxu0 0
    %5997 = vmatpush1.bf16.msra.mxu0 %v5649
    %5998 = vmatprep.subr.bf16.mxu0 0
    %5999 = vmatpush1.bf16.msra.mxu0 %v5650
    %6000 = vmatprep.subr.bf16.mxu0 0
    %6001 = vmatpush1.bf16.msra.mxu0 %v5651
    %6002 = vmatprep.subr.bf16.mxu0 0
    %6003 = vmatpush1.bf16.msra.mxu0 %v5652
    %6004 = vmatprep.subr.bf16.mxu0 0
    %6005 = vmatpush1.bf16.msra.mxu0 %v5653
    %6006 = vmatprep.subr.bf16.mxu0 0
    %6007 = vmatpush1.bf16.msra.mxu0 %v5654
    %6008 = vmatprep.subr.bf16.mxu0 0
    %6009 = vmatpush1.bf16.msra.mxu0 %v5655
    %6010 = vmatprep.subr.bf16.mxu0 0
    %6011 = vmatpush1.bf16.msra.mxu0 %v5656
    %6012 = vmatprep.subr.bf16.mxu0 0
    %6013 = vmatpush1.bf16.msra.mxu0 %v5657
    %6014 = vmatprep.subr.bf16.mxu0 0
    %6015 = vmatpush1.bf16.msra.mxu0 %v5658
    %6016 = vmatprep.subr.bf16.mxu0 0
    %6017 = vmatpush1.bf16.msra.mxu0 %v5659
    %6018 = vmatprep.subr.bf16.mxu0 0
    %6019 = vmatpush1.bf16.msra.mxu0 %v5660
    %6020 = vmatprep.subr.bf16.mxu0 0
    %6021 = vmatpush1.bf16.msra.mxu0 %v5661
    %6022 = vmatprep.subr.bf16.mxu0 0
    %6023 = vmatpush1.bf16.msra.mxu0 %v5662
    %6024 = vmatprep.mubr.bf16.mxu0 %v4722
    %6025 = vmatmul.mubr.bf16.gmra.mrb[0].mxu0 %v4721
    %v6026 = vpop.f32.mrb[0].mxu0
    %v6027 = vadd.f32 %v5922, %v6026
    %v6028 = vpop.f32.mrb[0].mxu0
    %v6029 = vpop.f32.mrb[0].mxu0
    %v6030 = vadd.f32 %v5925, %v6029
    %v6031 = vpop.f32.mrb[0].mxu0
    %6032 = vmatprep.mubr.bf16.mxu0 %v4738
    %6033 = vmatmul.mubr.bf16.gmra.mrb[0].mxu0 %v4737
    %v6034 = vpop.f32.mrb[0].mxu0
    %v6035 = vadd.f32 %v5930, %v6034
    %v6036 = vpop.f32.mrb[0].mxu0
    %v6037 = vpop.f32.mrb[0].mxu0
    %v6038 = vadd.f32 %v5933, %v6037
    %v6039 = vpop.f32.mrb[0].mxu0
    %6040 = vmatprep.mubr.bf16.mxu0 %v4754
    %6041 = vmatmul.mubr.bf16.gmra.mrb[0].mxu0 %v4753
    %v6042 = vpop.f32.mrb[0].mxu0
    %v6043 = vadd.f32 %v5938, %v6042
    %v6044 = vpop.f32.mrb[0].mxu0
    %v6045 = vpop.f32.mrb[0].mxu0
    %v6046 = vadd.f32 %v5941, %v6045
    %v6047 = vpop.f32.mrb[0].mxu0
    %6048 = vmatprep.mubr.bf16.mxu0 %v4770
    %6049 = vmatmul.mubr.bf16.gmra.mrb[0].mxu0 %v4769
    %v6050 = vpop.f32.mrb[0].mxu0
    %v6051 = vadd.f32 %v5946, %v6050
    %v6052 = vpop.f32.mrb[0].mxu0
    %v6053 = vpop.f32.mrb[0].mxu0
    %v6054 = vadd.f32 %v5949, %v6053
    %v6055 = vpop.f32.mrb[0].mxu0
    %6056 = vmatprep.mubr.bf16.mxu0 %v4786
    %6057 = vmatmul.mubr.bf16.gmra.mrb[0].mxu0 %v4785
    %v6058 = vpop.f32.mrb[0].mxu0
    %v6059 = vadd.f32 %v5954, %v6058
    %v6060 = vpop.f32.mrb[0].mxu0
    %v6061 = vpop.f32.mrb[0].mxu0
    %v6062 = vadd.f32 %v5957, %v6061
    %v6063 = vpop.f32.mrb[0].mxu0
    %6064 = vmatprep.mubr.bf16.mxu0 %v4802
    %6065 = vmatmul.mubr.bf16.gmra.mrb[0].mxu0 %v4801
    %v6066 = vpop.f32.mrb[0].mxu0
    %v6067 = vadd.f32 %v5962, %v6066
    %v6068 = vpop.f32.mrb[0].mxu0
    %v6069 = vpop.f32.mrb[0].mxu0
    %v6070 = vadd.f32 %v5965, %v6069
    %v6071 = vpop.f32.mrb[0].mxu0
    %6072 = vmatprep.mubr.bf16.mxu0 %v4818
    %6073 = vmatmul.mubr.bf16.gmra.mrb[0].mxu0 %v4817
    %v6074 = vpop.f32.mrb[0].mxu0
    %v6075 = vadd.f32 %v5970, %v6074
    %v6076 = vpop.f32.mrb[0].mxu0
    %v6077 = vpop.f32.mrb[0].mxu0
    %v6078 = vadd.f32 %v5973, %v6077
    %v6079 = vpop.f32.mrb[0].mxu0
    %6080 = vmatprep.mubr.bf16.mxu0 %v4834
    %6081 = vmatmul.mubr.bf16.gmra.mrb[0].mxu0 %v4833
    %v6082 = vpop.f32.mrb[0].mxu0
    %v6083 = vadd.f32 %v5978, %v6082
    %v6084 = vpop.f32.mrb[0].mxu0
    %v6085 = vpop.f32.mrb[0].mxu0
    %v6086 = vadd.f32 %v5981, %v6085
    %v6087 = vpop.f32.mrb[0].mxu0
    %6088 = vmatprep.mubr.bf16.mxu0 %v4850
    %6089 = vmatmul.mubr.bf16.gmra.mrb[0].mxu0 %v4849
    %v6090 = vpop.f32.mrb[0].mxu0
    %v6091 = vadd.f32 %v5986, %v6090
    %v6092 = vpop.f32.mrb[0].mxu0
    %v6093 = vpop.f32.mrb[0].mxu0
    %v6094 = vadd.f32 %v5989, %v6093
    %v6095 = vpop.f32.mrb[0].mxu0
    %6096 = vdwg.mxu0
    %6097 = vmatprep.subr.bf16.mxu0 0
    %6098 = vmatpush1.bf16.msra.mxu0 %v5663
    %6099 = vmatprep.subr.bf16.mxu0 0
    %6100 = vmatpush1.bf16.msra.mxu0 %v5664
    %6101 = vmatprep.subr.bf16.mxu0 0
    %6102 = vmatpush1.bf16.msra.mxu0 %v5665
    %6103 = vmatprep.subr.bf16.mxu0 0
    %6104 = vmatpush1.bf16.msra.mxu0 %v5666
    %6105 = vmatprep.subr.bf16.mxu0 0
    %6106 = vmatpush1.bf16.msra.mxu0 %v5667
    %6107 = vmatprep.subr.bf16.mxu0 0
    %6108 = vmatpush1.bf16.msra.mxu0 %v5668
    %6109 = vmatprep.subr.bf16.mxu0 0
    %6110 = vmatpush1.bf16.msra.mxu0 %v5669
    %6111 = vmatprep.subr.bf16.mxu0 0
    %6112 = vmatpush1.bf16.msra.mxu0 %v5670
    %6113 = vmatprep.subr.bf16.mxu0 0
    %6114 = vmatpush1.bf16.msra.mxu0 %v5671
    %6115 = vmatprep.subr.bf16.mxu0 0
    %6116 = vmatpush1.bf16.msra.mxu0 %v5672
    %6117 = vmatprep.subr.bf16.mxu0 0
    %6118 = vmatpush1.bf16.msra.mxu0 %v5673
    %6119 = vmatprep.subr.bf16.mxu0 0
    %6120 = vmatpush1.bf16.msra.mxu0 %v5674
    %6121 = vmatprep.subr.bf16.mxu0 0
    %6122 = vmatpush1.bf16.msra.mxu0 %v5675
    %6123 = vmatprep.subr.bf16.mxu0 0
    %6124 = vmatpush1.bf16.msra.mxu0 %v5676
    %6125 = vmatprep.subr.bf16.mxu0 0
    %6126 = vmatpush1.bf16.msra.mxu0 %v5677
    %6127 = vmatprep.subr.bf16.mxu0 0
    %6128 = vmatpush1.bf16.msra.mxu0 %v5678
    %6129 = vmatprep.mubr.bf16.mxu0 %v4724
    %6130 = vmatmul.mubr.bf16.gmra.mrb[0].mxu0 %v4723
    %v6131 = vpop.f32.mrb[0].mxu0
    %v6132 = vadd.f32 %v6027, %v6131
    %v6133 = vpop.f32.mrb[0].mxu0
    %v6134 = vpop.f32.mrb[0].mxu0
    %v6135 = vadd.f32 %v6030, %v6134
    %v6136 = vpop.f32.mrb[0].mxu0
    %6137 = vmatprep.mubr.bf16.mxu0 %v4740
    %6138 = vmatmul.mubr.bf16.gmra.mrb[0].mxu0 %v4739
    %v6139 = vpop.f32.mrb[0].mxu0
    %v6140 = vadd.f32 %v6035, %v6139
    %v6141 = vpop.f32.mrb[0].mxu0
    %v6142 = vpop.f32.mrb[0].mxu0
    %v6143 = vadd.f32 %v6038, %v6142
    %v6144 = vpop.f32.mrb[0].mxu0
    %6145 = vmatprep.mubr.bf16.mxu0 %v4756
    %6146 = vmatmul.mubr.bf16.gmra.mrb[0].mxu0 %v4755
    %v6147 = vpop.f32.mrb[0].mxu0
    %v6148 = vadd.f32 %v6043, %v6147
    %v6149 = vpop.f32.mrb[0].mxu0
    %v6150 = vpop.f32.mrb[0].mxu0
    %v6151 = vadd.f32 %v6046, %v6150
    %v6152 = vpop.f32.mrb[0].mxu0
    %6153 = vmatprep.mubr.bf16.mxu0 %v4772
    %6154 = vmatmul.mubr.bf16.gmra.mrb[0].mxu0 %v4771
    %v6155 = vpop.f32.mrb[0].mxu0
    %v6156 = vadd.f32 %v6051, %v6155
    %v6157 = vpop.f32.mrb[0].mxu0
    %v6158 = vpop.f32.mrb[0].mxu0
    %v6159 = vadd.f32 %v6054, %v6158
    %v6160 = vpop.f32.mrb[0].mxu0
    %6161 = vmatprep.mubr.bf16.mxu0 %v4788
    %6162 = vmatmul.mubr.bf16.gmra.mrb[0].mxu0 %v4787
    %v6163 = vpop.f32.mrb[0].mxu0
    %v6164 = vadd.f32 %v6059, %v6163
    %v6165 = vpop.f32.mrb[0].mxu0
    %v6166 = vpop.f32.mrb[0].mxu0
    %v6167 = vadd.f32 %v6062, %v6166
    %v6168 = vpop.f32.mrb[0].mxu0
    %6169 = vmatprep.mubr.bf16.mxu0 %v4804
    %6170 = vmatmul.mubr.bf16.gmra.mrb[0].mxu0 %v4803
    %v6171 = vpop.f32.mrb[0].mxu0
    %v6172 = vadd.f32 %v6067, %v6171
    %v6173 = vpop.f32.mrb[0].mxu0
    %v6174 = vpop.f32.mrb[0].mxu0
    %v6175 = vadd.f32 %v6070, %v6174
    %v6176 = vpop.f32.mrb[0].mxu0
    %6177 = vmatprep.mubr.bf16.mxu0 %v4820
    %6178 = vmatmul.mubr.bf16.gmra.mrb[0].mxu0 %v4819
    %v6179 = vpop.f32.mrb[0].mxu0
    %v6180 = vadd.f32 %v6075, %v6179
    %v6181 = vpop.f32.mrb[0].mxu0
    %v6182 = vpop.f32.mrb[0].mxu0
    %v6183 = vadd.f32 %v6078, %v6182
    %v6184 = vpop.f32.mrb[0].mxu0
    %6185 = vmatprep.mubr.bf16.mxu0 %v4836
    %6186 = vmatmul.mubr.bf16.gmra.mrb[0].mxu0 %v4835
    %v6187 = vpop.f32.mrb[0].mxu0
    %v6188 = vadd.f32 %v6083, %v6187
    %v6189 = vpop.f32.mrb[0].mxu0
    %v6190 = vpop.f32.mrb[0].mxu0
    %v6191 = vadd.f32 %v6086, %v6190
    %v6192 = vpop.f32.mrb[0].mxu0
    %6193 = vmatprep.mubr.bf16.mxu0 %v4852
    %6194 = vmatmul.mubr.bf16.gmra.mrb[0].mxu0 %v4851
    %v6195 = vpop.f32.mrb[0].mxu0
    %v6196 = vadd.f32 %v6091, %v6195
    %v6197 = vpop.f32.mrb[0].mxu0
    %v6198 = vpop.f32.mrb[0].mxu0
    %v6199 = vadd.f32 %v6094, %v6198
    %v6200 = vpop.f32.mrb[0].mxu0
    %6201 = vdwg.mxu0
    %6202 = vmatprep.subr.bf16.mxu0 0
    %6203 = vmatpush1.bf16.msra.mxu0 %v5679
    %6204 = vmatprep.subr.bf16.mxu0 0
    %6205 = vmatpush1.bf16.msra.mxu0 %v5680
    %6206 = vmatprep.subr.bf16.mxu0 0
    %6207 = vmatpush1.bf16.msra.mxu0 %v5681
    %6208 = vmatprep.subr.bf16.mxu0 0
    %6209 = vmatpush1.bf16.msra.mxu0 %v5682
    %6210 = vmatprep.subr.bf16.mxu0 0
    %6211 = vmatpush1.bf16.msra.mxu0 %v5683
    %6212 = vmatprep.subr.bf16.mxu0 0
    %6213 = vmatpush1.bf16.msra.mxu0 %v5684
    %6214 = vmatprep.subr.bf16.mxu0 0
    %6215 = vmatpush1.bf16.msra.mxu0 %v5685
    %6216 = vmatprep.subr.bf16.mxu0 0
    %6217 = vmatpush1.bf16.msra.mxu0 %v5686
    %6218 = vmatprep.subr.bf16.mxu0 0
    %6219 = vmatpush1.bf16.msra.mxu0 %v5687
    %6220 = vmatprep.subr.bf16.mxu0 0
    %6221 = vmatpush1.bf16.msra.mxu0 %v5688
    %6222 = vmatprep.subr.bf16.mxu0 0
    %6223 = vmatpush1.bf16.msra.mxu0 %v5689
    %6224 = vmatprep.subr.bf16.mxu0 0
    %6225 = vmatpush1.bf16.msra.mxu0 %v5690
    %6226 = vmatprep.subr.bf16.mxu0 0
    %6227 = vmatpush1.bf16.msra.mxu0 %v5691
    %6228 = vmatprep.subr.bf16.mxu0 0
    %6229 = vmatpush1.bf16.msra.mxu0 %v5692
    %6230 = vmatprep.subr.bf16.mxu0 0
    %6231 = vmatpush1.bf16.msra.mxu0 %v5693
    %6232 = vmatprep.subr.bf16.mxu0 0
    %6233 = vmatpush1.bf16.msra.mxu0 %v5694
    %6234 = vmatprep.mubr.bf16.mxu0 %v4726
    %6235 = vmatmul.mubr.bf16.gmra.mrb[0].mxu0 %v4725
    %v6236 = vpop.f32.mrb[0].mxu0
    %v6237 = vadd.f32 %v6132, %v6236
    %v6238 = vpop.f32.mrb[0].mxu0
    %v6239 = vpop.f32.mrb[0].mxu0
    %v6240 = vadd.f32 %v6135, %v6239
    %v6241 = vpop.f32.mrb[0].mxu0
    %6242 = vmatprep.mubr.bf16.mxu0 %v4742
    %6243 = vmatmul.mubr.bf16.gmra.mrb[0].mxu0 %v4741
    %v6244 = vpop.f32.mrb[0].mxu0
    %v6245 = vadd.f32 %v6140, %v6244
    %v6246 = vpop.f32.mrb[0].mxu0
    %v6247 = vpop.f32.mrb[0].mxu0
    %v6248 = vadd.f32 %v6143, %v6247
    %v6249 = vpop.f32.mrb[0].mxu0
    %6250 = vmatprep.mubr.bf16.mxu0 %v4758
    %6251 = vmatmul.mubr.bf16.gmra.mrb[0].mxu0 %v4757
    %v6252 = vpop.f32.mrb[0].mxu0
    %v6253 = vadd.f32 %v6148, %v6252
    %v6254 = vpop.f32.mrb[0].mxu0
    %v6255 = vpop.f32.mrb[0].mxu0
    %v6256 = vadd.f32 %v6151, %v6255
    %v6257 = vpop.f32.mrb[0].mxu0
    %6258 = vmatprep.mubr.bf16.mxu0 %v4774
    %6259 = vmatmul.mubr.bf16.gmra.mrb[0].mxu0 %v4773
    %v6260 = vpop.f32.mrb[0].mxu0
    %v6261 = vadd.f32 %v6156, %v6260
    %v6262 = vpop.f32.mrb[0].mxu0
    %v6263 = vpop.f32.mrb[0].mxu0
    %v6264 = vadd.f32 %v6159, %v6263
    %v6265 = vpop.f32.mrb[0].mxu0
    %6266 = vmatprep.mubr.bf16.mxu0 %v4790
    %6267 = vmatmul.mubr.bf16.gmra.mrb[0].mxu0 %v4789
    %v6268 = vpop.f32.mrb[0].mxu0
    %v6269 = vadd.f32 %v6164, %v6268
    %v6270 = vpop.f32.mrb[0].mxu0
    %v6271 = vpop.f32.mrb[0].mxu0
    %v6272 = vadd.f32 %v6167, %v6271
    %v6273 = vpop.f32.mrb[0].mxu0
    %6274 = vmatprep.mubr.bf16.mxu0 %v4806
    %6275 = vmatmul.mubr.bf16.gmra.mrb[0].mxu0 %v4805
    %v6276 = vpop.f32.mrb[0].mxu0
    %v6277 = vadd.f32 %v6172, %v6276
    %v6278 = vpop.f32.mrb[0].mxu0
    %v6279 = vpop.f32.mrb[0].mxu0
    %v6280 = vadd.f32 %v6175, %v6279
    %v6281 = vpop.f32.mrb[0].mxu0
    %6282 = vmatprep.mubr.bf16.mxu0 %v4822
    %6283 = vmatmul.mubr.bf16.gmra.mrb[0].mxu0 %v4821
    %v6284 = vpop.f32.mrb[0].mxu0
    %v6285 = vadd.f32 %v6180, %v6284
    %v6286 = vpop.f32.mrb[0].mxu0
    %v6287 = vpop.f32.mrb[0].mxu0
    %v6288 = vadd.f32 %v6183, %v6287
    %v6289 = vpop.f32.mrb[0].mxu0
    %6290 = vmatprep.mubr.bf16.mxu0 %v4838
    %6291 = vmatmul.mubr.bf16.gmra.mrb[0].mxu0 %v4837
    %v6292 = vpop.f32.mrb[0].mxu0
    %v6293 = vadd.f32 %v6188, %v6292
    %v6294 = vpop.f32.mrb[0].mxu0
    %v6295 = vpop.f32.mrb[0].mxu0
    %v6296 = vadd.f32 %v6191, %v6295
    %v6297 = vpop.f32.mrb[0].mxu0
    %6298 = vmatprep.mubr.bf16.mxu0 %v4854
    %6299 = vmatmul.mubr.bf16.gmra.mrb[0].mxu0 %v4853
    %v6300 = vpop.f32.mrb[0].mxu0
    %v6301 = vadd.f32 %v6196, %v6300
    %v6302 = vpop.f32.mrb[0].mxu0
    %v6303 = vpop.f32.mrb[0].mxu0
    %v6304 = vadd.f32 %v6199, %v6303
    %v6305 = vpop.f32.mrb[0].mxu0
    %6306 = vdwg.mxu0
    %6307 = vmatprep.subr.bf16.mxu0 0
    %6308 = vmatpush1.bf16.msra.mxu0 %v5695
    %6309 = vmatprep.subr.bf16.mxu0 0
    %6310 = vmatpush1.bf16.msra.mxu0 %v5696
    %6311 = vmatprep.subr.bf16.mxu0 0
    %6312 = vmatpush1.bf16.msra.mxu0 %v5697
    %6313 = vmatprep.subr.bf16.mxu0 0
    %6314 = vmatpush1.bf16.msra.mxu0 %v5698
    %6315 = vmatprep.subr.bf16.mxu0 0
    %6316 = vmatpush1.bf16.msra.mxu0 %v5699
    %6317 = vmatprep.subr.bf16.mxu0 0
    %6318 = vmatpush1.bf16.msra.mxu0 %v5700
    %6319 = vmatprep.subr.bf16.mxu0 0
    %6320 = vmatpush1.bf16.msra.mxu0 %v5701
    %6321 = vmatprep.subr.bf16.mxu0 0
    %6322 = vmatpush1.bf16.msra.mxu0 %v5702
    %6323 = vmatprep.subr.bf16.mxu0 0
    %6324 = vmatpush1.bf16.msra.mxu0 %v5703
    %6325 = vmatprep.subr.bf16.mxu0 0
    %6326 = vmatpush1.bf16.msra.mxu0 %v5704
    %6327 = vmatprep.subr.bf16.mxu0 0
    %6328 = vmatpush1.bf16.msra.mxu0 %v5705
    %6329 = vmatprep.subr.bf16.mxu0 0
    %6330 = vmatpush1.bf16.msra.mxu0 %v5706
    %6331 = vmatprep.subr.bf16.mxu0 0
    %6332 = vmatpush1.bf16.msra.mxu0 %v5707
    %6333 = vmatprep.subr.bf16.mxu0 0
    %6334 = vmatpush1.bf16.msra.mxu0 %v5708
    %6335 = vmatprep.subr.bf16.mxu0 0
    %6336 = vmatpush1.bf16.msra.mxu0 %v5709
    %6337 = vmatprep.subr.bf16.mxu0 0
    %6338 = vmatpush1.bf16.msra.mxu0 %v5710
    %6339 = vmatprep.mubr.bf16.mxu0 %v4728
    %6340 = vmatmul.mubr.bf16.gmra.mrb[0].mxu0 %v4727
    %v6341 = vpop.f32.mrb[0].mxu0
    %v6342 = vadd.f32 %v6237, %v6341
    %v6343 = vpop.f32.mrb[0].mxu0
    %v6344 = vpop.f32.mrb[0].mxu0
    %v6345 = vadd.f32 %v6240, %v6344
    %v6346 = vpop.f32.mrb[0].mxu0
    %6347 = vmatprep.mubr.bf16.mxu0 %v4744
    %6348 = vmatmul.mubr.bf16.gmra.mrb[0].mxu0 %v4743
    %v6349 = vpop.f32.mrb[0].mxu0
    %v6350 = vadd.f32 %v6245, %v6349
    %v6351 = vpop.f32.mrb[0].mxu0
    %v6352 = vpop.f32.mrb[0].mxu0
    %v6353 = vadd.f32 %v6248, %v6352
    %v6354 = vpop.f32.mrb[0].mxu0
    %6355 = vmatprep.mubr.bf16.mxu0 %v4760
    %6356 = vmatmul.mubr.bf16.gmra.mrb[0].mxu0 %v4759
    %v6357 = vpop.f32.mrb[0].mxu0
    %v6358 = vadd.f32 %v6253, %v6357
    %v6359 = vpop.f32.mrb[0].mxu0
    %v6360 = vpop.f32.mrb[0].mxu0
    %v6361 = vadd.f32 %v6256, %v6360
    %v6362 = vpop.f32.mrb[0].mxu0
    %6363 = vmatprep.mubr.bf16.mxu0 %v4776
    %6364 = vmatmul.mubr.bf16.gmra.mrb[0].mxu0 %v4775
    %v6365 = vpop.f32.mrb[0].mxu0
    %v6366 = vadd.f32 %v6261, %v6365
    %v6367 = vpop.f32.mrb[0].mxu0
    %v6368 = vpop.f32.mrb[0].mxu0
    %v6369 = vadd.f32 %v6264, %v6368
    %v6370 = vpop.f32.mrb[0].mxu0
    %6371 = vmatprep.mubr.bf16.mxu0 %v4792
    %6372 = vmatmul.mubr.bf16.gmra.mrb[0].mxu0 %v4791
    %v6373 = vpop.f32.mrb[0].mxu0
    %v6374 = vadd.f32 %v6269, %v6373
    %v6375 = vpop.f32.mrb[0].mxu0
    %v6376 = vpop.f32.mrb[0].mxu0
    %v6377 = vadd.f32 %v6272, %v6376
    %v6378 = vpop.f32.mrb[0].mxu0
    %6379 = vmatprep.mubr.bf16.mxu0 %v4808
    %6380 = vmatmul.mubr.bf16.gmra.mrb[0].mxu0 %v4807
    %v6381 = vpop.f32.mrb[0].mxu0
    %v6382 = vadd.f32 %v6277, %v6381
    %v6383 = vpop.f32.mrb[0].mxu0
    %v6384 = vpop.f32.mrb[0].mxu0
    %v6385 = vadd.f32 %v6280, %v6384
    %v6386 = vpop.f32.mrb[0].mxu0
    %6387 = vmatprep.mubr.bf16.mxu0 %v4824
    %6388 = vmatmul.mubr.bf16.gmra.mrb[0].mxu0 %v4823
    %v6389 = vpop.f32.mrb[0].mxu0
    %v6390 = vadd.f32 %v6285, %v6389
    %v6391 = vpop.f32.mrb[0].mxu0
    %v6392 = vpop.f32.mrb[0].mxu0
    %v6393 = vadd.f32 %v6288, %v6392
    %v6394 = vpop.f32.mrb[0].mxu0
    %6395 = vmatprep.mubr.bf16.mxu0 %v4840
    %6396 = vmatmul.mubr.bf16.gmra.mrb[0].mxu0 %v4839
    %v6397 = vpop.f32.mrb[0].mxu0
    %v6398 = vadd.f32 %v6293, %v6397
    %v6399 = vpop.f32.mrb[0].mxu0
    %v6400 = vpop.f32.mrb[0].mxu0
    %v6401 = vadd.f32 %v6296, %v6400
    %v6402 = vpop.f32.mrb[0].mxu0
    %6403 = vmatprep.mubr.bf16.mxu0 %v4856
    %6404 = vmatmul.mubr.bf16.gmra.mrb[0].mxu0 %v4855
    %v6405 = vpop.f32.mrb[0].mxu0
    %v6406 = vadd.f32 %v6301, %v6405
    %v6407 = vpop.f32.mrb[0].mxu0
    %v6408 = vpop.f32.mrb[0].mxu0
    %v6409 = vadd.f32 %v6304, %v6408
    %v6410 = vpop.f32.mrb[0].mxu0
    %6411 = vdwg.mxu0
    %6412 = vmatprep.subr.bf16.mxu0 0
    %6413 = vmatpush1.bf16.msra.mxu0 %v5711
    %6414 = vmatprep.subr.bf16.mxu0 0
    %6415 = vmatpush1.bf16.msra.mxu0 %v5712
    %6416 = vmatprep.subr.bf16.mxu0 0
    %6417 = vmatpush1.bf16.msra.mxu0 %v5713
    %6418 = vmatprep.subr.bf16.mxu0 0
    %6419 = vmatpush1.bf16.msra.mxu0 %v5714
    %6420 = vmatprep.subr.bf16.mxu0 0
    %6421 = vmatpush1.bf16.msra.mxu0 %v5715
    %6422 = vmatprep.subr.bf16.mxu0 0
    %6423 = vmatpush1.bf16.msra.mxu0 %v5716
    %6424 = vmatprep.subr.bf16.mxu0 0
    %6425 = vmatpush1.bf16.msra.mxu0 %v5717
    %6426 = vmatprep.subr.bf16.mxu0 0
    %6427 = vmatpush1.bf16.msra.mxu0 %v5718
    %6428 = vmatprep.subr.bf16.mxu0 0
    %6429 = vmatpush1.bf16.msra.mxu0 %v5719
    %6430 = vmatprep.subr.bf16.mxu0 0
    %6431 = vmatpush1.bf16.msra.mxu0 %v5720
    %6432 = vmatprep.subr.bf16.mxu0 0
    %6433 = vmatpush1.bf16.msra.mxu0 %v5721
    %6434 = vmatprep.subr.bf16.mxu0 0
    %6435 = vmatpush1.bf16.msra.mxu0 %v5722
    %6436 = vmatprep.subr.bf16.mxu0 0
    %6437 = vmatpush1.bf16.msra.mxu0 %v5723
    %6438 = vmatprep.subr.bf16.mxu0 0
    %6439 = vmatpush1.bf16.msra.mxu0 %v5724
    %6440 = vmatprep.subr.bf16.mxu0 0
    %6441 = vmatpush1.bf16.msra.mxu0 %v5725
    %6442 = vmatprep.subr.bf16.mxu0 0
    %6443 = vmatpush1.bf16.msra.mxu0 %v5726
    %6444 = vmatprep.mubr.bf16.mxu0 %v4730
    %6445 = vmatmul.mubr.bf16.gmra.mrb[0].mxu0 %v4729
    %v6446 = vpop.f32.mrb[0].mxu0
    %v6447 = vadd.f32 %v6342, %v6446
    %v6448 = vpop.f32.mrb[0].mxu0
    %v6449 = vpop.f32.mrb[0].mxu0
    %v6450 = vadd.f32 %v6345, %v6449
    %v6451 = vpop.f32.mrb[0].mxu0
    %6452 = vmatprep.mubr.bf16.mxu0 %v4746
    %6453 = vmatmul.mubr.bf16.gmra.mrb[0].mxu0 %v4745
    %v6454 = vpop.f32.mrb[0].mxu0
    %v6455 = vadd.f32 %v6350, %v6454
    %v6456 = vpop.f32.mrb[0].mxu0
    %v6457 = vpop.f32.mrb[0].mxu0
    %v6458 = vadd.f32 %v6353, %v6457
    %v6459 = vpop.f32.mrb[0].mxu0
    %6460 = vmatprep.mubr.bf16.mxu0 %v4762
    %6461 = vmatmul.mubr.bf16.gmra.mrb[0].mxu0 %v4761
    %v6462 = vpop.f32.mrb[0].mxu0
    %v6463 = vadd.f32 %v6358, %v6462
    %v6464 = vpop.f32.mrb[0].mxu0
    %v6465 = vpop.f32.mrb[0].mxu0
    %v6466 = vadd.f32 %v6361, %v6465
    %v6467 = vpop.f32.mrb[0].mxu0
    %6468 = vmatprep.mubr.bf16.mxu0 %v4778
    %6469 = vmatmul.mubr.bf16.gmra.mrb[0].mxu0 %v4777
    %v6470 = vpop.f32.mrb[0].mxu0
    %v6471 = vadd.f32 %v6366, %v6470
    %v6472 = vpop.f32.mrb[0].mxu0
    %v6473 = vpop.f32.mrb[0].mxu0
    %v6474 = vadd.f32 %v6369, %v6473
    %v6475 = vpop.f32.mrb[0].mxu0
    %6476 = vmatprep.mubr.bf16.mxu0 %v4794
    %6477 = vmatmul.mubr.bf16.gmra.mrb[0].mxu0 %v4793
    %v6478 = vpop.f32.mrb[0].mxu0
    %v6479 = vadd.f32 %v6374, %v6478
    %v6480 = vpop.f32.mrb[0].mxu0
    %v6481 = vpop.f32.mrb[0].mxu0
    %v6482 = vadd.f32 %v6377, %v6481
    %v6483 = vpop.f32.mrb[0].mxu0
    %6484 = vmatprep.mubr.bf16.mxu0 %v4810
    %6485 = vmatmul.mubr.bf16.gmra.mrb[0].mxu0 %v4809
    %v6486 = vpop.f32.mrb[0].mxu0
    %v6487 = vadd.f32 %v6382, %v6486
    %v6488 = vpop.f32.mrb[0].mxu0
    %v6489 = vpop.f32.mrb[0].mxu0
    %v6490 = vadd.f32 %v6385, %v6489
    %v6491 = vpop.f32.mrb[0].mxu0
    %6492 = vmatprep.mubr.bf16.mxu0 %v4826
    %6493 = vmatmul.mubr.bf16.gmra.mrb[0].mxu0 %v4825
    %v6494 = vpop.f32.mrb[0].mxu0
    %v6495 = vadd.f32 %v6390, %v6494
    %v6496 = vpop.f32.mrb[0].mxu0
    %v6497 = vpop.f32.mrb[0].mxu0
    %v6498 = vadd.f32 %v6393, %v6497
    %v6499 = vpop.f32.mrb[0].mxu0
    %6500 = vmatprep.mubr.bf16.mxu0 %v4842
    %6501 = vmatmul.mubr.bf16.gmra.mrb[0].mxu0 %v4841
    %v6502 = vpop.f32.mrb[0].mxu0
    %v6503 = vadd.f32 %v6398, %v6502
    %v6504 = vpop.f32.mrb[0].mxu0
    %v6505 = vpop.f32.mrb[0].mxu0
    %v6506 = vadd.f32 %v6401, %v6505
    %v6507 = vpop.f32.mrb[0].mxu0
    %6508 = vmatprep.mubr.bf16.mxu0 %v4858
    %6509 = vmatmul.mubr.bf16.gmra.mrb[0].mxu0 %v4857
    %v6510 = vpop.f32.mrb[0].mxu0
    %v6511 = vadd.f32 %v6406, %v6510
    %v6512 = vpop.f32.mrb[0].mxu0
    %v6513 = vpop.f32.mrb[0].mxu0
    %v6514 = vadd.f32 %v6409, %v6513
    %v6515 = vpop.f32.mrb[0].mxu0
    %6516 = vdwg.mxu0
    %6517 = vmatprep.subr.bf16.mxu0 0
    %6518 = vmatpush1.bf16.msra.mxu0 %v5727
    %6519 = vmatprep.subr.bf16.mxu0 0
    %6520 = vmatpush1.bf16.msra.mxu0 %v5728
    %6521 = vmatprep.subr.bf16.mxu0 0
    %6522 = vmatpush1.bf16.msra.mxu0 %v5729
    %6523 = vmatprep.subr.bf16.mxu0 0
    %6524 = vmatpush1.bf16.msra.mxu0 %v5730
    %6525 = vmatprep.subr.bf16.mxu0 0
    %6526 = vmatpush1.bf16.msra.mxu0 %v5731
    %6527 = vmatprep.subr.bf16.mxu0 0
    %6528 = vmatpush1.bf16.msra.mxu0 %v5732
    %6529 = vmatprep.subr.bf16.mxu0 0
    %6530 = vmatpush1.bf16.msra.mxu0 %v5733
    %6531 = vmatprep.subr.bf16.mxu0 0
    %6532 = vmatpush1.bf16.msra.mxu0 %v5734
    %6533 = vmatprep.subr.bf16.mxu0 0
    %6534 = vmatpush1.bf16.msra.mxu0 %v5735
    %6535 = vmatprep.subr.bf16.mxu0 0
    %6536 = vmatpush1.bf16.msra.mxu0 %v5736
    %6537 = vmatprep.subr.bf16.mxu0 0
    %6538 = vmatpush1.bf16.msra.mxu0 %v5737
    %6539 = vmatprep.subr.bf16.mxu0 0
    %6540 = vmatpush1.bf16.msra.mxu0 %v5738
    %6541 = vmatprep.subr.bf16.mxu0 0
    %6542 = vmatpush1.bf16.msra.mxu0 %v5739
    %6543 = vmatprep.subr.bf16.mxu0 0
    %6544 = vmatpush1.bf16.msra.mxu0 %v5740
    %6545 = vmatprep.subr.bf16.mxu0 0
    %6546 = vmatpush1.bf16.msra.mxu0 %v5741
    %6547 = vmatprep.subr.bf16.mxu0 0
    %6548 = vmatpush1.bf16.msra.mxu0 %v5742
    %6549 = vmatprep.mubr.bf16.mxu0 %v4732
    %6550 = vmatmul.mubr.bf16.gmra.mrb[0].mxu0 %v4731
    %v6551 = vpop.f32.mrb[0].mxu0
    %v6552 = vadd.f32 %v6447, %v6551
    %v6553 = vpop.f32.mrb[0].mxu0
    %v6554 = vpop.f32.mrb[0].mxu0
    %v6555 = vadd.f32 %v6450, %v6554
    %v6556 = vpop.f32.mrb[0].mxu0
    %6557 = vmatprep.mubr.bf16.mxu0 %v4748
    %6558 = vmatmul.mubr.bf16.gmra.mrb[0].mxu0 %v4747
    %v6559 = vpop.f32.mrb[0].mxu0
    %v6560 = vadd.f32 %v6455, %v6559
    %v6561 = vpop.f32.mrb[0].mxu0
    %v6562 = vpop.f32.mrb[0].mxu0
    %v6563 = vadd.f32 %v6458, %v6562
    %v6564 = vpop.f32.mrb[0].mxu0
    %6565 = vmatprep.mubr.bf16.mxu0 %v4764
    %6566 = vmatmul.mubr.bf16.gmra.mrb[0].mxu0 %v4763
    %v6567 = vpop.f32.mrb[0].mxu0
    %v6568 = vadd.f32 %v6463, %v6567
    %v6569 = vpop.f32.mrb[0].mxu0
    %v6570 = vpop.f32.mrb[0].mxu0
    %v6571 = vadd.f32 %v6466, %v6570
    %v6572 = vpop.f32.mrb[0].mxu0
    %6573 = vmatprep.mubr.bf16.mxu0 %v4780
    %6574 = vmatmul.mubr.bf16.gmra.mrb[0].mxu0 %v4779
    %v6575 = vpop.f32.mrb[0].mxu0
    %v6576 = vadd.f32 %v6471, %v6575
    %v6577 = vpop.f32.mrb[0].mxu0
    %v6578 = vpop.f32.mrb[0].mxu0
    %v6579 = vadd.f32 %v6474, %v6578
    %v6580 = vpop.f32.mrb[0].mxu0
    %6581 = vmatprep.mubr.bf16.mxu0 %v4796
    %6582 = vmatmul.mubr.bf16.gmra.mrb[0].mxu0 %v4795
    %v6583 = vpop.f32.mrb[0].mxu0
    %v6584 = vadd.f32 %v6479, %v6583
    %v6585 = vpop.f32.mrb[0].mxu0
    %v6586 = vpop.f32.mrb[0].mxu0
    %v6587 = vadd.f32 %v6482, %v6586
    %v6588 = vpop.f32.mrb[0].mxu0
    %6589 = vmatprep.mubr.bf16.mxu0 %v4812
    %6590 = vmatmul.mubr.bf16.gmra.mrb[0].mxu0 %v4811
    %v6591 = vpop.f32.mrb[0].mxu0
    %v6592 = vadd.f32 %v6487, %v6591
    %v6593 = vpop.f32.mrb[0].mxu0
    %v6594 = vpop.f32.mrb[0].mxu0
    %v6595 = vadd.f32 %v6490, %v6594
    %v6596 = vpop.f32.mrb[0].mxu0
    %6597 = vmatprep.mubr.bf16.mxu0 %v4828
    %6598 = vmatmul.mubr.bf16.gmra.mrb[0].mxu0 %v4827
    %v6599 = vpop.f32.mrb[0].mxu0
    %v6600 = vadd.f32 %v6495, %v6599
    %v6601 = vpop.f32.mrb[0].mxu0
    %v6602 = vpop.f32.mrb[0].mxu0
    %v6603 = vadd.f32 %v6498, %v6602
    %v6604 = vpop.f32.mrb[0].mxu0
    %6605 = vmatprep.mubr.bf16.mxu0 %v4844
    %6606 = vmatmul.mubr.bf16.gmra.mrb[0].mxu0 %v4843
    %v6607 = vpop.f32.mrb[0].mxu0
    %v6608 = vadd.f32 %v6503, %v6607
    %v6609 = vpop.f32.mrb[0].mxu0
    %v6610 = vpop.f32.mrb[0].mxu0
    %v6611 = vadd.f32 %v6506, %v6610
    %v6612 = vpop.f32.mrb[0].mxu0
    %6613 = vmatprep.mubr.bf16.mxu0 %v4860
    %6614 = vmatmul.mubr.bf16.gmra.mrb[0].mxu0 %v4859
    %v6615 = vpop.f32.mrb[0].mxu0
    %v6616 = vadd.f32 %v6511, %v6615
    %v6617 = vpop.f32.mrb[0].mxu0
    %v6618 = vpop.f32.mrb[0].mxu0
    %v6619 = vadd.f32 %v6514, %v6618
    %v6620 = vpop.f32.mrb[0].mxu0
    %6621 = vdwg.mxu0
    %6622 = vmatprep.subr.bf16.mxu0 0
    %6623 = vmatpush1.bf16.msra.mxu0 %v5743
    %6624 = vmatprep.subr.bf16.mxu0 0
    %6625 = vmatpush1.bf16.msra.mxu0 %v5744
    %6626 = vmatprep.subr.bf16.mxu0 0
    %6627 = vmatpush1.bf16.msra.mxu0 %v5745
    %6628 = vmatprep.subr.bf16.mxu0 0
    %6629 = vmatpush1.bf16.msra.mxu0 %v5746
    %6630 = vmatprep.subr.bf16.mxu0 0
    %6631 = vmatpush1.bf16.msra.mxu0 %v5747
    %6632 = vmatprep.subr.bf16.mxu0 0
    %6633 = vmatpush1.bf16.msra.mxu0 %v5748
    %6634 = vmatprep.subr.bf16.mxu0 0
    %6635 = vmatpush1.bf16.msra.mxu0 %v5749
    %6636 = vmatprep.subr.bf16.mxu0 0
    %6637 = vmatpush1.bf16.msra.mxu0 %v5750
    %6638 = vmatprep.subr.bf16.mxu0 0
    %6639 = vmatpush1.bf16.msra.mxu0 %v5751
    %6640 = vmatprep.subr.bf16.mxu0 0
    %6641 = vmatpush1.bf16.msra.mxu0 %v5752
    %6642 = vmatprep.subr.bf16.mxu0 0
    %6643 = vmatpush1.bf16.msra.mxu0 %v5753
    %6644 = vmatprep.subr.bf16.mxu0 0
    %6645 = vmatpush1.bf16.msra.mxu0 %v5754
    %6646 = vmatprep.subr.bf16.mxu0 0
    %6647 = vmatpush1.bf16.msra.mxu0 %v5755
    %6648 = vmatprep.subr.bf16.mxu0 0
    %6649 = vmatpush1.bf16.msra.mxu0 %v5756
    %6650 = vmatprep.subr.bf16.mxu0 0
    %6651 = vmatpush1.bf16.msra.mxu0 %v5757
    %6652 = vmatprep.subr.bf16.mxu0 0
    %6653 = vmatpush1.bf16.msra.mxu0 %v5758
    %6654 = vmatprep.mubr.bf16.mxu0 %v4734
    %6655 = vmatmul.mubr.bf16.gmra.mrb[0].mxu0 %v4733
    %v6656 = vpop.f32.mrb[0].mxu0
    %v6657 = vadd.f32 %v6552, %v6656
    %v6658 = vpop.f32.mrb[0].mxu0
    %v6659 = vpop.f32.mrb[0].mxu0
    %v6660 = vadd.f32 %v6555, %v6659
    %v6661 = vpop.f32.mrb[0].mxu0
    %6662 = vmatprep.mubr.bf16.mxu0 %v4750
    %6663 = vmatmul.mubr.bf16.gmra.mrb[0].mxu0 %v4749
    %v6664 = vpop.f32.mrb[0].mxu0
    %v6665 = vadd.f32 %v6560, %v6664
    %v6666 = vpop.f32.mrb[0].mxu0
    %v6667 = vpop.f32.mrb[0].mxu0
    %v6668 = vadd.f32 %v6563, %v6667
    %v6669 = vpop.f32.mrb[0].mxu0
    %6670 = vmatprep.mubr.bf16.mxu0 %v4766
    %6671 = vmatmul.mubr.bf16.gmra.mrb[0].mxu0 %v4765
    %v6672 = vpop.f32.mrb[0].mxu0
    %v6673 = vadd.f32 %v6568, %v6672
    %v6674 = vpop.f32.mrb[0].mxu0
    %v6675 = vpop.f32.mrb[0].mxu0
    %v6676 = vadd.f32 %v6571, %v6675
    %v6677 = vpop.f32.mrb[0].mxu0
    %6678 = vmatprep.mubr.bf16.mxu0 %v4782
    %6679 = vmatmul.mubr.bf16.gmra.mrb[0].mxu0 %v4781
    %v6680 = vpop.f32.mrb[0].mxu0
    %v6681 = vadd.f32 %v6576, %v6680
    %v6682 = vpop.f32.mrb[0].mxu0
    %v6683 = vpop.f32.mrb[0].mxu0
    %v6684 = vadd.f32 %v6579, %v6683
    %v6685 = vpop.f32.mrb[0].mxu0
    %6686 = vmatprep.mubr.bf16.mxu0 %v4798
    %6687 = vmatmul.mubr.bf16.gmra.mrb[0].mxu0 %v4797
    %v6688 = vpop.f32.mrb[0].mxu0
    %v6689 = vadd.f32 %v6584, %v6688
    %v6690 = vpop.f32.mrb[0].mxu0
    %v6691 = vpop.f32.mrb[0].mxu0
    %v6692 = vadd.f32 %v6587, %v6691
    %v6693 = vpop.f32.mrb[0].mxu0
    %6694 = vmatprep.mubr.bf16.mxu0 %v4814
    %6695 = vmatmul.mubr.bf16.gmra.mrb[0].mxu0 %v4813
    %v6696 = vpop.f32.mrb[0].mxu0
    %v6697 = vadd.f32 %v6592, %v6696
    %v6698 = vpop.f32.mrb[0].mxu0
    %v6699 = vpop.f32.mrb[0].mxu0
    %v6700 = vadd.f32 %v6595, %v6699
    %v6701 = vpop.f32.mrb[0].mxu0
    %6702 = vmatprep.mubr.bf16.mxu0 %v4830
    %6703 = vmatmul.mubr.bf16.gmra.mrb[0].mxu0 %v4829
    %v6704 = vpop.f32.mrb[0].mxu0
    %v6705 = vadd.f32 %v6600, %v6704
    %v6706 = vpop.f32.mrb[0].mxu0
    %v6707 = vpop.f32.mrb[0].mxu0
    %v6708 = vadd.f32 %v6603, %v6707
    %v6709 = vpop.f32.mrb[0].mxu0
    %6710 = vmatprep.mubr.bf16.mxu0 %v4846
    %6711 = vmatmul.mubr.bf16.gmra.mrb[0].mxu0 %v4845
    %v6712 = vpop.f32.mrb[0].mxu0
    %v6713 = vadd.f32 %v6608, %v6712
    %v6714 = vpop.f32.mrb[0].mxu0
    %v6715 = vpop.f32.mrb[0].mxu0
    %v6716 = vadd.f32 %v6611, %v6715
    %v6717 = vpop.f32.mrb[0].mxu0
    %6718 = vmatprep.mubr.bf16.mxu0 %v4862
    %6719 = vmatmul.mubr.bf16.gmra.mrb[0].mxu0 %v4861
    %v6720 = vpop.f32.mrb[0].mxu0
    %v6721 = vadd.f32 %v6616, %v6720
    %v6722 = vpop.f32.mrb[0].mxu0
    %v6723 = vpop.f32.mrb[0].mxu0
    %v6724 = vadd.f32 %v6619, %v6723
    %v6725 = vpop.f32.mrb[0].mxu0
    %6726 = vdwg.mxu0
    %v6744 = vrot.slane %v6657, 1
    %v6745 = vrot.slane %v6660, 1
    %v6746 = vsel %vm1589, %v6744, %v6745
    %v6747 = vrot.slane %v6665, 1
    %v6748 = vsel %vm1589, %v6745, %v6747
    %v6749 = vrot.slane %v6668, 1
    %v6750 = vsel %vm1589, %v6747, %v6749
    %v6751 = vrot.slane %v6673, 1
    %v6752 = vsel %vm1589, %v6749, %v6751
    %v6753 = vrot.slane %v6676, 1
    %v6754 = vsel %vm1589, %v6751, %v6753
    %v6755 = vrot.slane %v6681, 1
    %v6756 = vsel %vm1589, %v6753, %v6755
    %v6757 = vrot.slane %v6684, 1
    %v6758 = vsel %vm1589, %v6755, %v6757
    %v6759 = vrot.slane %v6689, 1
    %v6760 = vsel %vm1589, %v6757, %v6759
    %v6761 = vrot.slane %v6692, 1
    %v6762 = vsel %vm1589, %v6759, %v6761
    %v6763 = vrot.slane %v6697, 1
    %v6764 = vsel %vm1589, %v6761, %v6763
    %v6765 = vrot.slane %v6700, 1
    %v6766 = vsel %vm1589, %v6763, %v6765
    %v6767 = vrot.slane %v6705, 1
    %v6768 = vsel %vm1589, %v6765, %v6767
    %v6769 = vrot.slane %v6708, 1
    %v6770 = vsel %vm1589, %v6767, %v6769
    %v6771 = vrot.slane %v6713, 1
    %v6772 = vsel %vm1589, %v6769, %v6771
    %v6773 = vrot.slane %v6716, 1
    %v6774 = vsel %vm1589, %v6771, %v6773
    %v6775 = vrot.slane %v6721, 1
    %v6776 = vsel %vm1589, %v6773, %v6775
    %v6794 = vmax.f32 %v6657, %v6746
    %v6795 = vmax.f32 %v6660, %v6748
    %v6796 = vmax.f32 %v6665, %v6750
    %v6797 = vmax.f32 %v6668, %v6752
    %v6798 = vmax.f32 %v6673, %v6754
    %v6799 = vmax.f32 %v6676, %v6756
    %v6800 = vmax.f32 %v6681, %v6758
    %v6801 = vmax.f32 %v6684, %v6760
    %v6802 = vmax.f32 %v6689, %v6762
    %v6803 = vmax.f32 %v6692, %v6764
    %v6804 = vmax.f32 %v6697, %v6766
    %v6805 = vmax.f32 %v6700, %v6768
    %v6806 = vmax.f32 %v6705, %v6770
    %v6807 = vmax.f32 %v6708, %v6772
    %v6808 = vmax.f32 %v6713, %v6774
    %v6809 = vmax.f32 %v6716, %v6776
    %v6810 = vmax.f32 %v6721, %v6775
    %v6812 = vrot.slane %v6724, 1
    %v6813 = vsel %vm1589, %v6775, %v6812
    %v6816 = vmax.f32 %v6721, %v6813
    %v6817 = vmax.f32 %v6724, %v6812
    %v6835 = vrot.slane %v6795, 1
    %v6836 = vrot.slane %v6796, 1
    %v6837 = vsel %vm1589, %v6835, %v6836
    %v6838 = vrot.slane %v6797, 1
    %v6839 = vsel %vm1589, %v6836, %v6838
    %v6840 = vrot.slane %v6798, 1
    %v6841 = vsel %vm1589, %v6838, %v6840
    %v6842 = vrot.slane %v6799, 1
    %v6843 = vsel %vm1589, %v6840, %v6842
    %v6844 = vrot.slane %v6800, 1
    %v6845 = vsel %vm1589, %v6842, %v6844
    %v6846 = vrot.slane %v6801, 1
    %v6847 = vsel %vm1589, %v6844, %v6846
    %v6848 = vrot.slane %v6802, 1
    %v6849 = vsel %vm1589, %v6846, %v6848
    %v6850 = vrot.slane %v6803, 1
    %v6851 = vsel %vm1589, %v6848, %v6850
    %v6852 = vrot.slane %v6804, 1
    %v6853 = vsel %vm1589, %v6850, %v6852
    %v6854 = vrot.slane %v6805, 1
    %v6855 = vsel %vm1589, %v6852, %v6854
    %v6856 = vrot.slane %v6806, 1
    %v6857 = vsel %vm1589, %v6854, %v6856
    %v6858 = vrot.slane %v6807, 1
    %v6859 = vsel %vm1589, %v6856, %v6858
    %v6860 = vrot.slane %v6808, 1
    %v6861 = vsel %vm1589, %v6858, %v6860
    %v6862 = vrot.slane %v6809, 1
    %v6863 = vsel %vm1589, %v6860, %v6862
    %v6864 = vrot.slane %v6816, 1
    %v6865 = vsel %vm1589, %v6862, %v6864
    %v6866 = vrot.slane %v6817, 1
    %v6867 = vsel %vm1589, %v6864, %v6866
    %v6885 = vmax.f32 %v6794, %v6837
    %v6886 = vmax.f32 %v6795, %v6839
    %v6887 = vmax.f32 %v6796, %v6841
    %v6888 = vmax.f32 %v6797, %v6843
    %v6889 = vmax.f32 %v6798, %v6845
    %v6890 = vmax.f32 %v6799, %v6847
    %v6891 = vmax.f32 %v6800, %v6849
    %v6892 = vmax.f32 %v6801, %v6851
    %v6893 = vmax.f32 %v6802, %v6853
    %v6894 = vmax.f32 %v6803, %v6855
    %v6895 = vmax.f32 %v6804, %v6857
    %v6896 = vmax.f32 %v6805, %v6859
    %v6897 = vmax.f32 %v6806, %v6861
    %v6898 = vmax.f32 %v6807, %v6863
    %v6899 = vmax.f32 %v6808, %v6865
    %v6900 = vmax.f32 %v6809, %v6867
    %v6901 = vmax.f32 %v6810, %v6866
    %vm6902 = vcmask 261120
    %6903 = vst.msk [vmem:[#allocation4] sm:$0xff] %vm6902, %v6885
    %6904 = vst.msk [vmem:[#allocation4 + $0x8] sm:$0xff] %vm6902, %v6886
    %6905 = vst.msk [vmem:[#allocation4 + $0x10] sm:$0xff] %vm6902, %v6887
    %6906 = vst.msk [vmem:[#allocation4 + $0x18] sm:$0xff] %vm6902, %v6888
    %6907 = vst.msk [vmem:[#allocation4 + $0x20] sm:$0xff] %vm6902, %v6889
    %6908 = vst.msk [vmem:[#allocation4 + $0x28] sm:$0xff] %vm6902, %v6890
    %6909 = vst.msk [vmem:[#allocation4 + $0x30] sm:$0xff] %vm6902, %v6891
    %6910 = vst.msk [vmem:[#allocation4 + $0x38] sm:$0xff] %vm6902, %v6892
    %6911 = vst.msk [vmem:[#allocation4 + $0x40] sm:$0xff] %vm6902, %v6893
    %6912 = vst.msk [vmem:[#allocation4 + $0x48] sm:$0xff] %vm6902, %v6894
    %6913 = vst.msk [vmem:[#allocation4 + $0x50] sm:$0xff] %vm6902, %v6895
    %6914 = vst.msk [vmem:[#allocation4 + $0x58] sm:$0xff] %vm6902, %v6896
    %6915 = vst.msk [vmem:[#allocation4 + $0x60] sm:$0xff] %vm6902, %v6897
    %6916 = vst.msk [vmem:[#allocation4 + $0x68] sm:$0xff] %vm6902, %v6898
    %6917 = vst.msk [vmem:[#allocation4 + $0x70] sm:$0xff] %vm6902, %v6899
    %6918 = vst.msk [vmem:[#allocation4 + $0x78] sm:$0xff] %vm6902, %v6900
    %vm6919 = vcmask 253952
    %6920 = vst.msk [vmem:[#allocation4 + $0x80] sm:$0x1] %vm6919, %v6901
    %v6921 = vld [vmem:[%s6] sm:$0x1]
    %v6922 = vld [vmem:[#allocation4] ss:$2 sm:$0x7]
    %v6924 = vlaneseq
    %v6925 = vshrl.u32 %v6924, 7
    %v6926 = vsub.s32 0, %v6925
    %v6927 = vrot.slane %v6921, %v6926
    %v6929 = vadd.f32 %v6922, %v6927
    %v6930 = vmax.f32 %v6929, 0.0
    %6931 = vst.msk [vmem:[#allocation9] sm:$0x1] %vm6919, %v6930
    %v6934 = vunpack.c.l.s4 1983009808
    %v6935 = vunpack.c.0.s8 %v6934
    %v6936 = vlaneseq
    %v6937 = vshrl.u32 %v6936, 7
    %v6938 = vsub.s32 %v6935, %v6937
    %v6939 = vrot.slane %v6930, %v6938
    %v6940 = vrot.slane %v6939, 7
    %v6941 = vrot.slane %v6940, 2
    %6942 = vrot.lane.b32.xlu0 %v6941, 32
    %v6943 = vpop.permute.xlu0 %6942
    %vm6945 = vcmask 516352
    %6946 = vst.msk [vmem:[#allocation9] sm:$0x1] %vm6945, %v6943
    %v6947 = vcombine.high %v6939, %v6939
    %6948 = vrot.lane.b32.xlu0 %v6947, 64
    %v6949 = vpop.permute.xlu0 %6948
    %vm6951 = vcmask 778752
    %6952 = vst.msk [vmem:[#allocation9] sm:$0x1] %vm6951, %v6949
    %s6953 = scalar_lea.vmem [#allocation4], 18
    %v6954 = vld [vmem:[%s6953] ss:$2 sm:$0x7]
    %v6955 = vadd.f32 %v6954, %v6927
    %v6956 = vmax.f32 %v6955, 0.0
    %v6959 = vunpack.c.l.s4 1983009808
    %v6960 = vunpack.c.0.s8 %v6959
    %v6961 = vlaneseq
    %v6962 = vshrl.u32 %v6961, 7
    %v6963 = vsub.s32 %v6960, %v6962
    %v6964 = vrot.slane %v6956, %v6963
    %6965 = vrot.lane.b32.xlu0 %v6964, 96
    %v6966 = vpop.permute.xlu0 %6965
    %vm6968 = vcmask 1041152
    %6969 = vst.msk [vmem:[#allocation9] sm:$0x1] %vm6968, %v6966
    %v6970 = vrot.slane %v6964, 7
    %v6971 = vrot.slane %v6970, 2
    %6973 = vst.msk [vmem:[#allocation9 + $0x2] sm:$0x1] %vm6919, %v6971
    %v6974 = vcombine.high %v6964, %v6964
    %6975 = vrot.lane.b32.xlu0 %v6974, 32
    %v6976 = vpop.permute.xlu0 %6975
    %6978 = vst.msk [vmem:[#allocation9 + $0x2] sm:$0x1] %vm6945, %v6976
    %s6979 = scalar_lea.vmem [#allocation4], 36
    %v6980 = vld [vmem:[%s6979] ss:$2 sm:$0x7]
    %v6981 = vadd.f32 %v6980, %v6927
    %v6982 = vmax.f32 %v6981, 0.0
    %v6985 = vunpack.c.l.s4 1983009808
    %v6986 = vunpack.c.0.s8 %v6985
    %v6987 = vlaneseq
    %v6988 = vshrl.u32 %v6987, 7
    %v6989 = vsub.s32 %v6986, %v6988
    %v6990 = vrot.slane %v6982, %v6989
    %6991 = vrot.lane.b32.xlu0 %v6990, 64
    %v6992 = vpop.permute.xlu0 %6991
    %6994 = vst.msk [vmem:[#allocation9 + $0x2] sm:$0x1] %vm6951, %v6992
    %v6995 = vrot.slane %v6990, 7
    %v6996 = vrot.slane %v6995, 2
    %6997 = vrot.lane.b32.xlu0 %v6996, 96
    %v6998 = vpop.permute.xlu0 %6997
    %7000 = vst.msk [vmem:[#allocation9 + $0x2] sm:$0x1] %vm6968, %v6998
    %v7001 = vcombine.high %v6990, %v6990
    %7003 = vst.msk [vmem:[#allocation9 + $0x4] sm:$0x1] %vm6919, %v7001
    %s7004 = scalar_lea.vmem [#allocation4], 88
    %v7005 = vld [vmem:[%s7004] ss:$2 sm:$0x7]
    %v7006 = vadd.f32 %v7005, %v6927
    %v7007 = vmax.f32 %v7006, 0.0
    %7008 = vst.msk [vmem:[#allocation9 + $0x1] sm:$0x1] %vm6919, %v7007
    %v7011 = vunpack.c.l.s4 1983009808
    %v7012 = vunpack.c.0.s8 %v7011
    %v7013 = vlaneseq
    %v7014 = vshrl.u32 %v7013, 7
    %v7015 = vsub.s32 %v7012, %v7014
    %v7016 = vrot.slane %v7007, %v7015
    %v7017 = vrot.slane %v7016, 7
    %v7018 = vrot.slane %v7017, 2
    %7019 = vrot.lane.b32.xlu0 %v7018, 32
    %v7020 = vpop.permute.xlu0 %7019
    %7022 = vst.msk [vmem:[#allocation9 + $0x1] sm:$0x1] %vm6945, %v7020
    %v7023 = vcombine.high %v7016, %v7016
    %7024 = vrot.lane.b32.xlu0 %v7023, 64
    %v7025 = vpop.permute.xlu0 %7024
    %7027 = vst.msk [vmem:[#allocation9 + $0x1] sm:$0x1] %vm6951, %v7025
    %s7028 = scalar_lea.vmem [#allocation4], 106
    %v7029 = vld [vmem:[%s7028] ss:$2 sm:$0x7]
    %v7030 = vadd.f32 %v7029, %v6927
    %v7031 = vmax.f32 %v7030, 0.0
    %v7034 = vunpack.c.l.s4 1983009808
    %v7035 = vunpack.c.0.s8 %v7034
    %v7036 = vlaneseq
    %v7037 = vshrl.u32 %v7036, 7
    %v7038 = vsub.s32 %v7035, %v7037
    %v7039 = vrot.slane %v7031, %v7038
    %7040 = vrot.lane.b32.xlu0 %v7039, 96
    %v7041 = vpop.permute.xlu0 %7040
    %7043 = vst.msk [vmem:[#allocation9 + $0x1] sm:$0x1] %vm6968, %v7041
    %v7044 = vrot.slane %v7039, 7
    %v7045 = vrot.slane %v7044, 2
    %7047 = vst.msk [vmem:[#allocation9 + $0x3] sm:$0x1] %vm6919, %v7045
    %v7048 = vcombine.high %v7039, %v7039
    %7049 = vrot.lane.b32.xlu0 %v7048, 32
    %v7050 = vpop.permute.xlu0 %7049
    %7052 = vst.msk [vmem:[#allocation9 + $0x3] sm:$0x1] %vm6945, %v7050
    %s7053 = scalar_lea.vmem [#allocation4], 124
    %v7054 = vld [vmem:[%s7053] ss:$2 sm:$0x7]
    %v7055 = vadd.f32 %v7054, %v6927
    %v7056 = vmax.f32 %v7055, 0.0
    %v7059 = vunpack.c.l.s4 1983009808
    %v7060 = vunpack.c.0.s8 %v7059
    %v7061 = vlaneseq
    %v7062 = vshrl.u32 %v7061, 7
    %v7063 = vsub.s32 %v7060, %v7062
    %v7064 = vrot.slane %v7056, %v7063
    %7065 = vrot.lane.b32.xlu0 %v7064, 64
    %v7066 = vpop.permute.xlu0 %7065
    %7068 = vst.msk [vmem:[#allocation9 + $0x3] sm:$0x1] %vm6951, %v7066
    %v7069 = vrot.slane %v7064, 7
    %v7070 = vrot.slane %v7069, 2
    %7071 = vrot.lane.b32.xlu0 %v7070, 96
    %v7072 = vpop.permute.xlu0 %7071
    %7074 = vst.msk [vmem:[#allocation9 + $0x3] sm:$0x1] %vm6968, %v7072
    %v7075 = vcombine.high %v7064, %v7064
    %7077 = vst.msk [vmem:[#allocation9 + $0x5] sm:$0x1] %vm6919, %v7075
    %v7078 = vld [vmem:[#allocation9] sm:$0x3f]
    %v7080 = vcombine.high %v7078, %v7078
    %v7082 = vunpack.c.l.s4 1983009808
    %v7083 = vunpack.c.0.s8 %v7082
    %v7084 = vlaneseq
    %v7085 = vshrl.u32 %v7084, 7
    %v7086 = vsub.s32 %v7083, %v7085
    %v7087 = vrot.slane %v7078, %v7086
    %v7089 = vunpack.c.l.s4 1983009808
    %v7090 = vunpack.c.0.s8 %v7089
    %v7091 = vlaneseq
    %v7092 = vshrl.u32 %v7091, 7
    %v7093 = vsub.s32 %v7090, %v7092
    %v7094 = vrot.slane %v7080, %v7093
    %v7095 = vcombine.high %v7087, %v7087
    %v7099 = vpack.c.bf16 %v7087, %v7087
    %v7100 = vpack.c.bf16 %v7095, %v7095
    %v7101 = vpack.c.bf16 %v7094, %v7094
    %v7102 = vld [vmem:[%s7] sm:$0xff]
    %v7103 = vld [vmem:[%s7 + $0x8] sm:$0xff]
    %v7104 = vld [vmem:[%s7 + $0x10] sm:$0xff]
    %v7105 = vld [vmem:[%s7 + $0x18] sm:$0xff]
    %v7106 = vld [vmem:[%s7 + $0x20] sm:$0xff]
    %v7107 = vld [vmem:[%s7 + $0x28] sm:$0xff]
    %v7108 = vld [vmem:[%s7 + $0x30] sm:$0xff]
    %v7109 = vld [vmem:[%s7 + $0x38] sm:$0xff]
    %v7110 = vld [vmem:[%s7 + $0x40] sm:$0xff]
    %v7111 = vld [vmem:[%s7 + $0x48] sm:$0xff]
    %v7112 = vld [vmem:[%s7 + $0x50] sm:$0xff]
    %v7113 = vld [vmem:[%s7 + $0x58] sm:$0xff]
    %v7114 = vld [vmem:[%s7 + $0x60] sm:$0xff]
    %v7115 = vld [vmem:[%s7 + $0x68] sm:$0xff]
    %v7116 = vld [vmem:[%s7 + $0x70] sm:$0xff]
    %v7117 = vld [vmem:[%s7 + $0x78] sm:$0xff]
    %v7118 = vld [vmem:[%s7 + $0x80] sm:$0xff]
    %v7119 = vld [vmem:[%s7 + $0x88] sm:$0xff]
    %v7120 = vld [vmem:[%s7 + $0x90] sm:$0xff]
    %v7121 = vld [vmem:[%s7 + $0x98] sm:$0xff]
    %v7122 = vld [vmem:[%s7 + $0xa0] sm:$0xff]
    %v7123 = vld [vmem:[%s7 + $0xa8] sm:$0xff]
    %v7124 = vld [vmem:[%s7 + $0xb0] sm:$0xff]
    %v7125 = vld [vmem:[%s7 + $0xb8] sm:$0xff]
    %v7126 = vld [vmem:[%s7 + $0xc0] sm:$0xff]
    %v7127 = vld [vmem:[%s7 + $0xc8] sm:$0xff]
    %v7128 = vld [vmem:[%s7 + $0xd0] sm:$0xff]
    %v7129 = vld [vmem:[%s7 + $0xd8] sm:$0xff]
    %v7130 = vld [vmem:[%s7 + $0xe0] sm:$0xff]
    %v7131 = vld [vmem:[%s7 + $0xe8] sm:$0xff]
    %v7132 = vld [vmem:[%s7 + $0xf0] sm:$0xff]
    %v7133 = vld [vmem:[%s7 + $0xf8] sm:$0xff]
    %v7134 = vld [vmem:[%s7 + $0x100] sm:$0xff]
    %v7135 = vld [vmem:[%s7 + $0x108] sm:$0xff]
    %v7136 = vld [vmem:[%s7 + $0x110] sm:$0xff]
    %v7137 = vld [vmem:[%s7 + $0x118] sm:$0xff]
    %v7138 = vld [vmem:[%s8] sm:$0x3]
    %v7140 = vlaneseq
    %v7141 = vshrl.u32 %v7140, 7
    %v7142 = vsub.s32 0, %v7141
    %v7143 = vrot.slane %v7138, %v7142
    %v7144 = vlaneseq
    %v7145 = vshrl.u32 %v7144, 7
    %v7146 = vsub.s32 1, %v7145
    %v7147 = vrot.slane %v7138, %v7146
    %v7186 = vunpack.c.l.b16 %v7102
    %v7187 = vunpack.c.h.b16 %v7102
    %v7188 = vunpack.c.l.b16 %v7103
    %v7189 = vunpack.c.h.b16 %v7103
    %v7190 = vunpack.c.l.b16 %v7104
    %v7191 = vunpack.c.h.b16 %v7104
    %v7192 = vunpack.c.l.b16 %v7105
    %v7193 = vunpack.c.h.b16 %v7105
    %v7194 = vunpack.c.l.b16 %v7106
    %v7195 = vunpack.c.h.b16 %v7106
    %v7196 = vunpack.c.l.b16 %v7107
    %v7197 = vunpack.c.h.b16 %v7107
    %v7198 = vunpack.c.l.b16 %v7108
    %v7199 = vunpack.c.h.b16 %v7108
    %v7200 = vunpack.c.l.b16 %v7109
    %v7201 = vunpack.c.h.b16 %v7109
    %v7202 = vunpack.c.l.b16 %v7110
    %v7203 = vunpack.c.h.b16 %v7110
    %v7204 = vunpack.c.l.b16 %v7111
    %v7205 = vunpack.c.h.b16 %v7111
    %v7206 = vunpack.c.l.b16 %v7112
    %v7207 = vunpack.c.h.b16 %v7112
    %v7208 = vunpack.c.l.b16 %v7113
    %v7209 = vunpack.c.h.b16 %v7113
    %v7210 = vunpack.c.l.b16 %v7114
    %v7211 = vunpack.c.h.b16 %v7114
    %v7212 = vunpack.c.l.b16 %v7115
    %v7213 = vunpack.c.h.b16 %v7115
    %v7214 = vunpack.c.l.b16 %v7116
    %v7215 = vunpack.c.h.b16 %v7116
    %v7216 = vunpack.c.l.b16 %v7117
    %v7217 = vunpack.c.h.b16 %v7117
    %v7218 = vunpack.c.l.b16 %v7118
    %v7219 = vunpack.c.h.b16 %v7118
    %v7220 = vunpack.c.l.b16 %v7119
    %v7221 = vunpack.c.h.b16 %v7119
    %v7222 = vunpack.c.l.b16 %v7120
    %v7223 = vunpack.c.h.b16 %v7120
    %v7224 = vunpack.c.l.b16 %v7121
    %v7225 = vunpack.c.h.b16 %v7121
    %v7226 = vunpack.c.l.b16 %v7122
    %v7227 = vunpack.c.h.b16 %v7122
    %v7228 = vunpack.c.l.b16 %v7123
    %v7229 = vunpack.c.h.b16 %v7123
    %v7230 = vunpack.c.l.b16 %v7124
    %v7231 = vunpack.c.h.b16 %v7124
    %v7232 = vunpack.c.l.b16 %v7125
    %v7233 = vunpack.c.h.b16 %v7125
    %v7234 = vunpack.c.l.b16 %v7126
    %v7235 = vunpack.c.h.b16 %v7126
    %v7236 = vunpack.c.l.b16 %v7127
    %v7237 = vunpack.c.h.b16 %v7127
    %v7238 = vunpack.c.l.b16 %v7128
    %v7239 = vunpack.c.h.b16 %v7128
    %v7240 = vunpack.c.l.b16 %v7129
    %v7241 = vunpack.c.h.b16 %v7129
    %v7242 = vunpack.c.l.b16 %v7130
    %v7243 = vunpack.c.h.b16 %v7130
    %v7244 = vunpack.c.l.b16 %v7131
    %v7245 = vunpack.c.h.b16 %v7131
    %v7246 = vunpack.c.l.b16 %v7132
    %v7247 = vunpack.c.h.b16 %v7132
    %v7248 = vunpack.c.l.b16 %v7133
    %v7249 = vunpack.c.h.b16 %v7133
    %v7250 = vunpack.c.l.b16 %v7134
    %v7251 = vunpack.c.h.b16 %v7134
    %v7252 = vunpack.c.l.b16 %v7135
    %v7253 = vunpack.c.h.b16 %v7135
    %v7254 = vunpack.c.l.b16 %v7136
    %v7255 = vunpack.c.h.b16 %v7136
    %v7256 = vunpack.c.l.b16 %v7137
    %v7257 = vunpack.c.h.b16 %v7137
    %v7258 = vpack.c.b16 %v7188, %v7186
    %v7259 = vpack.c.b16 %v7189, %v7187
    %v7260 = vpack.c.b16 %v7192, %v7190
    %v7261 = vpack.c.b16 %v7193, %v7191
    %v7262 = vpack.c.b16 %v7196, %v7194
    %v7263 = vpack.c.b16 %v7197, %v7195
    %v7264 = vpack.c.b16 %v7200, %v7198
    %v7265 = vpack.c.b16 %v7201, %v7199
    %v7266 = vpack.c.b16 %v7204, %v7202
    %v7267 = vpack.c.b16 %v7205, %v7203
    %v7268 = vpack.c.b16 %v7208, %v7206
    %v7269 = vpack.c.b16 %v7209, %v7207
    %v7270 = vpack.c.b16 %v7212, %v7210
    %v7271 = vpack.c.b16 %v7213, %v7211
    %v7272 = vpack.c.b16 %v7216, %v7214
    %v7273 = vpack.c.b16 %v7217, %v7215
    %v7274 = vpack.c.b16 %v7220, %v7218
    %v7275 = vpack.c.b16 %v7221, %v7219
    %v7276 = vpack.c.b16 %v7224, %v7222
    %v7277 = vpack.c.b16 %v7225, %v7223
    %v7278 = vpack.c.b16 %v7228, %v7226
    %v7279 = vpack.c.b16 %v7229, %v7227
    %v7280 = vpack.c.b16 %v7232, %v7230
    %v7281 = vpack.c.b16 %v7233, %v7231
    %v7282 = vpack.c.b16 %v7236, %v7234
    %v7283 = vpack.c.b16 %v7237, %v7235
    %v7284 = vpack.c.b16 %v7240, %v7238
    %v7285 = vpack.c.b16 %v7241, %v7239
    %v7286 = vpack.c.b16 %v7244, %v7242
    %v7287 = vpack.c.b16 %v7245, %v7243
    %v7288 = vpack.c.b16 %v7248, %v7246
    %v7289 = vpack.c.b16 %v7249, %v7247
    %v7290 = vpack.c.b16 %v7252, %v7250
    %v7291 = vpack.c.b16 %v7253, %v7251
    %v7292 = vpack.c.b16 %v7256, %v7254
    %v7293 = vpack.c.b16 %v7257, %v7255
    %v7331 = vsel %vm6902, %v7101, 0
    %7333 = vmatprep.subr.bf16.mxu0 %v7259
    %7334 = vmatpush1.bf16.msra.mxu0 %v7258
    %7335 = vmatprep.subr.bf16.mxu0 %v7261
    %7336 = vmatpush1.bf16.msra.mxu0 %v7260
    %7337 = vmatprep.subr.bf16.mxu0 %v7263
    %7338 = vmatpush1.bf16.msra.mxu0 %v7262
    %7339 = vmatprep.subr.bf16.mxu0 %v7265
    %7340 = vmatpush1.bf16.msra.mxu0 %v7264
    %7341 = vmatprep.subr.bf16.mxu0 %v7267
    %7342 = vmatpush1.bf16.msra.mxu0 %v7266
    %7343 = vmatprep.subr.bf16.mxu0 %v7269
    %7344 = vmatpush1.bf16.msra.mxu0 %v7268
    %7345 = vmatprep.subr.bf16.mxu0 %v7271
    %7346 = vmatpush1.bf16.msra.mxu0 %v7270
    %7347 = vmatprep.subr.bf16.mxu0 %v7273
    %7348 = vmatpush1.bf16.msra.mxu0 %v7272
    %7349 = vmatprep.subr.bf16.mxu0 %v7275
    %7350 = vmatpush1.bf16.msra.mxu0 %v7274
    %7351 = vmatprep.subr.bf16.mxu0 %v7277
    %7352 = vmatpush1.bf16.msra.mxu0 %v7276
    %7353 = vmatprep.subr.bf16.mxu0 %v7279
    %7354 = vmatpush1.bf16.msra.mxu0 %v7278
    %7355 = vmatprep.subr.bf16.mxu0 %v7281
    %7356 = vmatpush1.bf16.msra.mxu0 %v7280
    %7357 = vmatprep.subr.bf16.mxu0 %v7283
    %7358 = vmatpush1.bf16.msra.mxu0 %v7282
    %7359 = vmatprep.subr.bf16.mxu0 %v7285
    %7360 = vmatpush1.bf16.msra.mxu0 %v7284
    %7361 = vmatprep.subr.bf16.mxu0 %v7287
    %7362 = vmatpush1.bf16.msra.mxu0 %v7286
    %7363 = vmatprep.subr.bf16.mxu0 %v7289
    %7364 = vmatpush1.bf16.msra.mxu0 %v7288
    %7365 = vmatprep.mubr.bf16.mxu0 %v7100
    %7366 = vmatmul.mubr.bf16.gmra.mrb[0].mxu0 %v7099
    %v7367 = vpop.f32.mrb[0].mxu0
    %v7368 = vadd.f32 %v7143, %v7367
    %v7369 = vpop.f32.mrb[0].mxu0
    %v7370 = vadd.f32 %v7147, %v7369
    %v7371 = vpop.f32.mrb[0].mxu0
    %v7372 = vpop.f32.mrb[0].mxu0
    %7373 = vdwg.mxu0
    %7374 = vmatprep.subr.bf16.mxu0 %v7291
    %7375 = vmatpush1.bf16.msra.mxu0 %v7290
    %7376 = vmatprep.subr.bf16.mxu0 %v7293
    %7377 = vmatpush1.bf16.msra.mxu0 %v7292
    %7378 = vmatprep.subr.bf16.mxu0 0
    %7379 = vmatpush1.bf16.msra.mxu0 0
    %7380 = vmatprep.subr.bf16.mxu0 0
    %7381 = vmatpush1.bf16.msra.mxu0 0
    %7382 = vmatprep.subr.bf16.mxu0 0
    %7383 = vmatpush1.bf16.msra.mxu0 0
    %7384 = vmatprep.subr.bf16.mxu0 0
    %7385 = vmatpush1.bf16.msra.mxu0 0
    %7386 = vmatprep.subr.bf16.mxu0 0
    %7387 = vmatpush1.bf16.msra.mxu0 0
    %7388 = vmatprep.subr.bf16.mxu0 0
    %7389 = vmatpush1.bf16.msra.mxu0 0
    %7390 = vmatprep.subr.bf16.mxu0 0
    %7391 = vmatpush1.bf16.msra.mxu0 0
    %7392 = vmatprep.subr.bf16.mxu0 0
    %7393 = vmatpush1.bf16.msra.mxu0 0
    %7394 = vmatprep.subr.bf16.mxu0 0
    %7395 = vmatpush1.bf16.msra.mxu0 0
    %7396 = vmatprep.subr.bf16.mxu0 0
    %7397 = vmatpush1.bf16.msra.mxu0 0
    %7398 = vmatprep.subr.bf16.mxu0 0
    %7399 = vmatpush1.bf16.msra.mxu0 0
    %7400 = vmatprep.subr.bf16.mxu0 0
    %7401 = vmatpush1.bf16.msra.mxu0 0
    %7402 = vmatprep.subr.bf16.mxu0 0
    %7403 = vmatpush1.bf16.msra.mxu0 0
    %7404 = vmatprep.subr.bf16.mxu0 0
    %7405 = vmatpush1.bf16.msra.mxu0 0
    %7406 = vmatprep.mubr.bf16.mxu0 0
    %7407 = vmatmul.mubr.bf16.gmra.mrb[0].mxu0 %v7331
    %v7408 = vpop.f32.mrb[0].mxu0
    %v7409 = vadd.f32 %v7368, %v7408
    %v7410 = vpop.f32.mrb[0].mxu0
    %v7411 = vadd.f32 %v7370, %v7410
    %v7412 = vpop.f32.mrb[0].mxu0
    %v7413 = vpop.f32.mrb[0].mxu0
    %7414 = vdwg.mxu0
    %v7415 = vmax.f32 %v7409, 0.0
    %v7416 = vmax.f32 %v7411, 0.0
    %v7417 = vpack.c.bf16 %v7415, %v7415
    %v7418 = vpack.c.bf16 %v7416, %v7416
    %v7419 = vld [vmem:[%s9] sm:$0xf]
    %v7420 = vld [vmem:[%s9 + $0x4] sm:$0xf]
    %v7421 = vld [vmem:[%s9 + $0x8] sm:$0xf]
    %v7422 = vld [vmem:[%s9 + $0xc] sm:$0xf]
    %v7423 = vld [vmem:[%s9 + $0x10] sm:$0xf]
    %v7424 = vld [vmem:[%s9 + $0x14] sm:$0xf]
    %v7425 = vld [vmem:[%s9 + $0x18] sm:$0xf]
    %v7426 = vld [vmem:[%s9 + $0x1c] sm:$0xf]
    %v7427 = vld [vmem:[%s9 + $0x20] sm:$0xf]
    %v7428 = vld [vmem:[%s9 + $0x24] sm:$0xf]
    %v7429 = vld [vmem:[%s9 + $0x28] sm:$0xf]
    %v7430 = vld [vmem:[%s9 + $0x2c] sm:$0xf]
    %v7431 = vld [vmem:[%s9 + $0x30] sm:$0xf]
    %v7432 = vld [vmem:[%s9 + $0x34] sm:$0xf]
    %v7433 = vld [vmem:[%s9 + $0x38] sm:$0xf]
    %v7434 = vld [vmem:[%s9 + $0x3c] sm:$0xf]
    %v7435 = vld [vmem:[%s9 + $0x40] sm:$0xf]
    %v7436 = vld [vmem:[%s9 + $0x44] sm:$0xf]
    %v7437 = vld [vmem:[%s9 + $0x48] sm:$0xf]
    %v7438 = vld [vmem:[%s9 + $0x4c] sm:$0xf]
    %v7439 = vld [vmem:[%s9 + $0x50] sm:$0xf]
    %v7440 = vld [vmem:[%s9 + $0x54] sm:$0xf]
    %v7441 = vld [vmem:[%s9 + $0x58] sm:$0xf]
    %v7442 = vld [vmem:[%s9 + $0x5c] sm:$0xf]
    %v7443 = vld [vmem:[%s9 + $0x60] sm:$0xf]
    %v7444 = vld [vmem:[%s9 + $0x64] sm:$0xf]
    %v7445 = vld [vmem:[%s9 + $0x68] sm:$0xf]
    %v7446 = vld [vmem:[%s9 + $0x6c] sm:$0xf]
    %v7447 = vld [vmem:[%s9 + $0x70] sm:$0xf]
    %v7448 = vld [vmem:[%s9 + $0x74] sm:$0xf]
    %v7449 = vld [vmem:[%s9 + $0x78] sm:$0xf]
    %v7450 = vld [vmem:[%s9 + $0x7c] sm:$0xf]
    %v7451 = vld [vmem:[%s10] sm:$0x1]
    %v7453 = vlaneseq
    %v7454 = vshrl.u32 %v7453, 7
    %v7455 = vsub.s32 0, %v7454
    %v7456 = vrot.slane %v7451, %v7455
    %v7490 = vunpack.c.l.b16 %v7419
    %v7491 = vunpack.c.l.b16 %v7420
    %v7492 = vunpack.c.l.b16 %v7421
    %v7493 = vunpack.c.l.b16 %v7422
    %v7494 = vunpack.c.l.b16 %v7423
    %v7495 = vunpack.c.l.b16 %v7424
    %v7496 = vunpack.c.l.b16 %v7425
    %v7497 = vunpack.c.l.b16 %v7426
    %v7498 = vunpack.c.l.b16 %v7427
    %v7499 = vunpack.c.l.b16 %v7428
    %v7500 = vunpack.c.l.b16 %v7429
    %v7501 = vunpack.c.l.b16 %v7430
    %v7502 = vunpack.c.l.b16 %v7431
    %v7503 = vunpack.c.l.b16 %v7432
    %v7504 = vunpack.c.l.b16 %v7433
    %v7505 = vunpack.c.l.b16 %v7434
    %v7506 = vunpack.c.l.b16 %v7435
    %v7507 = vunpack.c.l.b16 %v7436
    %v7508 = vunpack.c.l.b16 %v7437
    %v7509 = vunpack.c.l.b16 %v7438
    %v7510 = vunpack.c.l.b16 %v7439
    %v7511 = vunpack.c.l.b16 %v7440
    %v7512 = vunpack.c.l.b16 %v7441
    %v7513 = vunpack.c.l.b16 %v7442
    %v7514 = vunpack.c.l.b16 %v7443
    %v7515 = vunpack.c.l.b16 %v7444
    %v7516 = vunpack.c.l.b16 %v7445
    %v7517 = vunpack.c.l.b16 %v7446
    %v7518 = vunpack.c.l.b16 %v7447
    %v7519 = vunpack.c.l.b16 %v7448
    %v7520 = vunpack.c.l.b16 %v7449
    %v7521 = vunpack.c.l.b16 %v7450
    %v7522 = vpack.c.b16 %v7491, %v7490
    %v7523 = vpack.c.b16 %v7493, %v7492
    %v7524 = vpack.c.b16 %v7495, %v7494
    %v7525 = vpack.c.b16 %v7497, %v7496
    %v7526 = vpack.c.b16 %v7499, %v7498
    %v7527 = vpack.c.b16 %v7501, %v7500
    %v7528 = vpack.c.b16 %v7503, %v7502
    %v7529 = vpack.c.b16 %v7505, %v7504
    %v7530 = vpack.c.b16 %v7507, %v7506
    %v7531 = vpack.c.b16 %v7509, %v7508
    %v7532 = vpack.c.b16 %v7511, %v7510
    %v7533 = vpack.c.b16 %v7513, %v7512
    %v7534 = vpack.c.b16 %v7515, %v7514
    %v7535 = vpack.c.b16 %v7517, %v7516
    %v7536 = vpack.c.b16 %v7519, %v7518
    %v7537 = vpack.c.b16 %v7521, %v7520
    %7554 = vmatprep.subr.bf16.mxu0 0
    %7555 = vmatpush1.bf16.msra.mxu0 %v7522
    %7556 = vmatprep.subr.bf16.mxu0 0
    %7557 = vmatpush1.bf16.msra.mxu0 %v7523
    %7558 = vmatprep.subr.bf16.mxu0 0
    %7559 = vmatpush1.bf16.msra.mxu0 %v7524
    %7560 = vmatprep.subr.bf16.mxu0 0
    %7561 = vmatpush1.bf16.msra.mxu0 %v7525
    %7562 = vmatprep.subr.bf16.mxu0 0
    %7563 = vmatpush1.bf16.msra.mxu0 %v7526
    %7564 = vmatprep.subr.bf16.mxu0 0
    %7565 = vmatpush1.bf16.msra.mxu0 %v7527
    %7566 = vmatprep.subr.bf16.mxu0 0
    %7567 = vmatpush1.bf16.msra.mxu0 %v7528
    %7568 = vmatprep.subr.bf16.mxu0 0
    %7569 = vmatpush1.bf16.msra.mxu0 %v7529
    %7570 = vmatprep.subr.bf16.mxu0 0
    %7571 = vmatpush1.bf16.msra.mxu0 %v7530
    %7572 = vmatprep.subr.bf16.mxu0 0
    %7573 = vmatpush1.bf16.msra.mxu0 %v7531
    %7574 = vmatprep.subr.bf16.mxu0 0
    %7575 = vmatpush1.bf16.msra.mxu0 %v7532
    %7576 = vmatprep.subr.bf16.mxu0 0
    %7577 = vmatpush1.bf16.msra.mxu0 %v7533
    %7578 = vmatprep.subr.bf16.mxu0 0
    %7579 = vmatpush1.bf16.msra.mxu0 %v7534
    %7580 = vmatprep.subr.bf16.mxu0 0
    %7581 = vmatpush1.bf16.msra.mxu0 %v7535
    %7582 = vmatprep.subr.bf16.mxu0 0
    %7583 = vmatpush1.bf16.msra.mxu0 %v7536
    %7584 = vmatprep.subr.bf16.mxu0 0
    %7585 = vmatpush1.bf16.msra.mxu0 %v7537
    %7586 = vmatprep.mubr.bf16.mxu0 %v7418
    %7587 = vmatmul.mubr.bf16.gmra.mrb[0].mxu0 %v7417
    %v7588 = vpop.f32.mrb[0].mxu0
    %v7589 = vadd.f32 %v7456, %v7588
    %v7590 = vpop.f32.mrb[0].mxu0
    %v7591 = vpop.f32.mrb[0].mxu0
    %v7592 = vpop.f32.mrb[0].mxu0
    %7593 = vdwg.mxu0
    %vm7594 = vcmask 74752
    %7595 = vst.msk [vmem:[#allocation10] sm:$0x3] %vm7594, %v7589
    // Predicated region
    $region46: #{cnn_forward.1} parent=1 // pred_check
      _
    $region47: #{cnn_forward.1} parent=1 // pred_check_branch
      %7597 = sbr.rel (0) target = $region49
    $region48: #{cnn_forward.1} parent=1 // pred_region
      %s7599 = ssub.s32 32, 32
      %7600 = vsyncadd [#allocation11], %s7599
      %s7602 = sshll.u32 [#allocation10], 4
      %s7603 = int_to_ptr.vmem [resolvable:$true] %s7602
      %7605 = dma.vmem_to_hbm [thread:$0]  %s7603, 32, %s11, [#allocation11]
    $region49: #{cnn_forward.1} parent=1 // pred_fallthru
      _
    // Predicated region
    $region50: #{cnn_forward.1} parent=1 // pred_check
      _
    $region51: #{cnn_forward.1} parent=1 // pred_check_branch
      %7607 = sbr.rel (0) target = $region53
    $region52: #{cnn_forward.1} parent=1 // pred_region
      %7608 = dma.done [#allocation11], 32
    $region53: #{cnn_forward.1} parent=1 // pred_fallthru
      _
    %7609 = vsyncpa [#allocation11], 1

</llo_original>
